<compile_context>
chip_gen: v7x
topology: tpu7x:2x2x1
jax: 0.10.0
libtpu: 0.0.40
codegen_flags: <defaults>
</compile_context>

<pallas_src>
import jax
import jax.numpy as jnp
from jax.experimental import pallas as pl
from jax.experimental.pallas import tpu as pltpu

# ----------------------------- model config ---------------------------------
N_R = 4
N_T = 8
T = 8
FILT = 3
NUM_CH = 8
H_OUT = N_R - FILT + 1              # 2
W_OUT = T - FILT + 1                # 6
N_SPATIAL = H_OUT * W_OUT           # 12
PATCH_FEAT = 2 * FILT * FILT        # 18
IM2COL_K = N_SPATIAL * PATCH_FEAT   # 216
CONV_FEAT = NUM_CH * N_SPATIAL      # 96
HIDDEN = 1024
OUT_DIM = 2 * N_R * N_T + 2         # 66
OUT_PAD = 128                       # lane-dense output width
TILE_B = 256                        # batch tile (M dim for the MXU)


# ------------------------------ Pallas kernel --------------------------------
def _cnn_mlp_kernel(patches_ref, wc_ref, bc_ref,
                    w1_ref, b1_ref, w2_ref, b2_ref, w3_ref, b3_ref,
                    out_ref):
    # conv + flatten fused: (TB, 216) @ (216, 96) -> (TB, 96), columns already
    # in PyTorch channel-major flatten order.  bf16 inputs, f32 accumulation.
    flat = jnp.tanh(
        jnp.dot(patches_ref[...], wc_ref[...],
                preferred_element_type=jnp.float32) + bc_ref[...])
    h1 = jnp.tanh(
        jnp.dot(flat.astype(jnp.bfloat16), w1_ref[...],
                preferred_element_type=jnp.float32) + b1_ref[...])
    h2 = jnp.tanh(
        jnp.dot(h1.astype(jnp.bfloat16), w2_ref[...],
                preferred_element_type=jnp.float32) + b2_ref[...])
    out_ref[...] = (
        jnp.dot(h2.astype(jnp.bfloat16), w3_ref[...],
                preferred_element_type=jnp.float32) + b3_ref[...])


# ------------------------------ glue / wrapper --------------------------------
def _extract_patches(x):
    """x: (N, 2, H, W) -> (N, 216).  Column index = s*18 + j with
    s = h*W_OUT + w (spatial) and j = c_in*9 + kh*3 + kw (OIHW conv order)."""
    n = x.shape[0]
    slabs = [x[:, :, dh:dh + H_OUT, dw:dw + W_OUT]
             for dh in range(FILT) for dw in range(FILT)]   # each (N, 2, Ho, Wo)
    pats = jnp.stack(slabs, axis=2)                          # (N, 2, 9, Ho, Wo)
    pats = pats.reshape(n, PATCH_FEAT, H_OUT, W_OUT)         # (N, 18, Ho, Wo)
    pats = pats.transpose(0, 2, 3, 1)                        # (N, Ho, Wo, 18)
    return pats.reshape(n, IM2COL_K)


def init_params(key):
    """Deterministic synthetic parameters matching the PyTorch shapes."""
    ks = jax.random.split(key, 8)

    def u(k, shape, fan_in):
        bound = 1.0 / jnp.sqrt(fan_in)
        return jax.random.uniform(k, shape, jnp.float32, -bound, bound)

    conv_w = u(ks[0], (NUM_CH, 2, FILT, FILT), 2 * FILT * FILT)  # (C_out, C_in, K, K)
    conv_b = u(ks[1], (NUM_CH,), 2 * FILT * FILT)
    fc1_w = u(ks[2], (HIDDEN, CONV_FEAT), CONV_FEAT)             # PyTorch (out, in)
    fc1_b = u(ks[3], (HIDDEN,), CONV_FEAT)
    fc2_w = u(ks[4], (HIDDEN, HIDDEN), HIDDEN)
    fc2_b = u(ks[5], (HIDDEN,), HIDDEN)
    fc3_w = u(ks[6], (OUT_DIM, HIDDEN), HIDDEN)
    fc3_b = u(ks[7], (OUT_DIM,), HIDDEN)
    return dict(conv_w=conv_w, conv_b=conv_b, fc1_w=fc1_w, fc1_b=fc1_b,
                fc2_w=fc2_w, fc2_b=fc2_b, fc3_w=fc3_w, fc3_b=fc3_b)


def prepare_params(p):
    """ONE-TIME re-layout of PyTorch-shaped params into kernel operands.
    Call outside the jitted forward and reuse across calls (hoisted prep)."""
    # Block-diagonal im2col conv weight (216, 96): output column f = c*S + s
    # (PyTorch channel-major flatten), so fc1 needs no column permutation.
    wc_mat = p["conv_w"].reshape(NUM_CH, PATCH_FEAT).T            # (18, 8)
    eye_s = jnp.eye(N_SPATIAL, dtype=jnp.float32)
    wc_big = (wc_mat[None, :, :, None] * eye_s[:, None, None, :]
              ).reshape(IM2COL_K, CONV_FEAT)                      # (216, 96)
    bc_big = jnp.repeat(p["conv_b"], N_SPATIAL).reshape(1, CONV_FEAT)

    w1 = p["fc1_w"].T                                             # (96, 1024)
    b1 = p["fc1_b"].reshape(1, HIDDEN)
    w2 = p["fc2_w"].T                                             # (1024, 1024)
    b2 = p["fc2_b"].reshape(1, HIDDEN)
    # Pad fc3 to 128 output lanes for lane-dense stores; sliced after kernel.
    w3 = jnp.zeros((HIDDEN, OUT_PAD), jnp.float32).at[:, :OUT_DIM].set(p["fc3_w"].T)
    b3 = jnp.zeros((1, OUT_PAD), jnp.float32).at[:, :OUT_DIM].set(p["fc3_b"])

    bf = jnp.bfloat16
    return (wc_big.astype(bf), bc_big,
            w1.astype(bf), b1,
            w2.astype(bf), b2,
            w3.astype(bf), b3)


@jax.jit
def forward(x, kparams):
    wc, bc, w1, b1, w2, b2, w3, b3 = kparams
    n = x.shape[0]
    n_pad = ((n + TILE_B - 1) // TILE_B) * TILE_B
    patches = _extract_patches(x).astype(jnp.bfloat16)
    patches = jnp.pad(patches, ((0, n_pad - n), (0, 0)))

    def wmap(shape):
        # Constant index_map: weight block is VMEM-resident across grid steps.
        return pl.BlockSpec(shape, lambda i: (0, 0))

    out = pl.pallas_call(
        _cnn_mlp_kernel,
        out_shape=jax.ShapeDtypeStruct((n_pad, OUT_PAD), jnp.float32),
        grid=(n_pad // TILE_B,),
        in_specs=[
            pl.BlockSpec((TILE_B, IM2COL_K), lambda i: (i, 0)),   # patches
            wmap((IM2COL_K, CONV_FEAT)),                          # conv weight
            wmap((1, CONV_FEAT)),                                 # conv bias
            wmap((CONV_FEAT, HIDDEN)),                            # fc1 weight
            wmap((1, HIDDEN)),                                    # fc1 bias
            wmap((HIDDEN, HIDDEN)),                               # fc2 weight
            wmap((1, HIDDEN)),                                    # fc2 bias
            wmap((HIDDEN, OUT_PAD)),                              # fc3 weight (padded)
            wmap((1, OUT_PAD)),                                   # fc3 bias (padded)
        ],
        out_specs=pl.BlockSpec((TILE_B, OUT_PAD), lambda i: (i, 0)),
        compiler_params=pltpu.CompilerParams(
            dimension_semantics=("parallel",),
            vmem_limit_bytes=32 << 20),
    )(patches, wc, bc, w1, b1, w2, b2, w3, b3)
    return out[:n, :OUT_DIM]


def forward_reference(x, p):
    """Pure-JAX f32 reference reproducing the PyTorch forward exactly."""
    conv = jax.lax.conv_general_dilated(
        x, p["conv_w"], window_strides=(1, 1), padding="VALID",
        dimension_numbers=("NCHW", "OIHW", "NCHW"))
    conv = jnp.tanh(conv + p["conv_b"][None, :, None, None])
    flat = conv.reshape(x.shape[0], -1)                      # channel-major flatten
    h1 = jnp.tanh(flat @ p["fc1_w"].T + p["fc1_b"])
    h2 = jnp.tanh(h1 @ p["fc2_w"].T + p["fc2_b"])
    return h2 @ p["fc3_w"].T + p["fc3_b"]


if __name__ == "__main__":
    key = jax.random.PRNGKey(0)
    k_x, k_p = jax.random.split(key)
    batch = 2
    x = jax.random.normal(k_x, (batch, 2, N_R, T), jnp.float32)   # NCHW
    params = init_params(k_p)
    kparams = prepare_params(params)      # hoisted one-time weight prep

    out = forward(x, kparams)
    out = jax.block_until_ready(out)
    assert out.shape == (batch, OUT_DIM)

    ref = forward_reference(x, params)
    err = float(jnp.max(jnp.abs(out - ref)))
    # Tolerance accounts for bf16 weights / bf16 activation casts vs f32 ref.
    if err > 5e-2:
        raise AssertionError(f"kernel mismatch vs reference, max abs err={err}")

    print("KERNEL_OK")
</pallas_src>

<mosaic_0001>
module attributes {stable_mosaic.version = 11 : i64} {
  func.func @_cnn_mlp_kernel(%arg0: i32, %arg1: memref<256x216xbf16, #tpu.memory_space<vmem>>, %arg2: memref<216x96xbf16, #tpu.memory_space<vmem>>, %arg3: memref<1x96xf32, #tpu.memory_space<vmem>>, %arg4: memref<96x1024xbf16, #tpu.memory_space<vmem>>, %arg5: memref<1x1024xf32, #tpu.memory_space<vmem>>, %arg6: memref<1024x1024xbf16, #tpu.memory_space<vmem>>, %arg7: memref<1x1024xf32, #tpu.memory_space<vmem>>, %arg8: memref<1024x128xbf16, #tpu.memory_space<vmem>>, %arg9: memref<1x128xf32, #tpu.memory_space<vmem>>, %arg10: memref<256x128xf32, #tpu.memory_space<vmem>>) attributes {dimension_semantics = [#tpu.dimension_semantics<parallel>], iteration_bounds = array<i64: 1>, scalar_prefetch = 0 : i64, scratch_operands = 0 : i64, tpu.core_type = #tpu.core_type<tc>, window_params = [{transform_indices = @transform_0, window_bounds = array<i64: 256, 216>}, {pipeline_mode = #tpu.pipeline_mode<synchronous>, transform_indices = @transform_1, window_bounds = array<i64: 216, 96>}, {pipeline_mode = #tpu.pipeline_mode<synchronous>, transform_indices = @transform_2, window_bounds = array<i64: 1, 96>}, {pipeline_mode = #tpu.pipeline_mode<synchronous>, transform_indices = @transform_3, window_bounds = array<i64: 96, 1024>}, {pipeline_mode = #tpu.pipeline_mode<synchronous>, transform_indices = @transform_4, window_bounds = array<i64: 1, 1024>}, {pipeline_mode = #tpu.pipeline_mode<synchronous>, transform_indices = @transform_5, window_bounds = array<i64: 1024, 1024>}, {pipeline_mode = #tpu.pipeline_mode<synchronous>, transform_indices = @transform_6, window_bounds = array<i64: 1, 1024>}, {pipeline_mode = #tpu.pipeline_mode<synchronous>, transform_indices = @transform_7, window_bounds = array<i64: 1024, 128>}, {pipeline_mode = #tpu.pipeline_mode<synchronous>, transform_indices = @transform_8, window_bounds = array<i64: 1, 128>}, {transform_indices = @transform_9, window_bounds = array<i64: 256, 128>}]} {
    %c0 = arith.constant 0 : index
    %c0_0 = arith.constant 0 : index
    %0 = vector.load %arg1[%c0, %c0_0] : memref<256x216xbf16, #tpu.memory_space<vmem>>, vector<256x216xbf16>
    %c0_1 = arith.constant 0 : index
    %c0_2 = arith.constant 0 : index
    %1 = vector.load %arg2[%c0_1, %c0_2] : memref<216x96xbf16, #tpu.memory_space<vmem>>, vector<216x96xbf16>
    %cst = arith.constant dense<0.000000e+00> : vector<256x96xf32>
    %2 = tpu.matmul %0, %1, %cst {dimension_numbers = #tpu.dot_dimension_numbers<[1], [0], [0], [1], [0, 0, 1, 1], [], []>} : vector<256x216xbf16>, vector<216x96xbf16>, vector<256x96xf32> -> vector<256x96xf32>
    %c0_3 = arith.constant 0 : index
    %c0_4 = arith.constant 0 : index
    %3 = vector.load %arg3[%c0_3, %c0_4] : memref<1x96xf32, #tpu.memory_space<vmem>>, vector<1x96xf32>
    %4 = vector.broadcast %3 : vector<1x96xf32> to vector<256x96xf32>
    %5 = arith.addf %2, %4 : vector<256x96xf32>
    %6 = math.tanh %5 : vector<256x96xf32>
    %7 = arith.truncf %6 : vector<256x96xf32> to vector<256x96xbf16>
    %c0_5 = arith.constant 0 : index
    %c0_6 = arith.constant 0 : index
    %8 = vector.load %arg4[%c0_5, %c0_6] : memref<96x1024xbf16, #tpu.memory_space<vmem>>, vector<96x1024xbf16>
    %cst_7 = arith.constant dense<0.000000e+00> : vector<256x1024xf32>
    %9 = tpu.matmul %7, %8, %cst_7 {dimension_numbers = #tpu.dot_dimension_numbers<[1], [0], [0], [1], [0, 0, 1, 1], [], []>} : vector<256x96xbf16>, vector<96x1024xbf16>, vector<256x1024xf32> -> vector<256x1024xf32>
    %c0_8 = arith.constant 0 : index
    %c0_9 = arith.constant 0 : index
    %10 = vector.load %arg5[%c0_8, %c0_9] : memref<1x1024xf32, #tpu.memory_space<vmem>>, vector<1x1024xf32>
    %11 = vector.broadcast %10 : vector<1x1024xf32> to vector<256x1024xf32>
    %12 = arith.addf %9, %11 : vector<256x1024xf32>
    %13 = math.tanh %12 : vector<256x1024xf32>
    %14 = arith.truncf %13 : vector<256x1024xf32> to vector<256x1024xbf16>
    %c0_10 = arith.constant 0 : index
    %c0_11 = arith.constant 0 : index
    %15 = vector.load %arg6[%c0_10, %c0_11] : memref<1024x1024xbf16, #tpu.memory_space<vmem>>, vector<1024x1024xbf16>
    %cst_12 = arith.constant dense<0.000000e+00> : vector<256x1024xf32>
    %16 = tpu.matmul %14, %15, %cst_12 {dimension_numbers = #tpu.dot_dimension_numbers<[1], [0], [0], [1], [0, 0, 1, 1], [], []>} : vector<256x1024xbf16>, vector<1024x1024xbf16>, vector<256x1024xf32> -> vector<256x1024xf32>
    %c0_13 = arith.constant 0 : index
    %c0_14 = arith.constant 0 : index
    %17 = vector.load %arg7[%c0_13, %c0_14] : memref<1x1024xf32, #tpu.memory_space<vmem>>, vector<1x1024xf32>
    %18 = vector.broadcast %17 : vector<1x1024xf32> to vector<256x1024xf32>
    %19 = arith.addf %16, %18 : vector<256x1024xf32>
    %20 = math.tanh %19 : vector<256x1024xf32>
    %21 = arith.truncf %20 : vector<256x1024xf32> to vector<256x1024xbf16>
    %c0_15 = arith.constant 0 : index
    %c0_16 = arith.constant 0 : index
    %22 = vector.load %arg8[%c0_15, %c0_16] : memref<1024x128xbf16, #tpu.memory_space<vmem>>, vector<1024x128xbf16>
    %cst_17 = arith.constant dense<0.000000e+00> : vector<256x128xf32>
    %23 = tpu.matmul %21, %22, %cst_17 {dimension_numbers = #tpu.dot_dimension_numbers<[1], [0], [0], [1], [0, 0, 1, 1], [], []>} : vector<256x1024xbf16>, vector<1024x128xbf16>, vector<256x128xf32> -> vector<256x128xf32>
    %c0_18 = arith.constant 0 : index
    %c0_19 = arith.constant 0 : index
    %24 = vector.load %arg9[%c0_18, %c0_19] : memref<1x128xf32, #tpu.memory_space<vmem>>, vector<1x128xf32>
    %25 = vector.broadcast %24 : vector<1x128xf32> to vector<256x128xf32>
    %26 = arith.addf %23, %25 : vector<256x128xf32>
    %c0_20 = arith.constant 0 : index
    %c0_21 = arith.constant 0 : index
    %27 = vector.load %arg10[%c0_20, %c0_21] : memref<256x128xf32, #tpu.memory_space<vmem>>, vector<256x128xf32>
    tpu.vector_store %arg10[%c0_20, %c0_21], %26 {strides = array<i32>} : memref<256x128xf32, #tpu.memory_space<vmem>>, vector<256x128xf32>,
    return
  }
  func.func @transform_0(%arg0: i32) -> (i32, i32) {
    %c0_i32 = arith.constant 0 : i32
    %c0_i32_0 = arith.constant 0 : i32
    return %arg0, %c0_i32 : i32, i32
  }
  func.func @transform_1(%arg0: i32) -> (i32, i32) {
    %c0_i32 = arith.constant 0 : i32
    %c0_i32_0 = arith.constant 0 : i32
    %c0_i32_1 = arith.constant 0 : i32
    return %c0_i32, %c0_i32_0 : i32, i32
  }
  func.func @transform_2(%arg0: i32) -> (i32, i32) {
    %c0_i32 = arith.constant 0 : i32
    %c0_i32_0 = arith.constant 0 : i32
    %c0_i32_1 = arith.constant 0 : i32
    return %c0_i32, %c0_i32_0 : i32, i32
  }
  func.func @transform_3(%arg0: i32) -> (i32, i32) {
    %c0_i32 = arith.constant 0 : i32
    %c0_i32_0 = arith.constant 0 : i32
    %c0_i32_1 = arith.constant 0 : i32
    return %c0_i32, %c0_i32_0 : i32, i32
  }
  func.func @transform_4(%arg0: i32) -> (i32, i32) {
    %c0_i32 = arith.constant 0 : i32
    %c0_i32_0 = arith.constant 0 : i32
    %c0_i32_1 = arith.constant 0 : i32
    return %c0_i32, %c0_i32_0 : i32, i32
  }
  func.func @transform_5(%arg0: i32) -> (i32, i32) {
    %c0_i32 = arith.constant 0 : i32
    %c0_i32_0 = arith.constant 0 : i32
    %c0_i32_1 = arith.constant 0 : i32
    return %c0_i32, %c0_i32_0 : i32, i32
  }
  func.func @transform_6(%arg0: i32) -> (i32, i32) {
    %c0_i32 = arith.constant 0 : i32
    %c0_i32_0 = arith.constant 0 : i32
    %c0_i32_1 = arith.constant 0 : i32
    return %c0_i32, %c0_i32_0 : i32, i32
  }
  func.func @transform_7(%arg0: i32) -> (i32, i32) {
    %c0_i32 = arith.constant 0 : i32
    %c0_i32_0 = arith.constant 0 : i32
    %c0_i32_1 = arith.constant 0 : i32
    return %c0_i32, %c0_i32_0 : i32, i32
  }
  func.func @transform_8(%arg0: i32) -> (i32, i32) {
    %c0_i32 = arith.constant 0 : i32
    %c0_i32_0 = arith.constant 0 : i32
    %c0_i32_1 = arith.constant 0 : i32
    return %c0_i32, %c0_i32_0 : i32, i32
  }
  func.func @transform_9(%arg0: i32) -> (i32, i32) {
    %c0_i32 = arith.constant 0 : i32
    %c0_i32_0 = arith.constant 0 : i32
    return %arg0, %c0_i32 : i32, i32
  }
}

</mosaic_0001>

<llo_original>
// kernel: forward.1
$region0: #{forward.1}
  #allocation0 [shape = 'u32[]', space=smem, size = 0x4, offset = 0x4, fixed_abs, tag = 'smem constant byte address 0x4 - core index']
  #allocation1 [shape = 'u32[144,128]{1,0:T(1,128)}', space=vmem, size = 0x12000, scoped, tag = 'internal scratch']
  %s0 = inlined_call_operand.vmem [shape: bf16[256,216], index: 0, kind: input, shape index: {}]
  %s1 = inlined_call_operand.vmem [shape: bf16[216,96], index: 1, kind: input, shape index: {}]
  %s2 = inlined_call_operand.hbm [shape: f32[1,96], index: 2, kind: input, shape index: {}]
  %s3 = inlined_call_operand.hbm [shape: bf16[96,1024], index: 3, kind: input, shape index: {}]
  %s4 = inlined_call_operand.hbm [shape: f32[1,1024], index: 4, kind: input, shape index: {}]
  %s5 = inlined_call_operand.hbm [shape: bf16[1024,1024], index: 5, kind: input, shape index: {}]
  %s6 = inlined_call_operand.hbm [shape: f32[1,1024], index: 6, kind: input, shape index: {}]
  %s7 = inlined_call_operand.hbm [shape: bf16[1024,128], index: 7, kind: input, shape index: {}]
  %s8 = inlined_call_operand.hbm [shape: f32[1,128], index: 8, kind: input, shape index: {}]
  %s9 = inlined_call_operand.vmem [shape: f32[256,128], index: 9, kind: output, shape index: {}]
  %s10 = sld [smem:[#allocation0]]
  $region74: #{forward.1} parent=0
    _
  %s12 = ssub.s32 1, %s10
  %s13 = scalar_select 0, %s12, %s10
  $region1: #{forward.1} parent=0
    #allocation2 [shape = 'u8[512]{0}', space=vmem, size = 0x400, scoped, tag = 'input window, operand 2, single buffered']
    #allocation3 [shape = 's32[1]{0}', space=sflag, size = 0x4, scoped, tag = 'scoped memory for forward.1']
    #allocation4 [shape = 'u8[196608]{0}', space=vmem, size = 0x30000, scoped, tag = 'input window, operand 3, single buffered']
    #allocation5 [shape = 's32[1]{0}', space=sflag, size = 0x4, scoped, tag = 'scoped memory for forward.1']
    #allocation6 [shape = 'u8[4096]{0}', space=vmem, size = 0x1000, scoped, tag = 'input window, operand 4, single buffered']
    #allocation7 [shape = 'u8[2097152]{0}', space=vmem, size = 0x200000, scoped, tag = 'input window, operand 5, single buffered']
    #allocation8 [shape = 's32[1]{0}', space=sflag, size = 0x4, scoped, tag = 'scoped memory for forward.1']
    #allocation9 [shape = 'u8[4096]{0}', space=vmem, size = 0x1000, scoped, tag = 'input window, operand 6, single buffered']
    #allocation10 [shape = 'u8[262144]{0}', space=vmem, size = 0x40000, scoped, tag = 'input window, operand 7, single buffered']
    #allocation11 [shape = 's32[1]{0}', space=sflag, size = 0x4, scoped, tag = 'scoped memory for forward.1']
    #allocation12 [shape = 'u8[512]{0}', space=vmem, size = 0x400, scoped, tag = 'input window, operand 8, single buffered']
    %14 = vsyncpa [#allocation3], 0
    %15 = vsyncpa [#allocation5], 0
    %16 = vsyncpa [#allocation8], 0
    %17 = vsyncpa [#allocation11], 0
    // Predicated region
    $region2: #{forward.1} parent=1 // pred_check
      _
    $region3: #{forward.1} parent=1 // pred_check_branch
      %19 = sbr.rel (0) target = $region5
    $region4: #{forward.1} parent=1 // pred_region
      _
    $region5: #{forward.1} parent=1 // pred_fallthru
      _
    // Predicated region
    $region6: #{forward.1} parent=1 // pred_check
      _
    $region7: #{forward.1} parent=1 // pred_check_branch
      %21 = sbr.rel (0) target = $region9
    $region8: #{forward.1} parent=1 // pred_region
      _
    $region9: #{forward.1} parent=1 // pred_fallthru
      _
    // Predicated region
    $region10: #{forward.1} parent=1 // pred_check
      _
    $region11: #{forward.1} parent=1 // pred_check_branch
      %23 = sbr.rel (0) target = $region13
    $region12: #{forward.1} parent=1 // pred_region
      %s25 = ssub.s32 16, 16
      %26 = vsyncadd [#allocation3], %s25
      %s28 = sshll.u32 [#allocation2], 4
      %s29 = int_to_ptr.vmem [resolvable:$true] %s28
      %31 = dma.hbm_to_vmem [thread:$0]  %s2, 16, %s29, [#allocation3]
    $region13: #{forward.1} parent=1 // pred_fallthru
      _
    // Predicated region
    $region14: #{forward.1} parent=1 // pred_check
      _
    $region15: #{forward.1} parent=1 // pred_check_branch
      %33 = sbr.rel (0) target = $region17
    $region16: #{forward.1} parent=1 // pred_region
      %s35 = ssub.s32 6144, 6144
      %36 = vsyncadd [#allocation5], %s35
      %s37 = sshll.u32 [#allocation4], 4
      %s38 = int_to_ptr.vmem [resolvable:$true] %s37
      %43 = dma.hbm_to_vmem [thread:$0]  %s3, 6144, %s38, [#allocation5], 512, 512, 32
    $region17: #{forward.1} parent=1 // pred_fallthru
      _
    // Predicated region
    $region18: #{forward.1} parent=1 // pred_check
      _
    $region19: #{forward.1} parent=1 // pred_check_branch
      %45 = sbr.rel (0) target = $region21
    $region20: #{forward.1} parent=1 // pred_region
      %s47 = ssub.s32 128, 128
      %48 = vsyncadd [#allocation5], %s47
      %s50 = sshll.u32 [#allocation6], 4
      %s51 = int_to_ptr.vmem [resolvable:$true] %s50
      %53 = dma.hbm_to_vmem [thread:$0]  %s4, 128, %s51, [#allocation5]
    $region21: #{forward.1} parent=1 // pred_fallthru
      _
    // Predicated region
    $region22: #{forward.1} parent=1 // pred_check
      _
    $region23: #{forward.1} parent=1 // pred_check_branch
      %55 = sbr.rel (0) target = $region25
    $region24: #{forward.1} parent=1 // pred_region
      %s57 = ssub.s32 65536, 65536
      %58 = vsyncadd [#allocation8], %s57
      %s59 = sshll.u32 [#allocation7], 4
      %s60 = int_to_ptr.vmem [resolvable:$true] %s59
      %65 = dma.hbm_to_vmem [thread:$0]  %s5, 65536, %s60, [#allocation8], 512, 512, 32
    $region25: #{forward.1} parent=1 // pred_fallthru
      _
    // Predicated region
    $region26: #{forward.1} parent=1 // pred_check
      _
    $region27: #{forward.1} parent=1 // pred_check_branch
      %67 = sbr.rel (0) target = $region29
    $region28: #{forward.1} parent=1 // pred_region
      %s69 = ssub.s32 128, 128
      %70 = vsyncadd [#allocation8], %s69
      %s72 = sshll.u32 [#allocation9], 4
      %s73 = int_to_ptr.vmem [resolvable:$true] %s72
      %75 = dma.hbm_to_vmem [thread:$0]  %s6, 128, %s73, [#allocation8]
    $region29: #{forward.1} parent=1 // pred_fallthru
      _
    // Predicated region
    $region30: #{forward.1} parent=1 // pred_check
      _
    $region31: #{forward.1} parent=1 // pred_check_branch
      %77 = sbr.rel (0) target = $region33
    $region32: #{forward.1} parent=1 // pred_region
      %s79 = ssub.s32 8192, 8192
      %80 = vsyncadd [#allocation11], %s79
      %s81 = sshll.u32 [#allocation10], 4
      %s82 = int_to_ptr.vmem [resolvable:$true] %s81
      %87 = dma.hbm_to_vmem [thread:$0]  %s7, 8192, %s82, [#allocation11], 64, 64, 4
    $region33: #{forward.1} parent=1 // pred_fallthru
      _
    // Predicated region
    $region34: #{forward.1} parent=1 // pred_check
      _
    $region35: #{forward.1} parent=1 // pred_check_branch
      %89 = sbr.rel (0) target = $region37
    $region36: #{forward.1} parent=1 // pred_region
      %s91 = ssub.s32 16, 16
      %92 = vsyncadd [#allocation11], %s91
      %s94 = sshll.u32 [#allocation12], 4
      %s95 = int_to_ptr.vmem [resolvable:$true] %s94
      %97 = dma.hbm_to_vmem [thread:$0]  %s8, 16, %s95, [#allocation11]
    $region37: #{forward.1} parent=1 // pred_fallthru
      _
    // Predicated region
    $region38: #{forward.1} parent=1 // pred_check
      _
    $region39: #{forward.1} parent=1 // pred_check_branch
      %99 = sbr.rel (0) target = $region41
    $region40: #{forward.1} parent=1 // pred_region
      %100 = dma.done [#allocation3], 16
    $region41: #{forward.1} parent=1 // pred_fallthru
      _
    // Predicated region
    $region42: #{forward.1} parent=1 // pred_check
      _
    $region43: #{forward.1} parent=1 // pred_check_branch
      %102 = sbr.rel (0) target = $region45
    $region44: #{forward.1} parent=1 // pred_region
      %103 = dma.done [#allocation5], 6144
    $region45: #{forward.1} parent=1 // pred_fallthru
      _
    // Predicated region
    $region46: #{forward.1} parent=1 // pred_check
      _
    $region47: #{forward.1} parent=1 // pred_check_branch
      %105 = sbr.rel (0) target = $region49
    $region48: #{forward.1} parent=1 // pred_region
      %106 = dma.done [#allocation5], 128
    $region49: #{forward.1} parent=1 // pred_fallthru
      _
    // Predicated region
    $region50: #{forward.1} parent=1 // pred_check
      _
    $region51: #{forward.1} parent=1 // pred_check_branch
      %108 = sbr.rel (0) target = $region53
    $region52: #{forward.1} parent=1 // pred_region
      %109 = dma.done [#allocation8], 65536
    $region53: #{forward.1} parent=1 // pred_fallthru
      _
    // Predicated region
    $region54: #{forward.1} parent=1 // pred_check
      _
    $region55: #{forward.1} parent=1 // pred_check_branch
      %111 = sbr.rel (0) target = $region57
    $region56: #{forward.1} parent=1 // pred_region
      %112 = dma.done [#allocation8], 128
    $region57: #{forward.1} parent=1 // pred_fallthru
      _
    // Predicated region
    $region58: #{forward.1} parent=1 // pred_check
      _
    $region59: #{forward.1} parent=1 // pred_check_branch
      %114 = sbr.rel (0) target = $region61
    $region60: #{forward.1} parent=1 // pred_region
      %115 = dma.done [#allocation11], 8192
    $region61: #{forward.1} parent=1 // pred_fallthru
      _
    // Predicated region
    $region62: #{forward.1} parent=1 // pred_check
      _
    $region63: #{forward.1} parent=1 // pred_check_branch
      %117 = sbr.rel (0) target = $region65
    $region64: #{forward.1} parent=1 // pred_region
      %118 = dma.done [#allocation11], 16
    $region65: #{forward.1} parent=1 // pred_fallthru
      _
    %v120 = vld [vmem:[%s0] sm:$0xff]
    %v121 = vld [vmem:[%s0 + $0x8] sm:$0xff]
    %v122 = vld [vmem:[%s0 + $0x10] sm:$0xff]
    %v123 = vld [vmem:[%s0 + $0x18] sm:$0xff]
    %v124 = vld [vmem:[%s0 + $0x20] sm:$0xff]
    %v125 = vld [vmem:[%s0 + $0x28] sm:$0xff]
    %v126 = vld [vmem:[%s0 + $0x30] sm:$0xff]
    %v127 = vld [vmem:[%s0 + $0x38] sm:$0xff]
    %v128 = vld [vmem:[%s0 + $0x40] sm:$0xff]
    %v129 = vld [vmem:[%s0 + $0x48] sm:$0xff]
    %v130 = vld [vmem:[%s0 + $0x50] sm:$0xff]
    %v131 = vld [vmem:[%s0 + $0x58] sm:$0xff]
    %v132 = vld [vmem:[%s0 + $0x60] sm:$0xff]
    %v133 = vld [vmem:[%s0 + $0x68] sm:$0xff]
    %v134 = vld [vmem:[%s0 + $0x70] sm:$0xff]
    %v135 = vld [vmem:[%s0 + $0x78] sm:$0xff]
    %v136 = vld [vmem:[%s0 + $0x80] sm:$0xff]
    %v137 = vld [vmem:[%s0 + $0x88] sm:$0xff]
    %v138 = vld [vmem:[%s0 + $0x90] sm:$0xff]
    %v139 = vld [vmem:[%s0 + $0x98] sm:$0xff]
    %v140 = vld [vmem:[%s0 + $0xa0] sm:$0xff]
    %v141 = vld [vmem:[%s0 + $0xa8] sm:$0xff]
    %v142 = vld [vmem:[%s0 + $0xb0] sm:$0xff]
    %v143 = vld [vmem:[%s0 + $0xb8] sm:$0xff]
    %v144 = vld [vmem:[%s0 + $0xc0] sm:$0xff]
    %v145 = vld [vmem:[%s0 + $0xc8] sm:$0xff]
    %v146 = vld [vmem:[%s0 + $0xd0] sm:$0xff]
    %v147 = vld [vmem:[%s0 + $0xd8] sm:$0xff]
    %v148 = vld [vmem:[%s0 + $0xe0] sm:$0xff]
    %v149 = vld [vmem:[%s0 + $0xe8] sm:$0xff]
    %v150 = vld [vmem:[%s0 + $0xf0] sm:$0xff]
    %v151 = vld [vmem:[%s0 + $0xf8] sm:$0xff]
    %v152 = vld [vmem:[%s1] sm:$0xf]
    %v153 = vld [vmem:[%s1 + $0x4] sm:$0xf]
    %v154 = vld [vmem:[%s1 + $0x8] sm:$0xf]
    %v155 = vld [vmem:[%s1 + $0xc] sm:$0xf]
    %v156 = vld [vmem:[%s1 + $0x10] sm:$0xf]
    %v157 = vld [vmem:[%s1 + $0x14] sm:$0xf]
    %v158 = vld [vmem:[%s1 + $0x18] sm:$0xf]
    %v159 = vld [vmem:[%s1 + $0x1c] sm:$0xf]
    %v160 = vld [vmem:[%s1 + $0x20] sm:$0xf]
    %v161 = vld [vmem:[%s1 + $0x24] sm:$0xf]
    %v162 = vld [vmem:[%s1 + $0x28] sm:$0xf]
    %v163 = vld [vmem:[%s1 + $0x2c] sm:$0xf]
    %v164 = vld [vmem:[%s1 + $0x30] sm:$0xf]
    %v165 = vld [vmem:[%s1 + $0x34] sm:$0xf]
    %v166 = vld [vmem:[%s1 + $0x38] sm:$0xf]
    %v167 = vld [vmem:[%s1 + $0x3c] sm:$0xf]
    %v168 = vld [vmem:[%s1 + $0x40] sm:$0xf]
    %v169 = vld [vmem:[%s1 + $0x44] sm:$0xf]
    %v170 = vld [vmem:[%s1 + $0x48] sm:$0xf]
    %v171 = vld [vmem:[%s1 + $0x4c] sm:$0xf]
    %v172 = vld [vmem:[%s1 + $0x50] sm:$0xf]
    %v173 = vld [vmem:[%s1 + $0x54] sm:$0xf]
    %v174 = vld [vmem:[%s1 + $0x58] sm:$0xf]
    %v175 = vld [vmem:[%s1 + $0x5c] sm:$0xf]
    %v176 = vld [vmem:[%s1 + $0x60] sm:$0xf]
    %v177 = vld [vmem:[%s1 + $0x64] sm:$0xf]
    %v178 = vld [vmem:[%s1 + $0x68] sm:$0xf]
    %v179 = vld [vmem:[#allocation2] sm:$0x1]
    %v181 = vlaneseq
    %v182 = vshrl.u32 %v181, 7
    %v183 = vsub.s32 0, %v182
    %v184 = vrot.slane %v179, %v183
    %v218 = vunpack.c.l.b16 %v120
    %v219 = vunpack.c.h.b16 %v120
    %v220 = vunpack.c.l.b16 %v121
    %v221 = vunpack.c.h.b16 %v121
    %v222 = vunpack.c.l.b16 %v122
    %v223 = vunpack.c.h.b16 %v122
    %v224 = vunpack.c.l.b16 %v123
    %v225 = vunpack.c.h.b16 %v123
    %v226 = vunpack.c.l.b16 %v124
    %v227 = vunpack.c.h.b16 %v124
    %v228 = vunpack.c.l.b16 %v125
    %v229 = vunpack.c.h.b16 %v125
    %v230 = vunpack.c.l.b16 %v126
    %v231 = vunpack.c.h.b16 %v126
    %v232 = vunpack.c.l.b16 %v127
    %v233 = vunpack.c.h.b16 %v127
    %v234 = vunpack.c.l.b16 %v128
    %v235 = vunpack.c.h.b16 %v128
    %v236 = vunpack.c.l.b16 %v129
    %v237 = vunpack.c.h.b16 %v129
    %v238 = vunpack.c.l.b16 %v130
    %v239 = vunpack.c.h.b16 %v130
    %v240 = vunpack.c.l.b16 %v131
    %v241 = vunpack.c.h.b16 %v131
    %v242 = vunpack.c.l.b16 %v132
    %v243 = vunpack.c.h.b16 %v132
    %v244 = vunpack.c.l.b16 %v133
    %v245 = vunpack.c.h.b16 %v133
    %v246 = vunpack.c.l.b16 %v134
    %v247 = vunpack.c.h.b16 %v134
    %v248 = vunpack.c.l.b16 %v135
    %v249 = vunpack.c.h.b16 %v135
    %v250 = vunpack.c.l.b16 %v136
    %v251 = vunpack.c.h.b16 %v136
    %v252 = vunpack.c.l.b16 %v137
    %v253 = vunpack.c.h.b16 %v137
    %v254 = vunpack.c.l.b16 %v138
    %v255 = vunpack.c.h.b16 %v138
    %v256 = vunpack.c.l.b16 %v139
    %v257 = vunpack.c.h.b16 %v139
    %v258 = vunpack.c.l.b16 %v140
    %v259 = vunpack.c.h.b16 %v140
    %v260 = vunpack.c.l.b16 %v141
    %v261 = vunpack.c.h.b16 %v141
    %v262 = vunpack.c.l.b16 %v142
    %v263 = vunpack.c.h.b16 %v142
    %v264 = vunpack.c.l.b16 %v143
    %v265 = vunpack.c.h.b16 %v143
    %v266 = vunpack.c.l.b16 %v144
    %v267 = vunpack.c.h.b16 %v144
    %v268 = vunpack.c.l.b16 %v145
    %v269 = vunpack.c.h.b16 %v145
    %v270 = vunpack.c.l.b16 %v146
    %v271 = vunpack.c.h.b16 %v146
    %v272 = vunpack.c.l.b16 %v147
    %v273 = vunpack.c.h.b16 %v147
    %v274 = vunpack.c.l.b16 %v148
    %v275 = vunpack.c.h.b16 %v148
    %v276 = vunpack.c.l.b16 %v149
    %v277 = vunpack.c.h.b16 %v149
    %v278 = vunpack.c.l.b16 %v150
    %v279 = vunpack.c.h.b16 %v150
    %v280 = vunpack.c.l.b16 %v151
    %v281 = vunpack.c.h.b16 %v151
    %v282 = vpack.c.b16 %v220, %v218
    %v283 = vpack.c.b16 %v221, %v219
    %v284 = vpack.c.b16 %v224, %v222
    %v285 = vpack.c.b16 %v225, %v223
    %v286 = vpack.c.b16 %v228, %v226
    %v287 = vpack.c.b16 %v229, %v227
    %v288 = vpack.c.b16 %v232, %v230
    %v289 = vpack.c.b16 %v233, %v231
    %v290 = vpack.c.b16 %v236, %v234
    %v291 = vpack.c.b16 %v237, %v235
    %v292 = vpack.c.b16 %v240, %v238
    %v293 = vpack.c.b16 %v241, %v239
    %v294 = vpack.c.b16 %v244, %v242
    %v295 = vpack.c.b16 %v245, %v243
    %v296 = vpack.c.b16 %v248, %v246
    %v297 = vpack.c.b16 %v249, %v247
    %v298 = vpack.c.b16 %v252, %v250
    %v299 = vpack.c.b16 %v253, %v251
    %v300 = vpack.c.b16 %v256, %v254
    %v301 = vpack.c.b16 %v257, %v255
    %v302 = vpack.c.b16 %v260, %v258
    %v303 = vpack.c.b16 %v261, %v259
    %v304 = vpack.c.b16 %v264, %v262
    %v305 = vpack.c.b16 %v265, %v263
    %v306 = vpack.c.b16 %v268, %v266
    %v307 = vpack.c.b16 %v269, %v267
    %v308 = vpack.c.b16 %v272, %v270
    %v309 = vpack.c.b16 %v273, %v271
    %v310 = vpack.c.b16 %v276, %v274
    %v311 = vpack.c.b16 %v277, %v275
    %v312 = vpack.c.b16 %v280, %v278
    %v313 = vpack.c.b16 %v281, %v279
    %v357 = vunpack.c.l.b16 %v152
    %v358 = vunpack.c.l.b16 %v153
    %v359 = vunpack.c.l.b16 %v154
    %v360 = vunpack.c.l.b16 %v155
    %v361 = vunpack.c.l.b16 %v156
    %v362 = vunpack.c.l.b16 %v157
    %v363 = vunpack.c.l.b16 %v158
    %v364 = vunpack.c.l.b16 %v159
    %v365 = vunpack.c.l.b16 %v160
    %v366 = vunpack.c.l.b16 %v161
    %v367 = vunpack.c.l.b16 %v162
    %v368 = vunpack.c.l.b16 %v163
    %v369 = vunpack.c.l.b16 %v164
    %v370 = vunpack.c.l.b16 %v165
    %v371 = vunpack.c.l.b16 %v166
    %v372 = vunpack.c.l.b16 %v167
    %v373 = vunpack.c.l.b16 %v168
    %v374 = vunpack.c.l.b16 %v169
    %v375 = vunpack.c.l.b16 %v170
    %v376 = vunpack.c.l.b16 %v171
    %v377 = vunpack.c.l.b16 %v172
    %v378 = vunpack.c.l.b16 %v173
    %v379 = vunpack.c.l.b16 %v174
    %v380 = vunpack.c.l.b16 %v175
    %v381 = vunpack.c.l.b16 %v176
    %v382 = vunpack.c.l.b16 %v177
    %v383 = vunpack.c.l.b16 %v178
    %v384 = vpack.c.b16 %v358, %v357
    %v385 = vpack.c.b16 %v360, %v359
    %v386 = vpack.c.b16 %v362, %v361
    %v387 = vpack.c.b16 %v364, %v363
    %v388 = vpack.c.b16 %v366, %v365
    %v389 = vpack.c.b16 %v368, %v367
    %v390 = vpack.c.b16 %v370, %v369
    %v391 = vpack.c.b16 %v372, %v371
    %v392 = vpack.c.b16 %v374, %v373
    %v393 = vpack.c.b16 %v376, %v375
    %v394 = vpack.c.b16 %v378, %v377
    %v395 = vpack.c.b16 %v380, %v379
    %v396 = vpack.c.b16 %v382, %v381
    %v397 = vpack.c.b16 %v383, %v383
    %vm411 = vcmask 719872
    %v413 = vsel %vm411, %v283, 0
    %v416 = vsel %vm411, %v285, 0
    %v419 = vsel %vm411, %v287, 0
    %v422 = vsel %vm411, %v289, 0
    %v425 = vsel %vm411, %v291, 0
    %v428 = vsel %vm411, %v293, 0
    %v431 = vsel %vm411, %v295, 0
    %v434 = vsel %vm411, %v297, 0
    %v437 = vsel %vm411, %v299, 0
    %v440 = vsel %vm411, %v301, 0
    %v443 = vsel %vm411, %v303, 0
    %v446 = vsel %vm411, %v305, 0
    %v449 = vsel %vm411, %v307, 0
    %v452 = vsel %vm411, %v309, 0
    %v455 = vsel %vm411, %v311, 0
    %v458 = vsel %vm411, %v313, 0
    %vm460 = vcmask 1043456
    %v462 = vsel %vm460, %v397, 0
    %464 = vmatprep.subr.bf16.mxu0 0
    %465 = vmatpush1.bf16.msra.mxu0 %v384
    %466 = vmatprep.subr.bf16.mxu0 0
    %467 = vmatpush1.bf16.msra.mxu0 %v385
    %468 = vmatprep.subr.bf16.mxu0 0
    %469 = vmatpush1.bf16.msra.mxu0 %v386
    %470 = vmatprep.subr.bf16.mxu0 0
    %471 = vmatpush1.bf16.msra.mxu0 %v387
    %472 = vmatprep.subr.bf16.mxu0 0
    %473 = vmatpush1.bf16.msra.mxu0 %v388
    %474 = vmatprep.subr.bf16.mxu0 0
    %475 = vmatpush1.bf16.msra.mxu0 %v389
    %476 = vmatprep.subr.bf16.mxu0 0
    %477 = vmatpush1.bf16.msra.mxu0 %v390
    %478 = vmatprep.subr.bf16.mxu0 0
    %479 = vmatpush1.bf16.msra.mxu0 %v391
    %480 = vmatprep.subr.bf16.mxu0 0
    %481 = vmatpush1.bf16.msra.mxu0 %v392
    %482 = vmatprep.subr.bf16.mxu0 0
    %483 = vmatpush1.bf16.msra.mxu0 %v393
    %484 = vmatprep.subr.bf16.mxu0 0
    %485 = vmatpush1.bf16.msra.mxu0 %v394
    %486 = vmatprep.subr.bf16.mxu0 0
    %487 = vmatpush1.bf16.msra.mxu0 %v395
    %488 = vmatprep.subr.bf16.mxu0 0
    %489 = vmatpush1.bf16.msra.mxu0 %v396
    %490 = vmatprep.subr.bf16.mxu0 0
    %491 = vmatpush1.bf16.msra.mxu0 %v462
    %492 = vmatprep.subr.bf16.mxu0 0
    %493 = vmatpush1.bf16.msra.mxu0 0
    %494 = vmatprep.subr.bf16.mxu0 0
    %495 = vmatpush1.bf16.msra.mxu0 0
    %496 = vmatprep.mubr.bf16.mxu0 %v413
    %497 = vmatmul.mubr.bf16.gmra.mrb[0].mxu0 %v282
    %v498 = vpop.f32.mrb[0].mxu0
    %v499 = vadd.f32 %v184, %v498
    %v500 = vpop.f32.mrb[0].mxu0
    %v501 = vpop.f32.mrb[0].mxu0
    %v502 = vadd.f32 %v184, %v501
    %v503 = vpop.f32.mrb[0].mxu0
    %504 = vmatprep.mubr.bf16.mxu0 %v416
    %505 = vmatmul.mubr.bf16.gmra.mrb[0].mxu0 %v284
    %v506 = vpop.f32.mrb[0].mxu0
    %v507 = vadd.f32 %v184, %v506
    %v508 = vpop.f32.mrb[0].mxu0
    %v509 = vpop.f32.mrb[0].mxu0
    %v510 = vadd.f32 %v184, %v509
    %v511 = vpop.f32.mrb[0].mxu0
    %512 = vmatprep.mubr.bf16.mxu0 %v419
    %513 = vmatmul.mubr.bf16.gmra.mrb[0].mxu0 %v286
    %v514 = vpop.f32.mrb[0].mxu0
    %v515 = vadd.f32 %v184, %v514
    %v516 = vpop.f32.mrb[0].mxu0
    %v517 = vpop.f32.mrb[0].mxu0
    %v518 = vadd.f32 %v184, %v517
    %v519 = vpop.f32.mrb[0].mxu0
    %520 = vmatprep.mubr.bf16.mxu0 %v422
    %521 = vmatmul.mubr.bf16.gmra.mrb[0].mxu0 %v288
    %v522 = vpop.f32.mrb[0].mxu0
    %v523 = vadd.f32 %v184, %v522
    %v524 = vpop.f32.mrb[0].mxu0
    %v525 = vpop.f32.mrb[0].mxu0
    %v526 = vadd.f32 %v184, %v525
    %v527 = vpop.f32.mrb[0].mxu0
    %528 = vmatprep.mubr.bf16.mxu0 %v425
    %529 = vmatmul.mubr.bf16.gmra.mrb[0].mxu0 %v290
    %v530 = vpop.f32.mrb[0].mxu0
    %v531 = vadd.f32 %v184, %v530
    %v532 = vpop.f32.mrb[0].mxu0
    %v533 = vpop.f32.mrb[0].mxu0
    %v534 = vadd.f32 %v184, %v533
    %v535 = vpop.f32.mrb[0].mxu0
    %536 = vmatprep.mubr.bf16.mxu0 %v428
    %537 = vmatmul.mubr.bf16.gmra.mrb[0].mxu0 %v292
    %v538 = vpop.f32.mrb[0].mxu0
    %v539 = vadd.f32 %v184, %v538
    %v540 = vpop.f32.mrb[0].mxu0
    %v541 = vpop.f32.mrb[0].mxu0
    %v542 = vadd.f32 %v184, %v541
    %v543 = vpop.f32.mrb[0].mxu0
    %544 = vmatprep.mubr.bf16.mxu0 %v431
    %545 = vmatmul.mubr.bf16.gmra.mrb[0].mxu0 %v294
    %v546 = vpop.f32.mrb[0].mxu0
    %v547 = vadd.f32 %v184, %v546
    %v548 = vpop.f32.mrb[0].mxu0
    %v549 = vpop.f32.mrb[0].mxu0
    %v550 = vadd.f32 %v184, %v549
    %v551 = vpop.f32.mrb[0].mxu0
    %552 = vmatprep.mubr.bf16.mxu0 %v434
    %553 = vmatmul.mubr.bf16.gmra.mrb[0].mxu0 %v296
    %v554 = vpop.f32.mrb[0].mxu0
    %v555 = vadd.f32 %v184, %v554
    %v556 = vpop.f32.mrb[0].mxu0
    %v557 = vpop.f32.mrb[0].mxu0
    %v558 = vadd.f32 %v184, %v557
    %v559 = vpop.f32.mrb[0].mxu0
    %560 = vmatprep.mubr.bf16.mxu0 %v437
    %561 = vmatmul.mubr.bf16.gmra.mrb[0].mxu0 %v298
    %v562 = vpop.f32.mrb[0].mxu0
    %v563 = vadd.f32 %v184, %v562
    %v564 = vpop.f32.mrb[0].mxu0
    %v565 = vpop.f32.mrb[0].mxu0
    %v566 = vadd.f32 %v184, %v565
    %v567 = vpop.f32.mrb[0].mxu0
    %568 = vmatprep.mubr.bf16.mxu0 %v440
    %569 = vmatmul.mubr.bf16.gmra.mrb[0].mxu0 %v300
    %v570 = vpop.f32.mrb[0].mxu0
    %v571 = vadd.f32 %v184, %v570
    %v572 = vpop.f32.mrb[0].mxu0
    %v573 = vpop.f32.mrb[0].mxu0
    %v574 = vadd.f32 %v184, %v573
    %v575 = vpop.f32.mrb[0].mxu0
    %576 = vmatprep.mubr.bf16.mxu0 %v443
    %577 = vmatmul.mubr.bf16.gmra.mrb[0].mxu0 %v302
    %v578 = vpop.f32.mrb[0].mxu0
    %v579 = vadd.f32 %v184, %v578
    %v580 = vpop.f32.mrb[0].mxu0
    %v581 = vpop.f32.mrb[0].mxu0
    %v582 = vadd.f32 %v184, %v581
    %v583 = vpop.f32.mrb[0].mxu0
    %584 = vmatprep.mubr.bf16.mxu0 %v446
    %585 = vmatmul.mubr.bf16.gmra.mrb[0].mxu0 %v304
    %v586 = vpop.f32.mrb[0].mxu0
    %v587 = vadd.f32 %v184, %v586
    %v588 = vpop.f32.mrb[0].mxu0
    %v589 = vpop.f32.mrb[0].mxu0
    %v590 = vadd.f32 %v184, %v589
    %v591 = vpop.f32.mrb[0].mxu0
    %592 = vmatprep.mubr.bf16.mxu0 %v449
    %593 = vmatmul.mubr.bf16.gmra.mrb[0].mxu0 %v306
    %v594 = vpop.f32.mrb[0].mxu0
    %v595 = vadd.f32 %v184, %v594
    %v596 = vpop.f32.mrb[0].mxu0
    %v597 = vpop.f32.mrb[0].mxu0
    %v598 = vadd.f32 %v184, %v597
    %v599 = vpop.f32.mrb[0].mxu0
    %600 = vmatprep.mubr.bf16.mxu0 %v452
    %601 = vmatmul.mubr.bf16.gmra.mrb[0].mxu0 %v308
    %v602 = vpop.f32.mrb[0].mxu0
    %v603 = vadd.f32 %v184, %v602
    %v604 = vpop.f32.mrb[0].mxu0
    %v605 = vpop.f32.mrb[0].mxu0
    %v606 = vadd.f32 %v184, %v605
    %v607 = vpop.f32.mrb[0].mxu0
    %608 = vmatprep.mubr.bf16.mxu0 %v455
    %609 = vmatmul.mubr.bf16.gmra.mrb[0].mxu0 %v310
    %v610 = vpop.f32.mrb[0].mxu0
    %v611 = vadd.f32 %v184, %v610
    %v612 = vpop.f32.mrb[0].mxu0
    %v613 = vpop.f32.mrb[0].mxu0
    %v614 = vadd.f32 %v184, %v613
    %v615 = vpop.f32.mrb[0].mxu0
    %616 = vmatprep.mubr.bf16.mxu0 %v458
    %617 = vmatmul.mubr.bf16.gmra.mrb[0].mxu0 %v312
    %v618 = vpop.f32.mrb[0].mxu0
    %v619 = vadd.f32 %v184, %v618
    %v620 = vpop.f32.mrb[0].mxu0
    %v621 = vpop.f32.mrb[0].mxu0
    %v622 = vadd.f32 %v184, %v621
    %v623 = vpop.f32.mrb[0].mxu0
    %624 = vdwg.mxu0
    %v625 = vtanh.pop %v499
    %v626 = vtanh.pop %v502
    %v627 = vtanh.pop %v507
    %v628 = vtanh.pop %v510
    %v629 = vtanh.pop %v515
    %v630 = vtanh.pop %v518
    %v631 = vtanh.pop %v523
    %v632 = vtanh.pop %v526
    %v633 = vtanh.pop %v531
    %v634 = vtanh.pop %v534
    %v635 = vtanh.pop %v539
    %v636 = vtanh.pop %v542
    %v637 = vtanh.pop %v547
    %v638 = vtanh.pop %v550
    %v639 = vtanh.pop %v555
    %v640 = vtanh.pop %v558
    %v641 = vtanh.pop %v563
    %v642 = vtanh.pop %v566
    %v643 = vtanh.pop %v571
    %v644 = vtanh.pop %v574
    %v645 = vtanh.pop %v579
    %v646 = vtanh.pop %v582
    %v647 = vtanh.pop %v587
    %v648 = vtanh.pop %v590
    %v649 = vtanh.pop %v595
    %v650 = vtanh.pop %v598
    %v651 = vtanh.pop %v603
    %v652 = vtanh.pop %v606
    %v653 = vtanh.pop %v611
    %v654 = vtanh.pop %v614
    %v655 = vtanh.pop %v619
    %v656 = vtanh.pop %v622
    %v657 = vpack.c.bf16 %v626, %v625
    %v658 = vpack.c.bf16 %v628, %v627
    %v659 = vpack.c.bf16 %v630, %v629
    %v660 = vpack.c.bf16 %v632, %v631
    %v661 = vpack.c.bf16 %v634, %v633
    %v662 = vpack.c.bf16 %v636, %v635
    %v663 = vpack.c.bf16 %v638, %v637
    %v664 = vpack.c.bf16 %v640, %v639
    %v665 = vpack.c.bf16 %v642, %v641
    %v666 = vpack.c.bf16 %v644, %v643
    %v667 = vpack.c.bf16 %v646, %v645
    %v668 = vpack.c.bf16 %v648, %v647
    %v669 = vpack.c.bf16 %v650, %v649
    %v670 = vpack.c.bf16 %v652, %v651
    %v671 = vpack.c.bf16 %v654, %v653
    %v672 = vpack.c.bf16 %v656, %v655
    %v673 = vld [vmem:[#allocation4] sm:$0xff]
    %v674 = vld [vmem:[#allocation4 + $0x8] sm:$0xff]
    %v675 = vld [vmem:[#allocation4 + $0x10] sm:$0xff]
    %v676 = vld [vmem:[#allocation4 + $0x18] sm:$0xff]
    %v677 = vld [vmem:[#allocation4 + $0x20] sm:$0xff]
    %v678 = vld [vmem:[#allocation4 + $0x28] sm:$0xff]
    %v679 = vld [vmem:[#allocation4 + $0x30] sm:$0xff]
    %v680 = vld [vmem:[#allocation4 + $0x38] sm:$0xff]
    %v681 = vld [vmem:[#allocation4 + $0x40] sm:$0xff]
    %v682 = vld [vmem:[#allocation4 + $0x48] sm:$0xff]
    %v683 = vld [vmem:[#allocation4 + $0x50] sm:$0xff]
    %v684 = vld [vmem:[#allocation4 + $0x58] sm:$0xff]
    %v685 = vld [vmem:[#allocation4 + $0x60] sm:$0xff]
    %v686 = vld [vmem:[#allocation4 + $0x68] sm:$0xff]
    %v687 = vld [vmem:[#allocation4 + $0x70] sm:$0xff]
    %v688 = vld [vmem:[#allocation4 + $0x78] sm:$0xff]
    %v689 = vld [vmem:[#allocation4 + $0x80] sm:$0xff]
    %v690 = vld [vmem:[#allocation4 + $0x88] sm:$0xff]
    %v691 = vld [vmem:[#allocation4 + $0x90] sm:$0xff]
    %v692 = vld [vmem:[#allocation4 + $0x98] sm:$0xff]
    %v693 = vld [vmem:[#allocation4 + $0xa0] sm:$0xff]
    %v694 = vld [vmem:[#allocation4 + $0xa8] sm:$0xff]
    %v695 = vld [vmem:[#allocation4 + $0xb0] sm:$0xff]
    %v696 = vld [vmem:[#allocation4 + $0xb8] sm:$0xff]
    %v697 = vld [vmem:[#allocation4 + $0xc0] sm:$0xff]
    %v698 = vld [vmem:[#allocation4 + $0xc8] sm:$0xff]
    %v699 = vld [vmem:[#allocation4 + $0xd0] sm:$0xff]
    %v700 = vld [vmem:[#allocation4 + $0xd8] sm:$0xff]
    %v701 = vld [vmem:[#allocation4 + $0xe0] sm:$0xff]
    %v702 = vld [vmem:[#allocation4 + $0xe8] sm:$0xff]
    %v703 = vld [vmem:[#allocation4 + $0xf0] sm:$0xff]
    %v704 = vld [vmem:[#allocation4 + $0xf8] sm:$0xff]
    %v705 = vld [vmem:[#allocation4 + $0x100] sm:$0xff]
    %v706 = vld [vmem:[#allocation4 + $0x108] sm:$0xff]
    %v707 = vld [vmem:[#allocation4 + $0x110] sm:$0xff]
    %v708 = vld [vmem:[#allocation4 + $0x118] sm:$0xff]
    %v709 = vld [vmem:[#allocation4 + $0x120] sm:$0xff]
    %v710 = vld [vmem:[#allocation4 + $0x128] sm:$0xff]
    %v711 = vld [vmem:[#allocation4 + $0x130] sm:$0xff]
    %v712 = vld [vmem:[#allocation4 + $0x138] sm:$0xff]
    %v713 = vld [vmem:[#allocation4 + $0x140] sm:$0xff]
    %v714 = vld [vmem:[#allocation4 + $0x148] sm:$0xff]
    %v715 = vld [vmem:[#allocation4 + $0x150] sm:$0xff]
    %v716 = vld [vmem:[#allocation4 + $0x158] sm:$0xff]
    %v717 = vld [vmem:[#allocation4 + $0x160] sm:$0xff]
    %v718 = vld [vmem:[#allocation4 + $0x168] sm:$0xff]
    %v719 = vld [vmem:[#allocation4 + $0x170] sm:$0xff]
    %v720 = vld [vmem:[#allocation4 + $0x178] sm:$0xff]
    %v721 = vld [vmem:[#allocation6] sm:$0xff]
    %v723 = vlaneseq
    %v724 = vshrl.u32 %v723, 7
    %v725 = vsub.s32 0, %v724
    %v726 = vrot.slane %v721, %v725
    %v727 = vlaneseq
    %v728 = vshrl.u32 %v727, 7
    %v729 = vsub.s32 1, %v728
    %v730 = vrot.slane %v721, %v729
    %v731 = vlaneseq
    %v732 = vshrl.u32 %v731, 7
    %v733 = vsub.s32 2, %v732
    %v734 = vrot.slane %v721, %v733
    %v735 = vlaneseq
    %v736 = vshrl.u32 %v735, 7
    %v737 = vsub.s32 3, %v736
    %v738 = vrot.slane %v721, %v737
    %v739 = vlaneseq
    %v740 = vshrl.u32 %v739, 7
    %v741 = vsub.s32 4, %v740
    %v742 = vrot.slane %v721, %v741
    %v743 = vlaneseq
    %v744 = vshrl.u32 %v743, 7
    %v745 = vsub.s32 5, %v744
    %v746 = vrot.slane %v721, %v745
    %v747 = vlaneseq
    %v748 = vshrl.u32 %v747, 7
    %v749 = vsub.s32 6, %v748
    %v750 = vrot.slane %v721, %v749
    %v751 = vlaneseq
    %v752 = vshrl.u32 %v751, 7
    %v753 = vsub.s32 7, %v752
    %v754 = vrot.slane %v721, %v753
    %v811 = vunpack.c.l.b16 %v673
    %v812 = vunpack.c.h.b16 %v673
    %v813 = vunpack.c.l.b16 %v674
    %v814 = vunpack.c.h.b16 %v674
    %v815 = vunpack.c.l.b16 %v675
    %v816 = vunpack.c.h.b16 %v675
    %v817 = vunpack.c.l.b16 %v676
    %v818 = vunpack.c.h.b16 %v676
    %v819 = vunpack.c.l.b16 %v677
    %v820 = vunpack.c.h.b16 %v677
    %v821 = vunpack.c.l.b16 %v678
    %v822 = vunpack.c.h.b16 %v678
    %v823 = vunpack.c.l.b16 %v679
    %v824 = vunpack.c.h.b16 %v679
    %v825 = vunpack.c.l.b16 %v680
    %v826 = vunpack.c.h.b16 %v680
    %v827 = vunpack.c.l.b16 %v681
    %v828 = vunpack.c.h.b16 %v681
    %v829 = vunpack.c.l.b16 %v682
    %v830 = vunpack.c.h.b16 %v682
    %v831 = vunpack.c.l.b16 %v683
    %v832 = vunpack.c.h.b16 %v683
    %v833 = vunpack.c.l.b16 %v684
    %v834 = vunpack.c.h.b16 %v684
    %v835 = vunpack.c.l.b16 %v685
    %v836 = vunpack.c.h.b16 %v685
    %v837 = vunpack.c.l.b16 %v686
    %v838 = vunpack.c.h.b16 %v686
    %v839 = vunpack.c.l.b16 %v687
    %v840 = vunpack.c.h.b16 %v687
    %v841 = vunpack.c.l.b16 %v688
    %v842 = vunpack.c.h.b16 %v688
    %v843 = vunpack.c.l.b16 %v689
    %v844 = vunpack.c.h.b16 %v689
    %v845 = vunpack.c.l.b16 %v690
    %v846 = vunpack.c.h.b16 %v690
    %v847 = vunpack.c.l.b16 %v691
    %v848 = vunpack.c.h.b16 %v691
    %v849 = vunpack.c.l.b16 %v692
    %v850 = vunpack.c.h.b16 %v692
    %v851 = vunpack.c.l.b16 %v693
    %v852 = vunpack.c.h.b16 %v693
    %v853 = vunpack.c.l.b16 %v694
    %v854 = vunpack.c.h.b16 %v694
    %v855 = vunpack.c.l.b16 %v695
    %v856 = vunpack.c.h.b16 %v695
    %v857 = vunpack.c.l.b16 %v696
    %v858 = vunpack.c.h.b16 %v696
    %v859 = vunpack.c.l.b16 %v697
    %v860 = vunpack.c.h.b16 %v697
    %v861 = vunpack.c.l.b16 %v698
    %v862 = vunpack.c.h.b16 %v698
    %v863 = vunpack.c.l.b16 %v699
    %v864 = vunpack.c.h.b16 %v699
    %v865 = vunpack.c.l.b16 %v700
    %v866 = vunpack.c.h.b16 %v700
    %v867 = vunpack.c.l.b16 %v701
    %v868 = vunpack.c.h.b16 %v701
    %v869 = vunpack.c.l.b16 %v702
    %v870 = vunpack.c.h.b16 %v702
    %v871 = vunpack.c.l.b16 %v703
    %v872 = vunpack.c.h.b16 %v703
    %v873 = vunpack.c.l.b16 %v704
    %v874 = vunpack.c.h.b16 %v704
    %v875 = vunpack.c.l.b16 %v705
    %v876 = vunpack.c.h.b16 %v705
    %v877 = vunpack.c.l.b16 %v706
    %v878 = vunpack.c.h.b16 %v706
    %v879 = vunpack.c.l.b16 %v707
    %v880 = vunpack.c.h.b16 %v707
    %v881 = vunpack.c.l.b16 %v708
    %v882 = vunpack.c.h.b16 %v708
    %v883 = vunpack.c.l.b16 %v709
    %v884 = vunpack.c.h.b16 %v709
    %v885 = vunpack.c.l.b16 %v710
    %v886 = vunpack.c.h.b16 %v710
    %v887 = vunpack.c.l.b16 %v711
    %v888 = vunpack.c.h.b16 %v711
    %v889 = vunpack.c.l.b16 %v712
    %v890 = vunpack.c.h.b16 %v712
    %v891 = vunpack.c.l.b16 %v713
    %v892 = vunpack.c.h.b16 %v713
    %v893 = vunpack.c.l.b16 %v714
    %v894 = vunpack.c.h.b16 %v714
    %v895 = vunpack.c.l.b16 %v715
    %v896 = vunpack.c.h.b16 %v715
    %v897 = vunpack.c.l.b16 %v716
    %v898 = vunpack.c.h.b16 %v716
    %v899 = vunpack.c.l.b16 %v717
    %v900 = vunpack.c.h.b16 %v717
    %v901 = vunpack.c.l.b16 %v718
    %v902 = vunpack.c.h.b16 %v718
    %v903 = vunpack.c.l.b16 %v719
    %v904 = vunpack.c.h.b16 %v719
    %v905 = vunpack.c.l.b16 %v720
    %v906 = vunpack.c.h.b16 %v720
    %v907 = vpack.c.b16 %v819, %v811
    %v908 = vpack.c.b16 %v820, %v812
    %v909 = vpack.c.b16 %v821, %v813
    %v910 = vpack.c.b16 %v822, %v814
    %v911 = vpack.c.b16 %v823, %v815
    %v912 = vpack.c.b16 %v824, %v816
    %v913 = vpack.c.b16 %v825, %v817
    %v914 = vpack.c.b16 %v826, %v818
    %v915 = vpack.c.b16 %v835, %v827
    %v916 = vpack.c.b16 %v836, %v828
    %v917 = vpack.c.b16 %v837, %v829
    %v918 = vpack.c.b16 %v838, %v830
    %v919 = vpack.c.b16 %v839, %v831
    %v920 = vpack.c.b16 %v840, %v832
    %v921 = vpack.c.b16 %v841, %v833
    %v922 = vpack.c.b16 %v842, %v834
    %v923 = vpack.c.b16 %v851, %v843
    %v924 = vpack.c.b16 %v852, %v844
    %v925 = vpack.c.b16 %v853, %v845
    %v926 = vpack.c.b16 %v854, %v846
    %v927 = vpack.c.b16 %v855, %v847
    %v928 = vpack.c.b16 %v856, %v848
    %v929 = vpack.c.b16 %v857, %v849
    %v930 = vpack.c.b16 %v858, %v850
    %v931 = vpack.c.b16 %v867, %v859
    %v932 = vpack.c.b16 %v868, %v860
    %v933 = vpack.c.b16 %v869, %v861
    %v934 = vpack.c.b16 %v870, %v862
    %v935 = vpack.c.b16 %v871, %v863
    %v936 = vpack.c.b16 %v872, %v864
    %v937 = vpack.c.b16 %v873, %v865
    %v938 = vpack.c.b16 %v874, %v866
    %v939 = vpack.c.b16 %v883, %v875
    %v940 = vpack.c.b16 %v884, %v876
    %v941 = vpack.c.b16 %v885, %v877
    %v942 = vpack.c.b16 %v886, %v878
    %v943 = vpack.c.b16 %v887, %v879
    %v944 = vpack.c.b16 %v888, %v880
    %v945 = vpack.c.b16 %v889, %v881
    %v946 = vpack.c.b16 %v890, %v882
    %v947 = vpack.c.b16 %v899, %v891
    %v948 = vpack.c.b16 %v900, %v892
    %v949 = vpack.c.b16 %v901, %v893
    %v950 = vpack.c.b16 %v902, %v894
    %v951 = vpack.c.b16 %v903, %v895
    %v952 = vpack.c.b16 %v904, %v896
    %v953 = vpack.c.b16 %v905, %v897
    %v954 = vpack.c.b16 %v906, %v898
    %vm1003 = vcmask 785408
    %v1005 = vsel %vm1003, %v657, 0
    %v1008 = vsel %vm1003, %v658, 0
    %v1011 = vsel %vm1003, %v659, 0
    %v1014 = vsel %vm1003, %v660, 0
    %v1017 = vsel %vm1003, %v661, 0
    %v1020 = vsel %vm1003, %v662, 0
    %v1023 = vsel %vm1003, %v663, 0
    %v1026 = vsel %vm1003, %v664, 0
    %v1029 = vsel %vm1003, %v665, 0
    %v1032 = vsel %vm1003, %v666, 0
    %v1035 = vsel %vm1003, %v667, 0
    %v1038 = vsel %vm1003, %v668, 0
    %v1041 = vsel %vm1003, %v669, 0
    %v1044 = vsel %vm1003, %v670, 0
    %v1047 = vsel %vm1003, %v671, 0
    %v1050 = vsel %vm1003, %v672, 0
    %1052 = vmatprep.subr.bf16.mxu0 %v908
    %1053 = vmatpush1.bf16.msra.mxu0 %v907
    %1054 = vmatprep.subr.bf16.mxu0 %v916
    %1055 = vmatpush1.bf16.msra.mxu0 %v915
    %1056 = vmatprep.subr.bf16.mxu0 %v924
    %1057 = vmatpush1.bf16.msra.mxu0 %v923
    %1058 = vmatprep.subr.bf16.mxu0 %v932
    %1059 = vmatpush1.bf16.msra.mxu0 %v931
    %1060 = vmatprep.subr.bf16.mxu0 %v940
    %1061 = vmatpush1.bf16.msra.mxu0 %v939
    %1062 = vmatprep.subr.bf16.mxu0 %v948
    %1063 = vmatpush1.bf16.msra.mxu0 %v947
    %1064 = vmatprep.subr.bf16.mxu0 0
    %1065 = vmatpush1.bf16.msra.mxu0 0
    %1066 = vmatprep.subr.bf16.mxu0 0
    %1067 = vmatpush1.bf16.msra.mxu0 0
    %1068 = vmatprep.subr.bf16.mxu0 0
    %1069 = vmatpush1.bf16.msra.mxu0 0
    %1070 = vmatprep.subr.bf16.mxu0 0
    %1071 = vmatpush1.bf16.msra.mxu0 0
    %1072 = vmatprep.subr.bf16.mxu0 0
    %1073 = vmatpush1.bf16.msra.mxu0 0
    %1074 = vmatprep.subr.bf16.mxu0 0
    %1075 = vmatpush1.bf16.msra.mxu0 0
    %1076 = vmatprep.subr.bf16.mxu0 0
    %1077 = vmatpush1.bf16.msra.mxu0 0
    %1078 = vmatprep.subr.bf16.mxu0 0
    %1079 = vmatpush1.bf16.msra.mxu0 0
    %1080 = vmatprep.subr.bf16.mxu0 0
    %1081 = vmatpush1.bf16.msra.mxu0 0
    %1082 = vmatprep.subr.bf16.mxu0 0
    %1083 = vmatpush1.bf16.msra.mxu0 0
    %1084 = vmatprep.mubr.bf16.mxu0 0
    %1085 = vmatmul.mubr.bf16.gmra.mrb[0].mxu0 %v1005
    %v1086 = vpop.f32.mrb[0].mxu0
    %v1087 = vadd.f32 %v726, %v1086
    %v1088 = vpop.f32.mrb[0].mxu0
    %v1089 = vadd.f32 %v730, %v1088
    %v1090 = vpop.f32.mrb[0].mxu0
    %v1091 = vadd.f32 %v726, %v1090
    %v1092 = vpop.f32.mrb[0].mxu0
    %v1093 = vadd.f32 %v730, %v1092
    %1094 = vmatprep.mubr.bf16.mxu0 0
    %1095 = vmatmul.mubr.bf16.gmra.mrb[0].mxu0 %v1008
    %v1096 = vpop.f32.mrb[0].mxu0
    %v1097 = vadd.f32 %v726, %v1096
    %v1098 = vpop.f32.mrb[0].mxu0
    %v1099 = vadd.f32 %v730, %v1098
    %v1100 = vpop.f32.mrb[0].mxu0
    %v1101 = vadd.f32 %v726, %v1100
    %v1102 = vpop.f32.mrb[0].mxu0
    %v1103 = vadd.f32 %v730, %v1102
    %1104 = vmatprep.mubr.bf16.mxu0 0
    %1105 = vmatmul.mubr.bf16.gmra.mrb[0].mxu0 %v1011
    %v1106 = vpop.f32.mrb[0].mxu0
    %v1107 = vadd.f32 %v726, %v1106
    %v1108 = vpop.f32.mrb[0].mxu0
    %v1109 = vadd.f32 %v730, %v1108
    %v1110 = vpop.f32.mrb[0].mxu0
    %v1111 = vadd.f32 %v726, %v1110
    %v1112 = vpop.f32.mrb[0].mxu0
    %v1113 = vadd.f32 %v730, %v1112
    %1114 = vmatprep.mubr.bf16.mxu0 0
    %1115 = vmatmul.mubr.bf16.gmra.mrb[0].mxu0 %v1014
    %v1116 = vpop.f32.mrb[0].mxu0
    %v1117 = vadd.f32 %v726, %v1116
    %v1118 = vpop.f32.mrb[0].mxu0
    %v1119 = vadd.f32 %v730, %v1118
    %v1120 = vpop.f32.mrb[0].mxu0
    %v1121 = vadd.f32 %v726, %v1120
    %v1122 = vpop.f32.mrb[0].mxu0
    %v1123 = vadd.f32 %v730, %v1122
    %1124 = vmatprep.mubr.bf16.mxu0 0
    %1125 = vmatmul.mubr.bf16.gmra.mrb[0].mxu0 %v1017
    %v1126 = vpop.f32.mrb[0].mxu0
    %v1127 = vadd.f32 %v726, %v1126
    %v1128 = vpop.f32.mrb[0].mxu0
    %v1129 = vadd.f32 %v730, %v1128
    %v1130 = vpop.f32.mrb[0].mxu0
    %v1131 = vadd.f32 %v726, %v1130
    %v1132 = vpop.f32.mrb[0].mxu0
    %v1133 = vadd.f32 %v730, %v1132
    %1134 = vmatprep.mubr.bf16.mxu0 0
    %1135 = vmatmul.mubr.bf16.gmra.mrb[0].mxu0 %v1020
    %v1136 = vpop.f32.mrb[0].mxu0
    %v1137 = vadd.f32 %v726, %v1136
    %v1138 = vpop.f32.mrb[0].mxu0
    %v1139 = vadd.f32 %v730, %v1138
    %v1140 = vpop.f32.mrb[0].mxu0
    %v1141 = vadd.f32 %v726, %v1140
    %v1142 = vpop.f32.mrb[0].mxu0
    %v1143 = vadd.f32 %v730, %v1142
    %1144 = vmatprep.mubr.bf16.mxu0 0
    %1145 = vmatmul.mubr.bf16.gmra.mrb[0].mxu0 %v1023
    %v1146 = vpop.f32.mrb[0].mxu0
    %v1147 = vadd.f32 %v726, %v1146
    %v1148 = vpop.f32.mrb[0].mxu0
    %v1149 = vadd.f32 %v730, %v1148
    %v1150 = vpop.f32.mrb[0].mxu0
    %v1151 = vadd.f32 %v726, %v1150
    %v1152 = vpop.f32.mrb[0].mxu0
    %v1153 = vadd.f32 %v730, %v1152
    %1154 = vmatprep.mubr.bf16.mxu0 0
    %1155 = vmatmul.mubr.bf16.gmra.mrb[0].mxu0 %v1026
    %v1156 = vpop.f32.mrb[0].mxu0
    %v1157 = vadd.f32 %v726, %v1156
    %v1158 = vpop.f32.mrb[0].mxu0
    %v1159 = vadd.f32 %v730, %v1158
    %v1160 = vpop.f32.mrb[0].mxu0
    %v1161 = vadd.f32 %v726, %v1160
    %v1162 = vpop.f32.mrb[0].mxu0
    %v1163 = vadd.f32 %v730, %v1162
    %1164 = vmatprep.mubr.bf16.mxu0 0
    %1165 = vmatmul.mubr.bf16.gmra.mrb[0].mxu0 %v1029
    %v1166 = vpop.f32.mrb[0].mxu0
    %v1167 = vadd.f32 %v726, %v1166
    %v1168 = vpop.f32.mrb[0].mxu0
    %v1169 = vadd.f32 %v730, %v1168
    %v1170 = vpop.f32.mrb[0].mxu0
    %v1171 = vadd.f32 %v726, %v1170
    %v1172 = vpop.f32.mrb[0].mxu0
    %v1173 = vadd.f32 %v730, %v1172
    %1174 = vmatprep.mubr.bf16.mxu0 0
    %1175 = vmatmul.mubr.bf16.gmra.mrb[0].mxu0 %v1032
    %v1176 = vpop.f32.mrb[0].mxu0
    %v1177 = vadd.f32 %v726, %v1176
    %v1178 = vpop.f32.mrb[0].mxu0
    %v1179 = vadd.f32 %v730, %v1178
    %v1180 = vpop.f32.mrb[0].mxu0
    %v1181 = vadd.f32 %v726, %v1180
    %v1182 = vpop.f32.mrb[0].mxu0
    %v1183 = vadd.f32 %v730, %v1182
    %1184 = vmatprep.mubr.bf16.mxu0 0
    %1185 = vmatmul.mubr.bf16.gmra.mrb[0].mxu0 %v1035
    %v1186 = vpop.f32.mrb[0].mxu0
    %v1187 = vadd.f32 %v726, %v1186
    %v1188 = vpop.f32.mrb[0].mxu0
    %v1189 = vadd.f32 %v730, %v1188
    %v1190 = vpop.f32.mrb[0].mxu0
    %v1191 = vadd.f32 %v726, %v1190
    %v1192 = vpop.f32.mrb[0].mxu0
    %v1193 = vadd.f32 %v730, %v1192
    %1194 = vmatprep.mubr.bf16.mxu0 0
    %1195 = vmatmul.mubr.bf16.gmra.mrb[0].mxu0 %v1038
    %v1196 = vpop.f32.mrb[0].mxu0
    %v1197 = vadd.f32 %v726, %v1196
    %v1198 = vpop.f32.mrb[0].mxu0
    %v1199 = vadd.f32 %v730, %v1198
    %v1200 = vpop.f32.mrb[0].mxu0
    %v1201 = vadd.f32 %v726, %v1200
    %v1202 = vpop.f32.mrb[0].mxu0
    %v1203 = vadd.f32 %v730, %v1202
    %1204 = vmatprep.mubr.bf16.mxu0 0
    %1205 = vmatmul.mubr.bf16.gmra.mrb[0].mxu0 %v1041
    %v1206 = vpop.f32.mrb[0].mxu0
    %v1207 = vadd.f32 %v726, %v1206
    %v1208 = vpop.f32.mrb[0].mxu0
    %v1209 = vadd.f32 %v730, %v1208
    %v1210 = vpop.f32.mrb[0].mxu0
    %v1211 = vadd.f32 %v726, %v1210
    %v1212 = vpop.f32.mrb[0].mxu0
    %v1213 = vadd.f32 %v730, %v1212
    %1214 = vmatprep.mubr.bf16.mxu0 0
    %1215 = vmatmul.mubr.bf16.gmra.mrb[0].mxu0 %v1044
    %v1216 = vpop.f32.mrb[0].mxu0
    %v1217 = vadd.f32 %v726, %v1216
    %v1218 = vpop.f32.mrb[0].mxu0
    %v1219 = vadd.f32 %v730, %v1218
    %v1220 = vpop.f32.mrb[0].mxu0
    %v1221 = vadd.f32 %v726, %v1220
    %v1222 = vpop.f32.mrb[0].mxu0
    %v1223 = vadd.f32 %v730, %v1222
    %1224 = vmatprep.mubr.bf16.mxu0 0
    %1225 = vmatmul.mubr.bf16.gmra.mrb[0].mxu0 %v1047
    %v1226 = vpop.f32.mrb[0].mxu0
    %v1227 = vadd.f32 %v726, %v1226
    %v1228 = vpop.f32.mrb[0].mxu0
    %v1229 = vadd.f32 %v730, %v1228
    %v1230 = vpop.f32.mrb[0].mxu0
    %v1231 = vadd.f32 %v726, %v1230
    %v1232 = vpop.f32.mrb[0].mxu0
    %v1233 = vadd.f32 %v730, %v1232
    %1234 = vmatprep.mubr.bf16.mxu0 0
    %1235 = vmatmul.mubr.bf16.gmra.mrb[0].mxu0 %v1050
    %v1236 = vpop.f32.mrb[0].mxu0
    %v1237 = vadd.f32 %v726, %v1236
    %v1238 = vpop.f32.mrb[0].mxu0
    %v1239 = vadd.f32 %v730, %v1238
    %v1240 = vpop.f32.mrb[0].mxu0
    %v1241 = vadd.f32 %v726, %v1240
    %v1242 = vpop.f32.mrb[0].mxu0
    %v1243 = vadd.f32 %v730, %v1242
    %1244 = vdwg.mxu0
    %1245 = vmatprep.subr.bf16.mxu0 %v910
    %1246 = vmatpush1.bf16.msra.mxu0 %v909
    %1247 = vmatprep.subr.bf16.mxu0 %v918
    %1248 = vmatpush1.bf16.msra.mxu0 %v917
    %1249 = vmatprep.subr.bf16.mxu0 %v926
    %1250 = vmatpush1.bf16.msra.mxu0 %v925
    %1251 = vmatprep.subr.bf16.mxu0 %v934
    %1252 = vmatpush1.bf16.msra.mxu0 %v933
    %1253 = vmatprep.subr.bf16.mxu0 %v942
    %1254 = vmatpush1.bf16.msra.mxu0 %v941
    %1255 = vmatprep.subr.bf16.mxu0 %v950
    %1256 = vmatpush1.bf16.msra.mxu0 %v949
    %1257 = vmatprep.subr.bf16.mxu0 0
    %1258 = vmatpush1.bf16.msra.mxu0 0
    %1259 = vmatprep.subr.bf16.mxu0 0
    %1260 = vmatpush1.bf16.msra.mxu0 0
    %1261 = vmatprep.subr.bf16.mxu0 0
    %1262 = vmatpush1.bf16.msra.mxu0 0
    %1263 = vmatprep.subr.bf16.mxu0 0
    %1264 = vmatpush1.bf16.msra.mxu0 0
    %1265 = vmatprep.subr.bf16.mxu0 0
    %1266 = vmatpush1.bf16.msra.mxu0 0
    %1267 = vmatprep.subr.bf16.mxu0 0
    %1268 = vmatpush1.bf16.msra.mxu0 0
    %1269 = vmatprep.subr.bf16.mxu0 0
    %1270 = vmatpush1.bf16.msra.mxu0 0
    %1271 = vmatprep.subr.bf16.mxu0 0
    %1272 = vmatpush1.bf16.msra.mxu0 0
    %1273 = vmatprep.subr.bf16.mxu0 0
    %1274 = vmatpush1.bf16.msra.mxu0 0
    %1275 = vmatprep.subr.bf16.mxu0 0
    %1276 = vmatpush1.bf16.msra.mxu0 0
    %1277 = vmatprep.mubr.bf16.mxu0 0
    %1278 = vmatmul.mubr.bf16.gmra.mrb[0].mxu0 %v1005
    %v1279 = vpop.f32.mrb[0].mxu0
    %v1280 = vadd.f32 %v734, %v1279
    %v1281 = vpop.f32.mrb[0].mxu0
    %v1282 = vadd.f32 %v738, %v1281
    %v1283 = vpop.f32.mrb[0].mxu0
    %v1284 = vadd.f32 %v734, %v1283
    %v1285 = vpop.f32.mrb[0].mxu0
    %v1286 = vadd.f32 %v738, %v1285
    %1287 = vmatprep.mubr.bf16.mxu0 0
    %1288 = vmatmul.mubr.bf16.gmra.mrb[0].mxu0 %v1008
    %v1289 = vpop.f32.mrb[0].mxu0
    %v1290 = vadd.f32 %v734, %v1289
    %v1291 = vpop.f32.mrb[0].mxu0
    %v1292 = vadd.f32 %v738, %v1291
    %v1293 = vpop.f32.mrb[0].mxu0
    %v1294 = vadd.f32 %v734, %v1293
    %v1295 = vpop.f32.mrb[0].mxu0
    %v1296 = vadd.f32 %v738, %v1295
    %1297 = vmatprep.mubr.bf16.mxu0 0
    %1298 = vmatmul.mubr.bf16.gmra.mrb[0].mxu0 %v1011
    %v1299 = vpop.f32.mrb[0].mxu0
    %v1300 = vadd.f32 %v734, %v1299
    %v1301 = vpop.f32.mrb[0].mxu0
    %v1302 = vadd.f32 %v738, %v1301
    %v1303 = vpop.f32.mrb[0].mxu0
    %v1304 = vadd.f32 %v734, %v1303
    %v1305 = vpop.f32.mrb[0].mxu0
    %v1306 = vadd.f32 %v738, %v1305
    %1307 = vmatprep.mubr.bf16.mxu0 0
    %1308 = vmatmul.mubr.bf16.gmra.mrb[0].mxu0 %v1014
    %v1309 = vpop.f32.mrb[0].mxu0
    %v1310 = vadd.f32 %v734, %v1309
    %v1311 = vpop.f32.mrb[0].mxu0
    %v1312 = vadd.f32 %v738, %v1311
    %v1313 = vpop.f32.mrb[0].mxu0
    %v1314 = vadd.f32 %v734, %v1313
    %v1315 = vpop.f32.mrb[0].mxu0
    %v1316 = vadd.f32 %v738, %v1315
    %1317 = vmatprep.mubr.bf16.mxu0 0
    %1318 = vmatmul.mubr.bf16.gmra.mrb[0].mxu0 %v1017
    %v1319 = vpop.f32.mrb[0].mxu0
    %v1320 = vadd.f32 %v734, %v1319
    %v1321 = vpop.f32.mrb[0].mxu0
    %v1322 = vadd.f32 %v738, %v1321
    %v1323 = vpop.f32.mrb[0].mxu0
    %v1324 = vadd.f32 %v734, %v1323
    %v1325 = vpop.f32.mrb[0].mxu0
    %v1326 = vadd.f32 %v738, %v1325
    %1327 = vmatprep.mubr.bf16.mxu0 0
    %1328 = vmatmul.mubr.bf16.gmra.mrb[0].mxu0 %v1020
    %v1329 = vpop.f32.mrb[0].mxu0
    %v1330 = vadd.f32 %v734, %v1329
    %v1331 = vpop.f32.mrb[0].mxu0
    %v1332 = vadd.f32 %v738, %v1331
    %v1333 = vpop.f32.mrb[0].mxu0
    %v1334 = vadd.f32 %v734, %v1333
    %v1335 = vpop.f32.mrb[0].mxu0
    %v1336 = vadd.f32 %v738, %v1335
    %1337 = vmatprep.mubr.bf16.mxu0 0
    %1338 = vmatmul.mubr.bf16.gmra.mrb[0].mxu0 %v1023
    %v1339 = vpop.f32.mrb[0].mxu0
    %v1340 = vadd.f32 %v734, %v1339
    %v1341 = vpop.f32.mrb[0].mxu0
    %v1342 = vadd.f32 %v738, %v1341
    %v1343 = vpop.f32.mrb[0].mxu0
    %v1344 = vadd.f32 %v734, %v1343
    %v1345 = vpop.f32.mrb[0].mxu0
    %v1346 = vadd.f32 %v738, %v1345
    %1347 = vmatprep.mubr.bf16.mxu0 0
    %1348 = vmatmul.mubr.bf16.gmra.mrb[0].mxu0 %v1026
    %v1349 = vpop.f32.mrb[0].mxu0
    %v1350 = vadd.f32 %v734, %v1349
    %v1351 = vpop.f32.mrb[0].mxu0
    %v1352 = vadd.f32 %v738, %v1351
    %v1353 = vpop.f32.mrb[0].mxu0
    %v1354 = vadd.f32 %v734, %v1353
    %v1355 = vpop.f32.mrb[0].mxu0
    %v1356 = vadd.f32 %v738, %v1355
    %1357 = vmatprep.mubr.bf16.mxu0 0
    %1358 = vmatmul.mubr.bf16.gmra.mrb[0].mxu0 %v1029
    %v1359 = vpop.f32.mrb[0].mxu0
    %v1360 = vadd.f32 %v734, %v1359
    %v1361 = vpop.f32.mrb[0].mxu0
    %v1362 = vadd.f32 %v738, %v1361
    %v1363 = vpop.f32.mrb[0].mxu0
    %v1364 = vadd.f32 %v734, %v1363
    %v1365 = vpop.f32.mrb[0].mxu0
    %v1366 = vadd.f32 %v738, %v1365
    %1367 = vmatprep.mubr.bf16.mxu0 0
    %1368 = vmatmul.mubr.bf16.gmra.mrb[0].mxu0 %v1032
    %v1369 = vpop.f32.mrb[0].mxu0
    %v1370 = vadd.f32 %v734, %v1369
    %v1371 = vpop.f32.mrb[0].mxu0
    %v1372 = vadd.f32 %v738, %v1371
    %v1373 = vpop.f32.mrb[0].mxu0
    %v1374 = vadd.f32 %v734, %v1373
    %v1375 = vpop.f32.mrb[0].mxu0
    %v1376 = vadd.f32 %v738, %v1375
    %1377 = vmatprep.mubr.bf16.mxu0 0
    %1378 = vmatmul.mubr.bf16.gmra.mrb[0].mxu0 %v1035
    %v1379 = vpop.f32.mrb[0].mxu0
    %v1380 = vadd.f32 %v734, %v1379
    %v1381 = vpop.f32.mrb[0].mxu0
    %v1382 = vadd.f32 %v738, %v1381
    %v1383 = vpop.f32.mrb[0].mxu0
    %v1384 = vadd.f32 %v734, %v1383
    %v1385 = vpop.f32.mrb[0].mxu0
    %v1386 = vadd.f32 %v738, %v1385
    %1387 = vmatprep.mubr.bf16.mxu0 0
    %1388 = vmatmul.mubr.bf16.gmra.mrb[0].mxu0 %v1038
    %v1389 = vpop.f32.mrb[0].mxu0
    %v1390 = vadd.f32 %v734, %v1389
    %v1391 = vpop.f32.mrb[0].mxu0
    %v1392 = vadd.f32 %v738, %v1391
    %v1393 = vpop.f32.mrb[0].mxu0
    %v1394 = vadd.f32 %v734, %v1393
    %v1395 = vpop.f32.mrb[0].mxu0
    %v1396 = vadd.f32 %v738, %v1395
    %1397 = vmatprep.mubr.bf16.mxu0 0
    %1398 = vmatmul.mubr.bf16.gmra.mrb[0].mxu0 %v1041
    %v1399 = vpop.f32.mrb[0].mxu0
    %v1400 = vadd.f32 %v734, %v1399
    %v1401 = vpop.f32.mrb[0].mxu0
    %v1402 = vadd.f32 %v738, %v1401
    %v1403 = vpop.f32.mrb[0].mxu0
    %v1404 = vadd.f32 %v734, %v1403
    %v1405 = vpop.f32.mrb[0].mxu0
    %v1406 = vadd.f32 %v738, %v1405
    %1407 = vmatprep.mubr.bf16.mxu0 0
    %1408 = vmatmul.mubr.bf16.gmra.mrb[0].mxu0 %v1044
    %v1409 = vpop.f32.mrb[0].mxu0
    %v1410 = vadd.f32 %v734, %v1409
    %v1411 = vpop.f32.mrb[0].mxu0
    %v1412 = vadd.f32 %v738, %v1411
    %v1413 = vpop.f32.mrb[0].mxu0
    %v1414 = vadd.f32 %v734, %v1413
    %v1415 = vpop.f32.mrb[0].mxu0
    %v1416 = vadd.f32 %v738, %v1415
    %1417 = vmatprep.mubr.bf16.mxu0 0
    %1418 = vmatmul.mubr.bf16.gmra.mrb[0].mxu0 %v1047
    %v1419 = vpop.f32.mrb[0].mxu0
    %v1420 = vadd.f32 %v734, %v1419
    %v1421 = vpop.f32.mrb[0].mxu0
    %v1422 = vadd.f32 %v738, %v1421
    %v1423 = vpop.f32.mrb[0].mxu0
    %v1424 = vadd.f32 %v734, %v1423
    %v1425 = vpop.f32.mrb[0].mxu0
    %v1426 = vadd.f32 %v738, %v1425
    %1427 = vmatprep.mubr.bf16.mxu0 0
    %1428 = vmatmul.mubr.bf16.gmra.mrb[0].mxu0 %v1050
    %v1429 = vpop.f32.mrb[0].mxu0
    %v1430 = vadd.f32 %v734, %v1429
    %v1431 = vpop.f32.mrb[0].mxu0
    %v1432 = vadd.f32 %v738, %v1431
    %v1433 = vpop.f32.mrb[0].mxu0
    %v1434 = vadd.f32 %v734, %v1433
    %v1435 = vpop.f32.mrb[0].mxu0
    %v1436 = vadd.f32 %v738, %v1435
    %1437 = vdwg.mxu0
    %1438 = vmatprep.subr.bf16.mxu0 %v912
    %1439 = vmatpush1.bf16.msra.mxu0 %v911
    %1440 = vmatprep.subr.bf16.mxu0 %v920
    %1441 = vmatpush1.bf16.msra.mxu0 %v919
    %1442 = vmatprep.subr.bf16.mxu0 %v928
    %1443 = vmatpush1.bf16.msra.mxu0 %v927
    %1444 = vmatprep.subr.bf16.mxu0 %v936
    %1445 = vmatpush1.bf16.msra.mxu0 %v935
    %1446 = vmatprep.subr.bf16.mxu0 %v944
    %1447 = vmatpush1.bf16.msra.mxu0 %v943
    %1448 = vmatprep.subr.bf16.mxu0 %v952
    %1449 = vmatpush1.bf16.msra.mxu0 %v951
    %1450 = vmatprep.subr.bf16.mxu0 0
    %1451 = vmatpush1.bf16.msra.mxu0 0
    %1452 = vmatprep.subr.bf16.mxu0 0
    %1453 = vmatpush1.bf16.msra.mxu0 0
    %1454 = vmatprep.subr.bf16.mxu0 0
    %1455 = vmatpush1.bf16.msra.mxu0 0
    %1456 = vmatprep.subr.bf16.mxu0 0
    %1457 = vmatpush1.bf16.msra.mxu0 0
    %1458 = vmatprep.subr.bf16.mxu0 0
    %1459 = vmatpush1.bf16.msra.mxu0 0
    %1460 = vmatprep.subr.bf16.mxu0 0
    %1461 = vmatpush1.bf16.msra.mxu0 0
    %1462 = vmatprep.subr.bf16.mxu0 0
    %1463 = vmatpush1.bf16.msra.mxu0 0
    %1464 = vmatprep.subr.bf16.mxu0 0
    %1465 = vmatpush1.bf16.msra.mxu0 0
    %1466 = vmatprep.subr.bf16.mxu0 0
    %1467 = vmatpush1.bf16.msra.mxu0 0
    %1468 = vmatprep.subr.bf16.mxu0 0
    %1469 = vmatpush1.bf16.msra.mxu0 0
    %1470 = vmatprep.mubr.bf16.mxu0 0
    %1471 = vmatmul.mubr.bf16.gmra.mrb[0].mxu0 %v1005
    %v1472 = vpop.f32.mrb[0].mxu0
    %v1473 = vadd.f32 %v742, %v1472
    %v1474 = vpop.f32.mrb[0].mxu0
    %v1475 = vadd.f32 %v746, %v1474
    %v1476 = vpop.f32.mrb[0].mxu0
    %v1477 = vadd.f32 %v742, %v1476
    %v1478 = vpop.f32.mrb[0].mxu0
    %v1479 = vadd.f32 %v746, %v1478
    %1480 = vmatprep.mubr.bf16.mxu0 0
    %1481 = vmatmul.mubr.bf16.gmra.mrb[0].mxu0 %v1008
    %v1482 = vpop.f32.mrb[0].mxu0
    %v1483 = vadd.f32 %v742, %v1482
    %v1484 = vpop.f32.mrb[0].mxu0
    %v1485 = vadd.f32 %v746, %v1484
    %v1486 = vpop.f32.mrb[0].mxu0
    %v1487 = vadd.f32 %v742, %v1486
    %v1488 = vpop.f32.mrb[0].mxu0
    %v1489 = vadd.f32 %v746, %v1488
    %1490 = vmatprep.mubr.bf16.mxu0 0
    %1491 = vmatmul.mubr.bf16.gmra.mrb[0].mxu0 %v1011
    %v1492 = vpop.f32.mrb[0].mxu0
    %v1493 = vadd.f32 %v742, %v1492
    %v1494 = vpop.f32.mrb[0].mxu0
    %v1495 = vadd.f32 %v746, %v1494
    %v1496 = vpop.f32.mrb[0].mxu0
    %v1497 = vadd.f32 %v742, %v1496
    %v1498 = vpop.f32.mrb[0].mxu0
    %v1499 = vadd.f32 %v746, %v1498
    %1500 = vmatprep.mubr.bf16.mxu0 0
    %1501 = vmatmul.mubr.bf16.gmra.mrb[0].mxu0 %v1014
    %v1502 = vpop.f32.mrb[0].mxu0
    %v1503 = vadd.f32 %v742, %v1502
    %v1504 = vpop.f32.mrb[0].mxu0
    %v1505 = vadd.f32 %v746, %v1504
    %v1506 = vpop.f32.mrb[0].mxu0
    %v1507 = vadd.f32 %v742, %v1506
    %v1508 = vpop.f32.mrb[0].mxu0
    %v1509 = vadd.f32 %v746, %v1508
    %1510 = vmatprep.mubr.bf16.mxu0 0
    %1511 = vmatmul.mubr.bf16.gmra.mrb[0].mxu0 %v1017
    %v1512 = vpop.f32.mrb[0].mxu0
    %v1513 = vadd.f32 %v742, %v1512
    %v1514 = vpop.f32.mrb[0].mxu0
    %v1515 = vadd.f32 %v746, %v1514
    %v1516 = vpop.f32.mrb[0].mxu0
    %v1517 = vadd.f32 %v742, %v1516
    %v1518 = vpop.f32.mrb[0].mxu0
    %v1519 = vadd.f32 %v746, %v1518
    %1520 = vmatprep.mubr.bf16.mxu0 0
    %1521 = vmatmul.mubr.bf16.gmra.mrb[0].mxu0 %v1020
    %v1522 = vpop.f32.mrb[0].mxu0
    %v1523 = vadd.f32 %v742, %v1522
    %v1524 = vpop.f32.mrb[0].mxu0
    %v1525 = vadd.f32 %v746, %v1524
    %v1526 = vpop.f32.mrb[0].mxu0
    %v1527 = vadd.f32 %v742, %v1526
    %v1528 = vpop.f32.mrb[0].mxu0
    %v1529 = vadd.f32 %v746, %v1528
    %1530 = vmatprep.mubr.bf16.mxu0 0
    %1531 = vmatmul.mubr.bf16.gmra.mrb[0].mxu0 %v1023
    %v1532 = vpop.f32.mrb[0].mxu0
    %v1533 = vadd.f32 %v742, %v1532
    %v1534 = vpop.f32.mrb[0].mxu0
    %v1535 = vadd.f32 %v746, %v1534
    %v1536 = vpop.f32.mrb[0].mxu0
    %v1537 = vadd.f32 %v742, %v1536
    %v1538 = vpop.f32.mrb[0].mxu0
    %v1539 = vadd.f32 %v746, %v1538
    %1540 = vmatprep.mubr.bf16.mxu0 0
    %1541 = vmatmul.mubr.bf16.gmra.mrb[0].mxu0 %v1026
    %v1542 = vpop.f32.mrb[0].mxu0
    %v1543 = vadd.f32 %v742, %v1542
    %v1544 = vpop.f32.mrb[0].mxu0
    %v1545 = vadd.f32 %v746, %v1544
    %v1546 = vpop.f32.mrb[0].mxu0
    %v1547 = vadd.f32 %v742, %v1546
    %v1548 = vpop.f32.mrb[0].mxu0
    %v1549 = vadd.f32 %v746, %v1548
    %1550 = vmatprep.mubr.bf16.mxu0 0
    %1551 = vmatmul.mubr.bf16.gmra.mrb[0].mxu0 %v1029
    %v1552 = vpop.f32.mrb[0].mxu0
    %v1553 = vadd.f32 %v742, %v1552
    %v1554 = vpop.f32.mrb[0].mxu0
    %v1555 = vadd.f32 %v746, %v1554
    %v1556 = vpop.f32.mrb[0].mxu0
    %v1557 = vadd.f32 %v742, %v1556
    %v1558 = vpop.f32.mrb[0].mxu0
    %v1559 = vadd.f32 %v746, %v1558
    %1560 = vmatprep.mubr.bf16.mxu0 0
    %1561 = vmatmul.mubr.bf16.gmra.mrb[0].mxu0 %v1032
    %v1562 = vpop.f32.mrb[0].mxu0
    %v1563 = vadd.f32 %v742, %v1562
    %v1564 = vpop.f32.mrb[0].mxu0
    %v1565 = vadd.f32 %v746, %v1564
    %v1566 = vpop.f32.mrb[0].mxu0
    %v1567 = vadd.f32 %v742, %v1566
    %v1568 = vpop.f32.mrb[0].mxu0
    %v1569 = vadd.f32 %v746, %v1568
    %1570 = vmatprep.mubr.bf16.mxu0 0
    %1571 = vmatmul.mubr.bf16.gmra.mrb[0].mxu0 %v1035
    %v1572 = vpop.f32.mrb[0].mxu0
    %v1573 = vadd.f32 %v742, %v1572
    %v1574 = vpop.f32.mrb[0].mxu0
    %v1575 = vadd.f32 %v746, %v1574
    %v1576 = vpop.f32.mrb[0].mxu0
    %v1577 = vadd.f32 %v742, %v1576
    %v1578 = vpop.f32.mrb[0].mxu0
    %v1579 = vadd.f32 %v746, %v1578
    %1580 = vmatprep.mubr.bf16.mxu0 0
    %1581 = vmatmul.mubr.bf16.gmra.mrb[0].mxu0 %v1038
    %v1582 = vpop.f32.mrb[0].mxu0
    %v1583 = vadd.f32 %v742, %v1582
    %v1584 = vpop.f32.mrb[0].mxu0
    %v1585 = vadd.f32 %v746, %v1584
    %v1586 = vpop.f32.mrb[0].mxu0
    %v1587 = vadd.f32 %v742, %v1586
    %v1588 = vpop.f32.mrb[0].mxu0
    %v1589 = vadd.f32 %v746, %v1588
    %1590 = vmatprep.mubr.bf16.mxu0 0
    %1591 = vmatmul.mubr.bf16.gmra.mrb[0].mxu0 %v1041
    %v1592 = vpop.f32.mrb[0].mxu0
    %v1593 = vadd.f32 %v742, %v1592
    %v1594 = vpop.f32.mrb[0].mxu0
    %v1595 = vadd.f32 %v746, %v1594
    %v1596 = vpop.f32.mrb[0].mxu0
    %v1597 = vadd.f32 %v742, %v1596
    %v1598 = vpop.f32.mrb[0].mxu0
    %v1599 = vadd.f32 %v746, %v1598
    %1600 = vmatprep.mubr.bf16.mxu0 0
    %1601 = vmatmul.mubr.bf16.gmra.mrb[0].mxu0 %v1044
    %v1602 = vpop.f32.mrb[0].mxu0
    %v1603 = vadd.f32 %v742, %v1602
    %v1604 = vpop.f32.mrb[0].mxu0
    %v1605 = vadd.f32 %v746, %v1604
    %v1606 = vpop.f32.mrb[0].mxu0
    %v1607 = vadd.f32 %v742, %v1606
    %v1608 = vpop.f32.mrb[0].mxu0
    %v1609 = vadd.f32 %v746, %v1608
    %1610 = vmatprep.mubr.bf16.mxu0 0
    %1611 = vmatmul.mubr.bf16.gmra.mrb[0].mxu0 %v1047
    %v1612 = vpop.f32.mrb[0].mxu0
    %v1613 = vadd.f32 %v742, %v1612
    %v1614 = vpop.f32.mrb[0].mxu0
    %v1615 = vadd.f32 %v746, %v1614
    %v1616 = vpop.f32.mrb[0].mxu0
    %v1617 = vadd.f32 %v742, %v1616
    %v1618 = vpop.f32.mrb[0].mxu0
    %v1619 = vadd.f32 %v746, %v1618
    %1620 = vmatprep.mubr.bf16.mxu0 0
    %1621 = vmatmul.mubr.bf16.gmra.mrb[0].mxu0 %v1050
    %v1622 = vpop.f32.mrb[0].mxu0
    %v1623 = vadd.f32 %v742, %v1622
    %v1624 = vpop.f32.mrb[0].mxu0
    %v1625 = vadd.f32 %v746, %v1624
    %v1626 = vpop.f32.mrb[0].mxu0
    %v1627 = vadd.f32 %v742, %v1626
    %v1628 = vpop.f32.mrb[0].mxu0
    %v1629 = vadd.f32 %v746, %v1628
    %1630 = vdwg.mxu0
    %1631 = vmatprep.subr.bf16.mxu0 %v914
    %1632 = vmatpush1.bf16.msra.mxu0 %v913
    %1633 = vmatprep.subr.bf16.mxu0 %v922
    %1634 = vmatpush1.bf16.msra.mxu0 %v921
    %1635 = vmatprep.subr.bf16.mxu0 %v930
    %1636 = vmatpush1.bf16.msra.mxu0 %v929
    %1637 = vmatprep.subr.bf16.mxu0 %v938
    %1638 = vmatpush1.bf16.msra.mxu0 %v937
    %1639 = vmatprep.subr.bf16.mxu0 %v946
    %1640 = vmatpush1.bf16.msra.mxu0 %v945
    %1641 = vmatprep.subr.bf16.mxu0 %v954
    %1642 = vmatpush1.bf16.msra.mxu0 %v953
    %1643 = vmatprep.subr.bf16.mxu0 0
    %1644 = vmatpush1.bf16.msra.mxu0 0
    %1645 = vmatprep.subr.bf16.mxu0 0
    %1646 = vmatpush1.bf16.msra.mxu0 0
    %1647 = vmatprep.subr.bf16.mxu0 0
    %1648 = vmatpush1.bf16.msra.mxu0 0
    %1649 = vmatprep.subr.bf16.mxu0 0
    %1650 = vmatpush1.bf16.msra.mxu0 0
    %1651 = vmatprep.subr.bf16.mxu0 0
    %1652 = vmatpush1.bf16.msra.mxu0 0
    %1653 = vmatprep.subr.bf16.mxu0 0
    %1654 = vmatpush1.bf16.msra.mxu0 0
    %1655 = vmatprep.subr.bf16.mxu0 0
    %1656 = vmatpush1.bf16.msra.mxu0 0
    %1657 = vmatprep.subr.bf16.mxu0 0
    %1658 = vmatpush1.bf16.msra.mxu0 0
    %1659 = vmatprep.subr.bf16.mxu0 0
    %1660 = vmatpush1.bf16.msra.mxu0 0
    %1661 = vmatprep.subr.bf16.mxu0 0
    %1662 = vmatpush1.bf16.msra.mxu0 0
    %1663 = vmatprep.mubr.bf16.mxu0 0
    %1664 = vmatmul.mubr.bf16.gmra.mrb[0].mxu0 %v1005
    %v1665 = vpop.f32.mrb[0].mxu0
    %v1666 = vadd.f32 %v750, %v1665
    %v1667 = vpop.f32.mrb[0].mxu0
    %v1668 = vadd.f32 %v754, %v1667
    %v1669 = vpop.f32.mrb[0].mxu0
    %v1670 = vadd.f32 %v750, %v1669
    %v1671 = vpop.f32.mrb[0].mxu0
    %v1672 = vadd.f32 %v754, %v1671
    %1673 = vmatprep.mubr.bf16.mxu0 0
    %1674 = vmatmul.mubr.bf16.gmra.mrb[0].mxu0 %v1008
    %v1675 = vpop.f32.mrb[0].mxu0
    %v1676 = vadd.f32 %v750, %v1675
    %v1677 = vpop.f32.mrb[0].mxu0
    %v1678 = vadd.f32 %v754, %v1677
    %v1679 = vpop.f32.mrb[0].mxu0
    %v1680 = vadd.f32 %v750, %v1679
    %v1681 = vpop.f32.mrb[0].mxu0
    %v1682 = vadd.f32 %v754, %v1681
    %1683 = vmatprep.mubr.bf16.mxu0 0
    %1684 = vmatmul.mubr.bf16.gmra.mrb[0].mxu0 %v1011
    %v1685 = vpop.f32.mrb[0].mxu0
    %v1686 = vadd.f32 %v750, %v1685
    %v1687 = vpop.f32.mrb[0].mxu0
    %v1688 = vadd.f32 %v754, %v1687
    %v1689 = vpop.f32.mrb[0].mxu0
    %v1690 = vadd.f32 %v750, %v1689
    %v1691 = vpop.f32.mrb[0].mxu0
    %v1692 = vadd.f32 %v754, %v1691
    %1693 = vmatprep.mubr.bf16.mxu0 0
    %1694 = vmatmul.mubr.bf16.gmra.mrb[0].mxu0 %v1014
    %v1695 = vpop.f32.mrb[0].mxu0
    %v1696 = vadd.f32 %v750, %v1695
    %v1697 = vpop.f32.mrb[0].mxu0
    %v1698 = vadd.f32 %v754, %v1697
    %v1699 = vpop.f32.mrb[0].mxu0
    %v1700 = vadd.f32 %v750, %v1699
    %v1701 = vpop.f32.mrb[0].mxu0
    %v1702 = vadd.f32 %v754, %v1701
    %1703 = vmatprep.mubr.bf16.mxu0 0
    %1704 = vmatmul.mubr.bf16.gmra.mrb[0].mxu0 %v1017
    %v1705 = vpop.f32.mrb[0].mxu0
    %v1706 = vadd.f32 %v750, %v1705
    %v1707 = vpop.f32.mrb[0].mxu0
    %v1708 = vadd.f32 %v754, %v1707
    %v1709 = vpop.f32.mrb[0].mxu0
    %v1710 = vadd.f32 %v750, %v1709
    %v1711 = vpop.f32.mrb[0].mxu0
    %v1712 = vadd.f32 %v754, %v1711
    %1713 = vmatprep.mubr.bf16.mxu0 0
    %1714 = vmatmul.mubr.bf16.gmra.mrb[0].mxu0 %v1020
    %v1715 = vpop.f32.mrb[0].mxu0
    %v1716 = vadd.f32 %v750, %v1715
    %v1717 = vpop.f32.mrb[0].mxu0
    %v1718 = vadd.f32 %v754, %v1717
    %v1719 = vpop.f32.mrb[0].mxu0
    %v1720 = vadd.f32 %v750, %v1719
    %v1721 = vpop.f32.mrb[0].mxu0
    %v1722 = vadd.f32 %v754, %v1721
    %1723 = vmatprep.mubr.bf16.mxu0 0
    %1724 = vmatmul.mubr.bf16.gmra.mrb[0].mxu0 %v1023
    %v1725 = vpop.f32.mrb[0].mxu0
    %v1726 = vadd.f32 %v750, %v1725
    %v1727 = vpop.f32.mrb[0].mxu0
    %v1728 = vadd.f32 %v754, %v1727
    %v1729 = vpop.f32.mrb[0].mxu0
    %v1730 = vadd.f32 %v750, %v1729
    %v1731 = vpop.f32.mrb[0].mxu0
    %v1732 = vadd.f32 %v754, %v1731
    %1733 = vmatprep.mubr.bf16.mxu0 0
    %1734 = vmatmul.mubr.bf16.gmra.mrb[0].mxu0 %v1026
    %v1735 = vpop.f32.mrb[0].mxu0
    %v1736 = vadd.f32 %v750, %v1735
    %v1737 = vpop.f32.mrb[0].mxu0
    %v1738 = vadd.f32 %v754, %v1737
    %v1739 = vpop.f32.mrb[0].mxu0
    %v1740 = vadd.f32 %v750, %v1739
    %v1741 = vpop.f32.mrb[0].mxu0
    %v1742 = vadd.f32 %v754, %v1741
    %1743 = vmatprep.mubr.bf16.mxu0 0
    %1744 = vmatmul.mubr.bf16.gmra.mrb[0].mxu0 %v1029
    %v1745 = vpop.f32.mrb[0].mxu0
    %v1746 = vadd.f32 %v750, %v1745
    %v1747 = vpop.f32.mrb[0].mxu0
    %v1748 = vadd.f32 %v754, %v1747
    %v1749 = vpop.f32.mrb[0].mxu0
    %v1750 = vadd.f32 %v750, %v1749
    %v1751 = vpop.f32.mrb[0].mxu0
    %v1752 = vadd.f32 %v754, %v1751
    %1753 = vmatprep.mubr.bf16.mxu0 0
    %1754 = vmatmul.mubr.bf16.gmra.mrb[0].mxu0 %v1032
    %v1755 = vpop.f32.mrb[0].mxu0
    %v1756 = vadd.f32 %v750, %v1755
    %v1757 = vpop.f32.mrb[0].mxu0
    %v1758 = vadd.f32 %v754, %v1757
    %v1759 = vpop.f32.mrb[0].mxu0
    %v1760 = vadd.f32 %v750, %v1759
    %v1761 = vpop.f32.mrb[0].mxu0
    %v1762 = vadd.f32 %v754, %v1761
    %1763 = vmatprep.mubr.bf16.mxu0 0
    %1764 = vmatmul.mubr.bf16.gmra.mrb[0].mxu0 %v1035
    %v1765 = vpop.f32.mrb[0].mxu0
    %v1766 = vadd.f32 %v750, %v1765
    %v1767 = vpop.f32.mrb[0].mxu0
    %v1768 = vadd.f32 %v754, %v1767
    %v1769 = vpop.f32.mrb[0].mxu0
    %v1770 = vadd.f32 %v750, %v1769
    %v1771 = vpop.f32.mrb[0].mxu0
    %v1772 = vadd.f32 %v754, %v1771
    %1773 = vmatprep.mubr.bf16.mxu0 0
    %1774 = vmatmul.mubr.bf16.gmra.mrb[0].mxu0 %v1038
    %v1775 = vpop.f32.mrb[0].mxu0
    %v1776 = vadd.f32 %v750, %v1775
    %v1777 = vpop.f32.mrb[0].mxu0
    %v1778 = vadd.f32 %v754, %v1777
    %v1779 = vpop.f32.mrb[0].mxu0
    %v1780 = vadd.f32 %v750, %v1779
    %v1781 = vpop.f32.mrb[0].mxu0
    %v1782 = vadd.f32 %v754, %v1781
    %1783 = vmatprep.mubr.bf16.mxu0 0
    %1784 = vmatmul.mubr.bf16.gmra.mrb[0].mxu0 %v1041
    %v1785 = vpop.f32.mrb[0].mxu0
    %v1786 = vadd.f32 %v750, %v1785
    %v1787 = vpop.f32.mrb[0].mxu0
    %v1788 = vadd.f32 %v754, %v1787
    %v1789 = vpop.f32.mrb[0].mxu0
    %v1790 = vadd.f32 %v750, %v1789
    %v1791 = vpop.f32.mrb[0].mxu0
    %v1792 = vadd.f32 %v754, %v1791
    %1793 = vmatprep.mubr.bf16.mxu0 0
    %1794 = vmatmul.mubr.bf16.gmra.mrb[0].mxu0 %v1044
    %v1795 = vpop.f32.mrb[0].mxu0
    %v1796 = vadd.f32 %v750, %v1795
    %v1797 = vpop.f32.mrb[0].mxu0
    %v1798 = vadd.f32 %v754, %v1797
    %v1799 = vpop.f32.mrb[0].mxu0
    %v1800 = vadd.f32 %v750, %v1799
    %v1801 = vpop.f32.mrb[0].mxu0
    %v1802 = vadd.f32 %v754, %v1801
    %1803 = vmatprep.mubr.bf16.mxu0 0
    %1804 = vmatmul.mubr.bf16.gmra.mrb[0].mxu0 %v1047
    %v1805 = vpop.f32.mrb[0].mxu0
    %v1806 = vadd.f32 %v750, %v1805
    %v1807 = vpop.f32.mrb[0].mxu0
    %v1808 = vadd.f32 %v754, %v1807
    %v1809 = vpop.f32.mrb[0].mxu0
    %v1810 = vadd.f32 %v750, %v1809
    %v1811 = vpop.f32.mrb[0].mxu0
    %v1812 = vadd.f32 %v754, %v1811
    %1813 = vmatprep.mubr.bf16.mxu0 0
    %1814 = vmatmul.mubr.bf16.gmra.mrb[0].mxu0 %v1050
    %v1815 = vpop.f32.mrb[0].mxu0
    %v1816 = vadd.f32 %v750, %v1815
    %v1817 = vpop.f32.mrb[0].mxu0
    %v1818 = vadd.f32 %v754, %v1817
    %v1819 = vpop.f32.mrb[0].mxu0
    %v1820 = vadd.f32 %v750, %v1819
    %v1821 = vpop.f32.mrb[0].mxu0
    %v1822 = vadd.f32 %v754, %v1821
    %1823 = vdwg.mxu0
    %v1824 = vtanh.pop %v1087
    %v1825 = vtanh.pop %v1089
    %v1826 = vtanh.pop %v1280
    %v1827 = vtanh.pop %v1282
    %v1828 = vtanh.pop %v1473
    %v1829 = vtanh.pop %v1475
    %v1830 = vtanh.pop %v1666
    %v1831 = vtanh.pop %v1668
    %v1832 = vtanh.pop %v1091
    %v1833 = vtanh.pop %v1093
    %v1834 = vtanh.pop %v1284
    %v1835 = vtanh.pop %v1286
    %v1836 = vtanh.pop %v1477
    %v1837 = vtanh.pop %v1479
    %v1838 = vtanh.pop %v1670
    %v1839 = vtanh.pop %v1672
    %v1840 = vtanh.pop %v1097
    %v1841 = vtanh.pop %v1099
    %v1842 = vtanh.pop %v1290
    %v1843 = vtanh.pop %v1292
    %v1844 = vtanh.pop %v1483
    %v1845 = vtanh.pop %v1485
    %v1846 = vtanh.pop %v1676
    %v1847 = vtanh.pop %v1678
    %v1848 = vtanh.pop %v1101
    %v1849 = vtanh.pop %v1103
    %v1850 = vtanh.pop %v1294
    %v1851 = vtanh.pop %v1296
    %v1852 = vtanh.pop %v1487
    %v1853 = vtanh.pop %v1489
    %v1854 = vtanh.pop %v1680
    %v1855 = vtanh.pop %v1682
    %v1856 = vtanh.pop %v1107
    %v1857 = vtanh.pop %v1109
    %v1858 = vtanh.pop %v1300
    %v1859 = vtanh.pop %v1302
    %v1860 = vtanh.pop %v1493
    %v1861 = vtanh.pop %v1495
    %v1862 = vtanh.pop %v1686
    %v1863 = vtanh.pop %v1688
    %v1864 = vtanh.pop %v1111
    %v1865 = vtanh.pop %v1113
    %v1866 = vtanh.pop %v1304
    %v1867 = vtanh.pop %v1306
    %v1868 = vtanh.pop %v1497
    %v1869 = vtanh.pop %v1499
    %v1870 = vtanh.pop %v1690
    %v1871 = vtanh.pop %v1692
    %v1872 = vtanh.pop %v1117
    %v1873 = vtanh.pop %v1119
    %v1874 = vtanh.pop %v1310
    %v1875 = vtanh.pop %v1312
    %v1876 = vtanh.pop %v1503
    %v1877 = vtanh.pop %v1505
    %v1878 = vtanh.pop %v1696
    %v1879 = vtanh.pop %v1698
    %v1880 = vtanh.pop %v1121
    %v1881 = vtanh.pop %v1123
    %v1882 = vtanh.pop %v1314
    %v1883 = vtanh.pop %v1316
    %v1884 = vtanh.pop %v1507
    %v1885 = vtanh.pop %v1509
    %v1886 = vtanh.pop %v1700
    %v1887 = vtanh.pop %v1702
    %v1888 = vtanh.pop %v1127
    %v1889 = vtanh.pop %v1129
    %v1890 = vtanh.pop %v1320
    %v1891 = vtanh.pop %v1322
    %v1892 = vtanh.pop %v1513
    %v1893 = vtanh.pop %v1515
    %v1894 = vtanh.pop %v1706
    %v1895 = vtanh.pop %v1708
    %v1896 = vtanh.pop %v1131
    %v1897 = vtanh.pop %v1133
    %v1898 = vtanh.pop %v1324
    %v1899 = vtanh.pop %v1326
    %v1900 = vtanh.pop %v1517
    %v1901 = vtanh.pop %v1519
    %v1902 = vtanh.pop %v1710
    %v1903 = vtanh.pop %v1712
    %v1904 = vtanh.pop %v1137
    %v1905 = vtanh.pop %v1139
    %v1906 = vtanh.pop %v1330
    %v1907 = vtanh.pop %v1332
    %v1908 = vtanh.pop %v1523
    %v1909 = vtanh.pop %v1525
    %v1910 = vtanh.pop %v1716
    %v1911 = vtanh.pop %v1718
    %v1912 = vtanh.pop %v1141
    %v1913 = vtanh.pop %v1143
    %v1914 = vtanh.pop %v1334
    %v1915 = vtanh.pop %v1336
    %v1916 = vtanh.pop %v1527
    %v1917 = vtanh.pop %v1529
    %v1918 = vtanh.pop %v1720
    %v1919 = vtanh.pop %v1722
    %v1920 = vtanh.pop %v1147
    %v1921 = vtanh.pop %v1149
    %v1922 = vtanh.pop %v1340
    %v1923 = vtanh.pop %v1342
    %v1924 = vtanh.pop %v1533
    %v1925 = vtanh.pop %v1535
    %v1926 = vtanh.pop %v1726
    %v1927 = vtanh.pop %v1728
    %v1928 = vtanh.pop %v1151
    %v1929 = vtanh.pop %v1153
    %v1930 = vtanh.pop %v1344
    %v1931 = vtanh.pop %v1346
    %v1932 = vtanh.pop %v1537
    %v1933 = vtanh.pop %v1539
    %v1934 = vtanh.pop %v1730
    %v1935 = vtanh.pop %v1732
    %v1936 = vtanh.pop %v1157
    %v1937 = vtanh.pop %v1159
    %v1938 = vtanh.pop %v1350
    %v1939 = vtanh.pop %v1352
    %v1940 = vtanh.pop %v1543
    %v1941 = vtanh.pop %v1545
    %v1942 = vtanh.pop %v1736
    %v1943 = vtanh.pop %v1738
    %v1944 = vtanh.pop %v1161
    %v1945 = vtanh.pop %v1163
    %v1946 = vtanh.pop %v1354
    %v1947 = vtanh.pop %v1356
    %v1948 = vtanh.pop %v1547
    %v1949 = vtanh.pop %v1549
    %v1950 = vtanh.pop %v1740
    %v1951 = vtanh.pop %v1742
    %v1952 = vtanh.pop %v1167
    %v1953 = vtanh.pop %v1169
    %v1954 = vtanh.pop %v1360
    %v1955 = vtanh.pop %v1362
    %v1956 = vtanh.pop %v1553
    %v1957 = vtanh.pop %v1555
    %v1958 = vtanh.pop %v1746
    %v1959 = vtanh.pop %v1748
    %v1960 = vtanh.pop %v1171
    %v1961 = vtanh.pop %v1173
    %v1962 = vtanh.pop %v1364
    %v1963 = vtanh.pop %v1366
    %v1964 = vtanh.pop %v1557
    %v1965 = vtanh.pop %v1559
    %v1966 = vtanh.pop %v1750
    %v1967 = vtanh.pop %v1752
    %v1968 = vtanh.pop %v1177
    %v1969 = vtanh.pop %v1179
    %v1970 = vtanh.pop %v1370
    %v1971 = vtanh.pop %v1372
    %v1972 = vtanh.pop %v1563
    %v1973 = vtanh.pop %v1565
    %v1974 = vtanh.pop %v1756
    %v1975 = vtanh.pop %v1758
    %v1976 = vtanh.pop %v1181
    %v1977 = vtanh.pop %v1183
    %v1978 = vtanh.pop %v1374
    %v1979 = vtanh.pop %v1376
    %v1980 = vtanh.pop %v1567
    %v1981 = vtanh.pop %v1569
    %v1982 = vtanh.pop %v1760
    %v1983 = vtanh.pop %v1762
    %v1984 = vtanh.pop %v1187
    %v1985 = vtanh.pop %v1189
    %v1986 = vtanh.pop %v1380
    %v1987 = vtanh.pop %v1382
    %v1988 = vtanh.pop %v1573
    %v1989 = vtanh.pop %v1575
    %v1990 = vtanh.pop %v1766
    %v1991 = vtanh.pop %v1768
    %v1992 = vtanh.pop %v1191
    %v1993 = vtanh.pop %v1193
    %v1994 = vtanh.pop %v1384
    %v1995 = vtanh.pop %v1386
    %v1996 = vtanh.pop %v1577
    %v1997 = vtanh.pop %v1579
    %v1998 = vtanh.pop %v1770
    %v1999 = vtanh.pop %v1772
    %v2000 = vtanh.pop %v1197
    %v2001 = vtanh.pop %v1199
    %v2002 = vtanh.pop %v1390
    %v2003 = vtanh.pop %v1392
    %v2004 = vtanh.pop %v1583
    %v2005 = vtanh.pop %v1585
    %v2006 = vtanh.pop %v1776
    %v2007 = vtanh.pop %v1778
    %v2008 = vtanh.pop %v1201
    %v2009 = vtanh.pop %v1203
    %v2010 = vtanh.pop %v1394
    %v2011 = vtanh.pop %v1396
    %v2012 = vtanh.pop %v1587
    %v2013 = vtanh.pop %v1589
    %v2014 = vtanh.pop %v1780
    %v2015 = vtanh.pop %v1782
    %v2016 = vtanh.pop %v1207
    %v2017 = vtanh.pop %v1209
    %v2018 = vtanh.pop %v1400
    %v2019 = vtanh.pop %v1402
    %v2020 = vtanh.pop %v1593
    %v2021 = vtanh.pop %v1595
    %v2022 = vtanh.pop %v1786
    %v2023 = vtanh.pop %v1788
    %v2024 = vtanh.pop %v1211
    %v2025 = vtanh.pop %v1213
    %v2026 = vtanh.pop %v1404
    %v2027 = vtanh.pop %v1406
    %v2028 = vtanh.pop %v1597
    %v2029 = vtanh.pop %v1599
    %v2030 = vtanh.pop %v1790
    %v2031 = vtanh.pop %v1792
    %v2032 = vtanh.pop %v1217
    %v2033 = vtanh.pop %v1219
    %v2034 = vtanh.pop %v1410
    %v2035 = vtanh.pop %v1412
    %v2036 = vtanh.pop %v1603
    %v2037 = vtanh.pop %v1605
    %v2038 = vtanh.pop %v1796
    %v2039 = vtanh.pop %v1798
    %v2040 = vtanh.pop %v1221
    %v2041 = vtanh.pop %v1223
    %v2042 = vtanh.pop %v1414
    %v2043 = vtanh.pop %v1416
    %v2044 = vtanh.pop %v1607
    %v2045 = vtanh.pop %v1609
    %v2046 = vtanh.pop %v1800
    %v2047 = vtanh.pop %v1802
    %v2048 = vtanh.pop %v1227
    %v2049 = vtanh.pop %v1229
    %v2050 = vtanh.pop %v1420
    %v2051 = vtanh.pop %v1422
    %v2052 = vtanh.pop %v1613
    %v2053 = vtanh.pop %v1615
    %v2054 = vtanh.pop %v1806
    %v2055 = vtanh.pop %v1808
    %v2056 = vtanh.pop %v1231
    %v2057 = vtanh.pop %v1233
    %v2058 = vtanh.pop %v1424
    %v2059 = vtanh.pop %v1426
    %v2060 = vtanh.pop %v1617
    %v2061 = vtanh.pop %v1619
    %v2062 = vtanh.pop %v1810
    %v2063 = vtanh.pop %v1812
    %v2064 = vtanh.pop %v1237
    %v2065 = vtanh.pop %v1239
    %v2066 = vtanh.pop %v1430
    %v2067 = vtanh.pop %v1432
    %v2068 = vtanh.pop %v1623
    %v2069 = vtanh.pop %v1625
    %v2070 = vtanh.pop %v1816
    %v2071 = vtanh.pop %v1818
    %v2072 = vtanh.pop %v1241
    %v2073 = vtanh.pop %v1243
    %v2074 = vtanh.pop %v1434
    %v2075 = vtanh.pop %v1436
    %v2076 = vtanh.pop %v1627
    %v2077 = vtanh.pop %v1629
    %v2078 = vtanh.pop %v1820
    %v2079 = vtanh.pop %v1822
    %v2080 = vpack.c.bf16 %v1832, %v1824
    %v2081 = vpack.c.bf16 %v1833, %v1825
    %v2082 = vpack.c.bf16 %v1834, %v1826
    %v2083 = vpack.c.bf16 %v1835, %v1827
    %v2084 = vpack.c.bf16 %v1836, %v1828
    %v2085 = vpack.c.bf16 %v1837, %v1829
    %v2086 = vpack.c.bf16 %v1838, %v1830
    %v2087 = vpack.c.bf16 %v1839, %v1831
    %v2088 = vpack.c.bf16 %v1848, %v1840
    %v2089 = vpack.c.bf16 %v1849, %v1841
    %v2090 = vpack.c.bf16 %v1850, %v1842
    %v2091 = vpack.c.bf16 %v1851, %v1843
    %v2092 = vpack.c.bf16 %v1852, %v1844
    %v2093 = vpack.c.bf16 %v1853, %v1845
    %v2094 = vpack.c.bf16 %v1854, %v1846
    %v2095 = vpack.c.bf16 %v1855, %v1847
    %v2096 = vpack.c.bf16 %v1864, %v1856
    %v2097 = vpack.c.bf16 %v1865, %v1857
    %v2098 = vpack.c.bf16 %v1866, %v1858
    %v2099 = vpack.c.bf16 %v1867, %v1859
    %v2100 = vpack.c.bf16 %v1868, %v1860
    %v2101 = vpack.c.bf16 %v1869, %v1861
    %v2102 = vpack.c.bf16 %v1870, %v1862
    %v2103 = vpack.c.bf16 %v1871, %v1863
    %v2104 = vpack.c.bf16 %v1880, %v1872
    %v2105 = vpack.c.bf16 %v1881, %v1873
    %v2106 = vpack.c.bf16 %v1882, %v1874
    %v2107 = vpack.c.bf16 %v1883, %v1875
    %v2108 = vpack.c.bf16 %v1884, %v1876
    %v2109 = vpack.c.bf16 %v1885, %v1877
    %v2110 = vpack.c.bf16 %v1886, %v1878
    %v2111 = vpack.c.bf16 %v1887, %v1879
    %v2112 = vpack.c.bf16 %v1896, %v1888
    %v2113 = vpack.c.bf16 %v1897, %v1889
    %v2114 = vpack.c.bf16 %v1898, %v1890
    %v2115 = vpack.c.bf16 %v1899, %v1891
    %v2116 = vpack.c.bf16 %v1900, %v1892
    %v2117 = vpack.c.bf16 %v1901, %v1893
    %v2118 = vpack.c.bf16 %v1902, %v1894
    %v2119 = vpack.c.bf16 %v1903, %v1895
    %v2120 = vpack.c.bf16 %v1912, %v1904
    %v2121 = vpack.c.bf16 %v1913, %v1905
    %v2122 = vpack.c.bf16 %v1914, %v1906
    %v2123 = vpack.c.bf16 %v1915, %v1907
    %v2124 = vpack.c.bf16 %v1916, %v1908
    %v2125 = vpack.c.bf16 %v1917, %v1909
    %v2126 = vpack.c.bf16 %v1918, %v1910
    %v2127 = vpack.c.bf16 %v1919, %v1911
    %v2128 = vpack.c.bf16 %v1928, %v1920
    %v2129 = vpack.c.bf16 %v1929, %v1921
    %v2130 = vpack.c.bf16 %v1930, %v1922
    %v2131 = vpack.c.bf16 %v1931, %v1923
    %v2132 = vpack.c.bf16 %v1932, %v1924
    %v2133 = vpack.c.bf16 %v1933, %v1925
    %v2134 = vpack.c.bf16 %v1934, %v1926
    %v2135 = vpack.c.bf16 %v1935, %v1927
    %v2136 = vpack.c.bf16 %v1944, %v1936
    %v2137 = vpack.c.bf16 %v1945, %v1937
    %v2138 = vpack.c.bf16 %v1946, %v1938
    %v2139 = vpack.c.bf16 %v1947, %v1939
    %v2140 = vpack.c.bf16 %v1948, %v1940
    %v2141 = vpack.c.bf16 %v1949, %v1941
    %v2142 = vpack.c.bf16 %v1950, %v1942
    %v2143 = vpack.c.bf16 %v1951, %v1943
    %v2144 = vpack.c.bf16 %v1960, %v1952
    %v2145 = vpack.c.bf16 %v1961, %v1953
    %v2146 = vpack.c.bf16 %v1962, %v1954
    %v2147 = vpack.c.bf16 %v1963, %v1955
    %v2148 = vpack.c.bf16 %v1964, %v1956
    %v2149 = vpack.c.bf16 %v1965, %v1957
    %v2150 = vpack.c.bf16 %v1966, %v1958
    %v2151 = vpack.c.bf16 %v1967, %v1959
    %v2152 = vpack.c.bf16 %v1976, %v1968
    %v2153 = vpack.c.bf16 %v1977, %v1969
    %v2154 = vpack.c.bf16 %v1978, %v1970
    %v2155 = vpack.c.bf16 %v1979, %v1971
    %v2156 = vpack.c.bf16 %v1980, %v1972
    %v2157 = vpack.c.bf16 %v1981, %v1973
    %v2158 = vpack.c.bf16 %v1982, %v1974
    %v2159 = vpack.c.bf16 %v1983, %v1975
    %v2160 = vpack.c.bf16 %v1992, %v1984
    %v2161 = vpack.c.bf16 %v1993, %v1985
    %v2162 = vpack.c.bf16 %v1994, %v1986
    %v2163 = vpack.c.bf16 %v1995, %v1987
    %v2164 = vpack.c.bf16 %v1996, %v1988
    %v2165 = vpack.c.bf16 %v1997, %v1989
    %v2166 = vpack.c.bf16 %v1998, %v1990
    %v2167 = vpack.c.bf16 %v1999, %v1991
    %v2168 = vpack.c.bf16 %v2008, %v2000
    %v2169 = vpack.c.bf16 %v2009, %v2001
    %v2170 = vpack.c.bf16 %v2010, %v2002
    %v2171 = vpack.c.bf16 %v2011, %v2003
    %v2172 = vpack.c.bf16 %v2012, %v2004
    %v2173 = vpack.c.bf16 %v2013, %v2005
    %v2174 = vpack.c.bf16 %v2014, %v2006
    %v2175 = vpack.c.bf16 %v2015, %v2007
    %v2176 = vpack.c.bf16 %v2024, %v2016
    %v2177 = vpack.c.bf16 %v2025, %v2017
    %v2178 = vpack.c.bf16 %v2026, %v2018
    %v2179 = vpack.c.bf16 %v2027, %v2019
    %v2180 = vpack.c.bf16 %v2028, %v2020
    %v2181 = vpack.c.bf16 %v2029, %v2021
    %v2182 = vpack.c.bf16 %v2030, %v2022
    %v2183 = vpack.c.bf16 %v2031, %v2023
    %v2184 = vpack.c.bf16 %v2040, %v2032
    %v2185 = vpack.c.bf16 %v2041, %v2033
    %v2186 = vpack.c.bf16 %v2042, %v2034
    %v2187 = vpack.c.bf16 %v2043, %v2035
    %v2188 = vpack.c.bf16 %v2044, %v2036
    %v2189 = vpack.c.bf16 %v2045, %v2037
    %v2190 = vpack.c.bf16 %v2046, %v2038
    %v2191 = vpack.c.bf16 %v2047, %v2039
    %v2192 = vpack.c.bf16 %v2056, %v2048
    %v2193 = vpack.c.bf16 %v2057, %v2049
    %v2194 = vpack.c.bf16 %v2058, %v2050
    %v2195 = vpack.c.bf16 %v2059, %v2051
    %v2196 = vpack.c.bf16 %v2060, %v2052
    %v2197 = vpack.c.bf16 %v2061, %v2053
    %v2198 = vpack.c.bf16 %v2062, %v2054
    %v2199 = vpack.c.bf16 %v2063, %v2055
    %v2200 = vpack.c.bf16 %v2072, %v2064
    %v2201 = vpack.c.bf16 %v2073, %v2065
    %v2202 = vpack.c.bf16 %v2074, %v2066
    %v2203 = vpack.c.bf16 %v2075, %v2067
    %v2204 = vpack.c.bf16 %v2076, %v2068
    %v2205 = vpack.c.bf16 %v2077, %v2069
    %v2206 = vpack.c.bf16 %v2078, %v2070
    %v2207 = vpack.c.bf16 %v2079, %v2071
    %v2208 = vld [vmem:[#allocation7] sm:$0xff]
    %v2209 = vld [vmem:[#allocation7 + $0x8] sm:$0xff]
    %v2210 = vld [vmem:[#allocation7 + $0x10] sm:$0xff]
    %v2211 = vld [vmem:[#allocation7 + $0x18] sm:$0xff]
    %v2212 = vld [vmem:[#allocation7 + $0x20] sm:$0xff]
    %v2213 = vld [vmem:[#allocation7 + $0x28] sm:$0xff]
    %v2214 = vld [vmem:[#allocation7 + $0x30] sm:$0xff]
    %v2215 = vld [vmem:[#allocation7 + $0x38] sm:$0xff]
    %v2216 = vld [vmem:[#allocation7 + $0x40] sm:$0xff]
    %v2217 = vld [vmem:[#allocation7 + $0x48] sm:$0xff]
    %v2218 = vld [vmem:[#allocation7 + $0x50] sm:$0xff]
    %v2219 = vld [vmem:[#allocation7 + $0x58] sm:$0xff]
    %v2220 = vld [vmem:[#allocation7 + $0x60] sm:$0xff]
    %v2221 = vld [vmem:[#allocation7 + $0x68] sm:$0xff]
    %v2222 = vld [vmem:[#allocation7 + $0x70] sm:$0xff]
    %v2223 = vld [vmem:[#allocation7 + $0x78] sm:$0xff]
    %v2224 = vld [vmem:[#allocation7 + $0x80] sm:$0xff]
    %v2225 = vld [vmem:[#allocation7 + $0x88] sm:$0xff]
    %v2226 = vld [vmem:[#allocation7 + $0x90] sm:$0xff]
    %v2227 = vld [vmem:[#allocation7 + $0x98] sm:$0xff]
    %v2228 = vld [vmem:[#allocation7 + $0xa0] sm:$0xff]
    %v2229 = vld [vmem:[#allocation7 + $0xa8] sm:$0xff]
    %v2230 = vld [vmem:[#allocation7 + $0xb0] sm:$0xff]
    %v2231 = vld [vmem:[#allocation7 + $0xb8] sm:$0xff]
    %v2232 = vld [vmem:[#allocation7 + $0xc0] sm:$0xff]
    %v2233 = vld [vmem:[#allocation7 + $0xc8] sm:$0xff]
    %v2234 = vld [vmem:[#allocation7 + $0xd0] sm:$0xff]
    %v2235 = vld [vmem:[#allocation7 + $0xd8] sm:$0xff]
    %v2236 = vld [vmem:[#allocation7 + $0xe0] sm:$0xff]
    %v2237 = vld [vmem:[#allocation7 + $0xe8] sm:$0xff]
    %v2238 = vld [vmem:[#allocation7 + $0xf0] sm:$0xff]
    %v2239 = vld [vmem:[#allocation7 + $0xf8] sm:$0xff]
    %v2240 = vld [vmem:[#allocation7 + $0x100] sm:$0xff]
    %v2241 = vld [vmem:[#allocation7 + $0x108] sm:$0xff]
    %v2242 = vld [vmem:[#allocation7 + $0x110] sm:$0xff]
    %v2243 = vld [vmem:[#allocation7 + $0x118] sm:$0xff]
    %v2244 = vld [vmem:[#allocation7 + $0x120] sm:$0xff]
    %v2245 = vld [vmem:[#allocation7 + $0x128] sm:$0xff]
    %v2246 = vld [vmem:[#allocation7 + $0x130] sm:$0xff]
    %v2247 = vld [vmem:[#allocation7 + $0x138] sm:$0xff]
    %v2248 = vld [vmem:[#allocation7 + $0x140] sm:$0xff]
    %v2249 = vld [vmem:[#allocation7 + $0x148] sm:$0xff]
    %v2250 = vld [vmem:[#allocation7 + $0x150] sm:$0xff]
    %v2251 = vld [vmem:[#allocation7 + $0x158] sm:$0xff]
    %v2252 = vld [vmem:[#allocation7 + $0x160] sm:$0xff]
    %v2253 = vld [vmem:[#allocation7 + $0x168] sm:$0xff]
    %v2254 = vld [vmem:[#allocation7 + $0x170] sm:$0xff]
    %v2255 = vld [vmem:[#allocation7 + $0x178] sm:$0xff]
    %v2256 = vld [vmem:[#allocation7 + $0x180] sm:$0xff]
    %v2257 = vld [vmem:[#allocation7 + $0x188] sm:$0xff]
    %v2258 = vld [vmem:[#allocation7 + $0x190] sm:$0xff]
    %v2259 = vld [vmem:[#allocation7 + $0x198] sm:$0xff]
    %v2260 = vld [vmem:[#allocation7 + $0x1a0] sm:$0xff]
    %v2261 = vld [vmem:[#allocation7 + $0x1a8] sm:$0xff]
    %v2262 = vld [vmem:[#allocation7 + $0x1b0] sm:$0xff]
    %v2263 = vld [vmem:[#allocation7 + $0x1b8] sm:$0xff]
    %v2264 = vld [vmem:[#allocation7 + $0x1c0] sm:$0xff]
    %v2265 = vld [vmem:[#allocation7 + $0x1c8] sm:$0xff]
    %v2266 = vld [vmem:[#allocation7 + $0x1d0] sm:$0xff]
    %v2267 = vld [vmem:[#allocation7 + $0x1d8] sm:$0xff]
    %v2268 = vld [vmem:[#allocation7 + $0x1e0] sm:$0xff]
    %v2269 = vld [vmem:[#allocation7 + $0x1e8] sm:$0xff]
    %v2270 = vld [vmem:[#allocation7 + $0x1f0] sm:$0xff]
    %v2271 = vld [vmem:[#allocation7 + $0x1f8] sm:$0xff]
    %v2272 = vld [vmem:[#allocation7 + $0x200] sm:$0xff]
    %v2273 = vld [vmem:[#allocation7 + $0x208] sm:$0xff]
    %v2274 = vld [vmem:[#allocation7 + $0x210] sm:$0xff]
    %v2275 = vld [vmem:[#allocation7 + $0x218] sm:$0xff]
    %v2276 = vld [vmem:[#allocation7 + $0x220] sm:$0xff]
    %v2277 = vld [vmem:[#allocation7 + $0x228] sm:$0xff]
    %v2278 = vld [vmem:[#allocation7 + $0x230] sm:$0xff]
    %v2279 = vld [vmem:[#allocation7 + $0x238] sm:$0xff]
    %v2280 = vld [vmem:[#allocation7 + $0x240] sm:$0xff]
    %v2281 = vld [vmem:[#allocation7 + $0x248] sm:$0xff]
    %v2282 = vld [vmem:[#allocation7 + $0x250] sm:$0xff]
    %v2283 = vld [vmem:[#allocation7 + $0x258] sm:$0xff]
    %v2284 = vld [vmem:[#allocation7 + $0x260] sm:$0xff]
    %v2285 = vld [vmem:[#allocation7 + $0x268] sm:$0xff]
    %v2286 = vld [vmem:[#allocation7 + $0x270] sm:$0xff]
    %v2287 = vld [vmem:[#allocation7 + $0x278] sm:$0xff]
    %v2288 = vld [vmem:[#allocation7 + $0x280] sm:$0xff]
    %v2289 = vld [vmem:[#allocation7 + $0x288] sm:$0xff]
    %v2290 = vld [vmem:[#allocation7 + $0x290] sm:$0xff]
    %v2291 = vld [vmem:[#allocation7 + $0x298] sm:$0xff]
    %v2292 = vld [vmem:[#allocation7 + $0x2a0] sm:$0xff]
    %v2293 = vld [vmem:[#allocation7 + $0x2a8] sm:$0xff]
    %v2294 = vld [vmem:[#allocation7 + $0x2b0] sm:$0xff]
    %v2295 = vld [vmem:[#allocation7 + $0x2b8] sm:$0xff]
    %v2296 = vld [vmem:[#allocation7 + $0x2c0] sm:$0xff]
    %v2297 = vld [vmem:[#allocation7 + $0x2c8] sm:$0xff]
    %v2298 = vld [vmem:[#allocation7 + $0x2d0] sm:$0xff]
    %v2299 = vld [vmem:[#allocation7 + $0x2d8] sm:$0xff]
    %v2300 = vld [vmem:[#allocation7 + $0x2e0] sm:$0xff]
    %v2301 = vld [vmem:[#allocation7 + $0x2e8] sm:$0xff]
    %v2302 = vld [vmem:[#allocation7 + $0x2f0] sm:$0xff]
    %v2303 = vld [vmem:[#allocation7 + $0x2f8] sm:$0xff]
    %v2304 = vld [vmem:[#allocation7 + $0x300] sm:$0xff]
    %v2305 = vld [vmem:[#allocation7 + $0x308] sm:$0xff]
    %v2306 = vld [vmem:[#allocation7 + $0x310] sm:$0xff]
    %v2307 = vld [vmem:[#allocation7 + $0x318] sm:$0xff]
    %v2308 = vld [vmem:[#allocation7 + $0x320] sm:$0xff]
    %v2309 = vld [vmem:[#allocation7 + $0x328] sm:$0xff]
    %v2310 = vld [vmem:[#allocation7 + $0x330] sm:$0xff]
    %v2311 = vld [vmem:[#allocation7 + $0x338] sm:$0xff]
    %v2312 = vld [vmem:[#allocation7 + $0x340] sm:$0xff]
    %v2313 = vld [vmem:[#allocation7 + $0x348] sm:$0xff]
    %v2314 = vld [vmem:[#allocation7 + $0x350] sm:$0xff]
    %v2315 = vld [vmem:[#allocation7 + $0x358] sm:$0xff]
    %v2316 = vld [vmem:[#allocation7 + $0x360] sm:$0xff]
    %v2317 = vld [vmem:[#allocation7 + $0x368] sm:$0xff]
    %v2318 = vld [vmem:[#allocation7 + $0x370] sm:$0xff]
    %v2319 = vld [vmem:[#allocation7 + $0x378] sm:$0xff]
    %v2320 = vld [vmem:[#allocation7 + $0x380] sm:$0xff]
    %v2321 = vld [vmem:[#allocation7 + $0x388] sm:$0xff]
    %v2322 = vld [vmem:[#allocation7 + $0x390] sm:$0xff]
    %v2323 = vld [vmem:[#allocation7 + $0x398] sm:$0xff]
    %v2324 = vld [vmem:[#allocation7 + $0x3a0] sm:$0xff]
    %v2325 = vld [vmem:[#allocation7 + $0x3a8] sm:$0xff]
    %v2326 = vld [vmem:[#allocation7 + $0x3b0] sm:$0xff]
    %v2327 = vld [vmem:[#allocation7 + $0x3b8] sm:$0xff]
    %v2328 = vld [vmem:[#allocation7 + $0x3c0] sm:$0xff]
    %v2329 = vld [vmem:[#allocation7 + $0x3c8] sm:$0xff]
    %v2330 = vld [vmem:[#allocation7 + $0x3d0] sm:$0xff]
    %v2331 = vld [vmem:[#allocation7 + $0x3d8] sm:$0xff]
    %v2332 = vld [vmem:[#allocation7 + $0x3e0] sm:$0xff]
    %v2333 = vld [vmem:[#allocation7 + $0x3e8] sm:$0xff]
    %v2334 = vld [vmem:[#allocation7 + $0x3f0] sm:$0xff]
    %v2335 = vld [vmem:[#allocation7 + $0x3f8] sm:$0xff]
    %v2336 = vld [vmem:[#allocation7 + $0x400] sm:$0xff]
    %v2337 = vld [vmem:[#allocation7 + $0x408] sm:$0xff]
    %v2338 = vld [vmem:[#allocation7 + $0x410] sm:$0xff]
    %v2339 = vld [vmem:[#allocation7 + $0x418] sm:$0xff]
    %v2340 = vld [vmem:[#allocation7 + $0x420] sm:$0xff]
    %v2341 = vld [vmem:[#allocation7 + $0x428] sm:$0xff]
    %v2342 = vld [vmem:[#allocation7 + $0x430] sm:$0xff]
    %v2343 = vld [vmem:[#allocation7 + $0x438] sm:$0xff]
    %v2344 = vld [vmem:[#allocation7 + $0x440] sm:$0xff]
    %v2345 = vld [vmem:[#allocation7 + $0x448] sm:$0xff]
    %v2346 = vld [vmem:[#allocation7 + $0x450] sm:$0xff]
    %v2347 = vld [vmem:[#allocation7 + $0x458] sm:$0xff]
    %v2348 = vld [vmem:[#allocation7 + $0x460] sm:$0xff]
    %v2349 = vld [vmem:[#allocation7 + $0x468] sm:$0xff]
    %v2350 = vld [vmem:[#allocation7 + $0x470] sm:$0xff]
    %v2351 = vld [vmem:[#allocation7 + $0x478] sm:$0xff]
    %v2352 = vld [vmem:[#allocation7 + $0x480] sm:$0xff]
    %v2353 = vld [vmem:[#allocation7 + $0x488] sm:$0xff]
    %v2354 = vld [vmem:[#allocation7 + $0x490] sm:$0xff]
    %v2355 = vld [vmem:[#allocation7 + $0x498] sm:$0xff]
    %v2356 = vld [vmem:[#allocation7 + $0x4a0] sm:$0xff]
    %v2357 = vld [vmem:[#allocation7 + $0x4a8] sm:$0xff]
    %v2358 = vld [vmem:[#allocation7 + $0x4b0] sm:$0xff]
    %v2359 = vld [vmem:[#allocation7 + $0x4b8] sm:$0xff]
    %v2360 = vld [vmem:[#allocation7 + $0x4c0] sm:$0xff]
    %v2361 = vld [vmem:[#allocation7 + $0x4c8] sm:$0xff]
    %v2362 = vld [vmem:[#allocation7 + $0x4d0] sm:$0xff]
    %v2363 = vld [vmem:[#allocation7 + $0x4d8] sm:$0xff]
    %v2364 = vld [vmem:[#allocation7 + $0x4e0] sm:$0xff]
    %v2365 = vld [vmem:[#allocation7 + $0x4e8] sm:$0xff]
    %v2366 = vld [vmem:[#allocation7 + $0x4f0] sm:$0xff]
    %v2367 = vld [vmem:[#allocation7 + $0x4f8] sm:$0xff]
    %v2368 = vld [vmem:[#allocation7 + $0x500] sm:$0xff]
    %v2369 = vld [vmem:[#allocation7 + $0x508] sm:$0xff]
    %v2370 = vld [vmem:[#allocation7 + $0x510] sm:$0xff]
    %v2371 = vld [vmem:[#allocation7 + $0x518] sm:$0xff]
    %v2372 = vld [vmem:[#allocation7 + $0x520] sm:$0xff]
    %v2373 = vld [vmem:[#allocation7 + $0x528] sm:$0xff]
    %v2374 = vld [vmem:[#allocation7 + $0x530] sm:$0xff]
    %v2375 = vld [vmem:[#allocation7 + $0x538] sm:$0xff]
    %v2376 = vld [vmem:[#allocation7 + $0x540] sm:$0xff]
    %v2377 = vld [vmem:[#allocation7 + $0x548] sm:$0xff]
    %v2378 = vld [vmem:[#allocation7 + $0x550] sm:$0xff]
    %v2379 = vld [vmem:[#allocation7 + $0x558] sm:$0xff]
    %v2380 = vld [vmem:[#allocation7 + $0x560] sm:$0xff]
    %v2381 = vld [vmem:[#allocation7 + $0x568] sm:$0xff]
    %v2382 = vld [vmem:[#allocation7 + $0x570] sm:$0xff]
    %v2383 = vld [vmem:[#allocation7 + $0x578] sm:$0xff]
    %v2384 = vld [vmem:[#allocation7 + $0x580] sm:$0xff]
    %v2385 = vld [vmem:[#allocation7 + $0x588] sm:$0xff]
    %v2386 = vld [vmem:[#allocation7 + $0x590] sm:$0xff]
    %v2387 = vld [vmem:[#allocation7 + $0x598] sm:$0xff]
    %v2388 = vld [vmem:[#allocation7 + $0x5a0] sm:$0xff]
    %v2389 = vld [vmem:[#allocation7 + $0x5a8] sm:$0xff]
    %v2390 = vld [vmem:[#allocation7 + $0x5b0] sm:$0xff]
    %v2391 = vld [vmem:[#allocation7 + $0x5b8] sm:$0xff]
    %v2392 = vld [vmem:[#allocation7 + $0x5c0] sm:$0xff]
    %v2393 = vld [vmem:[#allocation7 + $0x5c8] sm:$0xff]
    %v2394 = vld [vmem:[#allocation7 + $0x5d0] sm:$0xff]
    %v2395 = vld [vmem:[#allocation7 + $0x5d8] sm:$0xff]
    %v2396 = vld [vmem:[#allocation7 + $0x5e0] sm:$0xff]
    %v2397 = vld [vmem:[#allocation7 + $0x5e8] sm:$0xff]
    %v2398 = vld [vmem:[#allocation7 + $0x5f0] sm:$0xff]
    %v2399 = vld [vmem:[#allocation7 + $0x5f8] sm:$0xff]
    %v2400 = vld [vmem:[#allocation7 + $0x600] sm:$0xff]
    %v2401 = vld [vmem:[#allocation7 + $0x608] sm:$0xff]
    %v2402 = vld [vmem:[#allocation7 + $0x610] sm:$0xff]
    %v2403 = vld [vmem:[#allocation7 + $0x618] sm:$0xff]
    %v2404 = vld [vmem:[#allocation7 + $0x620] sm:$0xff]
    %v2405 = vld [vmem:[#allocation7 + $0x628] sm:$0xff]
    %v2406 = vld [vmem:[#allocation7 + $0x630] sm:$0xff]
    %v2407 = vld [vmem:[#allocation7 + $0x638] sm:$0xff]
    %v2408 = vld [vmem:[#allocation7 + $0x640] sm:$0xff]
    %v2409 = vld [vmem:[#allocation7 + $0x648] sm:$0xff]
    %v2410 = vld [vmem:[#allocation7 + $0x650] sm:$0xff]
    %v2411 = vld [vmem:[#allocation7 + $0x658] sm:$0xff]
    %v2412 = vld [vmem:[#allocation7 + $0x660] sm:$0xff]
    %v2413 = vld [vmem:[#allocation7 + $0x668] sm:$0xff]
    %v2414 = vld [vmem:[#allocation7 + $0x670] sm:$0xff]
    %v2415 = vld [vmem:[#allocation7 + $0x678] sm:$0xff]
    %v2416 = vld [vmem:[#allocation7 + $0x680] sm:$0xff]
    %v2417 = vld [vmem:[#allocation7 + $0x688] sm:$0xff]
    %v2418 = vld [vmem:[#allocation7 + $0x690] sm:$0xff]
    %v2419 = vld [vmem:[#allocation7 + $0x698] sm:$0xff]
    %v2420 = vld [vmem:[#allocation7 + $0x6a0] sm:$0xff]
    %v2421 = vld [vmem:[#allocation7 + $0x6a8] sm:$0xff]
    %v2422 = vld [vmem:[#allocation7 + $0x6b0] sm:$0xff]
    %v2423 = vld [vmem:[#allocation7 + $0x6b8] sm:$0xff]
    %v2424 = vld [vmem:[#allocation7 + $0x6c0] sm:$0xff]
    %v2425 = vld [vmem:[#allocation7 + $0x6c8] sm:$0xff]
    %v2426 = vld [vmem:[#allocation7 + $0x6d0] sm:$0xff]
    %v2427 = vld [vmem:[#allocation7 + $0x6d8] sm:$0xff]
    %v2428 = vld [vmem:[#allocation7 + $0x6e0] sm:$0xff]
    %v2429 = vld [vmem:[#allocation7 + $0x6e8] sm:$0xff]
    %v2430 = vld [vmem:[#allocation7 + $0x6f0] sm:$0xff]
    %v2431 = vld [vmem:[#allocation7 + $0x6f8] sm:$0xff]
    %v2432 = vld [vmem:[#allocation7 + $0x700] sm:$0xff]
    %v2433 = vld [vmem:[#allocation7 + $0x708] sm:$0xff]
    %v2434 = vld [vmem:[#allocation7 + $0x710] sm:$0xff]
    %v2435 = vld [vmem:[#allocation7 + $0x718] sm:$0xff]
    %v2436 = vld [vmem:[#allocation7 + $0x720] sm:$0xff]
    %v2437 = vld [vmem:[#allocation7 + $0x728] sm:$0xff]
    %v2438 = vld [vmem:[#allocation7 + $0x730] sm:$0xff]
    %v2439 = vld [vmem:[#allocation7 + $0x738] sm:$0xff]
    %v2440 = vld [vmem:[#allocation7 + $0x740] sm:$0xff]
    %v2441 = vld [vmem:[#allocation7 + $0x748] sm:$0xff]
    %v2442 = vld [vmem:[#allocation7 + $0x750] sm:$0xff]
    %v2443 = vld [vmem:[#allocation7 + $0x758] sm:$0xff]
    %v2444 = vld [vmem:[#allocation7 + $0x760] sm:$0xff]
    %v2445 = vld [vmem:[#allocation7 + $0x768] sm:$0xff]
    %v2446 = vld [vmem:[#allocation7 + $0x770] sm:$0xff]
    %v2447 = vld [vmem:[#allocation7 + $0x778] sm:$0xff]
    %v2448 = vld [vmem:[#allocation7 + $0x780] sm:$0xff]
    %v2449 = vld [vmem:[#allocation7 + $0x788] sm:$0xff]
    %v2450 = vld [vmem:[#allocation7 + $0x790] sm:$0xff]
    %v2451 = vld [vmem:[#allocation7 + $0x798] sm:$0xff]
    %v2452 = vld [vmem:[#allocation7 + $0x7a0] sm:$0xff]
    %v2453 = vld [vmem:[#allocation7 + $0x7a8] sm:$0xff]
    %v2454 = vld [vmem:[#allocation7 + $0x7b0] sm:$0xff]
    %v2455 = vld [vmem:[#allocation7 + $0x7b8] sm:$0xff]
    %v2456 = vld [vmem:[#allocation7 + $0x7c0] sm:$0xff]
    %v2457 = vld [vmem:[#allocation7 + $0x7c8] sm:$0xff]
    %v2458 = vld [vmem:[#allocation7 + $0x7d0] sm:$0xff]
    %v2459 = vld [vmem:[#allocation7 + $0x7d8] sm:$0xff]
    %v2460 = vld [vmem:[#allocation7 + $0x7e0] sm:$0xff]
    %v2461 = vld [vmem:[#allocation7 + $0x7e8] sm:$0xff]
    %v2462 = vld [vmem:[#allocation7 + $0x7f0] sm:$0xff]
    %v2463 = vld [vmem:[#allocation7 + $0x7f8] sm:$0xff]
    %v2464 = vld [vmem:[#allocation7 + $0x800] sm:$0xff]
    %v2465 = vld [vmem:[#allocation7 + $0x808] sm:$0xff]
    %v2466 = vld [vmem:[#allocation7 + $0x810] sm:$0xff]
    %v2467 = vld [vmem:[#allocation7 + $0x818] sm:$0xff]
    %v2468 = vld [vmem:[#allocation7 + $0x820] sm:$0xff]
    %v2469 = vld [vmem:[#allocation7 + $0x828] sm:$0xff]
    %v2470 = vld [vmem:[#allocation7 + $0x830] sm:$0xff]
    %v2471 = vld [vmem:[#allocation7 + $0x838] sm:$0xff]
    %v2472 = vld [vmem:[#allocation7 + $0x840] sm:$0xff]
    %v2473 = vld [vmem:[#allocation7 + $0x848] sm:$0xff]
    %v2474 = vld [vmem:[#allocation7 + $0x850] sm:$0xff]
    %v2475 = vld [vmem:[#allocation7 + $0x858] sm:$0xff]
    %v2476 = vld [vmem:[#allocation7 + $0x860] sm:$0xff]
    %v2477 = vld [vmem:[#allocation7 + $0x868] sm:$0xff]
    %v2478 = vld [vmem:[#allocation7 + $0x870] sm:$0xff]
    %v2479 = vld [vmem:[#allocation7 + $0x878] sm:$0xff]
    %v2480 = vld [vmem:[#allocation7 + $0x880] sm:$0xff]
    %v2481 = vld [vmem:[#allocation7 + $0x888] sm:$0xff]
    %v2482 = vld [vmem:[#allocation7 + $0x890] sm:$0xff]
    %v2483 = vld [vmem:[#allocation7 + $0x898] sm:$0xff]
    %v2484 = vld [vmem:[#allocation7 + $0x8a0] sm:$0xff]
    %v2485 = vld [vmem:[#allocation7 + $0x8a8] sm:$0xff]
    %v2486 = vld [vmem:[#allocation7 + $0x8b0] sm:$0xff]
    %v2487 = vld [vmem:[#allocation7 + $0x8b8] sm:$0xff]
    %v2488 = vld [vmem:[#allocation7 + $0x8c0] sm:$0xff]
    %v2489 = vld [vmem:[#allocation7 + $0x8c8] sm:$0xff]
    %v2490 = vld [vmem:[#allocation7 + $0x8d0] sm:$0xff]
    %v2491 = vld [vmem:[#allocation7 + $0x8d8] sm:$0xff]
    %v2492 = vld [vmem:[#allocation7 + $0x8e0] sm:$0xff]
    %v2493 = vld [vmem:[#allocation7 + $0x8e8] sm:$0xff]
    %v2494 = vld [vmem:[#allocation7 + $0x8f0] sm:$0xff]
    %v2495 = vld [vmem:[#allocation7 + $0x8f8] sm:$0xff]
    %v2496 = vld [vmem:[#allocation7 + $0x900] sm:$0xff]
    %v2497 = vld [vmem:[#allocation7 + $0x908] sm:$0xff]
    %v2498 = vld [vmem:[#allocation7 + $0x910] sm:$0xff]
    %v2499 = vld [vmem:[#allocation7 + $0x918] sm:$0xff]
    %v2500 = vld [vmem:[#allocation7 + $0x920] sm:$0xff]
    %v2501 = vld [vmem:[#allocation7 + $0x928] sm:$0xff]
    %v2502 = vld [vmem:[#allocation7 + $0x930] sm:$0xff]
    %v2503 = vld [vmem:[#allocation7 + $0x938] sm:$0xff]
    %v2504 = vld [vmem:[#allocation7 + $0x940] sm:$0xff]
    %v2505 = vld [vmem:[#allocation7 + $0x948] sm:$0xff]
    %v2506 = vld [vmem:[#allocation7 + $0x950] sm:$0xff]
    %v2507 = vld [vmem:[#allocation7 + $0x958] sm:$0xff]
    %v2508 = vld [vmem:[#allocation7 + $0x960] sm:$0xff]
    %v2509 = vld [vmem:[#allocation7 + $0x968] sm:$0xff]
    %v2510 = vld [vmem:[#allocation7 + $0x970] sm:$0xff]
    %v2511 = vld [vmem:[#allocation7 + $0x978] sm:$0xff]
    %v2512 = vld [vmem:[#allocation7 + $0x980] sm:$0xff]
    %v2513 = vld [vmem:[#allocation7 + $0x988] sm:$0xff]
    %v2514 = vld [vmem:[#allocation7 + $0x990] sm:$0xff]
    %v2515 = vld [vmem:[#allocation7 + $0x998] sm:$0xff]
    %v2516 = vld [vmem:[#allocation7 + $0x9a0] sm:$0xff]
    %v2517 = vld [vmem:[#allocation7 + $0x9a8] sm:$0xff]
    %v2518 = vld [vmem:[#allocation7 + $0x9b0] sm:$0xff]
    %v2519 = vld [vmem:[#allocation7 + $0x9b8] sm:$0xff]
    %v2520 = vld [vmem:[#allocation7 + $0x9c0] sm:$0xff]
    %v2521 = vld [vmem:[#allocation7 + $0x9c8] sm:$0xff]
    %v2522 = vld [vmem:[#allocation7 + $0x9d0] sm:$0xff]
    %v2523 = vld [vmem:[#allocation7 + $0x9d8] sm:$0xff]
    %v2524 = vld [vmem:[#allocation7 + $0x9e0] sm:$0xff]
    %v2525 = vld [vmem:[#allocation7 + $0x9e8] sm:$0xff]
    %v2526 = vld [vmem:[#allocation7 + $0x9f0] sm:$0xff]
    %v2527 = vld [vmem:[#allocation7 + $0x9f8] sm:$0xff]
    %v2528 = vld [vmem:[#allocation7 + $0xa00] sm:$0xff]
    %v2529 = vld [vmem:[#allocation7 + $0xa08] sm:$0xff]
    %v2530 = vld [vmem:[#allocation7 + $0xa10] sm:$0xff]
    %v2531 = vld [vmem:[#allocation7 + $0xa18] sm:$0xff]
    %v2532 = vld [vmem:[#allocation7 + $0xa20] sm:$0xff]
    %v2533 = vld [vmem:[#allocation7 + $0xa28] sm:$0xff]
    %v2534 = vld [vmem:[#allocation7 + $0xa30] sm:$0xff]
    %v2535 = vld [vmem:[#allocation7 + $0xa38] sm:$0xff]
    %v2536 = vld [vmem:[#allocation7 + $0xa40] sm:$0xff]
    %v2537 = vld [vmem:[#allocation7 + $0xa48] sm:$0xff]
    %v2538 = vld [vmem:[#allocation7 + $0xa50] sm:$0xff]
    %v2539 = vld [vmem:[#allocation7 + $0xa58] sm:$0xff]
    %v2540 = vld [vmem:[#allocation7 + $0xa60] sm:$0xff]
    %v2541 = vld [vmem:[#allocation7 + $0xa68] sm:$0xff]
    %v2542 = vld [vmem:[#allocation7 + $0xa70] sm:$0xff]
    %v2543 = vld [vmem:[#allocation7 + $0xa78] sm:$0xff]
    %v2544 = vld [vmem:[#allocation7 + $0xa80] sm:$0xff]
    %v2545 = vld [vmem:[#allocation7 + $0xa88] sm:$0xff]
    %v2546 = vld [vmem:[#allocation7 + $0xa90] sm:$0xff]
    %v2547 = vld [vmem:[#allocation7 + $0xa98] sm:$0xff]
    %v2548 = vld [vmem:[#allocation7 + $0xaa0] sm:$0xff]
    %v2549 = vld [vmem:[#allocation7 + $0xaa8] sm:$0xff]
    %v2550 = vld [vmem:[#allocation7 + $0xab0] sm:$0xff]
    %v2551 = vld [vmem:[#allocation7 + $0xab8] sm:$0xff]
    %v2552 = vld [vmem:[#allocation7 + $0xac0] sm:$0xff]
    %v2553 = vld [vmem:[#allocation7 + $0xac8] sm:$0xff]
    %v2554 = vld [vmem:[#allocation7 + $0xad0] sm:$0xff]
    %v2555 = vld [vmem:[#allocation7 + $0xad8] sm:$0xff]
    %v2556 = vld [vmem:[#allocation7 + $0xae0] sm:$0xff]
    %v2557 = vld [vmem:[#allocation7 + $0xae8] sm:$0xff]
    %v2558 = vld [vmem:[#allocation7 + $0xaf0] sm:$0xff]
    %v2559 = vld [vmem:[#allocation7 + $0xaf8] sm:$0xff]
    %v2560 = vld [vmem:[#allocation7 + $0xb00] sm:$0xff]
    %v2561 = vld [vmem:[#allocation7 + $0xb08] sm:$0xff]
    %v2562 = vld [vmem:[#allocation7 + $0xb10] sm:$0xff]
    %v2563 = vld [vmem:[#allocation7 + $0xb18] sm:$0xff]
    %v2564 = vld [vmem:[#allocation7 + $0xb20] sm:$0xff]
    %v2565 = vld [vmem:[#allocation7 + $0xb28] sm:$0xff]
    %v2566 = vld [vmem:[#allocation7 + $0xb30] sm:$0xff]
    %v2567 = vld [vmem:[#allocation7 + $0xb38] sm:$0xff]
    %v2568 = vld [vmem:[#allocation7 + $0xb40] sm:$0xff]
    %v2569 = vld [vmem:[#allocation7 + $0xb48] sm:$0xff]
    %v2570 = vld [vmem:[#allocation7 + $0xb50] sm:$0xff]
    %v2571 = vld [vmem:[#allocation7 + $0xb58] sm:$0xff]
    %v2572 = vld [vmem:[#allocation7 + $0xb60] sm:$0xff]
    %v2573 = vld [vmem:[#allocation7 + $0xb68] sm:$0xff]
    %v2574 = vld [vmem:[#allocation7 + $0xb70] sm:$0xff]
    %v2575 = vld [vmem:[#allocation7 + $0xb78] sm:$0xff]
    %v2576 = vld [vmem:[#allocation7 + $0xb80] sm:$0xff]
    %v2577 = vld [vmem:[#allocation7 + $0xb88] sm:$0xff]
    %v2578 = vld [vmem:[#allocation7 + $0xb90] sm:$0xff]
    %v2579 = vld [vmem:[#allocation7 + $0xb98] sm:$0xff]
    %v2580 = vld [vmem:[#allocation7 + $0xba0] sm:$0xff]
    %v2581 = vld [vmem:[#allocation7 + $0xba8] sm:$0xff]
    %v2582 = vld [vmem:[#allocation7 + $0xbb0] sm:$0xff]
    %v2583 = vld [vmem:[#allocation7 + $0xbb8] sm:$0xff]
    %v2584 = vld [vmem:[#allocation7 + $0xbc0] sm:$0xff]
    %v2585 = vld [vmem:[#allocation7 + $0xbc8] sm:$0xff]
    %v2586 = vld [vmem:[#allocation7 + $0xbd0] sm:$0xff]
    %v2587 = vld [vmem:[#allocation7 + $0xbd8] sm:$0xff]
    %v2588 = vld [vmem:[#allocation7 + $0xbe0] sm:$0xff]
    %v2589 = vld [vmem:[#allocation7 + $0xbe8] sm:$0xff]
    %v2590 = vld [vmem:[#allocation7 + $0xbf0] sm:$0xff]
    %v2591 = vld [vmem:[#allocation7 + $0xbf8] sm:$0xff]
    %v2592 = vld [vmem:[#allocation7 + $0xc00] sm:$0xff]
    %v2593 = vld [vmem:[#allocation7 + $0xc08] sm:$0xff]
    %v2594 = vld [vmem:[#allocation7 + $0xc10] sm:$0xff]
    %v2595 = vld [vmem:[#allocation7 + $0xc18] sm:$0xff]
    %v2596 = vld [vmem:[#allocation7 + $0xc20] sm:$0xff]
    %v2597 = vld [vmem:[#allocation7 + $0xc28] sm:$0xff]
    %v2598 = vld [vmem:[#allocation7 + $0xc30] sm:$0xff]
    %v2599 = vld [vmem:[#allocation7 + $0xc38] sm:$0xff]
    %v2600 = vld [vmem:[#allocation7 + $0xc40] sm:$0xff]
    %v2601 = vld [vmem:[#allocation7 + $0xc48] sm:$0xff]
    %v2602 = vld [vmem:[#allocation7 + $0xc50] sm:$0xff]
    %v2603 = vld [vmem:[#allocation7 + $0xc58] sm:$0xff]
    %v2604 = vld [vmem:[#allocation7 + $0xc60] sm:$0xff]
    %v2605 = vld [vmem:[#allocation7 + $0xc68] sm:$0xff]
    %v2606 = vld [vmem:[#allocation7 + $0xc70] sm:$0xff]
    %v2607 = vld [vmem:[#allocation7 + $0xc78] sm:$0xff]
    %v2608 = vld [vmem:[#allocation7 + $0xc80] sm:$0xff]
    %v2609 = vld [vmem:[#allocation7 + $0xc88] sm:$0xff]
    %v2610 = vld [vmem:[#allocation7 + $0xc90] sm:$0xff]
    %v2611 = vld [vmem:[#allocation7 + $0xc98] sm:$0xff]
    %v2612 = vld [vmem:[#allocation7 + $0xca0] sm:$0xff]
    %v2613 = vld [vmem:[#allocation7 + $0xca8] sm:$0xff]
    %v2614 = vld [vmem:[#allocation7 + $0xcb0] sm:$0xff]
    %v2615 = vld [vmem:[#allocation7 + $0xcb8] sm:$0xff]
    %v2616 = vld [vmem:[#allocation7 + $0xcc0] sm:$0xff]
    %v2617 = vld [vmem:[#allocation7 + $0xcc8] sm:$0xff]
    %v2618 = vld [vmem:[#allocation7 + $0xcd0] sm:$0xff]
    %v2619 = vld [vmem:[#allocation7 + $0xcd8] sm:$0xff]
    %v2620 = vld [vmem:[#allocation7 + $0xce0] sm:$0xff]
    %v2621 = vld [vmem:[#allocation7 + $0xce8] sm:$0xff]
    %v2622 = vld [vmem:[#allocation7 + $0xcf0] sm:$0xff]
    %v2623 = vld [vmem:[#allocation7 + $0xcf8] sm:$0xff]
    %v2624 = vld [vmem:[#allocation7 + $0xd00] sm:$0xff]
    %v2625 = vld [vmem:[#allocation7 + $0xd08] sm:$0xff]
    %v2626 = vld [vmem:[#allocation7 + $0xd10] sm:$0xff]
    %v2627 = vld [vmem:[#allocation7 + $0xd18] sm:$0xff]
    %v2628 = vld [vmem:[#allocation7 + $0xd20] sm:$0xff]
    %v2629 = vld [vmem:[#allocation7 + $0xd28] sm:$0xff]
    %v2630 = vld [vmem:[#allocation7 + $0xd30] sm:$0xff]
    %v2631 = vld [vmem:[#allocation7 + $0xd38] sm:$0xff]
    %v2632 = vld [vmem:[#allocation7 + $0xd40] sm:$0xff]
    %v2633 = vld [vmem:[#allocation7 + $0xd48] sm:$0xff]
    %v2634 = vld [vmem:[#allocation7 + $0xd50] sm:$0xff]
    %v2635 = vld [vmem:[#allocation7 + $0xd58] sm:$0xff]
    %v2636 = vld [vmem:[#allocation7 + $0xd60] sm:$0xff]
    %v2637 = vld [vmem:[#allocation7 + $0xd68] sm:$0xff]
    %v2638 = vld [vmem:[#allocation7 + $0xd70] sm:$0xff]
    %v2639 = vld [vmem:[#allocation7 + $0xd78] sm:$0xff]
    %v2640 = vld [vmem:[#allocation7 + $0xd80] sm:$0xff]
    %v2641 = vld [vmem:[#allocation7 + $0xd88] sm:$0xff]
    %v2642 = vld [vmem:[#allocation7 + $0xd90] sm:$0xff]
    %v2643 = vld [vmem:[#allocation7 + $0xd98] sm:$0xff]
    %v2644 = vld [vmem:[#allocation7 + $0xda0] sm:$0xff]
    %v2645 = vld [vmem:[#allocation7 + $0xda8] sm:$0xff]
    %v2646 = vld [vmem:[#allocation7 + $0xdb0] sm:$0xff]
    %v2647 = vld [vmem:[#allocation7 + $0xdb8] sm:$0xff]
    %v2648 = vld [vmem:[#allocation7 + $0xdc0] sm:$0xff]
    %v2649 = vld [vmem:[#allocation7 + $0xdc8] sm:$0xff]
    %v2650 = vld [vmem:[#allocation7 + $0xdd0] sm:$0xff]
    %v2651 = vld [vmem:[#allocation7 + $0xdd8] sm:$0xff]
    %v2652 = vld [vmem:[#allocation7 + $0xde0] sm:$0xff]
    %v2653 = vld [vmem:[#allocation7 + $0xde8] sm:$0xff]
    %v2654 = vld [vmem:[#allocation7 + $0xdf0] sm:$0xff]
    %v2655 = vld [vmem:[#allocation7 + $0xdf8] sm:$0xff]
    %v2656 = vld [vmem:[#allocation7 + $0xe00] sm:$0xff]
    %v2657 = vld [vmem:[#allocation7 + $0xe08] sm:$0xff]
    %v2658 = vld [vmem:[#allocation7 + $0xe10] sm:$0xff]
    %v2659 = vld [vmem:[#allocation7 + $0xe18] sm:$0xff]
    %v2660 = vld [vmem:[#allocation7 + $0xe20] sm:$0xff]
    %v2661 = vld [vmem:[#allocation7 + $0xe28] sm:$0xff]
    %v2662 = vld [vmem:[#allocation7 + $0xe30] sm:$0xff]
    %v2663 = vld [vmem:[#allocation7 + $0xe38] sm:$0xff]
    %v2664 = vld [vmem:[#allocation7 + $0xe40] sm:$0xff]
    %v2665 = vld [vmem:[#allocation7 + $0xe48] sm:$0xff]
    %v2666 = vld [vmem:[#allocation7 + $0xe50] sm:$0xff]
    %v2667 = vld [vmem:[#allocation7 + $0xe58] sm:$0xff]
    %v2668 = vld [vmem:[#allocation7 + $0xe60] sm:$0xff]
    %v2669 = vld [vmem:[#allocation7 + $0xe68] sm:$0xff]
    %v2670 = vld [vmem:[#allocation7 + $0xe70] sm:$0xff]
    %v2671 = vld [vmem:[#allocation7 + $0xe78] sm:$0xff]
    %v2672 = vld [vmem:[#allocation7 + $0xe80] sm:$0xff]
    %v2673 = vld [vmem:[#allocation7 + $0xe88] sm:$0xff]
    %v2674 = vld [vmem:[#allocation7 + $0xe90] sm:$0xff]
    %v2675 = vld [vmem:[#allocation7 + $0xe98] sm:$0xff]
    %v2676 = vld [vmem:[#allocation7 + $0xea0] sm:$0xff]
    %v2677 = vld [vmem:[#allocation7 + $0xea8] sm:$0xff]
    %v2678 = vld [vmem:[#allocation7 + $0xeb0] sm:$0xff]
    %v2679 = vld [vmem:[#allocation7 + $0xeb8] sm:$0xff]
    %v2680 = vld [vmem:[#allocation7 + $0xec0] sm:$0xff]
    %v2681 = vld [vmem:[#allocation7 + $0xec8] sm:$0xff]
    %v2682 = vld [vmem:[#allocation7 + $0xed0] sm:$0xff]
    %v2683 = vld [vmem:[#allocation7 + $0xed8] sm:$0xff]
    %v2684 = vld [vmem:[#allocation7 + $0xee0] sm:$0xff]
    %v2685 = vld [vmem:[#allocation7 + $0xee8] sm:$0xff]
    %v2686 = vld [vmem:[#allocation7 + $0xef0] sm:$0xff]
    %v2687 = vld [vmem:[#allocation7 + $0xef8] sm:$0xff]
    %v2688 = vld [vmem:[#allocation7 + $0xf00] sm:$0xff]
    %v2689 = vld [vmem:[#allocation7 + $0xf08] sm:$0xff]
    %v2690 = vld [vmem:[#allocation7 + $0xf10] sm:$0xff]
    %v2691 = vld [vmem:[#allocation7 + $0xf18] sm:$0xff]
    %v2692 = vld [vmem:[#allocation7 + $0xf20] sm:$0xff]
    %v2693 = vld [vmem:[#allocation7 + $0xf28] sm:$0xff]
    %v2694 = vld [vmem:[#allocation7 + $0xf30] sm:$0xff]
    %v2695 = vld [vmem:[#allocation7 + $0xf38] sm:$0xff]
    %v2696 = vld [vmem:[#allocation7 + $0xf40] sm:$0xff]
    %v2697 = vld [vmem:[#allocation7 + $0xf48] sm:$0xff]
    %v2698 = vld [vmem:[#allocation7 + $0xf50] sm:$0xff]
    %v2699 = vld [vmem:[#allocation7 + $0xf58] sm:$0xff]
    %v2700 = vld [vmem:[#allocation7 + $0xf60] sm:$0xff]
    %v2701 = vld [vmem:[#allocation7 + $0xf68] sm:$0xff]
    %v2702 = vld [vmem:[#allocation7 + $0xf70] sm:$0xff]
    %v2703 = vld [vmem:[#allocation7 + $0xf78] sm:$0xff]
    %v2704 = vld [vmem:[#allocation7 + $0xf80] sm:$0xff]
    %v2705 = vld [vmem:[#allocation7 + $0xf88] sm:$0xff]
    %v2706 = vld [vmem:[#allocation7 + $0xf90] sm:$0xff]
    %v2707 = vld [vmem:[#allocation7 + $0xf98] sm:$0xff]
    %v2708 = vld [vmem:[#allocation7 + $0xfa0] sm:$0xff]
    %v2709 = vld [vmem:[#allocation7 + $0xfa8] sm:$0xff]
    %v2710 = vld [vmem:[#allocation7 + $0xfb0] sm:$0xff]
    %v2711 = vld [vmem:[#allocation7 + $0xfb8] sm:$0xff]
    %v2712 = vld [vmem:[#allocation7 + $0xfc0] sm:$0xff]
    %v2713 = vld [vmem:[#allocation7 + $0xfc8] sm:$0xff]
    %v2714 = vld [vmem:[#allocation7 + $0xfd0] sm:$0xff]
    %v2715 = vld [vmem:[#allocation7 + $0xfd8] sm:$0xff]
    %v2716 = vld [vmem:[#allocation7 + $0xfe0] sm:$0xff]
    %v2717 = vld [vmem:[#allocation7 + $0xfe8] sm:$0xff]
    %v2718 = vld [vmem:[#allocation7 + $0xff0] sm:$0xff]
    %v2719 = vld [vmem:[#allocation7 + $0xff8] sm:$0xff]
    %v2720 = vld [vmem:[#allocation9] sm:$0xff]
    %v2722 = vlaneseq
    %v2723 = vshrl.u32 %v2722, 7
    %v2724 = vsub.s32 0, %v2723
    %v2725 = vrot.slane %v2720, %v2724
    %v2726 = vlaneseq
    %v2727 = vshrl.u32 %v2726, 7
    %v2728 = vsub.s32 1, %v2727
    %v2729 = vrot.slane %v2720, %v2728
    %v2730 = vlaneseq
    %v2731 = vshrl.u32 %v2730, 7
    %v2732 = vsub.s32 2, %v2731
    %v2733 = vrot.slane %v2720, %v2732
    %v2734 = vlaneseq
    %v2735 = vshrl.u32 %v2734, 7
    %v2736 = vsub.s32 3, %v2735
    %v2737 = vrot.slane %v2720, %v2736
    %v2738 = vlaneseq
    %v2739 = vshrl.u32 %v2738, 7
    %v2740 = vsub.s32 4, %v2739
    %v2741 = vrot.slane %v2720, %v2740
    %v2742 = vlaneseq
    %v2743 = vshrl.u32 %v2742, 7
    %v2744 = vsub.s32 5, %v2743
    %v2745 = vrot.slane %v2720, %v2744
    %v2746 = vlaneseq
    %v2747 = vshrl.u32 %v2746, 7
    %v2748 = vsub.s32 6, %v2747
    %v2749 = vrot.slane %v2720, %v2748
    %v2750 = vlaneseq
    %v2751 = vshrl.u32 %v2750, 7
    %v2752 = vsub.s32 7, %v2751
    %v2753 = vrot.slane %v2720, %v2752
    %v3274 = vunpack.c.l.b16 %v2208
    %v3275 = vunpack.c.h.b16 %v2208
    %v3276 = vunpack.c.l.b16 %v2209
    %v3277 = vunpack.c.h.b16 %v2209
    %v3278 = vunpack.c.l.b16 %v2210
    %v3279 = vunpack.c.h.b16 %v2210
    %v3280 = vunpack.c.l.b16 %v2211
    %v3281 = vunpack.c.h.b16 %v2211
    %v3282 = vunpack.c.l.b16 %v2212
    %v3283 = vunpack.c.h.b16 %v2212
    %v3284 = vunpack.c.l.b16 %v2213
    %v3285 = vunpack.c.h.b16 %v2213
    %v3286 = vunpack.c.l.b16 %v2214
    %v3287 = vunpack.c.h.b16 %v2214
    %v3288 = vunpack.c.l.b16 %v2215
    %v3289 = vunpack.c.h.b16 %v2215
    %v3290 = vunpack.c.l.b16 %v2216
    %v3291 = vunpack.c.h.b16 %v2216
    %v3292 = vunpack.c.l.b16 %v2217
    %v3293 = vunpack.c.h.b16 %v2217
    %v3294 = vunpack.c.l.b16 %v2218
    %v3295 = vunpack.c.h.b16 %v2218
    %v3296 = vunpack.c.l.b16 %v2219
    %v3297 = vunpack.c.h.b16 %v2219
    %v3298 = vunpack.c.l.b16 %v2220
    %v3299 = vunpack.c.h.b16 %v2220
    %v3300 = vunpack.c.l.b16 %v2221
    %v3301 = vunpack.c.h.b16 %v2221
    %v3302 = vunpack.c.l.b16 %v2222
    %v3303 = vunpack.c.h.b16 %v2222
    %v3304 = vunpack.c.l.b16 %v2223
    %v3305 = vunpack.c.h.b16 %v2223
    %v3306 = vunpack.c.l.b16 %v2224
    %v3307 = vunpack.c.h.b16 %v2224
    %v3308 = vunpack.c.l.b16 %v2225
    %v3309 = vunpack.c.h.b16 %v2225
    %v3310 = vunpack.c.l.b16 %v2226
    %v3311 = vunpack.c.h.b16 %v2226
    %v3312 = vunpack.c.l.b16 %v2227
    %v3313 = vunpack.c.h.b16 %v2227
    %v3314 = vunpack.c.l.b16 %v2228
    %v3315 = vunpack.c.h.b16 %v2228
    %v3316 = vunpack.c.l.b16 %v2229
    %v3317 = vunpack.c.h.b16 %v2229
    %v3318 = vunpack.c.l.b16 %v2230
    %v3319 = vunpack.c.h.b16 %v2230
    %v3320 = vunpack.c.l.b16 %v2231
    %v3321 = vunpack.c.h.b16 %v2231
    %v3322 = vunpack.c.l.b16 %v2232
    %v3323 = vunpack.c.h.b16 %v2232
    %v3324 = vunpack.c.l.b16 %v2233
    %v3325 = vunpack.c.h.b16 %v2233
    %v3326 = vunpack.c.l.b16 %v2234
    %v3327 = vunpack.c.h.b16 %v2234
    %v3328 = vunpack.c.l.b16 %v2235
    %v3329 = vunpack.c.h.b16 %v2235
    %v3330 = vunpack.c.l.b16 %v2236
    %v3331 = vunpack.c.h.b16 %v2236
    %v3332 = vunpack.c.l.b16 %v2237
    %v3333 = vunpack.c.h.b16 %v2237
    %v3334 = vunpack.c.l.b16 %v2238
    %v3335 = vunpack.c.h.b16 %v2238
    %v3336 = vunpack.c.l.b16 %v2239
    %v3337 = vunpack.c.h.b16 %v2239
    %v3338 = vunpack.c.l.b16 %v2240
    %v3339 = vunpack.c.h.b16 %v2240
    %v3340 = vunpack.c.l.b16 %v2241
    %v3341 = vunpack.c.h.b16 %v2241
    %v3342 = vunpack.c.l.b16 %v2242
    %v3343 = vunpack.c.h.b16 %v2242
    %v3344 = vunpack.c.l.b16 %v2243
    %v3345 = vunpack.c.h.b16 %v2243
    %v3346 = vunpack.c.l.b16 %v2244
    %v3347 = vunpack.c.h.b16 %v2244
    %v3348 = vunpack.c.l.b16 %v2245
    %v3349 = vunpack.c.h.b16 %v2245
    %v3350 = vunpack.c.l.b16 %v2246
    %v3351 = vunpack.c.h.b16 %v2246
    %v3352 = vunpack.c.l.b16 %v2247
    %v3353 = vunpack.c.h.b16 %v2247
    %v3354 = vunpack.c.l.b16 %v2248
    %v3355 = vunpack.c.h.b16 %v2248
    %v3356 = vunpack.c.l.b16 %v2249
    %v3357 = vunpack.c.h.b16 %v2249
    %v3358 = vunpack.c.l.b16 %v2250
    %v3359 = vunpack.c.h.b16 %v2250
    %v3360 = vunpack.c.l.b16 %v2251
    %v3361 = vunpack.c.h.b16 %v2251
    %v3362 = vunpack.c.l.b16 %v2252
    %v3363 = vunpack.c.h.b16 %v2252
    %v3364 = vunpack.c.l.b16 %v2253
    %v3365 = vunpack.c.h.b16 %v2253
    %v3366 = vunpack.c.l.b16 %v2254
    %v3367 = vunpack.c.h.b16 %v2254
    %v3368 = vunpack.c.l.b16 %v2255
    %v3369 = vunpack.c.h.b16 %v2255
    %v3370 = vunpack.c.l.b16 %v2256
    %v3371 = vunpack.c.h.b16 %v2256
    %v3372 = vunpack.c.l.b16 %v2257
    %v3373 = vunpack.c.h.b16 %v2257
    %v3374 = vunpack.c.l.b16 %v2258
    %v3375 = vunpack.c.h.b16 %v2258
    %v3376 = vunpack.c.l.b16 %v2259
    %v3377 = vunpack.c.h.b16 %v2259
    %v3378 = vunpack.c.l.b16 %v2260
    %v3379 = vunpack.c.h.b16 %v2260
    %v3380 = vunpack.c.l.b16 %v2261
    %v3381 = vunpack.c.h.b16 %v2261
    %v3382 = vunpack.c.l.b16 %v2262
    %v3383 = vunpack.c.h.b16 %v2262
    %v3384 = vunpack.c.l.b16 %v2263
    %v3385 = vunpack.c.h.b16 %v2263
    %v3386 = vunpack.c.l.b16 %v2264
    %v3387 = vunpack.c.h.b16 %v2264
    %v3388 = vunpack.c.l.b16 %v2265
    %v3389 = vunpack.c.h.b16 %v2265
    %v3390 = vunpack.c.l.b16 %v2266
    %v3391 = vunpack.c.h.b16 %v2266
    %v3392 = vunpack.c.l.b16 %v2267
    %v3393 = vunpack.c.h.b16 %v2267
    %v3394 = vunpack.c.l.b16 %v2268
    %v3395 = vunpack.c.h.b16 %v2268
    %v3396 = vunpack.c.l.b16 %v2269
    %v3397 = vunpack.c.h.b16 %v2269
    %v3398 = vunpack.c.l.b16 %v2270
    %v3399 = vunpack.c.h.b16 %v2270
    %v3400 = vunpack.c.l.b16 %v2271
    %v3401 = vunpack.c.h.b16 %v2271
    %v3402 = vunpack.c.l.b16 %v2272
    %v3403 = vunpack.c.h.b16 %v2272
    %v3404 = vunpack.c.l.b16 %v2273
    %v3405 = vunpack.c.h.b16 %v2273
    %v3406 = vunpack.c.l.b16 %v2274
    %v3407 = vunpack.c.h.b16 %v2274
    %v3408 = vunpack.c.l.b16 %v2275
    %v3409 = vunpack.c.h.b16 %v2275
    %v3410 = vunpack.c.l.b16 %v2276
    %v3411 = vunpack.c.h.b16 %v2276
    %v3412 = vunpack.c.l.b16 %v2277
    %v3413 = vunpack.c.h.b16 %v2277
    %v3414 = vunpack.c.l.b16 %v2278
    %v3415 = vunpack.c.h.b16 %v2278
    %v3416 = vunpack.c.l.b16 %v2279
    %v3417 = vunpack.c.h.b16 %v2279
    %v3418 = vunpack.c.l.b16 %v2280
    %v3419 = vunpack.c.h.b16 %v2280
    %v3420 = vunpack.c.l.b16 %v2281
    %v3421 = vunpack.c.h.b16 %v2281
    %v3422 = vunpack.c.l.b16 %v2282
    %v3423 = vunpack.c.h.b16 %v2282
    %v3424 = vunpack.c.l.b16 %v2283
    %v3425 = vunpack.c.h.b16 %v2283
    %v3426 = vunpack.c.l.b16 %v2284
    %v3427 = vunpack.c.h.b16 %v2284
    %v3428 = vunpack.c.l.b16 %v2285
    %v3429 = vunpack.c.h.b16 %v2285
    %v3430 = vunpack.c.l.b16 %v2286
    %v3431 = vunpack.c.h.b16 %v2286
    %v3432 = vunpack.c.l.b16 %v2287
    %v3433 = vunpack.c.h.b16 %v2287
    %v3434 = vunpack.c.l.b16 %v2288
    %v3435 = vunpack.c.h.b16 %v2288
    %v3436 = vunpack.c.l.b16 %v2289
    %v3437 = vunpack.c.h.b16 %v2289
    %v3438 = vunpack.c.l.b16 %v2290
    %v3439 = vunpack.c.h.b16 %v2290
    %v3440 = vunpack.c.l.b16 %v2291
    %v3441 = vunpack.c.h.b16 %v2291
    %v3442 = vunpack.c.l.b16 %v2292
    %v3443 = vunpack.c.h.b16 %v2292
    %v3444 = vunpack.c.l.b16 %v2293
    %v3445 = vunpack.c.h.b16 %v2293
    %v3446 = vunpack.c.l.b16 %v2294
    %v3447 = vunpack.c.h.b16 %v2294
    %v3448 = vunpack.c.l.b16 %v2295
    %v3449 = vunpack.c.h.b16 %v2295
    %v3450 = vunpack.c.l.b16 %v2296
    %v3451 = vunpack.c.h.b16 %v2296
    %v3452 = vunpack.c.l.b16 %v2297
    %v3453 = vunpack.c.h.b16 %v2297
    %v3454 = vunpack.c.l.b16 %v2298
    %v3455 = vunpack.c.h.b16 %v2298
    %v3456 = vunpack.c.l.b16 %v2299
    %v3457 = vunpack.c.h.b16 %v2299
    %v3458 = vunpack.c.l.b16 %v2300
    %v3459 = vunpack.c.h.b16 %v2300
    %v3460 = vunpack.c.l.b16 %v2301
    %v3461 = vunpack.c.h.b16 %v2301
    %v3462 = vunpack.c.l.b16 %v2302
    %v3463 = vunpack.c.h.b16 %v2302
    %v3464 = vunpack.c.l.b16 %v2303
    %v3465 = vunpack.c.h.b16 %v2303
    %v3466 = vunpack.c.l.b16 %v2304
    %v3467 = vunpack.c.h.b16 %v2304
    %v3468 = vunpack.c.l.b16 %v2305
    %v3469 = vunpack.c.h.b16 %v2305
    %v3470 = vunpack.c.l.b16 %v2306
    %v3471 = vunpack.c.h.b16 %v2306
    %v3472 = vunpack.c.l.b16 %v2307
    %v3473 = vunpack.c.h.b16 %v2307
    %v3474 = vunpack.c.l.b16 %v2308
    %v3475 = vunpack.c.h.b16 %v2308
    %v3476 = vunpack.c.l.b16 %v2309
    %v3477 = vunpack.c.h.b16 %v2309
    %v3478 = vunpack.c.l.b16 %v2310
    %v3479 = vunpack.c.h.b16 %v2310
    %v3480 = vunpack.c.l.b16 %v2311
    %v3481 = vunpack.c.h.b16 %v2311
    %v3482 = vunpack.c.l.b16 %v2312
    %v3483 = vunpack.c.h.b16 %v2312
    %v3484 = vunpack.c.l.b16 %v2313
    %v3485 = vunpack.c.h.b16 %v2313
    %v3486 = vunpack.c.l.b16 %v2314
    %v3487 = vunpack.c.h.b16 %v2314
    %v3488 = vunpack.c.l.b16 %v2315
    %v3489 = vunpack.c.h.b16 %v2315
    %v3490 = vunpack.c.l.b16 %v2316
    %v3491 = vunpack.c.h.b16 %v2316
    %v3492 = vunpack.c.l.b16 %v2317
    %v3493 = vunpack.c.h.b16 %v2317
    %v3494 = vunpack.c.l.b16 %v2318
    %v3495 = vunpack.c.h.b16 %v2318
    %v3496 = vunpack.c.l.b16 %v2319
    %v3497 = vunpack.c.h.b16 %v2319
    %v3498 = vunpack.c.l.b16 %v2320
    %v3499 = vunpack.c.h.b16 %v2320
    %v3500 = vunpack.c.l.b16 %v2321
    %v3501 = vunpack.c.h.b16 %v2321
    %v3502 = vunpack.c.l.b16 %v2322
    %v3503 = vunpack.c.h.b16 %v2322
    %v3504 = vunpack.c.l.b16 %v2323
    %v3505 = vunpack.c.h.b16 %v2323
    %v3506 = vunpack.c.l.b16 %v2324
    %v3507 = vunpack.c.h.b16 %v2324
    %v3508 = vunpack.c.l.b16 %v2325
    %v3509 = vunpack.c.h.b16 %v2325
    %v3510 = vunpack.c.l.b16 %v2326
    %v3511 = vunpack.c.h.b16 %v2326
    %v3512 = vunpack.c.l.b16 %v2327
    %v3513 = vunpack.c.h.b16 %v2327
    %v3514 = vunpack.c.l.b16 %v2328
    %v3515 = vunpack.c.h.b16 %v2328
    %v3516 = vunpack.c.l.b16 %v2329
    %v3517 = vunpack.c.h.b16 %v2329
    %v3518 = vunpack.c.l.b16 %v2330
    %v3519 = vunpack.c.h.b16 %v2330
    %v3520 = vunpack.c.l.b16 %v2331
    %v3521 = vunpack.c.h.b16 %v2331
    %v3522 = vunpack.c.l.b16 %v2332
    %v3523 = vunpack.c.h.b16 %v2332
    %v3524 = vunpack.c.l.b16 %v2333
    %v3525 = vunpack.c.h.b16 %v2333
    %v3526 = vunpack.c.l.b16 %v2334
    %v3527 = vunpack.c.h.b16 %v2334
    %v3528 = vunpack.c.l.b16 %v2335
    %v3529 = vunpack.c.h.b16 %v2335
    %v3530 = vunpack.c.l.b16 %v2336
    %v3531 = vunpack.c.h.b16 %v2336
    %v3532 = vunpack.c.l.b16 %v2337
    %v3533 = vunpack.c.h.b16 %v2337
    %v3534 = vunpack.c.l.b16 %v2338
    %v3535 = vunpack.c.h.b16 %v2338
    %v3536 = vunpack.c.l.b16 %v2339
    %v3537 = vunpack.c.h.b16 %v2339
    %v3538 = vunpack.c.l.b16 %v2340
    %v3539 = vunpack.c.h.b16 %v2340
    %v3540 = vunpack.c.l.b16 %v2341
    %v3541 = vunpack.c.h.b16 %v2341
    %v3542 = vunpack.c.l.b16 %v2342
    %v3543 = vunpack.c.h.b16 %v2342
    %v3544 = vunpack.c.l.b16 %v2343
    %v3545 = vunpack.c.h.b16 %v2343
    %v3546 = vunpack.c.l.b16 %v2344
    %v3547 = vunpack.c.h.b16 %v2344
    %v3548 = vunpack.c.l.b16 %v2345
    %v3549 = vunpack.c.h.b16 %v2345
    %v3550 = vunpack.c.l.b16 %v2346
    %v3551 = vunpack.c.h.b16 %v2346
    %v3552 = vunpack.c.l.b16 %v2347
    %v3553 = vunpack.c.h.b16 %v2347
    %v3554 = vunpack.c.l.b16 %v2348
    %v3555 = vunpack.c.h.b16 %v2348
    %v3556 = vunpack.c.l.b16 %v2349
    %v3557 = vunpack.c.h.b16 %v2349
    %v3558 = vunpack.c.l.b16 %v2350
    %v3559 = vunpack.c.h.b16 %v2350
    %v3560 = vunpack.c.l.b16 %v2351
    %v3561 = vunpack.c.h.b16 %v2351
    %v3562 = vunpack.c.l.b16 %v2352
    %v3563 = vunpack.c.h.b16 %v2352
    %v3564 = vunpack.c.l.b16 %v2353
    %v3565 = vunpack.c.h.b16 %v2353
    %v3566 = vunpack.c.l.b16 %v2354
    %v3567 = vunpack.c.h.b16 %v2354
    %v3568 = vunpack.c.l.b16 %v2355
    %v3569 = vunpack.c.h.b16 %v2355
    %v3570 = vunpack.c.l.b16 %v2356
    %v3571 = vunpack.c.h.b16 %v2356
    %v3572 = vunpack.c.l.b16 %v2357
    %v3573 = vunpack.c.h.b16 %v2357
    %v3574 = vunpack.c.l.b16 %v2358
    %v3575 = vunpack.c.h.b16 %v2358
    %v3576 = vunpack.c.l.b16 %v2359
    %v3577 = vunpack.c.h.b16 %v2359
    %v3578 = vunpack.c.l.b16 %v2360
    %v3579 = vunpack.c.h.b16 %v2360
    %v3580 = vunpack.c.l.b16 %v2361
    %v3581 = vunpack.c.h.b16 %v2361
    %v3582 = vunpack.c.l.b16 %v2362
    %v3583 = vunpack.c.h.b16 %v2362
    %v3584 = vunpack.c.l.b16 %v2363
    %v3585 = vunpack.c.h.b16 %v2363
    %v3586 = vunpack.c.l.b16 %v2364
    %v3587 = vunpack.c.h.b16 %v2364
    %v3588 = vunpack.c.l.b16 %v2365
    %v3589 = vunpack.c.h.b16 %v2365
    %v3590 = vunpack.c.l.b16 %v2366
    %v3591 = vunpack.c.h.b16 %v2366
    %v3592 = vunpack.c.l.b16 %v2367
    %v3593 = vunpack.c.h.b16 %v2367
    %v3594 = vunpack.c.l.b16 %v2368
    %v3595 = vunpack.c.h.b16 %v2368
    %v3596 = vunpack.c.l.b16 %v2369
    %v3597 = vunpack.c.h.b16 %v2369
    %v3598 = vunpack.c.l.b16 %v2370
    %v3599 = vunpack.c.h.b16 %v2370
    %v3600 = vunpack.c.l.b16 %v2371
    %v3601 = vunpack.c.h.b16 %v2371
    %v3602 = vunpack.c.l.b16 %v2372
    %v3603 = vunpack.c.h.b16 %v2372
    %v3604 = vunpack.c.l.b16 %v2373
    %v3605 = vunpack.c.h.b16 %v2373
    %v3606 = vunpack.c.l.b16 %v2374
    %v3607 = vunpack.c.h.b16 %v2374
    %v3608 = vunpack.c.l.b16 %v2375
    %v3609 = vunpack.c.h.b16 %v2375
    %v3610 = vunpack.c.l.b16 %v2376
    %v3611 = vunpack.c.h.b16 %v2376
    %v3612 = vunpack.c.l.b16 %v2377
    %v3613 = vunpack.c.h.b16 %v2377
    %v3614 = vunpack.c.l.b16 %v2378
    %v3615 = vunpack.c.h.b16 %v2378
    %v3616 = vunpack.c.l.b16 %v2379
    %v3617 = vunpack.c.h.b16 %v2379
    %v3618 = vunpack.c.l.b16 %v2380
    %v3619 = vunpack.c.h.b16 %v2380
    %v3620 = vunpack.c.l.b16 %v2381
    %v3621 = vunpack.c.h.b16 %v2381
    %v3622 = vunpack.c.l.b16 %v2382
    %v3623 = vunpack.c.h.b16 %v2382
    %v3624 = vunpack.c.l.b16 %v2383
    %v3625 = vunpack.c.h.b16 %v2383
    %v3626 = vunpack.c.l.b16 %v2384
    %v3627 = vunpack.c.h.b16 %v2384
    %v3628 = vunpack.c.l.b16 %v2385
    %v3629 = vunpack.c.h.b16 %v2385
    %v3630 = vunpack.c.l.b16 %v2386
    %v3631 = vunpack.c.h.b16 %v2386
    %v3632 = vunpack.c.l.b16 %v2387
    %v3633 = vunpack.c.h.b16 %v2387
    %v3634 = vunpack.c.l.b16 %v2388
    %v3635 = vunpack.c.h.b16 %v2388
    %v3636 = vunpack.c.l.b16 %v2389
    %v3637 = vunpack.c.h.b16 %v2389
    %v3638 = vunpack.c.l.b16 %v2390
    %v3639 = vunpack.c.h.b16 %v2390
    %v3640 = vunpack.c.l.b16 %v2391
    %v3641 = vunpack.c.h.b16 %v2391
    %v3642 = vunpack.c.l.b16 %v2392
    %v3643 = vunpack.c.h.b16 %v2392
    %v3644 = vunpack.c.l.b16 %v2393
    %v3645 = vunpack.c.h.b16 %v2393
    %v3646 = vunpack.c.l.b16 %v2394
    %v3647 = vunpack.c.h.b16 %v2394
    %v3648 = vunpack.c.l.b16 %v2395
    %v3649 = vunpack.c.h.b16 %v2395
    %v3650 = vunpack.c.l.b16 %v2396
    %v3651 = vunpack.c.h.b16 %v2396
    %v3652 = vunpack.c.l.b16 %v2397
    %v3653 = vunpack.c.h.b16 %v2397
    %v3654 = vunpack.c.l.b16 %v2398
    %v3655 = vunpack.c.h.b16 %v2398
    %v3656 = vunpack.c.l.b16 %v2399
    %v3657 = vunpack.c.h.b16 %v2399
    %v3658 = vunpack.c.l.b16 %v2400
    %v3659 = vunpack.c.h.b16 %v2400
    %v3660 = vunpack.c.l.b16 %v2401
    %v3661 = vunpack.c.h.b16 %v2401
    %v3662 = vunpack.c.l.b16 %v2402
    %v3663 = vunpack.c.h.b16 %v2402
    %v3664 = vunpack.c.l.b16 %v2403
    %v3665 = vunpack.c.h.b16 %v2403
    %v3666 = vunpack.c.l.b16 %v2404
    %v3667 = vunpack.c.h.b16 %v2404
    %v3668 = vunpack.c.l.b16 %v2405
    %v3669 = vunpack.c.h.b16 %v2405
    %v3670 = vunpack.c.l.b16 %v2406
    %v3671 = vunpack.c.h.b16 %v2406
    %v3672 = vunpack.c.l.b16 %v2407
    %v3673 = vunpack.c.h.b16 %v2407
    %v3674 = vunpack.c.l.b16 %v2408
    %v3675 = vunpack.c.h.b16 %v2408
    %v3676 = vunpack.c.l.b16 %v2409
    %v3677 = vunpack.c.h.b16 %v2409
    %v3678 = vunpack.c.l.b16 %v2410
    %v3679 = vunpack.c.h.b16 %v2410
    %v3680 = vunpack.c.l.b16 %v2411
    %v3681 = vunpack.c.h.b16 %v2411
    %v3682 = vunpack.c.l.b16 %v2412
    %v3683 = vunpack.c.h.b16 %v2412
    %v3684 = vunpack.c.l.b16 %v2413
    %v3685 = vunpack.c.h.b16 %v2413
    %v3686 = vunpack.c.l.b16 %v2414
    %v3687 = vunpack.c.h.b16 %v2414
    %v3688 = vunpack.c.l.b16 %v2415
    %v3689 = vunpack.c.h.b16 %v2415
    %v3690 = vunpack.c.l.b16 %v2416
    %v3691 = vunpack.c.h.b16 %v2416
    %v3692 = vunpack.c.l.b16 %v2417
    %v3693 = vunpack.c.h.b16 %v2417
    %v3694 = vunpack.c.l.b16 %v2418
    %v3695 = vunpack.c.h.b16 %v2418
    %v3696 = vunpack.c.l.b16 %v2419
    %v3697 = vunpack.c.h.b16 %v2419
    %v3698 = vunpack.c.l.b16 %v2420
    %v3699 = vunpack.c.h.b16 %v2420
    %v3700 = vunpack.c.l.b16 %v2421
    %v3701 = vunpack.c.h.b16 %v2421
    %v3702 = vunpack.c.l.b16 %v2422
    %v3703 = vunpack.c.h.b16 %v2422
    %v3704 = vunpack.c.l.b16 %v2423
    %v3705 = vunpack.c.h.b16 %v2423
    %v3706 = vunpack.c.l.b16 %v2424
    %v3707 = vunpack.c.h.b16 %v2424
    %v3708 = vunpack.c.l.b16 %v2425
    %v3709 = vunpack.c.h.b16 %v2425
    %v3710 = vunpack.c.l.b16 %v2426
    %v3711 = vunpack.c.h.b16 %v2426
    %v3712 = vunpack.c.l.b16 %v2427
    %v3713 = vunpack.c.h.b16 %v2427
    %v3714 = vunpack.c.l.b16 %v2428
    %v3715 = vunpack.c.h.b16 %v2428
    %v3716 = vunpack.c.l.b16 %v2429
    %v3717 = vunpack.c.h.b16 %v2429
    %v3718 = vunpack.c.l.b16 %v2430
    %v3719 = vunpack.c.h.b16 %v2430
    %v3720 = vunpack.c.l.b16 %v2431
    %v3721 = vunpack.c.h.b16 %v2431
    %v3722 = vunpack.c.l.b16 %v2432
    %v3723 = vunpack.c.h.b16 %v2432
    %v3724 = vunpack.c.l.b16 %v2433
    %v3725 = vunpack.c.h.b16 %v2433
    %v3726 = vunpack.c.l.b16 %v2434
    %v3727 = vunpack.c.h.b16 %v2434
    %v3728 = vunpack.c.l.b16 %v2435
    %v3729 = vunpack.c.h.b16 %v2435
    %v3730 = vunpack.c.l.b16 %v2436
    %v3731 = vunpack.c.h.b16 %v2436
    %v3732 = vunpack.c.l.b16 %v2437
    %v3733 = vunpack.c.h.b16 %v2437
    %v3734 = vunpack.c.l.b16 %v2438
    %v3735 = vunpack.c.h.b16 %v2438
    %v3736 = vunpack.c.l.b16 %v2439
    %v3737 = vunpack.c.h.b16 %v2439
    %v3738 = vunpack.c.l.b16 %v2440
    %v3739 = vunpack.c.h.b16 %v2440
    %v3740 = vunpack.c.l.b16 %v2441
    %v3741 = vunpack.c.h.b16 %v2441
    %v3742 = vunpack.c.l.b16 %v2442
    %v3743 = vunpack.c.h.b16 %v2442
    %v3744 = vunpack.c.l.b16 %v2443
    %v3745 = vunpack.c.h.b16 %v2443
    %v3746 = vunpack.c.l.b16 %v2444
    %v3747 = vunpack.c.h.b16 %v2444
    %v3748 = vunpack.c.l.b16 %v2445
    %v3749 = vunpack.c.h.b16 %v2445
    %v3750 = vunpack.c.l.b16 %v2446
    %v3751 = vunpack.c.h.b16 %v2446
    %v3752 = vunpack.c.l.b16 %v2447
    %v3753 = vunpack.c.h.b16 %v2447
    %v3754 = vunpack.c.l.b16 %v2448
    %v3755 = vunpack.c.h.b16 %v2448
    %v3756 = vunpack.c.l.b16 %v2449
    %v3757 = vunpack.c.h.b16 %v2449
    %v3758 = vunpack.c.l.b16 %v2450
    %v3759 = vunpack.c.h.b16 %v2450
    %v3760 = vunpack.c.l.b16 %v2451
    %v3761 = vunpack.c.h.b16 %v2451
    %v3762 = vunpack.c.l.b16 %v2452
    %v3763 = vunpack.c.h.b16 %v2452
    %v3764 = vunpack.c.l.b16 %v2453
    %v3765 = vunpack.c.h.b16 %v2453
    %v3766 = vunpack.c.l.b16 %v2454
    %v3767 = vunpack.c.h.b16 %v2454
    %v3768 = vunpack.c.l.b16 %v2455
    %v3769 = vunpack.c.h.b16 %v2455
    %v3770 = vunpack.c.l.b16 %v2456
    %v3771 = vunpack.c.h.b16 %v2456
    %v3772 = vunpack.c.l.b16 %v2457
    %v3773 = vunpack.c.h.b16 %v2457
    %v3774 = vunpack.c.l.b16 %v2458
    %v3775 = vunpack.c.h.b16 %v2458
    %v3776 = vunpack.c.l.b16 %v2459
    %v3777 = vunpack.c.h.b16 %v2459
    %v3778 = vunpack.c.l.b16 %v2460
    %v3779 = vunpack.c.h.b16 %v2460
    %v3780 = vunpack.c.l.b16 %v2461
    %v3781 = vunpack.c.h.b16 %v2461
    %v3782 = vunpack.c.l.b16 %v2462
    %v3783 = vunpack.c.h.b16 %v2462
    %v3784 = vunpack.c.l.b16 %v2463
    %v3785 = vunpack.c.h.b16 %v2463
    %v3786 = vunpack.c.l.b16 %v2464
    %v3787 = vunpack.c.h.b16 %v2464
    %v3788 = vunpack.c.l.b16 %v2465
    %v3789 = vunpack.c.h.b16 %v2465
    %v3790 = vunpack.c.l.b16 %v2466
    %v3791 = vunpack.c.h.b16 %v2466
    %v3792 = vunpack.c.l.b16 %v2467
    %v3793 = vunpack.c.h.b16 %v2467
    %v3794 = vunpack.c.l.b16 %v2468
    %v3795 = vunpack.c.h.b16 %v2468
    %v3796 = vunpack.c.l.b16 %v2469
    %v3797 = vunpack.c.h.b16 %v2469
    %v3798 = vunpack.c.l.b16 %v2470
    %v3799 = vunpack.c.h.b16 %v2470
    %v3800 = vunpack.c.l.b16 %v2471
    %v3801 = vunpack.c.h.b16 %v2471
    %v3802 = vunpack.c.l.b16 %v2472
    %v3803 = vunpack.c.h.b16 %v2472
    %v3804 = vunpack.c.l.b16 %v2473
    %v3805 = vunpack.c.h.b16 %v2473
    %v3806 = vunpack.c.l.b16 %v2474
    %v3807 = vunpack.c.h.b16 %v2474
    %v3808 = vunpack.c.l.b16 %v2475
    %v3809 = vunpack.c.h.b16 %v2475
    %v3810 = vunpack.c.l.b16 %v2476
    %v3811 = vunpack.c.h.b16 %v2476
    %v3812 = vunpack.c.l.b16 %v2477
    %v3813 = vunpack.c.h.b16 %v2477
    %v3814 = vunpack.c.l.b16 %v2478
    %v3815 = vunpack.c.h.b16 %v2478
    %v3816 = vunpack.c.l.b16 %v2479
    %v3817 = vunpack.c.h.b16 %v2479
    %v3818 = vunpack.c.l.b16 %v2480
    %v3819 = vunpack.c.h.b16 %v2480
    %v3820 = vunpack.c.l.b16 %v2481
    %v3821 = vunpack.c.h.b16 %v2481
    %v3822 = vunpack.c.l.b16 %v2482
    %v3823 = vunpack.c.h.b16 %v2482
    %v3824 = vunpack.c.l.b16 %v2483
    %v3825 = vunpack.c.h.b16 %v2483
    %v3826 = vunpack.c.l.b16 %v2484
    %v3827 = vunpack.c.h.b16 %v2484
    %v3828 = vunpack.c.l.b16 %v2485
    %v3829 = vunpack.c.h.b16 %v2485
    %v3830 = vunpack.c.l.b16 %v2486
    %v3831 = vunpack.c.h.b16 %v2486
    %v3832 = vunpack.c.l.b16 %v2487
    %v3833 = vunpack.c.h.b16 %v2487
    %v3834 = vunpack.c.l.b16 %v2488
    %v3835 = vunpack.c.h.b16 %v2488
    %v3836 = vunpack.c.l.b16 %v2489
    %v3837 = vunpack.c.h.b16 %v2489
    %v3838 = vunpack.c.l.b16 %v2490
    %v3839 = vunpack.c.h.b16 %v2490
    %v3840 = vunpack.c.l.b16 %v2491
    %v3841 = vunpack.c.h.b16 %v2491
    %v3842 = vunpack.c.l.b16 %v2492
    %v3843 = vunpack.c.h.b16 %v2492
    %v3844 = vunpack.c.l.b16 %v2493
    %v3845 = vunpack.c.h.b16 %v2493
    %v3846 = vunpack.c.l.b16 %v2494
    %v3847 = vunpack.c.h.b16 %v2494
    %v3848 = vunpack.c.l.b16 %v2495
    %v3849 = vunpack.c.h.b16 %v2495
    %v3850 = vunpack.c.l.b16 %v2496
    %v3851 = vunpack.c.h.b16 %v2496
    %v3852 = vunpack.c.l.b16 %v2497
    %v3853 = vunpack.c.h.b16 %v2497
    %v3854 = vunpack.c.l.b16 %v2498
    %v3855 = vunpack.c.h.b16 %v2498
    %v3856 = vunpack.c.l.b16 %v2499
    %v3857 = vunpack.c.h.b16 %v2499
    %v3858 = vunpack.c.l.b16 %v2500
    %v3859 = vunpack.c.h.b16 %v2500
    %v3860 = vunpack.c.l.b16 %v2501
    %v3861 = vunpack.c.h.b16 %v2501
    %v3862 = vunpack.c.l.b16 %v2502
    %v3863 = vunpack.c.h.b16 %v2502
    %v3864 = vunpack.c.l.b16 %v2503
    %v3865 = vunpack.c.h.b16 %v2503
    %v3866 = vunpack.c.l.b16 %v2504
    %v3867 = vunpack.c.h.b16 %v2504
    %v3868 = vunpack.c.l.b16 %v2505
    %v3869 = vunpack.c.h.b16 %v2505
    %v3870 = vunpack.c.l.b16 %v2506
    %v3871 = vunpack.c.h.b16 %v2506
    %v3872 = vunpack.c.l.b16 %v2507
    %v3873 = vunpack.c.h.b16 %v2507
    %v3874 = vunpack.c.l.b16 %v2508
    %v3875 = vunpack.c.h.b16 %v2508
    %v3876 = vunpack.c.l.b16 %v2509
    %v3877 = vunpack.c.h.b16 %v2509
    %v3878 = vunpack.c.l.b16 %v2510
    %v3879 = vunpack.c.h.b16 %v2510
    %v3880 = vunpack.c.l.b16 %v2511
    %v3881 = vunpack.c.h.b16 %v2511
    %v3882 = vunpack.c.l.b16 %v2512
    %v3883 = vunpack.c.h.b16 %v2512
    %v3884 = vunpack.c.l.b16 %v2513
    %v3885 = vunpack.c.h.b16 %v2513
    %v3886 = vunpack.c.l.b16 %v2514
    %v3887 = vunpack.c.h.b16 %v2514
    %v3888 = vunpack.c.l.b16 %v2515
    %v3889 = vunpack.c.h.b16 %v2515
    %v3890 = vunpack.c.l.b16 %v2516
    %v3891 = vunpack.c.h.b16 %v2516
    %v3892 = vunpack.c.l.b16 %v2517
    %v3893 = vunpack.c.h.b16 %v2517
    %v3894 = vunpack.c.l.b16 %v2518
    %v3895 = vunpack.c.h.b16 %v2518
    %v3896 = vunpack.c.l.b16 %v2519
    %v3897 = vunpack.c.h.b16 %v2519
    %v3898 = vunpack.c.l.b16 %v2520
    %v3899 = vunpack.c.h.b16 %v2520
    %v3900 = vunpack.c.l.b16 %v2521
    %v3901 = vunpack.c.h.b16 %v2521
    %v3902 = vunpack.c.l.b16 %v2522
    %v3903 = vunpack.c.h.b16 %v2522
    %v3904 = vunpack.c.l.b16 %v2523
    %v3905 = vunpack.c.h.b16 %v2523
    %v3906 = vunpack.c.l.b16 %v2524
    %v3907 = vunpack.c.h.b16 %v2524
    %v3908 = vunpack.c.l.b16 %v2525
    %v3909 = vunpack.c.h.b16 %v2525
    %v3910 = vunpack.c.l.b16 %v2526
    %v3911 = vunpack.c.h.b16 %v2526
    %v3912 = vunpack.c.l.b16 %v2527
    %v3913 = vunpack.c.h.b16 %v2527
    %v3914 = vunpack.c.l.b16 %v2528
    %v3915 = vunpack.c.h.b16 %v2528
    %v3916 = vunpack.c.l.b16 %v2529
    %v3917 = vunpack.c.h.b16 %v2529
    %v3918 = vunpack.c.l.b16 %v2530
    %v3919 = vunpack.c.h.b16 %v2530
    %v3920 = vunpack.c.l.b16 %v2531
    %v3921 = vunpack.c.h.b16 %v2531
    %v3922 = vunpack.c.l.b16 %v2532
    %v3923 = vunpack.c.h.b16 %v2532
    %v3924 = vunpack.c.l.b16 %v2533
    %v3925 = vunpack.c.h.b16 %v2533
    %v3926 = vunpack.c.l.b16 %v2534
    %v3927 = vunpack.c.h.b16 %v2534
    %v3928 = vunpack.c.l.b16 %v2535
    %v3929 = vunpack.c.h.b16 %v2535
    %v3930 = vunpack.c.l.b16 %v2536
    %v3931 = vunpack.c.h.b16 %v2536
    %v3932 = vunpack.c.l.b16 %v2537
    %v3933 = vunpack.c.h.b16 %v2537
    %v3934 = vunpack.c.l.b16 %v2538
    %v3935 = vunpack.c.h.b16 %v2538
    %v3936 = vunpack.c.l.b16 %v2539
    %v3937 = vunpack.c.h.b16 %v2539
    %v3938 = vunpack.c.l.b16 %v2540
    %v3939 = vunpack.c.h.b16 %v2540
    %v3940 = vunpack.c.l.b16 %v2541
    %v3941 = vunpack.c.h.b16 %v2541
    %v3942 = vunpack.c.l.b16 %v2542
    %v3943 = vunpack.c.h.b16 %v2542
    %v3944 = vunpack.c.l.b16 %v2543
    %v3945 = vunpack.c.h.b16 %v2543
    %v3946 = vunpack.c.l.b16 %v2544
    %v3947 = vunpack.c.h.b16 %v2544
    %v3948 = vunpack.c.l.b16 %v2545
    %v3949 = vunpack.c.h.b16 %v2545
    %v3950 = vunpack.c.l.b16 %v2546
    %v3951 = vunpack.c.h.b16 %v2546
    %v3952 = vunpack.c.l.b16 %v2547
    %v3953 = vunpack.c.h.b16 %v2547
    %v3954 = vunpack.c.l.b16 %v2548
    %v3955 = vunpack.c.h.b16 %v2548
    %v3956 = vunpack.c.l.b16 %v2549
    %v3957 = vunpack.c.h.b16 %v2549
    %v3958 = vunpack.c.l.b16 %v2550
    %v3959 = vunpack.c.h.b16 %v2550
    %v3960 = vunpack.c.l.b16 %v2551
    %v3961 = vunpack.c.h.b16 %v2551
    %v3962 = vunpack.c.l.b16 %v2552
    %v3963 = vunpack.c.h.b16 %v2552
    %v3964 = vunpack.c.l.b16 %v2553
    %v3965 = vunpack.c.h.b16 %v2553
    %v3966 = vunpack.c.l.b16 %v2554
    %v3967 = vunpack.c.h.b16 %v2554
    %v3968 = vunpack.c.l.b16 %v2555
    %v3969 = vunpack.c.h.b16 %v2555
    %v3970 = vunpack.c.l.b16 %v2556
    %v3971 = vunpack.c.h.b16 %v2556
    %v3972 = vunpack.c.l.b16 %v2557
    %v3973 = vunpack.c.h.b16 %v2557
    %v3974 = vunpack.c.l.b16 %v2558
    %v3975 = vunpack.c.h.b16 %v2558
    %v3976 = vunpack.c.l.b16 %v2559
    %v3977 = vunpack.c.h.b16 %v2559
    %v3978 = vunpack.c.l.b16 %v2560
    %v3979 = vunpack.c.h.b16 %v2560
    %v3980 = vunpack.c.l.b16 %v2561
    %v3981 = vunpack.c.h.b16 %v2561
    %v3982 = vunpack.c.l.b16 %v2562
    %v3983 = vunpack.c.h.b16 %v2562
    %v3984 = vunpack.c.l.b16 %v2563
    %v3985 = vunpack.c.h.b16 %v2563
    %v3986 = vunpack.c.l.b16 %v2564
    %v3987 = vunpack.c.h.b16 %v2564
    %v3988 = vunpack.c.l.b16 %v2565
    %v3989 = vunpack.c.h.b16 %v2565
    %v3990 = vunpack.c.l.b16 %v2566
    %v3991 = vunpack.c.h.b16 %v2566
    %v3992 = vunpack.c.l.b16 %v2567
    %v3993 = vunpack.c.h.b16 %v2567
    %v3994 = vunpack.c.l.b16 %v2568
    %v3995 = vunpack.c.h.b16 %v2568
    %v3996 = vunpack.c.l.b16 %v2569
    %v3997 = vunpack.c.h.b16 %v2569
    %v3998 = vunpack.c.l.b16 %v2570
    %v3999 = vunpack.c.h.b16 %v2570
    %v4000 = vunpack.c.l.b16 %v2571
    %v4001 = vunpack.c.h.b16 %v2571
    %v4002 = vunpack.c.l.b16 %v2572
    %v4003 = vunpack.c.h.b16 %v2572
    %v4004 = vunpack.c.l.b16 %v2573
    %v4005 = vunpack.c.h.b16 %v2573
    %v4006 = vunpack.c.l.b16 %v2574
    %v4007 = vunpack.c.h.b16 %v2574
    %v4008 = vunpack.c.l.b16 %v2575
    %v4009 = vunpack.c.h.b16 %v2575
    %v4010 = vunpack.c.l.b16 %v2576
    %v4011 = vunpack.c.h.b16 %v2576
    %v4012 = vunpack.c.l.b16 %v2577
    %v4013 = vunpack.c.h.b16 %v2577
    %v4014 = vunpack.c.l.b16 %v2578
    %v4015 = vunpack.c.h.b16 %v2578
    %v4016 = vunpack.c.l.b16 %v2579
    %v4017 = vunpack.c.h.b16 %v2579
    %v4018 = vunpack.c.l.b16 %v2580
    %v4019 = vunpack.c.h.b16 %v2580
    %v4020 = vunpack.c.l.b16 %v2581
    %v4021 = vunpack.c.h.b16 %v2581
    %v4022 = vunpack.c.l.b16 %v2582
    %v4023 = vunpack.c.h.b16 %v2582
    %v4024 = vunpack.c.l.b16 %v2583
    %v4025 = vunpack.c.h.b16 %v2583
    %v4026 = vunpack.c.l.b16 %v2584
    %v4027 = vunpack.c.h.b16 %v2584
    %v4028 = vunpack.c.l.b16 %v2585
    %v4029 = vunpack.c.h.b16 %v2585
    %v4030 = vunpack.c.l.b16 %v2586
    %v4031 = vunpack.c.h.b16 %v2586
    %v4032 = vunpack.c.l.b16 %v2587
    %v4033 = vunpack.c.h.b16 %v2587
    %v4034 = vunpack.c.l.b16 %v2588
    %v4035 = vunpack.c.h.b16 %v2588
    %v4036 = vunpack.c.l.b16 %v2589
    %v4037 = vunpack.c.h.b16 %v2589
    %v4038 = vunpack.c.l.b16 %v2590
    %v4039 = vunpack.c.h.b16 %v2590
    %v4040 = vunpack.c.l.b16 %v2591
    %v4041 = vunpack.c.h.b16 %v2591
    %v4042 = vunpack.c.l.b16 %v2592
    %v4043 = vunpack.c.h.b16 %v2592
    %v4044 = vunpack.c.l.b16 %v2593
    %v4045 = vunpack.c.h.b16 %v2593
    %v4046 = vunpack.c.l.b16 %v2594
    %v4047 = vunpack.c.h.b16 %v2594
    %v4048 = vunpack.c.l.b16 %v2595
    %v4049 = vunpack.c.h.b16 %v2595
    %v4050 = vunpack.c.l.b16 %v2596
    %v4051 = vunpack.c.h.b16 %v2596
    %v4052 = vunpack.c.l.b16 %v2597
    %v4053 = vunpack.c.h.b16 %v2597
    %v4054 = vunpack.c.l.b16 %v2598
    %v4055 = vunpack.c.h.b16 %v2598
    %v4056 = vunpack.c.l.b16 %v2599
    %v4057 = vunpack.c.h.b16 %v2599
    %v4058 = vunpack.c.l.b16 %v2600
    %v4059 = vunpack.c.h.b16 %v2600
    %v4060 = vunpack.c.l.b16 %v2601
    %v4061 = vunpack.c.h.b16 %v2601
    %v4062 = vunpack.c.l.b16 %v2602
    %v4063 = vunpack.c.h.b16 %v2602
    %v4064 = vunpack.c.l.b16 %v2603
    %v4065 = vunpack.c.h.b16 %v2603
    %v4066 = vunpack.c.l.b16 %v2604
    %v4067 = vunpack.c.h.b16 %v2604
    %v4068 = vunpack.c.l.b16 %v2605
    %v4069 = vunpack.c.h.b16 %v2605
    %v4070 = vunpack.c.l.b16 %v2606
    %v4071 = vunpack.c.h.b16 %v2606
    %v4072 = vunpack.c.l.b16 %v2607
    %v4073 = vunpack.c.h.b16 %v2607
    %v4074 = vunpack.c.l.b16 %v2608
    %v4075 = vunpack.c.h.b16 %v2608
    %v4076 = vunpack.c.l.b16 %v2609
    %v4077 = vunpack.c.h.b16 %v2609
    %v4078 = vunpack.c.l.b16 %v2610
    %v4079 = vunpack.c.h.b16 %v2610
    %v4080 = vunpack.c.l.b16 %v2611
    %v4081 = vunpack.c.h.b16 %v2611
    %v4082 = vunpack.c.l.b16 %v2612
    %v4083 = vunpack.c.h.b16 %v2612
    %v4084 = vunpack.c.l.b16 %v2613
    %v4085 = vunpack.c.h.b16 %v2613
    %v4086 = vunpack.c.l.b16 %v2614
    %v4087 = vunpack.c.h.b16 %v2614
    %v4088 = vunpack.c.l.b16 %v2615
    %v4089 = vunpack.c.h.b16 %v2615
    %v4090 = vunpack.c.l.b16 %v2616
    %v4091 = vunpack.c.h.b16 %v2616
    %v4092 = vunpack.c.l.b16 %v2617
    %v4093 = vunpack.c.h.b16 %v2617
    %v4094 = vunpack.c.l.b16 %v2618
    %v4095 = vunpack.c.h.b16 %v2618
    %v4096 = vunpack.c.l.b16 %v2619
    %v4097 = vunpack.c.h.b16 %v2619
    %v4098 = vunpack.c.l.b16 %v2620
    %v4099 = vunpack.c.h.b16 %v2620
    %v4100 = vunpack.c.l.b16 %v2621
    %v4101 = vunpack.c.h.b16 %v2621
    %v4102 = vunpack.c.l.b16 %v2622
    %v4103 = vunpack.c.h.b16 %v2622
    %v4104 = vunpack.c.l.b16 %v2623
    %v4105 = vunpack.c.h.b16 %v2623
    %v4106 = vunpack.c.l.b16 %v2624
    %v4107 = vunpack.c.h.b16 %v2624
    %v4108 = vunpack.c.l.b16 %v2625
    %v4109 = vunpack.c.h.b16 %v2625
    %v4110 = vunpack.c.l.b16 %v2626
    %v4111 = vunpack.c.h.b16 %v2626
    %v4112 = vunpack.c.l.b16 %v2627
    %v4113 = vunpack.c.h.b16 %v2627
    %v4114 = vunpack.c.l.b16 %v2628
    %v4115 = vunpack.c.h.b16 %v2628
    %v4116 = vunpack.c.l.b16 %v2629
    %v4117 = vunpack.c.h.b16 %v2629
    %v4118 = vunpack.c.l.b16 %v2630
    %v4119 = vunpack.c.h.b16 %v2630
    %v4120 = vunpack.c.l.b16 %v2631
    %v4121 = vunpack.c.h.b16 %v2631
    %v4122 = vunpack.c.l.b16 %v2632
    %v4123 = vunpack.c.h.b16 %v2632
    %v4124 = vunpack.c.l.b16 %v2633
    %v4125 = vunpack.c.h.b16 %v2633
    %v4126 = vunpack.c.l.b16 %v2634
    %v4127 = vunpack.c.h.b16 %v2634
    %v4128 = vunpack.c.l.b16 %v2635
    %v4129 = vunpack.c.h.b16 %v2635
    %v4130 = vunpack.c.l.b16 %v2636
    %v4131 = vunpack.c.h.b16 %v2636
    %v4132 = vunpack.c.l.b16 %v2637
    %v4133 = vunpack.c.h.b16 %v2637
    %v4134 = vunpack.c.l.b16 %v2638
    %v4135 = vunpack.c.h.b16 %v2638
    %v4136 = vunpack.c.l.b16 %v2639
    %v4137 = vunpack.c.h.b16 %v2639
    %v4138 = vunpack.c.l.b16 %v2640
    %v4139 = vunpack.c.h.b16 %v2640
    %v4140 = vunpack.c.l.b16 %v2641
    %v4141 = vunpack.c.h.b16 %v2641
    %v4142 = vunpack.c.l.b16 %v2642
    %v4143 = vunpack.c.h.b16 %v2642
    %v4144 = vunpack.c.l.b16 %v2643
    %v4145 = vunpack.c.h.b16 %v2643
    %v4146 = vunpack.c.l.b16 %v2644
    %v4147 = vunpack.c.h.b16 %v2644
    %v4148 = vunpack.c.l.b16 %v2645
    %v4149 = vunpack.c.h.b16 %v2645
    %v4150 = vunpack.c.l.b16 %v2646
    %v4151 = vunpack.c.h.b16 %v2646
    %v4152 = vunpack.c.l.b16 %v2647
    %v4153 = vunpack.c.h.b16 %v2647
    %v4154 = vunpack.c.l.b16 %v2648
    %v4155 = vunpack.c.h.b16 %v2648
    %v4156 = vunpack.c.l.b16 %v2649
    %v4157 = vunpack.c.h.b16 %v2649
    %v4158 = vunpack.c.l.b16 %v2650
    %v4159 = vunpack.c.h.b16 %v2650
    %v4160 = vunpack.c.l.b16 %v2651
    %v4161 = vunpack.c.h.b16 %v2651
    %v4162 = vunpack.c.l.b16 %v2652
    %v4163 = vunpack.c.h.b16 %v2652
    %v4164 = vunpack.c.l.b16 %v2653
    %v4165 = vunpack.c.h.b16 %v2653
    %v4166 = vunpack.c.l.b16 %v2654
    %v4167 = vunpack.c.h.b16 %v2654
    %v4168 = vunpack.c.l.b16 %v2655
    %v4169 = vunpack.c.h.b16 %v2655
    %v4170 = vunpack.c.l.b16 %v2656
    %v4171 = vunpack.c.h.b16 %v2656
    %v4172 = vunpack.c.l.b16 %v2657
    %v4173 = vunpack.c.h.b16 %v2657
    %v4174 = vunpack.c.l.b16 %v2658
    %v4175 = vunpack.c.h.b16 %v2658
    %v4176 = vunpack.c.l.b16 %v2659
    %v4177 = vunpack.c.h.b16 %v2659
    %v4178 = vunpack.c.l.b16 %v2660
    %v4179 = vunpack.c.h.b16 %v2660
    %v4180 = vunpack.c.l.b16 %v2661
    %v4181 = vunpack.c.h.b16 %v2661
    %v4182 = vunpack.c.l.b16 %v2662
    %v4183 = vunpack.c.h.b16 %v2662
    %v4184 = vunpack.c.l.b16 %v2663
    %v4185 = vunpack.c.h.b16 %v2663
    %v4186 = vunpack.c.l.b16 %v2664
    %v4187 = vunpack.c.h.b16 %v2664
    %v4188 = vunpack.c.l.b16 %v2665
    %v4189 = vunpack.c.h.b16 %v2665
    %v4190 = vunpack.c.l.b16 %v2666
    %v4191 = vunpack.c.h.b16 %v2666
    %v4192 = vunpack.c.l.b16 %v2667
    %v4193 = vunpack.c.h.b16 %v2667
    %v4194 = vunpack.c.l.b16 %v2668
    %v4195 = vunpack.c.h.b16 %v2668
    %v4196 = vunpack.c.l.b16 %v2669
    %v4197 = vunpack.c.h.b16 %v2669
    %v4198 = vunpack.c.l.b16 %v2670
    %v4199 = vunpack.c.h.b16 %v2670
    %v4200 = vunpack.c.l.b16 %v2671
    %v4201 = vunpack.c.h.b16 %v2671
    %v4202 = vunpack.c.l.b16 %v2672
    %v4203 = vunpack.c.h.b16 %v2672
    %v4204 = vunpack.c.l.b16 %v2673
    %v4205 = vunpack.c.h.b16 %v2673
    %v4206 = vunpack.c.l.b16 %v2674
    %v4207 = vunpack.c.h.b16 %v2674
    %v4208 = vunpack.c.l.b16 %v2675
    %v4209 = vunpack.c.h.b16 %v2675
    %v4210 = vunpack.c.l.b16 %v2676
    %v4211 = vunpack.c.h.b16 %v2676
    %v4212 = vunpack.c.l.b16 %v2677
    %v4213 = vunpack.c.h.b16 %v2677
    %v4214 = vunpack.c.l.b16 %v2678
    %v4215 = vunpack.c.h.b16 %v2678
    %v4216 = vunpack.c.l.b16 %v2679
    %v4217 = vunpack.c.h.b16 %v2679
    %v4218 = vunpack.c.l.b16 %v2680
    %v4219 = vunpack.c.h.b16 %v2680
    %v4220 = vunpack.c.l.b16 %v2681
    %v4221 = vunpack.c.h.b16 %v2681
    %v4222 = vunpack.c.l.b16 %v2682
    %v4223 = vunpack.c.h.b16 %v2682
    %v4224 = vunpack.c.l.b16 %v2683
    %v4225 = vunpack.c.h.b16 %v2683
    %v4226 = vunpack.c.l.b16 %v2684
    %v4227 = vunpack.c.h.b16 %v2684
    %v4228 = vunpack.c.l.b16 %v2685
    %v4229 = vunpack.c.h.b16 %v2685
    %v4230 = vunpack.c.l.b16 %v2686
    %v4231 = vunpack.c.h.b16 %v2686
    %v4232 = vunpack.c.l.b16 %v2687
    %v4233 = vunpack.c.h.b16 %v2687
    %v4234 = vunpack.c.l.b16 %v2688
    %v4235 = vunpack.c.h.b16 %v2688
    %v4236 = vunpack.c.l.b16 %v2689
    %v4237 = vunpack.c.h.b16 %v2689
    %v4238 = vunpack.c.l.b16 %v2690
    %v4239 = vunpack.c.h.b16 %v2690
    %v4240 = vunpack.c.l.b16 %v2691
    %v4241 = vunpack.c.h.b16 %v2691
    %v4242 = vunpack.c.l.b16 %v2692
    %v4243 = vunpack.c.h.b16 %v2692
    %v4244 = vunpack.c.l.b16 %v2693
    %v4245 = vunpack.c.h.b16 %v2693
    %v4246 = vunpack.c.l.b16 %v2694
    %v4247 = vunpack.c.h.b16 %v2694
    %v4248 = vunpack.c.l.b16 %v2695
    %v4249 = vunpack.c.h.b16 %v2695
    %v4250 = vunpack.c.l.b16 %v2696
    %v4251 = vunpack.c.h.b16 %v2696
    %v4252 = vunpack.c.l.b16 %v2697
    %v4253 = vunpack.c.h.b16 %v2697
    %v4254 = vunpack.c.l.b16 %v2698
    %v4255 = vunpack.c.h.b16 %v2698
    %v4256 = vunpack.c.l.b16 %v2699
    %v4257 = vunpack.c.h.b16 %v2699
    %v4258 = vunpack.c.l.b16 %v2700
    %v4259 = vunpack.c.h.b16 %v2700
    %v4260 = vunpack.c.l.b16 %v2701
    %v4261 = vunpack.c.h.b16 %v2701
    %v4262 = vunpack.c.l.b16 %v2702
    %v4263 = vunpack.c.h.b16 %v2702
    %v4264 = vunpack.c.l.b16 %v2703
    %v4265 = vunpack.c.h.b16 %v2703
    %v4266 = vunpack.c.l.b16 %v2704
    %v4267 = vunpack.c.h.b16 %v2704
    %v4268 = vunpack.c.l.b16 %v2705
    %v4269 = vunpack.c.h.b16 %v2705
    %v4270 = vunpack.c.l.b16 %v2706
    %v4271 = vunpack.c.h.b16 %v2706
    %v4272 = vunpack.c.l.b16 %v2707
    %v4273 = vunpack.c.h.b16 %v2707
    %v4274 = vunpack.c.l.b16 %v2708
    %v4275 = vunpack.c.h.b16 %v2708
    %v4276 = vunpack.c.l.b16 %v2709
    %v4277 = vunpack.c.h.b16 %v2709
    %v4278 = vunpack.c.l.b16 %v2710
    %v4279 = vunpack.c.h.b16 %v2710
    %v4280 = vunpack.c.l.b16 %v2711
    %v4281 = vunpack.c.h.b16 %v2711
    %v4282 = vunpack.c.l.b16 %v2712
    %v4283 = vunpack.c.h.b16 %v2712
    %v4284 = vunpack.c.l.b16 %v2713
    %v4285 = vunpack.c.h.b16 %v2713
    %v4286 = vunpack.c.l.b16 %v2714
    %v4287 = vunpack.c.h.b16 %v2714
    %v4288 = vunpack.c.l.b16 %v2715
    %v4289 = vunpack.c.h.b16 %v2715
    %v4290 = vunpack.c.l.b16 %v2716
    %v4291 = vunpack.c.h.b16 %v2716
    %v4292 = vunpack.c.l.b16 %v2717
    %v4293 = vunpack.c.h.b16 %v2717
    %v4294 = vunpack.c.l.b16 %v2718
    %v4295 = vunpack.c.h.b16 %v2718
    %v4296 = vunpack.c.l.b16 %v2719
    %v4297 = vunpack.c.h.b16 %v2719
    %v4298 = vpack.c.b16 %v3282, %v3274
    %v4299 = vpack.c.b16 %v3283, %v3275
    %v4300 = vpack.c.b16 %v3284, %v3276
    %v4301 = vpack.c.b16 %v3285, %v3277
    %v4302 = vpack.c.b16 %v3286, %v3278
    %v4303 = vpack.c.b16 %v3287, %v3279
    %v4304 = vpack.c.b16 %v3288, %v3280
    %v4305 = vpack.c.b16 %v3289, %v3281
    %v4306 = vpack.c.b16 %v3298, %v3290
    %v4307 = vpack.c.b16 %v3299, %v3291
    %v4308 = vpack.c.b16 %v3300, %v3292
    %v4309 = vpack.c.b16 %v3301, %v3293
    %v4310 = vpack.c.b16 %v3302, %v3294
    %v4311 = vpack.c.b16 %v3303, %v3295
    %v4312 = vpack.c.b16 %v3304, %v3296
    %v4313 = vpack.c.b16 %v3305, %v3297
    %v4314 = vpack.c.b16 %v3314, %v3306
    %v4315 = vpack.c.b16 %v3315, %v3307
    %v4316 = vpack.c.b16 %v3316, %v3308
    %v4317 = vpack.c.b16 %v3317, %v3309
    %v4318 = vpack.c.b16 %v3318, %v3310
    %v4319 = vpack.c.b16 %v3319, %v3311
    %v4320 = vpack.c.b16 %v3320, %v3312
    %v4321 = vpack.c.b16 %v3321, %v3313
    %v4322 = vpack.c.b16 %v3330, %v3322
    %v4323 = vpack.c.b16 %v3331, %v3323
    %v4324 = vpack.c.b16 %v3332, %v3324
    %v4325 = vpack.c.b16 %v3333, %v3325
    %v4326 = vpack.c.b16 %v3334, %v3326
    %v4327 = vpack.c.b16 %v3335, %v3327
    %v4328 = vpack.c.b16 %v3336, %v3328
    %v4329 = vpack.c.b16 %v3337, %v3329
    %v4330 = vpack.c.b16 %v3346, %v3338
    %v4331 = vpack.c.b16 %v3347, %v3339
    %v4332 = vpack.c.b16 %v3348, %v3340
    %v4333 = vpack.c.b16 %v3349, %v3341
    %v4334 = vpack.c.b16 %v3350, %v3342
    %v4335 = vpack.c.b16 %v3351, %v3343
    %v4336 = vpack.c.b16 %v3352, %v3344
    %v4337 = vpack.c.b16 %v3353, %v3345
    %v4338 = vpack.c.b16 %v3362, %v3354
    %v4339 = vpack.c.b16 %v3363, %v3355
    %v4340 = vpack.c.b16 %v3364, %v3356
    %v4341 = vpack.c.b16 %v3365, %v3357
    %v4342 = vpack.c.b16 %v3366, %v3358
    %v4343 = vpack.c.b16 %v3367, %v3359
    %v4344 = vpack.c.b16 %v3368, %v3360
    %v4345 = vpack.c.b16 %v3369, %v3361
    %v4346 = vpack.c.b16 %v3378, %v3370
    %v4347 = vpack.c.b16 %v3379, %v3371
    %v4348 = vpack.c.b16 %v3380, %v3372
    %v4349 = vpack.c.b16 %v3381, %v3373
    %v4350 = vpack.c.b16 %v3382, %v3374
    %v4351 = vpack.c.b16 %v3383, %v3375
    %v4352 = vpack.c.b16 %v3384, %v3376
    %v4353 = vpack.c.b16 %v3385, %v3377
    %v4354 = vpack.c.b16 %v3394, %v3386
    %v4355 = vpack.c.b16 %v3395, %v3387
    %v4356 = vpack.c.b16 %v3396, %v3388
    %v4357 = vpack.c.b16 %v3397, %v3389
    %v4358 = vpack.c.b16 %v3398, %v3390
    %v4359 = vpack.c.b16 %v3399, %v3391
    %v4360 = vpack.c.b16 %v3400, %v3392
    %v4361 = vpack.c.b16 %v3401, %v3393
    %v4362 = vpack.c.b16 %v3410, %v3402
    %v4363 = vpack.c.b16 %v3411, %v3403
    %v4364 = vpack.c.b16 %v3412, %v3404
    %v4365 = vpack.c.b16 %v3413, %v3405
    %v4366 = vpack.c.b16 %v3414, %v3406
    %v4367 = vpack.c.b16 %v3415, %v3407
    %v4368 = vpack.c.b16 %v3416, %v3408
    %v4369 = vpack.c.b16 %v3417, %v3409
    %v4370 = vpack.c.b16 %v3426, %v3418
    %v4371 = vpack.c.b16 %v3427, %v3419
    %v4372 = vpack.c.b16 %v3428, %v3420
    %v4373 = vpack.c.b16 %v3429, %v3421
    %v4374 = vpack.c.b16 %v3430, %v3422
    %v4375 = vpack.c.b16 %v3431, %v3423
    %v4376 = vpack.c.b16 %v3432, %v3424
    %v4377 = vpack.c.b16 %v3433, %v3425
    %v4378 = vpack.c.b16 %v3442, %v3434
    %v4379 = vpack.c.b16 %v3443, %v3435
    %v4380 = vpack.c.b16 %v3444, %v3436
    %v4381 = vpack.c.b16 %v3445, %v3437
    %v4382 = vpack.c.b16 %v3446, %v3438
    %v4383 = vpack.c.b16 %v3447, %v3439
    %v4384 = vpack.c.b16 %v3448, %v3440
    %v4385 = vpack.c.b16 %v3449, %v3441
    %v4386 = vpack.c.b16 %v3458, %v3450
    %v4387 = vpack.c.b16 %v3459, %v3451
    %v4388 = vpack.c.b16 %v3460, %v3452
    %v4389 = vpack.c.b16 %v3461, %v3453
    %v4390 = vpack.c.b16 %v3462, %v3454
    %v4391 = vpack.c.b16 %v3463, %v3455
    %v4392 = vpack.c.b16 %v3464, %v3456
    %v4393 = vpack.c.b16 %v3465, %v3457
    %v4394 = vpack.c.b16 %v3474, %v3466
    %v4395 = vpack.c.b16 %v3475, %v3467
    %v4396 = vpack.c.b16 %v3476, %v3468
    %v4397 = vpack.c.b16 %v3477, %v3469
    %v4398 = vpack.c.b16 %v3478, %v3470
    %v4399 = vpack.c.b16 %v3479, %v3471
    %v4400 = vpack.c.b16 %v3480, %v3472
    %v4401 = vpack.c.b16 %v3481, %v3473
    %v4402 = vpack.c.b16 %v3490, %v3482
    %v4403 = vpack.c.b16 %v3491, %v3483
    %v4404 = vpack.c.b16 %v3492, %v3484
    %v4405 = vpack.c.b16 %v3493, %v3485
    %v4406 = vpack.c.b16 %v3494, %v3486
    %v4407 = vpack.c.b16 %v3495, %v3487
    %v4408 = vpack.c.b16 %v3496, %v3488
    %v4409 = vpack.c.b16 %v3497, %v3489
    %v4410 = vpack.c.b16 %v3506, %v3498
    %v4411 = vpack.c.b16 %v3507, %v3499
    %v4412 = vpack.c.b16 %v3508, %v3500
    %v4413 = vpack.c.b16 %v3509, %v3501
    %v4414 = vpack.c.b16 %v3510, %v3502
    %v4415 = vpack.c.b16 %v3511, %v3503
    %v4416 = vpack.c.b16 %v3512, %v3504
    %v4417 = vpack.c.b16 %v3513, %v3505
    %v4418 = vpack.c.b16 %v3522, %v3514
    %v4419 = vpack.c.b16 %v3523, %v3515
    %v4420 = vpack.c.b16 %v3524, %v3516
    %v4421 = vpack.c.b16 %v3525, %v3517
    %v4422 = vpack.c.b16 %v3526, %v3518
    %v4423 = vpack.c.b16 %v3527, %v3519
    %v4424 = vpack.c.b16 %v3528, %v3520
    %v4425 = vpack.c.b16 %v3529, %v3521
    %v4426 = vpack.c.b16 %v3538, %v3530
    %v4427 = vpack.c.b16 %v3539, %v3531
    %v4428 = vpack.c.b16 %v3540, %v3532
    %v4429 = vpack.c.b16 %v3541, %v3533
    %v4430 = vpack.c.b16 %v3542, %v3534
    %v4431 = vpack.c.b16 %v3543, %v3535
    %v4432 = vpack.c.b16 %v3544, %v3536
    %v4433 = vpack.c.b16 %v3545, %v3537
    %v4434 = vpack.c.b16 %v3554, %v3546
    %v4435 = vpack.c.b16 %v3555, %v3547
    %v4436 = vpack.c.b16 %v3556, %v3548
    %v4437 = vpack.c.b16 %v3557, %v3549
    %v4438 = vpack.c.b16 %v3558, %v3550
    %v4439 = vpack.c.b16 %v3559, %v3551
    %v4440 = vpack.c.b16 %v3560, %v3552
    %v4441 = vpack.c.b16 %v3561, %v3553
    %v4442 = vpack.c.b16 %v3570, %v3562
    %v4443 = vpack.c.b16 %v3571, %v3563
    %v4444 = vpack.c.b16 %v3572, %v3564
    %v4445 = vpack.c.b16 %v3573, %v3565
    %v4446 = vpack.c.b16 %v3574, %v3566
    %v4447 = vpack.c.b16 %v3575, %v3567
    %v4448 = vpack.c.b16 %v3576, %v3568
    %v4449 = vpack.c.b16 %v3577, %v3569
    %v4450 = vpack.c.b16 %v3586, %v3578
    %v4451 = vpack.c.b16 %v3587, %v3579
    %v4452 = vpack.c.b16 %v3588, %v3580
    %v4453 = vpack.c.b16 %v3589, %v3581
    %v4454 = vpack.c.b16 %v3590, %v3582
    %v4455 = vpack.c.b16 %v3591, %v3583
    %v4456 = vpack.c.b16 %v3592, %v3584
    %v4457 = vpack.c.b16 %v3593, %v3585
    %v4458 = vpack.c.b16 %v3602, %v3594
    %v4459 = vpack.c.b16 %v3603, %v3595
    %v4460 = vpack.c.b16 %v3604, %v3596
    %v4461 = vpack.c.b16 %v3605, %v3597
    %v4462 = vpack.c.b16 %v3606, %v3598
    %v4463 = vpack.c.b16 %v3607, %v3599
    %v4464 = vpack.c.b16 %v3608, %v3600
    %v4465 = vpack.c.b16 %v3609, %v3601
    %v4466 = vpack.c.b16 %v3618, %v3610
    %v4467 = vpack.c.b16 %v3619, %v3611
    %v4468 = vpack.c.b16 %v3620, %v3612
    %v4469 = vpack.c.b16 %v3621, %v3613
    %v4470 = vpack.c.b16 %v3622, %v3614
    %v4471 = vpack.c.b16 %v3623, %v3615
    %v4472 = vpack.c.b16 %v3624, %v3616
    %v4473 = vpack.c.b16 %v3625, %v3617
    %v4474 = vpack.c.b16 %v3634, %v3626
    %v4475 = vpack.c.b16 %v3635, %v3627
    %v4476 = vpack.c.b16 %v3636, %v3628
    %v4477 = vpack.c.b16 %v3637, %v3629
    %v4478 = vpack.c.b16 %v3638, %v3630
    %v4479 = vpack.c.b16 %v3639, %v3631
    %v4480 = vpack.c.b16 %v3640, %v3632
    %v4481 = vpack.c.b16 %v3641, %v3633
    %v4482 = vpack.c.b16 %v3650, %v3642
    %v4483 = vpack.c.b16 %v3651, %v3643
    %v4484 = vpack.c.b16 %v3652, %v3644
    %v4485 = vpack.c.b16 %v3653, %v3645
    %v4486 = vpack.c.b16 %v3654, %v3646
    %v4487 = vpack.c.b16 %v3655, %v3647
    %v4488 = vpack.c.b16 %v3656, %v3648
    %v4489 = vpack.c.b16 %v3657, %v3649
    %v4490 = vpack.c.b16 %v3666, %v3658
    %v4491 = vpack.c.b16 %v3667, %v3659
    %v4492 = vpack.c.b16 %v3668, %v3660
    %v4493 = vpack.c.b16 %v3669, %v3661
    %v4494 = vpack.c.b16 %v3670, %v3662
    %v4495 = vpack.c.b16 %v3671, %v3663
    %v4496 = vpack.c.b16 %v3672, %v3664
    %v4497 = vpack.c.b16 %v3673, %v3665
    %v4498 = vpack.c.b16 %v3682, %v3674
    %v4499 = vpack.c.b16 %v3683, %v3675
    %v4500 = vpack.c.b16 %v3684, %v3676
    %v4501 = vpack.c.b16 %v3685, %v3677
    %v4502 = vpack.c.b16 %v3686, %v3678
    %v4503 = vpack.c.b16 %v3687, %v3679
    %v4504 = vpack.c.b16 %v3688, %v3680
    %v4505 = vpack.c.b16 %v3689, %v3681
    %v4506 = vpack.c.b16 %v3698, %v3690
    %v4507 = vpack.c.b16 %v3699, %v3691
    %v4508 = vpack.c.b16 %v3700, %v3692
    %v4509 = vpack.c.b16 %v3701, %v3693
    %v4510 = vpack.c.b16 %v3702, %v3694
    %v4511 = vpack.c.b16 %v3703, %v3695
    %v4512 = vpack.c.b16 %v3704, %v3696
    %v4513 = vpack.c.b16 %v3705, %v3697
    %v4514 = vpack.c.b16 %v3714, %v3706
    %v4515 = vpack.c.b16 %v3715, %v3707
    %v4516 = vpack.c.b16 %v3716, %v3708
    %v4517 = vpack.c.b16 %v3717, %v3709
    %v4518 = vpack.c.b16 %v3718, %v3710
    %v4519 = vpack.c.b16 %v3719, %v3711
    %v4520 = vpack.c.b16 %v3720, %v3712
    %v4521 = vpack.c.b16 %v3721, %v3713
    %v4522 = vpack.c.b16 %v3730, %v3722
    %v4523 = vpack.c.b16 %v3731, %v3723
    %v4524 = vpack.c.b16 %v3732, %v3724
    %v4525 = vpack.c.b16 %v3733, %v3725
    %v4526 = vpack.c.b16 %v3734, %v3726
    %v4527 = vpack.c.b16 %v3735, %v3727
    %v4528 = vpack.c.b16 %v3736, %v3728
    %v4529 = vpack.c.b16 %v3737, %v3729
    %v4530 = vpack.c.b16 %v3746, %v3738
    %v4531 = vpack.c.b16 %v3747, %v3739
    %v4532 = vpack.c.b16 %v3748, %v3740
    %v4533 = vpack.c.b16 %v3749, %v3741
    %v4534 = vpack.c.b16 %v3750, %v3742
    %v4535 = vpack.c.b16 %v3751, %v3743
    %v4536 = vpack.c.b16 %v3752, %v3744
    %v4537 = vpack.c.b16 %v3753, %v3745
    %v4538 = vpack.c.b16 %v3762, %v3754
    %v4539 = vpack.c.b16 %v3763, %v3755
    %v4540 = vpack.c.b16 %v3764, %v3756
    %v4541 = vpack.c.b16 %v3765, %v3757
    %v4542 = vpack.c.b16 %v3766, %v3758
    %v4543 = vpack.c.b16 %v3767, %v3759
    %v4544 = vpack.c.b16 %v3768, %v3760
    %v4545 = vpack.c.b16 %v3769, %v3761
    %v4546 = vpack.c.b16 %v3778, %v3770
    %v4547 = vpack.c.b16 %v3779, %v3771
    %v4548 = vpack.c.b16 %v3780, %v3772
    %v4549 = vpack.c.b16 %v3781, %v3773
    %v4550 = vpack.c.b16 %v3782, %v3774
    %v4551 = vpack.c.b16 %v3783, %v3775
    %v4552 = vpack.c.b16 %v3784, %v3776
    %v4553 = vpack.c.b16 %v3785, %v3777
    %v4554 = vpack.c.b16 %v3794, %v3786
    %v4555 = vpack.c.b16 %v3795, %v3787
    %v4556 = vpack.c.b16 %v3796, %v3788
    %v4557 = vpack.c.b16 %v3797, %v3789
    %v4558 = vpack.c.b16 %v3798, %v3790
    %v4559 = vpack.c.b16 %v3799, %v3791
    %v4560 = vpack.c.b16 %v3800, %v3792
    %v4561 = vpack.c.b16 %v3801, %v3793
    %v4562 = vpack.c.b16 %v3810, %v3802
    %v4563 = vpack.c.b16 %v3811, %v3803
    %v4564 = vpack.c.b16 %v3812, %v3804
    %v4565 = vpack.c.b16 %v3813, %v3805
    %v4566 = vpack.c.b16 %v3814, %v3806
    %v4567 = vpack.c.b16 %v3815, %v3807
    %v4568 = vpack.c.b16 %v3816, %v3808
    %v4569 = vpack.c.b16 %v3817, %v3809
    %v4570 = vpack.c.b16 %v3826, %v3818
    %v4571 = vpack.c.b16 %v3827, %v3819
    %v4572 = vpack.c.b16 %v3828, %v3820
    %v4573 = vpack.c.b16 %v3829, %v3821
    %v4574 = vpack.c.b16 %v3830, %v3822
    %v4575 = vpack.c.b16 %v3831, %v3823
    %v4576 = vpack.c.b16 %v3832, %v3824
    %v4577 = vpack.c.b16 %v3833, %v3825
    %v4578 = vpack.c.b16 %v3842, %v3834
    %v4579 = vpack.c.b16 %v3843, %v3835
    %v4580 = vpack.c.b16 %v3844, %v3836
    %v4581 = vpack.c.b16 %v3845, %v3837
    %v4582 = vpack.c.b16 %v3846, %v3838
    %v4583 = vpack.c.b16 %v3847, %v3839
    %v4584 = vpack.c.b16 %v3848, %v3840
    %v4585 = vpack.c.b16 %v3849, %v3841
    %v4586 = vpack.c.b16 %v3858, %v3850
    %v4587 = vpack.c.b16 %v3859, %v3851
    %v4588 = vpack.c.b16 %v3860, %v3852
    %v4589 = vpack.c.b16 %v3861, %v3853
    %v4590 = vpack.c.b16 %v3862, %v3854
    %v4591 = vpack.c.b16 %v3863, %v3855
    %v4592 = vpack.c.b16 %v3864, %v3856
    %v4593 = vpack.c.b16 %v3865, %v3857
    %v4594 = vpack.c.b16 %v3874, %v3866
    %v4595 = vpack.c.b16 %v3875, %v3867
    %v4596 = vpack.c.b16 %v3876, %v3868
    %v4597 = vpack.c.b16 %v3877, %v3869
    %v4598 = vpack.c.b16 %v3878, %v3870
    %v4599 = vpack.c.b16 %v3879, %v3871
    %v4600 = vpack.c.b16 %v3880, %v3872
    %v4601 = vpack.c.b16 %v3881, %v3873
    %v4602 = vpack.c.b16 %v3890, %v3882
    %v4603 = vpack.c.b16 %v3891, %v3883
    %v4604 = vpack.c.b16 %v3892, %v3884
    %v4605 = vpack.c.b16 %v3893, %v3885
    %v4606 = vpack.c.b16 %v3894, %v3886
    %v4607 = vpack.c.b16 %v3895, %v3887
    %v4608 = vpack.c.b16 %v3896, %v3888
    %v4609 = vpack.c.b16 %v3897, %v3889
    %v4610 = vpack.c.b16 %v3906, %v3898
    %v4611 = vpack.c.b16 %v3907, %v3899
    %v4612 = vpack.c.b16 %v3908, %v3900
    %v4613 = vpack.c.b16 %v3909, %v3901
    %v4614 = vpack.c.b16 %v3910, %v3902
    %v4615 = vpack.c.b16 %v3911, %v3903
    %v4616 = vpack.c.b16 %v3912, %v3904
    %v4617 = vpack.c.b16 %v3913, %v3905
    %v4618 = vpack.c.b16 %v3922, %v3914
    %v4619 = vpack.c.b16 %v3923, %v3915
    %v4620 = vpack.c.b16 %v3924, %v3916
    %v4621 = vpack.c.b16 %v3925, %v3917
    %v4622 = vpack.c.b16 %v3926, %v3918
    %v4623 = vpack.c.b16 %v3927, %v3919
    %v4624 = vpack.c.b16 %v3928, %v3920
    %v4625 = vpack.c.b16 %v3929, %v3921
    %v4626 = vpack.c.b16 %v3938, %v3930
    %v4627 = vpack.c.b16 %v3939, %v3931
    %v4628 = vpack.c.b16 %v3940, %v3932
    %v4629 = vpack.c.b16 %v3941, %v3933
    %v4630 = vpack.c.b16 %v3942, %v3934
    %v4631 = vpack.c.b16 %v3943, %v3935
    %v4632 = vpack.c.b16 %v3944, %v3936
    %v4633 = vpack.c.b16 %v3945, %v3937
    %v4634 = vpack.c.b16 %v3954, %v3946
    %v4635 = vpack.c.b16 %v3955, %v3947
    %v4636 = vpack.c.b16 %v3956, %v3948
    %v4637 = vpack.c.b16 %v3957, %v3949
    %v4638 = vpack.c.b16 %v3958, %v3950
    %v4639 = vpack.c.b16 %v3959, %v3951
    %v4640 = vpack.c.b16 %v3960, %v3952
    %v4641 = vpack.c.b16 %v3961, %v3953
    %v4642 = vpack.c.b16 %v3970, %v3962
    %v4643 = vpack.c.b16 %v3971, %v3963
    %v4644 = vpack.c.b16 %v3972, %v3964
    %v4645 = vpack.c.b16 %v3973, %v3965
    %v4646 = vpack.c.b16 %v3974, %v3966
    %v4647 = vpack.c.b16 %v3975, %v3967
    %v4648 = vpack.c.b16 %v3976, %v3968
    %v4649 = vpack.c.b16 %v3977, %v3969
    %v4650 = vpack.c.b16 %v3986, %v3978
    %v4651 = vpack.c.b16 %v3987, %v3979
    %v4652 = vpack.c.b16 %v3988, %v3980
    %v4653 = vpack.c.b16 %v3989, %v3981
    %v4654 = vpack.c.b16 %v3990, %v3982
    %v4655 = vpack.c.b16 %v3991, %v3983
    %v4656 = vpack.c.b16 %v3992, %v3984
    %v4657 = vpack.c.b16 %v3993, %v3985
    %v4658 = vpack.c.b16 %v4002, %v3994
    %v4659 = vpack.c.b16 %v4003, %v3995
    %v4660 = vpack.c.b16 %v4004, %v3996
    %v4661 = vpack.c.b16 %v4005, %v3997
    %v4662 = vpack.c.b16 %v4006, %v3998
    %v4663 = vpack.c.b16 %v4007, %v3999
    %v4664 = vpack.c.b16 %v4008, %v4000
    %v4665 = vpack.c.b16 %v4009, %v4001
    %v4666 = vpack.c.b16 %v4018, %v4010
    %v4667 = vpack.c.b16 %v4019, %v4011
    %v4668 = vpack.c.b16 %v4020, %v4012
    %v4669 = vpack.c.b16 %v4021, %v4013
    %v4670 = vpack.c.b16 %v4022, %v4014
    %v4671 = vpack.c.b16 %v4023, %v4015
    %v4672 = vpack.c.b16 %v4024, %v4016
    %v4673 = vpack.c.b16 %v4025, %v4017
    %v4674 = vpack.c.b16 %v4034, %v4026
    %v4675 = vpack.c.b16 %v4035, %v4027
    %v4676 = vpack.c.b16 %v4036, %v4028
    %v4677 = vpack.c.b16 %v4037, %v4029
    %v4678 = vpack.c.b16 %v4038, %v4030
    %v4679 = vpack.c.b16 %v4039, %v4031
    %v4680 = vpack.c.b16 %v4040, %v4032
    %v4681 = vpack.c.b16 %v4041, %v4033
    %v4682 = vpack.c.b16 %v4050, %v4042
    %v4683 = vpack.c.b16 %v4051, %v4043
    %v4684 = vpack.c.b16 %v4052, %v4044
    %v4685 = vpack.c.b16 %v4053, %v4045
    %v4686 = vpack.c.b16 %v4054, %v4046
    %v4687 = vpack.c.b16 %v4055, %v4047
    %v4688 = vpack.c.b16 %v4056, %v4048
    %v4689 = vpack.c.b16 %v4057, %v4049
    %v4690 = vpack.c.b16 %v4066, %v4058
    %v4691 = vpack.c.b16 %v4067, %v4059
    %v4692 = vpack.c.b16 %v4068, %v4060
    %v4693 = vpack.c.b16 %v4069, %v4061
    %v4694 = vpack.c.b16 %v4070, %v4062
    %v4695 = vpack.c.b16 %v4071, %v4063
    %v4696 = vpack.c.b16 %v4072, %v4064
    %v4697 = vpack.c.b16 %v4073, %v4065
    %v4698 = vpack.c.b16 %v4082, %v4074
    %v4699 = vpack.c.b16 %v4083, %v4075
    %v4700 = vpack.c.b16 %v4084, %v4076
    %v4701 = vpack.c.b16 %v4085, %v4077
    %v4702 = vpack.c.b16 %v4086, %v4078
    %v4703 = vpack.c.b16 %v4087, %v4079
    %v4704 = vpack.c.b16 %v4088, %v4080
    %v4705 = vpack.c.b16 %v4089, %v4081
    %v4706 = vpack.c.b16 %v4098, %v4090
    %v4707 = vpack.c.b16 %v4099, %v4091
    %v4708 = vpack.c.b16 %v4100, %v4092
    %v4709 = vpack.c.b16 %v4101, %v4093
    %v4710 = vpack.c.b16 %v4102, %v4094
    %v4711 = vpack.c.b16 %v4103, %v4095
    %v4712 = vpack.c.b16 %v4104, %v4096
    %v4713 = vpack.c.b16 %v4105, %v4097
    %v4714 = vpack.c.b16 %v4114, %v4106
    %v4715 = vpack.c.b16 %v4115, %v4107
    %v4716 = vpack.c.b16 %v4116, %v4108
    %v4717 = vpack.c.b16 %v4117, %v4109
    %v4718 = vpack.c.b16 %v4118, %v4110
    %v4719 = vpack.c.b16 %v4119, %v4111
    %v4720 = vpack.c.b16 %v4120, %v4112
    %v4721 = vpack.c.b16 %v4121, %v4113
    %v4722 = vpack.c.b16 %v4130, %v4122
    %v4723 = vpack.c.b16 %v4131, %v4123
    %v4724 = vpack.c.b16 %v4132, %v4124
    %v4725 = vpack.c.b16 %v4133, %v4125
    %v4726 = vpack.c.b16 %v4134, %v4126
    %v4727 = vpack.c.b16 %v4135, %v4127
    %v4728 = vpack.c.b16 %v4136, %v4128
    %v4729 = vpack.c.b16 %v4137, %v4129
    %v4730 = vpack.c.b16 %v4146, %v4138
    %v4731 = vpack.c.b16 %v4147, %v4139
    %v4732 = vpack.c.b16 %v4148, %v4140
    %v4733 = vpack.c.b16 %v4149, %v4141
    %v4734 = vpack.c.b16 %v4150, %v4142
    %v4735 = vpack.c.b16 %v4151, %v4143
    %v4736 = vpack.c.b16 %v4152, %v4144
    %v4737 = vpack.c.b16 %v4153, %v4145
    %v4738 = vpack.c.b16 %v4162, %v4154
    %v4739 = vpack.c.b16 %v4163, %v4155
    %v4740 = vpack.c.b16 %v4164, %v4156
    %v4741 = vpack.c.b16 %v4165, %v4157
    %v4742 = vpack.c.b16 %v4166, %v4158
    %v4743 = vpack.c.b16 %v4167, %v4159
    %v4744 = vpack.c.b16 %v4168, %v4160
    %v4745 = vpack.c.b16 %v4169, %v4161
    %v4746 = vpack.c.b16 %v4178, %v4170
    %v4747 = vpack.c.b16 %v4179, %v4171
    %v4748 = vpack.c.b16 %v4180, %v4172
    %v4749 = vpack.c.b16 %v4181, %v4173
    %v4750 = vpack.c.b16 %v4182, %v4174
    %v4751 = vpack.c.b16 %v4183, %v4175
    %v4752 = vpack.c.b16 %v4184, %v4176
    %v4753 = vpack.c.b16 %v4185, %v4177
    %v4754 = vpack.c.b16 %v4194, %v4186
    %v4755 = vpack.c.b16 %v4195, %v4187
    %v4756 = vpack.c.b16 %v4196, %v4188
    %v4757 = vpack.c.b16 %v4197, %v4189
    %v4758 = vpack.c.b16 %v4198, %v4190
    %v4759 = vpack.c.b16 %v4199, %v4191
    %v4760 = vpack.c.b16 %v4200, %v4192
    %v4761 = vpack.c.b16 %v4201, %v4193
    %v4762 = vpack.c.b16 %v4210, %v4202
    %v4763 = vpack.c.b16 %v4211, %v4203
    %v4764 = vpack.c.b16 %v4212, %v4204
    %v4765 = vpack.c.b16 %v4213, %v4205
    %v4766 = vpack.c.b16 %v4214, %v4206
    %v4767 = vpack.c.b16 %v4215, %v4207
    %v4768 = vpack.c.b16 %v4216, %v4208
    %v4769 = vpack.c.b16 %v4217, %v4209
    %v4770 = vpack.c.b16 %v4226, %v4218
    %v4771 = vpack.c.b16 %v4227, %v4219
    %v4772 = vpack.c.b16 %v4228, %v4220
    %v4773 = vpack.c.b16 %v4229, %v4221
    %v4774 = vpack.c.b16 %v4230, %v4222
    %v4775 = vpack.c.b16 %v4231, %v4223
    %v4776 = vpack.c.b16 %v4232, %v4224
    %v4777 = vpack.c.b16 %v4233, %v4225
    %v4778 = vpack.c.b16 %v4242, %v4234
    %v4779 = vpack.c.b16 %v4243, %v4235
    %v4780 = vpack.c.b16 %v4244, %v4236
    %v4781 = vpack.c.b16 %v4245, %v4237
    %v4782 = vpack.c.b16 %v4246, %v4238
    %v4783 = vpack.c.b16 %v4247, %v4239
    %v4784 = vpack.c.b16 %v4248, %v4240
    %v4785 = vpack.c.b16 %v4249, %v4241
    %v4786 = vpack.c.b16 %v4258, %v4250
    %v4787 = vpack.c.b16 %v4259, %v4251
    %v4788 = vpack.c.b16 %v4260, %v4252
    %v4789 = vpack.c.b16 %v4261, %v4253
    %v4790 = vpack.c.b16 %v4262, %v4254
    %v4791 = vpack.c.b16 %v4263, %v4255
    %v4792 = vpack.c.b16 %v4264, %v4256
    %v4793 = vpack.c.b16 %v4265, %v4257
    %v4794 = vpack.c.b16 %v4274, %v4266
    %v4795 = vpack.c.b16 %v4275, %v4267
    %v4796 = vpack.c.b16 %v4276, %v4268
    %v4797 = vpack.c.b16 %v4277, %v4269
    %v4798 = vpack.c.b16 %v4278, %v4270
    %v4799 = vpack.c.b16 %v4279, %v4271
    %v4800 = vpack.c.b16 %v4280, %v4272
    %v4801 = vpack.c.b16 %v4281, %v4273
    %v4802 = vpack.c.b16 %v4290, %v4282
    %v4803 = vpack.c.b16 %v4291, %v4283
    %v4804 = vpack.c.b16 %v4292, %v4284
    %v4805 = vpack.c.b16 %v4293, %v4285
    %v4806 = vpack.c.b16 %v4294, %v4286
    %v4807 = vpack.c.b16 %v4295, %v4287
    %v4808 = vpack.c.b16 %v4296, %v4288
    %v4809 = vpack.c.b16 %v4297, %v4289
    %5322 = vmatprep.subr.bf16.mxu0 %v4299
    %5323 = vmatpush1.bf16.msra.mxu0 %v4298
    %5324 = vmatprep.subr.bf16.mxu0 %v4307
    %5325 = vmatpush1.bf16.msra.mxu0 %v4306
    %5326 = vmatprep.subr.bf16.mxu0 %v4315
    %5327 = vmatpush1.bf16.msra.mxu0 %v4314
    %5328 = vmatprep.subr.bf16.mxu0 %v4323
    %5329 = vmatpush1.bf16.msra.mxu0 %v4322
    %5330 = vmatprep.subr.bf16.mxu0 %v4331
    %5331 = vmatpush1.bf16.msra.mxu0 %v4330
    %5332 = vmatprep.subr.bf16.mxu0 %v4339
    %5333 = vmatpush1.bf16.msra.mxu0 %v4338
    %5334 = vmatprep.subr.bf16.mxu0 %v4347
    %5335 = vmatpush1.bf16.msra.mxu0 %v4346
    %5336 = vmatprep.subr.bf16.mxu0 %v4355
    %5337 = vmatpush1.bf16.msra.mxu0 %v4354
    %5338 = vmatprep.subr.bf16.mxu0 %v4363
    %5339 = vmatpush1.bf16.msra.mxu0 %v4362
    %5340 = vmatprep.subr.bf16.mxu0 %v4371
    %5341 = vmatpush1.bf16.msra.mxu0 %v4370
    %5342 = vmatprep.subr.bf16.mxu0 %v4379
    %5343 = vmatpush1.bf16.msra.mxu0 %v4378
    %5344 = vmatprep.subr.bf16.mxu0 %v4387
    %5345 = vmatpush1.bf16.msra.mxu0 %v4386
    %5346 = vmatprep.subr.bf16.mxu0 %v4395
    %5347 = vmatpush1.bf16.msra.mxu0 %v4394
    %5348 = vmatprep.subr.bf16.mxu0 %v4403
    %5349 = vmatpush1.bf16.msra.mxu0 %v4402
    %5350 = vmatprep.subr.bf16.mxu0 %v4411
    %5351 = vmatpush1.bf16.msra.mxu0 %v4410
    %5352 = vmatprep.subr.bf16.mxu0 %v4419
    %5353 = vmatpush1.bf16.msra.mxu0 %v4418
    %5354 = vmatprep.mubr.bf16.mxu0 %v2081
    %5355 = vmatmul.mubr.bf16.gmra.mrb[0].mxu0 %v2080
    %v5356 = vpop.f32.mrb[0].mxu0
    %v5357 = vadd.f32 %v2725, %v5356
    %v5358 = vpop.f32.mrb[0].mxu0
    %v5359 = vadd.f32 %v2729, %v5358
    %v5360 = vpop.f32.mrb[0].mxu0
    %v5361 = vadd.f32 %v2725, %v5360
    %v5362 = vpop.f32.mrb[0].mxu0
    %v5363 = vadd.f32 %v2729, %v5362
    %5364 = vmatprep.mubr.bf16.mxu0 %v2089
    %5365 = vmatmul.mubr.bf16.gmra.mrb[0].mxu0 %v2088
    %v5366 = vpop.f32.mrb[0].mxu0
    %v5367 = vadd.f32 %v2725, %v5366
    %v5368 = vpop.f32.mrb[0].mxu0
    %v5369 = vadd.f32 %v2729, %v5368
    %v5370 = vpop.f32.mrb[0].mxu0
    %v5371 = vadd.f32 %v2725, %v5370
    %v5372 = vpop.f32.mrb[0].mxu0
    %v5373 = vadd.f32 %v2729, %v5372
    %5374 = vmatprep.mubr.bf16.mxu0 %v2097
    %5375 = vmatmul.mubr.bf16.gmra.mrb[0].mxu0 %v2096
    %v5376 = vpop.f32.mrb[0].mxu0
    %v5377 = vadd.f32 %v2725, %v5376
    %v5378 = vpop.f32.mrb[0].mxu0
    %v5379 = vadd.f32 %v2729, %v5378
    %v5380 = vpop.f32.mrb[0].mxu0
    %v5381 = vadd.f32 %v2725, %v5380
    %v5382 = vpop.f32.mrb[0].mxu0
    %v5383 = vadd.f32 %v2729, %v5382
    %5384 = vmatprep.mubr.bf16.mxu0 %v2105
    %5385 = vmatmul.mubr.bf16.gmra.mrb[0].mxu0 %v2104
    %v5386 = vpop.f32.mrb[0].mxu0
    %v5387 = vadd.f32 %v2725, %v5386
    %v5388 = vpop.f32.mrb[0].mxu0
    %v5389 = vadd.f32 %v2729, %v5388
    %v5390 = vpop.f32.mrb[0].mxu0
    %v5391 = vadd.f32 %v2725, %v5390
    %v5392 = vpop.f32.mrb[0].mxu0
    %v5393 = vadd.f32 %v2729, %v5392
    %5394 = vmatprep.mubr.bf16.mxu0 %v2113
    %5395 = vmatmul.mubr.bf16.gmra.mrb[0].mxu0 %v2112
    %v5396 = vpop.f32.mrb[0].mxu0
    %v5397 = vadd.f32 %v2725, %v5396
    %v5398 = vpop.f32.mrb[0].mxu0
    %v5399 = vadd.f32 %v2729, %v5398
    %v5400 = vpop.f32.mrb[0].mxu0
    %v5401 = vadd.f32 %v2725, %v5400
    %v5402 = vpop.f32.mrb[0].mxu0
    %v5403 = vadd.f32 %v2729, %v5402
    %5404 = vmatprep.mubr.bf16.mxu0 %v2121
    %5405 = vmatmul.mubr.bf16.gmra.mrb[0].mxu0 %v2120
    %v5406 = vpop.f32.mrb[0].mxu0
    %v5407 = vadd.f32 %v2725, %v5406
    %v5408 = vpop.f32.mrb[0].mxu0
    %v5409 = vadd.f32 %v2729, %v5408
    %v5410 = vpop.f32.mrb[0].mxu0
    %v5411 = vadd.f32 %v2725, %v5410
    %v5412 = vpop.f32.mrb[0].mxu0
    %v5413 = vadd.f32 %v2729, %v5412
    %5414 = vmatprep.mubr.bf16.mxu0 %v2129
    %5415 = vmatmul.mubr.bf16.gmra.mrb[0].mxu0 %v2128
    %v5416 = vpop.f32.mrb[0].mxu0
    %v5417 = vadd.f32 %v2725, %v5416
    %v5418 = vpop.f32.mrb[0].mxu0
    %v5419 = vadd.f32 %v2729, %v5418
    %v5420 = vpop.f32.mrb[0].mxu0
    %v5421 = vadd.f32 %v2725, %v5420
    %v5422 = vpop.f32.mrb[0].mxu0
    %v5423 = vadd.f32 %v2729, %v5422
    %5424 = vmatprep.mubr.bf16.mxu0 %v2137
    %5425 = vmatmul.mubr.bf16.gmra.mrb[0].mxu0 %v2136
    %v5426 = vpop.f32.mrb[0].mxu0
    %v5427 = vadd.f32 %v2725, %v5426
    %v5428 = vpop.f32.mrb[0].mxu0
    %v5429 = vadd.f32 %v2729, %v5428
    %v5430 = vpop.f32.mrb[0].mxu0
    %v5431 = vadd.f32 %v2725, %v5430
    %v5432 = vpop.f32.mrb[0].mxu0
    %v5433 = vadd.f32 %v2729, %v5432
    %5434 = vmatprep.mubr.bf16.mxu0 %v2145
    %5435 = vmatmul.mubr.bf16.gmra.mrb[0].mxu0 %v2144
    %v5436 = vpop.f32.mrb[0].mxu0
    %v5437 = vadd.f32 %v2725, %v5436
    %v5438 = vpop.f32.mrb[0].mxu0
    %v5439 = vadd.f32 %v2729, %v5438
    %v5440 = vpop.f32.mrb[0].mxu0
    %v5441 = vadd.f32 %v2725, %v5440
    %v5442 = vpop.f32.mrb[0].mxu0
    %v5443 = vadd.f32 %v2729, %v5442
    %5444 = vmatprep.mubr.bf16.mxu0 %v2153
    %5445 = vmatmul.mubr.bf16.gmra.mrb[0].mxu0 %v2152
    %v5446 = vpop.f32.mrb[0].mxu0
    %v5447 = vadd.f32 %v2725, %v5446
    %v5448 = vpop.f32.mrb[0].mxu0
    %v5449 = vadd.f32 %v2729, %v5448
    %v5450 = vpop.f32.mrb[0].mxu0
    %v5451 = vadd.f32 %v2725, %v5450
    %v5452 = vpop.f32.mrb[0].mxu0
    %v5453 = vadd.f32 %v2729, %v5452
    %5454 = vmatprep.mubr.bf16.mxu0 %v2161
    %5455 = vmatmul.mubr.bf16.gmra.mrb[0].mxu0 %v2160
    %v5456 = vpop.f32.mrb[0].mxu0
    %v5457 = vadd.f32 %v2725, %v5456
    %v5458 = vpop.f32.mrb[0].mxu0
    %v5459 = vadd.f32 %v2729, %v5458
    %v5460 = vpop.f32.mrb[0].mxu0
    %v5461 = vadd.f32 %v2725, %v5460
    %v5462 = vpop.f32.mrb[0].mxu0
    %v5463 = vadd.f32 %v2729, %v5462
    %5464 = vmatprep.mubr.bf16.mxu0 %v2169
    %5465 = vmatmul.mubr.bf16.gmra.mrb[0].mxu0 %v2168
    %v5466 = vpop.f32.mrb[0].mxu0
    %v5467 = vadd.f32 %v2725, %v5466
    %v5468 = vpop.f32.mrb[0].mxu0
    %v5469 = vadd.f32 %v2729, %v5468
    %v5470 = vpop.f32.mrb[0].mxu0
    %v5471 = vadd.f32 %v2725, %v5470
    %v5472 = vpop.f32.mrb[0].mxu0
    %v5473 = vadd.f32 %v2729, %v5472
    %5474 = vmatprep.mubr.bf16.mxu0 %v2177
    %5475 = vmatmul.mubr.bf16.gmra.mrb[0].mxu0 %v2176
    %v5476 = vpop.f32.mrb[0].mxu0
    %v5477 = vadd.f32 %v2725, %v5476
    %v5478 = vpop.f32.mrb[0].mxu0
    %v5479 = vadd.f32 %v2729, %v5478
    %v5480 = vpop.f32.mrb[0].mxu0
    %v5481 = vadd.f32 %v2725, %v5480
    %v5482 = vpop.f32.mrb[0].mxu0
    %v5483 = vadd.f32 %v2729, %v5482
    %5484 = vmatprep.mubr.bf16.mxu0 %v2185
    %5485 = vmatmul.mubr.bf16.gmra.mrb[0].mxu0 %v2184
    %v5486 = vpop.f32.mrb[0].mxu0
    %v5487 = vadd.f32 %v2725, %v5486
    %v5488 = vpop.f32.mrb[0].mxu0
    %v5489 = vadd.f32 %v2729, %v5488
    %v5490 = vpop.f32.mrb[0].mxu0
    %v5491 = vadd.f32 %v2725, %v5490
    %v5492 = vpop.f32.mrb[0].mxu0
    %v5493 = vadd.f32 %v2729, %v5492
    %5494 = vmatprep.mubr.bf16.mxu0 %v2193
    %5495 = vmatmul.mubr.bf16.gmra.mrb[0].mxu0 %v2192
    %v5496 = vpop.f32.mrb[0].mxu0
    %v5497 = vadd.f32 %v2725, %v5496
    %v5498 = vpop.f32.mrb[0].mxu0
    %v5499 = vadd.f32 %v2729, %v5498
    %v5500 = vpop.f32.mrb[0].mxu0
    %v5501 = vadd.f32 %v2725, %v5500
    %v5502 = vpop.f32.mrb[0].mxu0
    %v5503 = vadd.f32 %v2729, %v5502
    %5504 = vmatprep.mubr.bf16.mxu0 %v2201
    %5505 = vmatmul.mubr.bf16.gmra.mrb[0].mxu0 %v2200
    %v5506 = vpop.f32.mrb[0].mxu0
    %v5507 = vadd.f32 %v2725, %v5506
    %v5508 = vpop.f32.mrb[0].mxu0
    %v5509 = vadd.f32 %v2729, %v5508
    %v5510 = vpop.f32.mrb[0].mxu0
    %v5511 = vadd.f32 %v2725, %v5510
    %v5512 = vpop.f32.mrb[0].mxu0
    %v5513 = vadd.f32 %v2729, %v5512
    %5514 = vdwg.mxu0
    %5515 = vmatprep.subr.bf16.mxu0 %v4427
    %5516 = vmatpush1.bf16.msra.mxu0 %v4426
    %5517 = vmatprep.subr.bf16.mxu0 %v4435
    %5518 = vmatpush1.bf16.msra.mxu0 %v4434
    %5519 = vmatprep.subr.bf16.mxu0 %v4443
    %5520 = vmatpush1.bf16.msra.mxu0 %v4442
    %5521 = vmatprep.subr.bf16.mxu0 %v4451
    %5522 = vmatpush1.bf16.msra.mxu0 %v4450
    %5523 = vmatprep.subr.bf16.mxu0 %v4459
    %5524 = vmatpush1.bf16.msra.mxu0 %v4458
    %5525 = vmatprep.subr.bf16.mxu0 %v4467
    %5526 = vmatpush1.bf16.msra.mxu0 %v4466
    %5527 = vmatprep.subr.bf16.mxu0 %v4475
    %5528 = vmatpush1.bf16.msra.mxu0 %v4474
    %5529 = vmatprep.subr.bf16.mxu0 %v4483
    %5530 = vmatpush1.bf16.msra.mxu0 %v4482
    %5531 = vmatprep.subr.bf16.mxu0 %v4491
    %5532 = vmatpush1.bf16.msra.mxu0 %v4490
    %5533 = vmatprep.subr.bf16.mxu0 %v4499
    %5534 = vmatpush1.bf16.msra.mxu0 %v4498
    %5535 = vmatprep.subr.bf16.mxu0 %v4507
    %5536 = vmatpush1.bf16.msra.mxu0 %v4506
    %5537 = vmatprep.subr.bf16.mxu0 %v4515
    %5538 = vmatpush1.bf16.msra.mxu0 %v4514
    %5539 = vmatprep.subr.bf16.mxu0 %v4523
    %5540 = vmatpush1.bf16.msra.mxu0 %v4522
    %5541 = vmatprep.subr.bf16.mxu0 %v4531
    %5542 = vmatpush1.bf16.msra.mxu0 %v4530
    %5543 = vmatprep.subr.bf16.mxu0 %v4539
    %5544 = vmatpush1.bf16.msra.mxu0 %v4538
    %5545 = vmatprep.subr.bf16.mxu0 %v4547
    %5546 = vmatpush1.bf16.msra.mxu0 %v4546
    %5547 = vmatprep.mubr.bf16.mxu0 %v2083
    %5548 = vmatmul.mubr.bf16.gmra.mrb[0].mxu0 %v2082
    %v5549 = vpop.f32.mrb[0].mxu0
    %v5550 = vadd.f32 %v5357, %v5549
    %v5551 = vpop.f32.mrb[0].mxu0
    %v5552 = vadd.f32 %v5359, %v5551
    %v5553 = vpop.f32.mrb[0].mxu0
    %v5554 = vadd.f32 %v5361, %v5553
    %v5555 = vpop.f32.mrb[0].mxu0
    %v5556 = vadd.f32 %v5363, %v5555
    %5557 = vmatprep.mubr.bf16.mxu0 %v2091
    %5558 = vmatmul.mubr.bf16.gmra.mrb[0].mxu0 %v2090
    %v5559 = vpop.f32.mrb[0].mxu0
    %v5560 = vadd.f32 %v5367, %v5559
    %v5561 = vpop.f32.mrb[0].mxu0
    %v5562 = vadd.f32 %v5369, %v5561
    %v5563 = vpop.f32.mrb[0].mxu0
    %v5564 = vadd.f32 %v5371, %v5563
    %v5565 = vpop.f32.mrb[0].mxu0
    %v5566 = vadd.f32 %v5373, %v5565
    %5567 = vmatprep.mubr.bf16.mxu0 %v2099
    %5568 = vmatmul.mubr.bf16.gmra.mrb[0].mxu0 %v2098
    %v5569 = vpop.f32.mrb[0].mxu0
    %v5570 = vadd.f32 %v5377, %v5569
    %v5571 = vpop.f32.mrb[0].mxu0
    %v5572 = vadd.f32 %v5379, %v5571
    %v5573 = vpop.f32.mrb[0].mxu0
    %v5574 = vadd.f32 %v5381, %v5573
    %v5575 = vpop.f32.mrb[0].mxu0
    %v5576 = vadd.f32 %v5383, %v5575
    %5577 = vmatprep.mubr.bf16.mxu0 %v2107
    %5578 = vmatmul.mubr.bf16.gmra.mrb[0].mxu0 %v2106
    %v5579 = vpop.f32.mrb[0].mxu0
    %v5580 = vadd.f32 %v5387, %v5579
    %v5581 = vpop.f32.mrb[0].mxu0
    %v5582 = vadd.f32 %v5389, %v5581
    %v5583 = vpop.f32.mrb[0].mxu0
    %v5584 = vadd.f32 %v5391, %v5583
    %v5585 = vpop.f32.mrb[0].mxu0
    %v5586 = vadd.f32 %v5393, %v5585
    %5587 = vmatprep.mubr.bf16.mxu0 %v2115
    %5588 = vmatmul.mubr.bf16.gmra.mrb[0].mxu0 %v2114
    %v5589 = vpop.f32.mrb[0].mxu0
    %v5590 = vadd.f32 %v5397, %v5589
    %v5591 = vpop.f32.mrb[0].mxu0
    %v5592 = vadd.f32 %v5399, %v5591
    %v5593 = vpop.f32.mrb[0].mxu0
    %v5594 = vadd.f32 %v5401, %v5593
    %v5595 = vpop.f32.mrb[0].mxu0
    %v5596 = vadd.f32 %v5403, %v5595
    %5597 = vmatprep.mubr.bf16.mxu0 %v2123
    %5598 = vmatmul.mubr.bf16.gmra.mrb[0].mxu0 %v2122
    %v5599 = vpop.f32.mrb[0].mxu0
    %v5600 = vadd.f32 %v5407, %v5599
    %v5601 = vpop.f32.mrb[0].mxu0
    %v5602 = vadd.f32 %v5409, %v5601
    %v5603 = vpop.f32.mrb[0].mxu0
    %v5604 = vadd.f32 %v5411, %v5603
    %v5605 = vpop.f32.mrb[0].mxu0
    %v5606 = vadd.f32 %v5413, %v5605
    %5607 = vmatprep.mubr.bf16.mxu0 %v2131
    %5608 = vmatmul.mubr.bf16.gmra.mrb[0].mxu0 %v2130
    %v5609 = vpop.f32.mrb[0].mxu0
    %v5610 = vadd.f32 %v5417, %v5609
    %v5611 = vpop.f32.mrb[0].mxu0
    %v5612 = vadd.f32 %v5419, %v5611
    %v5613 = vpop.f32.mrb[0].mxu0
    %v5614 = vadd.f32 %v5421, %v5613
    %v5615 = vpop.f32.mrb[0].mxu0
    %v5616 = vadd.f32 %v5423, %v5615
    %5617 = vmatprep.mubr.bf16.mxu0 %v2139
    %5618 = vmatmul.mubr.bf16.gmra.mrb[0].mxu0 %v2138
    %v5619 = vpop.f32.mrb[0].mxu0
    %v5620 = vadd.f32 %v5427, %v5619
    %v5621 = vpop.f32.mrb[0].mxu0
    %v5622 = vadd.f32 %v5429, %v5621
    %v5623 = vpop.f32.mrb[0].mxu0
    %v5624 = vadd.f32 %v5431, %v5623
    %v5625 = vpop.f32.mrb[0].mxu0
    %v5626 = vadd.f32 %v5433, %v5625
    %5627 = vmatprep.mubr.bf16.mxu0 %v2147
    %5628 = vmatmul.mubr.bf16.gmra.mrb[0].mxu0 %v2146
    %v5629 = vpop.f32.mrb[0].mxu0
    %v5630 = vadd.f32 %v5437, %v5629
    %v5631 = vpop.f32.mrb[0].mxu0
    %v5632 = vadd.f32 %v5439, %v5631
    %v5633 = vpop.f32.mrb[0].mxu0
    %v5634 = vadd.f32 %v5441, %v5633
    %v5635 = vpop.f32.mrb[0].mxu0
    %v5636 = vadd.f32 %v5443, %v5635
    %5637 = vmatprep.mubr.bf16.mxu0 %v2155
    %5638 = vmatmul.mubr.bf16.gmra.mrb[0].mxu0 %v2154
    %v5639 = vpop.f32.mrb[0].mxu0
    %v5640 = vadd.f32 %v5447, %v5639
    %v5641 = vpop.f32.mrb[0].mxu0
    %v5642 = vadd.f32 %v5449, %v5641
    %v5643 = vpop.f32.mrb[0].mxu0
    %v5644 = vadd.f32 %v5451, %v5643
    %v5645 = vpop.f32.mrb[0].mxu0
    %v5646 = vadd.f32 %v5453, %v5645
    %5647 = vmatprep.mubr.bf16.mxu0 %v2163
    %5648 = vmatmul.mubr.bf16.gmra.mrb[0].mxu0 %v2162
    %v5649 = vpop.f32.mrb[0].mxu0
    %v5650 = vadd.f32 %v5457, %v5649
    %v5651 = vpop.f32.mrb[0].mxu0
    %v5652 = vadd.f32 %v5459, %v5651
    %v5653 = vpop.f32.mrb[0].mxu0
    %v5654 = vadd.f32 %v5461, %v5653
    %v5655 = vpop.f32.mrb[0].mxu0
    %v5656 = vadd.f32 %v5463, %v5655
    %5657 = vmatprep.mubr.bf16.mxu0 %v2171
    %5658 = vmatmul.mubr.bf16.gmra.mrb[0].mxu0 %v2170
    %v5659 = vpop.f32.mrb[0].mxu0
    %v5660 = vadd.f32 %v5467, %v5659
    %v5661 = vpop.f32.mrb[0].mxu0
    %v5662 = vadd.f32 %v5469, %v5661
    %v5663 = vpop.f32.mrb[0].mxu0
    %v5664 = vadd.f32 %v5471, %v5663
    %v5665 = vpop.f32.mrb[0].mxu0
    %v5666 = vadd.f32 %v5473, %v5665
    %5667 = vmatprep.mubr.bf16.mxu0 %v2179
    %5668 = vmatmul.mubr.bf16.gmra.mrb[0].mxu0 %v2178
    %v5669 = vpop.f32.mrb[0].mxu0
    %v5670 = vadd.f32 %v5477, %v5669
    %v5671 = vpop.f32.mrb[0].mxu0
    %v5672 = vadd.f32 %v5479, %v5671
    %v5673 = vpop.f32.mrb[0].mxu0
    %v5674 = vadd.f32 %v5481, %v5673
    %v5675 = vpop.f32.mrb[0].mxu0
    %v5676 = vadd.f32 %v5483, %v5675
    %5677 = vmatprep.mubr.bf16.mxu0 %v2187
    %5678 = vmatmul.mubr.bf16.gmra.mrb[0].mxu0 %v2186
    %v5679 = vpop.f32.mrb[0].mxu0
    %v5680 = vadd.f32 %v5487, %v5679
    %v5681 = vpop.f32.mrb[0].mxu0
    %v5682 = vadd.f32 %v5489, %v5681
    %v5683 = vpop.f32.mrb[0].mxu0
    %v5684 = vadd.f32 %v5491, %v5683
    %v5685 = vpop.f32.mrb[0].mxu0
    %v5686 = vadd.f32 %v5493, %v5685
    %5687 = vmatprep.mubr.bf16.mxu0 %v2195
    %5688 = vmatmul.mubr.bf16.gmra.mrb[0].mxu0 %v2194
    %v5689 = vpop.f32.mrb[0].mxu0
    %v5690 = vadd.f32 %v5497, %v5689
    %v5691 = vpop.f32.mrb[0].mxu0
    %v5692 = vadd.f32 %v5499, %v5691
    %v5693 = vpop.f32.mrb[0].mxu0
    %v5694 = vadd.f32 %v5501, %v5693
    %v5695 = vpop.f32.mrb[0].mxu0
    %v5696 = vadd.f32 %v5503, %v5695
    %5697 = vmatprep.mubr.bf16.mxu0 %v2203
    %5698 = vmatmul.mubr.bf16.gmra.mrb[0].mxu0 %v2202
    %v5699 = vpop.f32.mrb[0].mxu0
    %v5700 = vadd.f32 %v5507, %v5699
    %v5701 = vpop.f32.mrb[0].mxu0
    %v5702 = vadd.f32 %v5509, %v5701
    %v5703 = vpop.f32.mrb[0].mxu0
    %v5704 = vadd.f32 %v5511, %v5703
    %v5705 = vpop.f32.mrb[0].mxu0
    %v5706 = vadd.f32 %v5513, %v5705
    %5707 = vdwg.mxu0
    %5708 = vmatprep.subr.bf16.mxu0 %v4555
    %5709 = vmatpush1.bf16.msra.mxu0 %v4554
    %5710 = vmatprep.subr.bf16.mxu0 %v4563
    %5711 = vmatpush1.bf16.msra.mxu0 %v4562
    %5712 = vmatprep.subr.bf16.mxu0 %v4571
    %5713 = vmatpush1.bf16.msra.mxu0 %v4570
    %5714 = vmatprep.subr.bf16.mxu0 %v4579
    %5715 = vmatpush1.bf16.msra.mxu0 %v4578
    %5716 = vmatprep.subr.bf16.mxu0 %v4587
    %5717 = vmatpush1.bf16.msra.mxu0 %v4586
    %5718 = vmatprep.subr.bf16.mxu0 %v4595
    %5719 = vmatpush1.bf16.msra.mxu0 %v4594
    %5720 = vmatprep.subr.bf16.mxu0 %v4603
    %5721 = vmatpush1.bf16.msra.mxu0 %v4602
    %5722 = vmatprep.subr.bf16.mxu0 %v4611
    %5723 = vmatpush1.bf16.msra.mxu0 %v4610
    %5724 = vmatprep.subr.bf16.mxu0 %v4619
    %5725 = vmatpush1.bf16.msra.mxu0 %v4618
    %5726 = vmatprep.subr.bf16.mxu0 %v4627
    %5727 = vmatpush1.bf16.msra.mxu0 %v4626
    %5728 = vmatprep.subr.bf16.mxu0 %v4635
    %5729 = vmatpush1.bf16.msra.mxu0 %v4634
    %5730 = vmatprep.subr.bf16.mxu0 %v4643
    %5731 = vmatpush1.bf16.msra.mxu0 %v4642
    %5732 = vmatprep.subr.bf16.mxu0 %v4651
    %5733 = vmatpush1.bf16.msra.mxu0 %v4650
    %5734 = vmatprep.subr.bf16.mxu0 %v4659
    %5735 = vmatpush1.bf16.msra.mxu0 %v4658
    %5736 = vmatprep.subr.bf16.mxu0 %v4667
    %5737 = vmatpush1.bf16.msra.mxu0 %v4666
    %5738 = vmatprep.subr.bf16.mxu0 %v4675
    %5739 = vmatpush1.bf16.msra.mxu0 %v4674
    %5740 = vmatprep.mubr.bf16.mxu0 %v2085
    %5741 = vmatmul.mubr.bf16.gmra.mrb[0].mxu0 %v2084
    %v5742 = vpop.f32.mrb[0].mxu0
    %v5743 = vadd.f32 %v5550, %v5742
    %v5744 = vpop.f32.mrb[0].mxu0
    %v5745 = vadd.f32 %v5552, %v5744
    %v5746 = vpop.f32.mrb[0].mxu0
    %v5747 = vadd.f32 %v5554, %v5746
    %v5748 = vpop.f32.mrb[0].mxu0
    %v5749 = vadd.f32 %v5556, %v5748
    %5750 = vmatprep.mubr.bf16.mxu0 %v2093
    %5751 = vmatmul.mubr.bf16.gmra.mrb[0].mxu0 %v2092
    %v5752 = vpop.f32.mrb[0].mxu0
    %v5753 = vadd.f32 %v5560, %v5752
    %v5754 = vpop.f32.mrb[0].mxu0
    %v5755 = vadd.f32 %v5562, %v5754
    %v5756 = vpop.f32.mrb[0].mxu0
    %v5757 = vadd.f32 %v5564, %v5756
    %v5758 = vpop.f32.mrb[0].mxu0
    %v5759 = vadd.f32 %v5566, %v5758
    %5760 = vmatprep.mubr.bf16.mxu0 %v2101
    %5761 = vmatmul.mubr.bf16.gmra.mrb[0].mxu0 %v2100
    %v5762 = vpop.f32.mrb[0].mxu0
    %v5763 = vadd.f32 %v5570, %v5762
    %v5764 = vpop.f32.mrb[0].mxu0
    %v5765 = vadd.f32 %v5572, %v5764
    %v5766 = vpop.f32.mrb[0].mxu0
    %v5767 = vadd.f32 %v5574, %v5766
    %v5768 = vpop.f32.mrb[0].mxu0
    %v5769 = vadd.f32 %v5576, %v5768
    %5770 = vmatprep.mubr.bf16.mxu0 %v2109
    %5771 = vmatmul.mubr.bf16.gmra.mrb[0].mxu0 %v2108
    %v5772 = vpop.f32.mrb[0].mxu0
    %v5773 = vadd.f32 %v5580, %v5772
    %v5774 = vpop.f32.mrb[0].mxu0
    %v5775 = vadd.f32 %v5582, %v5774
    %v5776 = vpop.f32.mrb[0].mxu0
    %v5777 = vadd.f32 %v5584, %v5776
    %v5778 = vpop.f32.mrb[0].mxu0
    %v5779 = vadd.f32 %v5586, %v5778
    %5780 = vmatprep.mubr.bf16.mxu0 %v2117
    %5781 = vmatmul.mubr.bf16.gmra.mrb[0].mxu0 %v2116
    %v5782 = vpop.f32.mrb[0].mxu0
    %v5783 = vadd.f32 %v5590, %v5782
    %v5784 = vpop.f32.mrb[0].mxu0
    %v5785 = vadd.f32 %v5592, %v5784
    %v5786 = vpop.f32.mrb[0].mxu0
    %v5787 = vadd.f32 %v5594, %v5786
    %v5788 = vpop.f32.mrb[0].mxu0
    %v5789 = vadd.f32 %v5596, %v5788
    %5790 = vmatprep.mubr.bf16.mxu0 %v2125
    %5791 = vmatmul.mubr.bf16.gmra.mrb[0].mxu0 %v2124
    %v5792 = vpop.f32.mrb[0].mxu0
    %v5793 = vadd.f32 %v5600, %v5792
    %v5794 = vpop.f32.mrb[0].mxu0
    %v5795 = vadd.f32 %v5602, %v5794
    %v5796 = vpop.f32.mrb[0].mxu0
    %v5797 = vadd.f32 %v5604, %v5796
    %v5798 = vpop.f32.mrb[0].mxu0
    %v5799 = vadd.f32 %v5606, %v5798
    %5800 = vmatprep.mubr.bf16.mxu0 %v2133
    %5801 = vmatmul.mubr.bf16.gmra.mrb[0].mxu0 %v2132
    %v5802 = vpop.f32.mrb[0].mxu0
    %v5803 = vadd.f32 %v5610, %v5802
    %v5804 = vpop.f32.mrb[0].mxu0
    %v5805 = vadd.f32 %v5612, %v5804
    %v5806 = vpop.f32.mrb[0].mxu0
    %v5807 = vadd.f32 %v5614, %v5806
    %v5808 = vpop.f32.mrb[0].mxu0
    %v5809 = vadd.f32 %v5616, %v5808
    %5810 = vmatprep.mubr.bf16.mxu0 %v2141
    %5811 = vmatmul.mubr.bf16.gmra.mrb[0].mxu0 %v2140
    %v5812 = vpop.f32.mrb[0].mxu0
    %v5813 = vadd.f32 %v5620, %v5812
    %v5814 = vpop.f32.mrb[0].mxu0
    %v5815 = vadd.f32 %v5622, %v5814
    %v5816 = vpop.f32.mrb[0].mxu0
    %v5817 = vadd.f32 %v5624, %v5816
    %v5818 = vpop.f32.mrb[0].mxu0
    %v5819 = vadd.f32 %v5626, %v5818
    %5820 = vmatprep.mubr.bf16.mxu0 %v2149
    %5821 = vmatmul.mubr.bf16.gmra.mrb[0].mxu0 %v2148
    %v5822 = vpop.f32.mrb[0].mxu0
    %v5823 = vadd.f32 %v5630, %v5822
    %v5824 = vpop.f32.mrb[0].mxu0
    %v5825 = vadd.f32 %v5632, %v5824
    %v5826 = vpop.f32.mrb[0].mxu0
    %v5827 = vadd.f32 %v5634, %v5826
    %v5828 = vpop.f32.mrb[0].mxu0
    %v5829 = vadd.f32 %v5636, %v5828
    %5830 = vmatprep.mubr.bf16.mxu0 %v2157
    %5831 = vmatmul.mubr.bf16.gmra.mrb[0].mxu0 %v2156
    %v5832 = vpop.f32.mrb[0].mxu0
    %v5833 = vadd.f32 %v5640, %v5832
    %v5834 = vpop.f32.mrb[0].mxu0
    %v5835 = vadd.f32 %v5642, %v5834
    %v5836 = vpop.f32.mrb[0].mxu0
    %v5837 = vadd.f32 %v5644, %v5836
    %v5838 = vpop.f32.mrb[0].mxu0
    %v5839 = vadd.f32 %v5646, %v5838
    %5840 = vmatprep.mubr.bf16.mxu0 %v2165
    %5841 = vmatmul.mubr.bf16.gmra.mrb[0].mxu0 %v2164
    %v5842 = vpop.f32.mrb[0].mxu0
    %v5843 = vadd.f32 %v5650, %v5842
    %v5844 = vpop.f32.mrb[0].mxu0
    %v5845 = vadd.f32 %v5652, %v5844
    %v5846 = vpop.f32.mrb[0].mxu0
    %v5847 = vadd.f32 %v5654, %v5846
    %v5848 = vpop.f32.mrb[0].mxu0
    %v5849 = vadd.f32 %v5656, %v5848
    %5850 = vmatprep.mubr.bf16.mxu0 %v2173
    %5851 = vmatmul.mubr.bf16.gmra.mrb[0].mxu0 %v2172
    %v5852 = vpop.f32.mrb[0].mxu0
    %v5853 = vadd.f32 %v5660, %v5852
    %v5854 = vpop.f32.mrb[0].mxu0
    %v5855 = vadd.f32 %v5662, %v5854
    %v5856 = vpop.f32.mrb[0].mxu0
    %v5857 = vadd.f32 %v5664, %v5856
    %v5858 = vpop.f32.mrb[0].mxu0
    %v5859 = vadd.f32 %v5666, %v5858
    %5860 = vmatprep.mubr.bf16.mxu0 %v2181
    %5861 = vmatmul.mubr.bf16.gmra.mrb[0].mxu0 %v2180
    %v5862 = vpop.f32.mrb[0].mxu0
    %v5863 = vadd.f32 %v5670, %v5862
    %v5864 = vpop.f32.mrb[0].mxu0
    %v5865 = vadd.f32 %v5672, %v5864
    %v5866 = vpop.f32.mrb[0].mxu0
    %v5867 = vadd.f32 %v5674, %v5866
    %v5868 = vpop.f32.mrb[0].mxu0
    %v5869 = vadd.f32 %v5676, %v5868
    %5870 = vmatprep.mubr.bf16.mxu0 %v2189
    %5871 = vmatmul.mubr.bf16.gmra.mrb[0].mxu0 %v2188
    %v5872 = vpop.f32.mrb[0].mxu0
    %v5873 = vadd.f32 %v5680, %v5872
    %v5874 = vpop.f32.mrb[0].mxu0
    %v5875 = vadd.f32 %v5682, %v5874
    %v5876 = vpop.f32.mrb[0].mxu0
    %v5877 = vadd.f32 %v5684, %v5876
    %v5878 = vpop.f32.mrb[0].mxu0
    %v5879 = vadd.f32 %v5686, %v5878
    %5880 = vmatprep.mubr.bf16.mxu0 %v2197
    %5881 = vmatmul.mubr.bf16.gmra.mrb[0].mxu0 %v2196
    %v5882 = vpop.f32.mrb[0].mxu0
    %v5883 = vadd.f32 %v5690, %v5882
    %v5884 = vpop.f32.mrb[0].mxu0
    %v5885 = vadd.f32 %v5692, %v5884
    %v5886 = vpop.f32.mrb[0].mxu0
    %v5887 = vadd.f32 %v5694, %v5886
    %v5888 = vpop.f32.mrb[0].mxu0
    %v5889 = vadd.f32 %v5696, %v5888
    %5890 = vmatprep.mubr.bf16.mxu0 %v2205
    %5891 = vmatmul.mubr.bf16.gmra.mrb[0].mxu0 %v2204
    %v5892 = vpop.f32.mrb[0].mxu0
    %v5893 = vadd.f32 %v5700, %v5892
    %v5894 = vpop.f32.mrb[0].mxu0
    %v5895 = vadd.f32 %v5702, %v5894
    %v5896 = vpop.f32.mrb[0].mxu0
    %v5897 = vadd.f32 %v5704, %v5896
    %v5898 = vpop.f32.mrb[0].mxu0
    %v5899 = vadd.f32 %v5706, %v5898
    %5900 = vdwg.mxu0
    %5901 = vmatprep.subr.bf16.mxu0 %v4683
    %5902 = vmatpush1.bf16.msra.mxu0 %v4682
    %5903 = vmatprep.subr.bf16.mxu0 %v4691
    %5904 = vmatpush1.bf16.msra.mxu0 %v4690
    %5905 = vmatprep.subr.bf16.mxu0 %v4699
    %5906 = vmatpush1.bf16.msra.mxu0 %v4698
    %5907 = vmatprep.subr.bf16.mxu0 %v4707
    %5908 = vmatpush1.bf16.msra.mxu0 %v4706
    %5909 = vmatprep.subr.bf16.mxu0 %v4715
    %5910 = vmatpush1.bf16.msra.mxu0 %v4714
    %5911 = vmatprep.subr.bf16.mxu0 %v4723
    %5912 = vmatpush1.bf16.msra.mxu0 %v4722
    %5913 = vmatprep.subr.bf16.mxu0 %v4731
    %5914 = vmatpush1.bf16.msra.mxu0 %v4730
    %5915 = vmatprep.subr.bf16.mxu0 %v4739
    %5916 = vmatpush1.bf16.msra.mxu0 %v4738
    %5917 = vmatprep.subr.bf16.mxu0 %v4747
    %5918 = vmatpush1.bf16.msra.mxu0 %v4746
    %5919 = vmatprep.subr.bf16.mxu0 %v4755
    %5920 = vmatpush1.bf16.msra.mxu0 %v4754
    %5921 = vmatprep.subr.bf16.mxu0 %v4763
    %5922 = vmatpush1.bf16.msra.mxu0 %v4762
    %5923 = vmatprep.subr.bf16.mxu0 %v4771
    %5924 = vmatpush1.bf16.msra.mxu0 %v4770
    %5925 = vmatprep.subr.bf16.mxu0 %v4779
    %5926 = vmatpush1.bf16.msra.mxu0 %v4778
    %5927 = vmatprep.subr.bf16.mxu0 %v4787
    %5928 = vmatpush1.bf16.msra.mxu0 %v4786
    %5929 = vmatprep.subr.bf16.mxu0 %v4795
    %5930 = vmatpush1.bf16.msra.mxu0 %v4794
    %5931 = vmatprep.subr.bf16.mxu0 %v4803
    %5932 = vmatpush1.bf16.msra.mxu0 %v4802
    %5933 = vmatprep.mubr.bf16.mxu0 %v2087
    %5934 = vmatmul.mubr.bf16.gmra.mrb[0].mxu0 %v2086
    %v5935 = vpop.f32.mrb[0].mxu0
    %v5936 = vadd.f32 %v5743, %v5935
    %v5937 = vpop.f32.mrb[0].mxu0
    %v5938 = vadd.f32 %v5745, %v5937
    %v5939 = vpop.f32.mrb[0].mxu0
    %v5940 = vadd.f32 %v5747, %v5939
    %v5941 = vpop.f32.mrb[0].mxu0
    %v5942 = vadd.f32 %v5749, %v5941
    %5943 = vmatprep.mubr.bf16.mxu0 %v2095
    %5944 = vmatmul.mubr.bf16.gmra.mrb[0].mxu0 %v2094
    %v5945 = vpop.f32.mrb[0].mxu0
    %v5946 = vadd.f32 %v5753, %v5945
    %v5947 = vpop.f32.mrb[0].mxu0
    %v5948 = vadd.f32 %v5755, %v5947
    %v5949 = vpop.f32.mrb[0].mxu0
    %v5950 = vadd.f32 %v5757, %v5949
    %v5951 = vpop.f32.mrb[0].mxu0
    %v5952 = vadd.f32 %v5759, %v5951
    %5953 = vmatprep.mubr.bf16.mxu0 %v2103
    %5954 = vmatmul.mubr.bf16.gmra.mrb[0].mxu0 %v2102
    %v5955 = vpop.f32.mrb[0].mxu0
    %v5956 = vadd.f32 %v5763, %v5955
    %v5957 = vpop.f32.mrb[0].mxu0
    %v5958 = vadd.f32 %v5765, %v5957
    %v5959 = vpop.f32.mrb[0].mxu0
    %v5960 = vadd.f32 %v5767, %v5959
    %v5961 = vpop.f32.mrb[0].mxu0
    %v5962 = vadd.f32 %v5769, %v5961
    %5963 = vmatprep.mubr.bf16.mxu0 %v2111
    %5964 = vmatmul.mubr.bf16.gmra.mrb[0].mxu0 %v2110
    %v5965 = vpop.f32.mrb[0].mxu0
    %v5966 = vadd.f32 %v5773, %v5965
    %v5967 = vpop.f32.mrb[0].mxu0
    %v5968 = vadd.f32 %v5775, %v5967
    %v5969 = vpop.f32.mrb[0].mxu0
    %v5970 = vadd.f32 %v5777, %v5969
    %v5971 = vpop.f32.mrb[0].mxu0
    %v5972 = vadd.f32 %v5779, %v5971
    %5973 = vmatprep.mubr.bf16.mxu0 %v2119
    %5974 = vmatmul.mubr.bf16.gmra.mrb[0].mxu0 %v2118
    %v5975 = vpop.f32.mrb[0].mxu0
    %v5976 = vadd.f32 %v5783, %v5975
    %v5977 = vpop.f32.mrb[0].mxu0
    %v5978 = vadd.f32 %v5785, %v5977
    %v5979 = vpop.f32.mrb[0].mxu0
    %v5980 = vadd.f32 %v5787, %v5979
    %v5981 = vpop.f32.mrb[0].mxu0
    %v5982 = vadd.f32 %v5789, %v5981
    %5983 = vmatprep.mubr.bf16.mxu0 %v2127
    %5984 = vmatmul.mubr.bf16.gmra.mrb[0].mxu0 %v2126
    %v5985 = vpop.f32.mrb[0].mxu0
    %v5986 = vadd.f32 %v5793, %v5985
    %v5987 = vpop.f32.mrb[0].mxu0
    %v5988 = vadd.f32 %v5795, %v5987
    %v5989 = vpop.f32.mrb[0].mxu0
    %v5990 = vadd.f32 %v5797, %v5989
    %v5991 = vpop.f32.mrb[0].mxu0
    %v5992 = vadd.f32 %v5799, %v5991
    %5993 = vmatprep.mubr.bf16.mxu0 %v2135
    %5994 = vmatmul.mubr.bf16.gmra.mrb[0].mxu0 %v2134
    %v5995 = vpop.f32.mrb[0].mxu0
    %v5996 = vadd.f32 %v5803, %v5995
    %v5997 = vpop.f32.mrb[0].mxu0
    %v5998 = vadd.f32 %v5805, %v5997
    %v5999 = vpop.f32.mrb[0].mxu0
    %v6000 = vadd.f32 %v5807, %v5999
    %v6001 = vpop.f32.mrb[0].mxu0
    %v6002 = vadd.f32 %v5809, %v6001
    %6003 = vmatprep.mubr.bf16.mxu0 %v2143
    %6004 = vmatmul.mubr.bf16.gmra.mrb[0].mxu0 %v2142
    %v6005 = vpop.f32.mrb[0].mxu0
    %v6006 = vadd.f32 %v5813, %v6005
    %v6007 = vpop.f32.mrb[0].mxu0
    %v6008 = vadd.f32 %v5815, %v6007
    %v6009 = vpop.f32.mrb[0].mxu0
    %v6010 = vadd.f32 %v5817, %v6009
    %v6011 = vpop.f32.mrb[0].mxu0
    %v6012 = vadd.f32 %v5819, %v6011
    %6013 = vmatprep.mubr.bf16.mxu0 %v2151
    %6014 = vmatmul.mubr.bf16.gmra.mrb[0].mxu0 %v2150
    %v6015 = vpop.f32.mrb[0].mxu0
    %v6016 = vadd.f32 %v5823, %v6015
    %v6017 = vpop.f32.mrb[0].mxu0
    %v6018 = vadd.f32 %v5825, %v6017
    %v6019 = vpop.f32.mrb[0].mxu0
    %v6020 = vadd.f32 %v5827, %v6019
    %v6021 = vpop.f32.mrb[0].mxu0
    %v6022 = vadd.f32 %v5829, %v6021
    %6023 = vmatprep.mubr.bf16.mxu0 %v2159
    %6024 = vmatmul.mubr.bf16.gmra.mrb[0].mxu0 %v2158
    %v6025 = vpop.f32.mrb[0].mxu0
    %v6026 = vadd.f32 %v5833, %v6025
    %v6027 = vpop.f32.mrb[0].mxu0
    %v6028 = vadd.f32 %v5835, %v6027
    %v6029 = vpop.f32.mrb[0].mxu0
    %v6030 = vadd.f32 %v5837, %v6029
    %v6031 = vpop.f32.mrb[0].mxu0
    %v6032 = vadd.f32 %v5839, %v6031
    %6033 = vmatprep.mubr.bf16.mxu0 %v2167
    %6034 = vmatmul.mubr.bf16.gmra.mrb[0].mxu0 %v2166
    %v6035 = vpop.f32.mrb[0].mxu0
    %v6036 = vadd.f32 %v5843, %v6035
    %v6037 = vpop.f32.mrb[0].mxu0
    %v6038 = vadd.f32 %v5845, %v6037
    %v6039 = vpop.f32.mrb[0].mxu0
    %v6040 = vadd.f32 %v5847, %v6039
    %v6041 = vpop.f32.mrb[0].mxu0
    %v6042 = vadd.f32 %v5849, %v6041
    %6043 = vmatprep.mubr.bf16.mxu0 %v2175
    %6044 = vmatmul.mubr.bf16.gmra.mrb[0].mxu0 %v2174
    %v6045 = vpop.f32.mrb[0].mxu0
    %v6046 = vadd.f32 %v5853, %v6045
    %v6047 = vpop.f32.mrb[0].mxu0
    %v6048 = vadd.f32 %v5855, %v6047
    %v6049 = vpop.f32.mrb[0].mxu0
    %v6050 = vadd.f32 %v5857, %v6049
    %v6051 = vpop.f32.mrb[0].mxu0
    %v6052 = vadd.f32 %v5859, %v6051
    %6053 = vmatprep.mubr.bf16.mxu0 %v2183
    %6054 = vmatmul.mubr.bf16.gmra.mrb[0].mxu0 %v2182
    %v6055 = vpop.f32.mrb[0].mxu0
    %v6056 = vadd.f32 %v5863, %v6055
    %v6057 = vpop.f32.mrb[0].mxu0
    %v6058 = vadd.f32 %v5865, %v6057
    %v6059 = vpop.f32.mrb[0].mxu0
    %v6060 = vadd.f32 %v5867, %v6059
    %v6061 = vpop.f32.mrb[0].mxu0
    %v6062 = vadd.f32 %v5869, %v6061
    %6063 = vmatprep.mubr.bf16.mxu0 %v2191
    %6064 = vmatmul.mubr.bf16.gmra.mrb[0].mxu0 %v2190
    %v6065 = vpop.f32.mrb[0].mxu0
    %v6066 = vadd.f32 %v5873, %v6065
    %v6067 = vpop.f32.mrb[0].mxu0
    %v6068 = vadd.f32 %v5875, %v6067
    %v6069 = vpop.f32.mrb[0].mxu0
    %v6070 = vadd.f32 %v5877, %v6069
    %v6071 = vpop.f32.mrb[0].mxu0
    %v6072 = vadd.f32 %v5879, %v6071
    %6073 = vmatprep.mubr.bf16.mxu0 %v2199
    %6074 = vmatmul.mubr.bf16.gmra.mrb[0].mxu0 %v2198
    %v6075 = vpop.f32.mrb[0].mxu0
    %v6076 = vadd.f32 %v5883, %v6075
    %v6077 = vpop.f32.mrb[0].mxu0
    %v6078 = vadd.f32 %v5885, %v6077
    %v6079 = vpop.f32.mrb[0].mxu0
    %v6080 = vadd.f32 %v5887, %v6079
    %v6081 = vpop.f32.mrb[0].mxu0
    %v6082 = vadd.f32 %v5889, %v6081
    %6083 = vmatprep.mubr.bf16.mxu0 %v2207
    %6084 = vmatmul.mubr.bf16.gmra.mrb[0].mxu0 %v2206
    %v6085 = vpop.f32.mrb[0].mxu0
    %v6086 = vadd.f32 %v5893, %v6085
    %v6087 = vpop.f32.mrb[0].mxu0
    %v6088 = vadd.f32 %v5895, %v6087
    %v6089 = vpop.f32.mrb[0].mxu0
    %v6090 = vadd.f32 %v5897, %v6089
    %v6091 = vpop.f32.mrb[0].mxu0
    %v6092 = vadd.f32 %v5899, %v6091
    %6093 = vdwg.mxu0
    %6094 = vmatprep.subr.bf16.mxu0 %v4301
    %6095 = vmatpush1.bf16.msra.mxu0 %v4300
    %6096 = vmatprep.subr.bf16.mxu0 %v4309
    %6097 = vmatpush1.bf16.msra.mxu0 %v4308
    %6098 = vmatprep.subr.bf16.mxu0 %v4317
    %6099 = vmatpush1.bf16.msra.mxu0 %v4316
    %6100 = vmatprep.subr.bf16.mxu0 %v4325
    %6101 = vmatpush1.bf16.msra.mxu0 %v4324
    %6102 = vmatprep.subr.bf16.mxu0 %v4333
    %6103 = vmatpush1.bf16.msra.mxu0 %v4332
    %6104 = vmatprep.subr.bf16.mxu0 %v4341
    %6105 = vmatpush1.bf16.msra.mxu0 %v4340
    %6106 = vmatprep.subr.bf16.mxu0 %v4349
    %6107 = vmatpush1.bf16.msra.mxu0 %v4348
    %6108 = vmatprep.subr.bf16.mxu0 %v4357
    %6109 = vmatpush1.bf16.msra.mxu0 %v4356
    %6110 = vmatprep.subr.bf16.mxu0 %v4365
    %6111 = vmatpush1.bf16.msra.mxu0 %v4364
    %6112 = vmatprep.subr.bf16.mxu0 %v4373
    %6113 = vmatpush1.bf16.msra.mxu0 %v4372
    %6114 = vmatprep.subr.bf16.mxu0 %v4381
    %6115 = vmatpush1.bf16.msra.mxu0 %v4380
    %6116 = vmatprep.subr.bf16.mxu0 %v4389
    %6117 = vmatpush1.bf16.msra.mxu0 %v4388
    %6118 = vmatprep.subr.bf16.mxu0 %v4397
    %6119 = vmatpush1.bf16.msra.mxu0 %v4396
    %6120 = vmatprep.subr.bf16.mxu0 %v4405
    %6121 = vmatpush1.bf16.msra.mxu0 %v4404
    %6122 = vmatprep.subr.bf16.mxu0 %v4413
    %6123 = vmatpush1.bf16.msra.mxu0 %v4412
    %6124 = vmatprep.subr.bf16.mxu0 %v4421
    %6125 = vmatpush1.bf16.msra.mxu0 %v4420
    %6126 = vmatprep.mubr.bf16.mxu0 %v2081
    %6127 = vmatmul.mubr.bf16.gmra.mrb[0].mxu0 %v2080
    %v6128 = vpop.f32.mrb[0].mxu0
    %v6129 = vadd.f32 %v2733, %v6128
    %v6130 = vpop.f32.mrb[0].mxu0
    %v6131 = vadd.f32 %v2737, %v6130
    %v6132 = vpop.f32.mrb[0].mxu0
    %v6133 = vadd.f32 %v2733, %v6132
    %v6134 = vpop.f32.mrb[0].mxu0
    %v6135 = vadd.f32 %v2737, %v6134
    %6136 = vmatprep.mubr.bf16.mxu0 %v2089
    %6137 = vmatmul.mubr.bf16.gmra.mrb[0].mxu0 %v2088
    %v6138 = vpop.f32.mrb[0].mxu0
    %v6139 = vadd.f32 %v2733, %v6138
    %v6140 = vpop.f32.mrb[0].mxu0
    %v6141 = vadd.f32 %v2737, %v6140
    %v6142 = vpop.f32.mrb[0].mxu0
    %v6143 = vadd.f32 %v2733, %v6142
    %v6144 = vpop.f32.mrb[0].mxu0
    %v6145 = vadd.f32 %v2737, %v6144
    %6146 = vmatprep.mubr.bf16.mxu0 %v2097
    %6147 = vmatmul.mubr.bf16.gmra.mrb[0].mxu0 %v2096
    %v6148 = vpop.f32.mrb[0].mxu0
    %v6149 = vadd.f32 %v2733, %v6148
    %v6150 = vpop.f32.mrb[0].mxu0
    %v6151 = vadd.f32 %v2737, %v6150
    %v6152 = vpop.f32.mrb[0].mxu0
    %v6153 = vadd.f32 %v2733, %v6152
    %v6154 = vpop.f32.mrb[0].mxu0
    %v6155 = vadd.f32 %v2737, %v6154
    %6156 = vmatprep.mubr.bf16.mxu0 %v2105
    %6157 = vmatmul.mubr.bf16.gmra.mrb[0].mxu0 %v2104
    %v6158 = vpop.f32.mrb[0].mxu0
    %v6159 = vadd.f32 %v2733, %v6158
    %v6160 = vpop.f32.mrb[0].mxu0
    %v6161 = vadd.f32 %v2737, %v6160
    %v6162 = vpop.f32.mrb[0].mxu0
    %v6163 = vadd.f32 %v2733, %v6162
    %v6164 = vpop.f32.mrb[0].mxu0
    %v6165 = vadd.f32 %v2737, %v6164
    %6166 = vmatprep.mubr.bf16.mxu0 %v2113
    %6167 = vmatmul.mubr.bf16.gmra.mrb[0].mxu0 %v2112
    %v6168 = vpop.f32.mrb[0].mxu0
    %v6169 = vadd.f32 %v2733, %v6168
    %v6170 = vpop.f32.mrb[0].mxu0
    %v6171 = vadd.f32 %v2737, %v6170
    %v6172 = vpop.f32.mrb[0].mxu0
    %v6173 = vadd.f32 %v2733, %v6172
    %v6174 = vpop.f32.mrb[0].mxu0
    %v6175 = vadd.f32 %v2737, %v6174
    %6176 = vmatprep.mubr.bf16.mxu0 %v2121
    %6177 = vmatmul.mubr.bf16.gmra.mrb[0].mxu0 %v2120
    %v6178 = vpop.f32.mrb[0].mxu0
    %v6179 = vadd.f32 %v2733, %v6178
    %v6180 = vpop.f32.mrb[0].mxu0
    %v6181 = vadd.f32 %v2737, %v6180
    %v6182 = vpop.f32.mrb[0].mxu0
    %v6183 = vadd.f32 %v2733, %v6182
    %v6184 = vpop.f32.mrb[0].mxu0
    %v6185 = vadd.f32 %v2737, %v6184
    %6186 = vmatprep.mubr.bf16.mxu0 %v2129
    %6187 = vmatmul.mubr.bf16.gmra.mrb[0].mxu0 %v2128
    %v6188 = vpop.f32.mrb[0].mxu0
    %v6189 = vadd.f32 %v2733, %v6188
    %v6190 = vpop.f32.mrb[0].mxu0
    %v6191 = vadd.f32 %v2737, %v6190
    %v6192 = vpop.f32.mrb[0].mxu0
    %v6193 = vadd.f32 %v2733, %v6192
    %v6194 = vpop.f32.mrb[0].mxu0
    %v6195 = vadd.f32 %v2737, %v6194
    %6196 = vmatprep.mubr.bf16.mxu0 %v2137
    %6197 = vmatmul.mubr.bf16.gmra.mrb[0].mxu0 %v2136
    %v6198 = vpop.f32.mrb[0].mxu0
    %v6199 = vadd.f32 %v2733, %v6198
    %v6200 = vpop.f32.mrb[0].mxu0
    %v6201 = vadd.f32 %v2737, %v6200
    %v6202 = vpop.f32.mrb[0].mxu0
    %v6203 = vadd.f32 %v2733, %v6202
    %v6204 = vpop.f32.mrb[0].mxu0
    %v6205 = vadd.f32 %v2737, %v6204
    %6206 = vmatprep.mubr.bf16.mxu0 %v2145
    %6207 = vmatmul.mubr.bf16.gmra.mrb[0].mxu0 %v2144
    %v6208 = vpop.f32.mrb[0].mxu0
    %v6209 = vadd.f32 %v2733, %v6208
    %v6210 = vpop.f32.mrb[0].mxu0
    %v6211 = vadd.f32 %v2737, %v6210
    %v6212 = vpop.f32.mrb[0].mxu0
    %v6213 = vadd.f32 %v2733, %v6212
    %v6214 = vpop.f32.mrb[0].mxu0
    %v6215 = vadd.f32 %v2737, %v6214
    %6216 = vmatprep.mubr.bf16.mxu0 %v2153
    %6217 = vmatmul.mubr.bf16.gmra.mrb[0].mxu0 %v2152
    %v6218 = vpop.f32.mrb[0].mxu0
    %v6219 = vadd.f32 %v2733, %v6218
    %v6220 = vpop.f32.mrb[0].mxu0
    %v6221 = vadd.f32 %v2737, %v6220
    %v6222 = vpop.f32.mrb[0].mxu0
    %v6223 = vadd.f32 %v2733, %v6222
    %v6224 = vpop.f32.mrb[0].mxu0
    %v6225 = vadd.f32 %v2737, %v6224
    %6226 = vmatprep.mubr.bf16.mxu0 %v2161
    %6227 = vmatmul.mubr.bf16.gmra.mrb[0].mxu0 %v2160
    %v6228 = vpop.f32.mrb[0].mxu0
    %v6229 = vadd.f32 %v2733, %v6228
    %v6230 = vpop.f32.mrb[0].mxu0
    %v6231 = vadd.f32 %v2737, %v6230
    %v6232 = vpop.f32.mrb[0].mxu0
    %v6233 = vadd.f32 %v2733, %v6232
    %v6234 = vpop.f32.mrb[0].mxu0
    %v6235 = vadd.f32 %v2737, %v6234
    %6236 = vmatprep.mubr.bf16.mxu0 %v2169
    %6237 = vmatmul.mubr.bf16.gmra.mrb[0].mxu0 %v2168
    %v6238 = vpop.f32.mrb[0].mxu0
    %v6239 = vadd.f32 %v2733, %v6238
    %v6240 = vpop.f32.mrb[0].mxu0
    %v6241 = vadd.f32 %v2737, %v6240
    %v6242 = vpop.f32.mrb[0].mxu0
    %v6243 = vadd.f32 %v2733, %v6242
    %v6244 = vpop.f32.mrb[0].mxu0
    %v6245 = vadd.f32 %v2737, %v6244
    %6246 = vmatprep.mubr.bf16.mxu0 %v2177
    %6247 = vmatmul.mubr.bf16.gmra.mrb[0].mxu0 %v2176
    %v6248 = vpop.f32.mrb[0].mxu0
    %v6249 = vadd.f32 %v2733, %v6248
    %v6250 = vpop.f32.mrb[0].mxu0
    %v6251 = vadd.f32 %v2737, %v6250
    %v6252 = vpop.f32.mrb[0].mxu0
    %v6253 = vadd.f32 %v2733, %v6252
    %v6254 = vpop.f32.mrb[0].mxu0
    %v6255 = vadd.f32 %v2737, %v6254
    %6256 = vmatprep.mubr.bf16.mxu0 %v2185
    %6257 = vmatmul.mubr.bf16.gmra.mrb[0].mxu0 %v2184
    %v6258 = vpop.f32.mrb[0].mxu0
    %v6259 = vadd.f32 %v2733, %v6258
    %v6260 = vpop.f32.mrb[0].mxu0
    %v6261 = vadd.f32 %v2737, %v6260
    %v6262 = vpop.f32.mrb[0].mxu0
    %v6263 = vadd.f32 %v2733, %v6262
    %v6264 = vpop.f32.mrb[0].mxu0
    %v6265 = vadd.f32 %v2737, %v6264
    %6266 = vmatprep.mubr.bf16.mxu0 %v2193
    %6267 = vmatmul.mubr.bf16.gmra.mrb[0].mxu0 %v2192
    %v6268 = vpop.f32.mrb[0].mxu0
    %v6269 = vadd.f32 %v2733, %v6268
    %v6270 = vpop.f32.mrb[0].mxu0
    %v6271 = vadd.f32 %v2737, %v6270
    %v6272 = vpop.f32.mrb[0].mxu0
    %v6273 = vadd.f32 %v2733, %v6272
    %v6274 = vpop.f32.mrb[0].mxu0
    %v6275 = vadd.f32 %v2737, %v6274
    %6276 = vmatprep.mubr.bf16.mxu0 %v2201
    %6277 = vmatmul.mubr.bf16.gmra.mrb[0].mxu0 %v2200
    %v6278 = vpop.f32.mrb[0].mxu0
    %v6279 = vadd.f32 %v2733, %v6278
    %v6280 = vpop.f32.mrb[0].mxu0
    %v6281 = vadd.f32 %v2737, %v6280
    %v6282 = vpop.f32.mrb[0].mxu0
    %v6283 = vadd.f32 %v2733, %v6282
    %v6284 = vpop.f32.mrb[0].mxu0
    %v6285 = vadd.f32 %v2737, %v6284
    %6286 = vdwg.mxu0
    %6287 = vmatprep.subr.bf16.mxu0 %v4429
    %6288 = vmatpush1.bf16.msra.mxu0 %v4428
    %6289 = vmatprep.subr.bf16.mxu0 %v4437
    %6290 = vmatpush1.bf16.msra.mxu0 %v4436
    %6291 = vmatprep.subr.bf16.mxu0 %v4445
    %6292 = vmatpush1.bf16.msra.mxu0 %v4444
    %6293 = vmatprep.subr.bf16.mxu0 %v4453
    %6294 = vmatpush1.bf16.msra.mxu0 %v4452
    %6295 = vmatprep.subr.bf16.mxu0 %v4461
    %6296 = vmatpush1.bf16.msra.mxu0 %v4460
    %6297 = vmatprep.subr.bf16.mxu0 %v4469
    %6298 = vmatpush1.bf16.msra.mxu0 %v4468
    %6299 = vmatprep.subr.bf16.mxu0 %v4477
    %6300 = vmatpush1.bf16.msra.mxu0 %v4476
    %6301 = vmatprep.subr.bf16.mxu0 %v4485
    %6302 = vmatpush1.bf16.msra.mxu0 %v4484
    %6303 = vmatprep.subr.bf16.mxu0 %v4493
    %6304 = vmatpush1.bf16.msra.mxu0 %v4492
    %6305 = vmatprep.subr.bf16.mxu0 %v4501
    %6306 = vmatpush1.bf16.msra.mxu0 %v4500
    %6307 = vmatprep.subr.bf16.mxu0 %v4509
    %6308 = vmatpush1.bf16.msra.mxu0 %v4508
    %6309 = vmatprep.subr.bf16.mxu0 %v4517
    %6310 = vmatpush1.bf16.msra.mxu0 %v4516
    %6311 = vmatprep.subr.bf16.mxu0 %v4525
    %6312 = vmatpush1.bf16.msra.mxu0 %v4524
    %6313 = vmatprep.subr.bf16.mxu0 %v4533
    %6314 = vmatpush1.bf16.msra.mxu0 %v4532
    %6315 = vmatprep.subr.bf16.mxu0 %v4541
    %6316 = vmatpush1.bf16.msra.mxu0 %v4540
    %6317 = vmatprep.subr.bf16.mxu0 %v4549
    %6318 = vmatpush1.bf16.msra.mxu0 %v4548
    %6319 = vmatprep.mubr.bf16.mxu0 %v2083
    %6320 = vmatmul.mubr.bf16.gmra.mrb[0].mxu0 %v2082
    %v6321 = vpop.f32.mrb[0].mxu0
    %v6322 = vadd.f32 %v6129, %v6321
    %v6323 = vpop.f32.mrb[0].mxu0
    %v6324 = vadd.f32 %v6131, %v6323
    %v6325 = vpop.f32.mrb[0].mxu0
    %v6326 = vadd.f32 %v6133, %v6325
    %v6327 = vpop.f32.mrb[0].mxu0
    %v6328 = vadd.f32 %v6135, %v6327
    %6329 = vmatprep.mubr.bf16.mxu0 %v2091
    %6330 = vmatmul.mubr.bf16.gmra.mrb[0].mxu0 %v2090
    %v6331 = vpop.f32.mrb[0].mxu0
    %v6332 = vadd.f32 %v6139, %v6331
    %v6333 = vpop.f32.mrb[0].mxu0
    %v6334 = vadd.f32 %v6141, %v6333
    %v6335 = vpop.f32.mrb[0].mxu0
    %v6336 = vadd.f32 %v6143, %v6335
    %v6337 = vpop.f32.mrb[0].mxu0
    %v6338 = vadd.f32 %v6145, %v6337
    %6339 = vmatprep.mubr.bf16.mxu0 %v2099
    %6340 = vmatmul.mubr.bf16.gmra.mrb[0].mxu0 %v2098
    %v6341 = vpop.f32.mrb[0].mxu0
    %v6342 = vadd.f32 %v6149, %v6341
    %v6343 = vpop.f32.mrb[0].mxu0
    %v6344 = vadd.f32 %v6151, %v6343
    %v6345 = vpop.f32.mrb[0].mxu0
    %v6346 = vadd.f32 %v6153, %v6345
    %v6347 = vpop.f32.mrb[0].mxu0
    %v6348 = vadd.f32 %v6155, %v6347
    %6349 = vmatprep.mubr.bf16.mxu0 %v2107
    %6350 = vmatmul.mubr.bf16.gmra.mrb[0].mxu0 %v2106
    %v6351 = vpop.f32.mrb[0].mxu0
    %v6352 = vadd.f32 %v6159, %v6351
    %v6353 = vpop.f32.mrb[0].mxu0
    %v6354 = vadd.f32 %v6161, %v6353
    %v6355 = vpop.f32.mrb[0].mxu0
    %v6356 = vadd.f32 %v6163, %v6355
    %v6357 = vpop.f32.mrb[0].mxu0
    %v6358 = vadd.f32 %v6165, %v6357
    %6359 = vmatprep.mubr.bf16.mxu0 %v2115
    %6360 = vmatmul.mubr.bf16.gmra.mrb[0].mxu0 %v2114
    %v6361 = vpop.f32.mrb[0].mxu0
    %v6362 = vadd.f32 %v6169, %v6361
    %v6363 = vpop.f32.mrb[0].mxu0
    %v6364 = vadd.f32 %v6171, %v6363
    %v6365 = vpop.f32.mrb[0].mxu0
    %v6366 = vadd.f32 %v6173, %v6365
    %v6367 = vpop.f32.mrb[0].mxu0
    %v6368 = vadd.f32 %v6175, %v6367
    %6369 = vmatprep.mubr.bf16.mxu0 %v2123
    %6370 = vmatmul.mubr.bf16.gmra.mrb[0].mxu0 %v2122
    %v6371 = vpop.f32.mrb[0].mxu0
    %v6372 = vadd.f32 %v6179, %v6371
    %v6373 = vpop.f32.mrb[0].mxu0
    %v6374 = vadd.f32 %v6181, %v6373
    %v6375 = vpop.f32.mrb[0].mxu0
    %v6376 = vadd.f32 %v6183, %v6375
    %v6377 = vpop.f32.mrb[0].mxu0
    %v6378 = vadd.f32 %v6185, %v6377
    %6379 = vmatprep.mubr.bf16.mxu0 %v2131
    %6380 = vmatmul.mubr.bf16.gmra.mrb[0].mxu0 %v2130
    %v6381 = vpop.f32.mrb[0].mxu0
    %v6382 = vadd.f32 %v6189, %v6381
    %v6383 = vpop.f32.mrb[0].mxu0
    %v6384 = vadd.f32 %v6191, %v6383
    %v6385 = vpop.f32.mrb[0].mxu0
    %v6386 = vadd.f32 %v6193, %v6385
    %v6387 = vpop.f32.mrb[0].mxu0
    %v6388 = vadd.f32 %v6195, %v6387
    %6389 = vmatprep.mubr.bf16.mxu0 %v2139
    %6390 = vmatmul.mubr.bf16.gmra.mrb[0].mxu0 %v2138
    %v6391 = vpop.f32.mrb[0].mxu0
    %v6392 = vadd.f32 %v6199, %v6391
    %v6393 = vpop.f32.mrb[0].mxu0
    %v6394 = vadd.f32 %v6201, %v6393
    %v6395 = vpop.f32.mrb[0].mxu0
    %v6396 = vadd.f32 %v6203, %v6395
    %v6397 = vpop.f32.mrb[0].mxu0
    %v6398 = vadd.f32 %v6205, %v6397
    %6399 = vmatprep.mubr.bf16.mxu0 %v2147
    %6400 = vmatmul.mubr.bf16.gmra.mrb[0].mxu0 %v2146
    %v6401 = vpop.f32.mrb[0].mxu0
    %v6402 = vadd.f32 %v6209, %v6401
    %v6403 = vpop.f32.mrb[0].mxu0
    %v6404 = vadd.f32 %v6211, %v6403
    %v6405 = vpop.f32.mrb[0].mxu0
    %v6406 = vadd.f32 %v6213, %v6405
    %v6407 = vpop.f32.mrb[0].mxu0
    %v6408 = vadd.f32 %v6215, %v6407
    %6409 = vmatprep.mubr.bf16.mxu0 %v2155
    %6410 = vmatmul.mubr.bf16.gmra.mrb[0].mxu0 %v2154
    %v6411 = vpop.f32.mrb[0].mxu0
    %v6412 = vadd.f32 %v6219, %v6411
    %v6413 = vpop.f32.mrb[0].mxu0
    %v6414 = vadd.f32 %v6221, %v6413
    %v6415 = vpop.f32.mrb[0].mxu0
    %v6416 = vadd.f32 %v6223, %v6415
    %v6417 = vpop.f32.mrb[0].mxu0
    %v6418 = vadd.f32 %v6225, %v6417
    %6419 = vmatprep.mubr.bf16.mxu0 %v2163
    %6420 = vmatmul.mubr.bf16.gmra.mrb[0].mxu0 %v2162
    %v6421 = vpop.f32.mrb[0].mxu0
    %v6422 = vadd.f32 %v6229, %v6421
    %v6423 = vpop.f32.mrb[0].mxu0
    %v6424 = vadd.f32 %v6231, %v6423
    %v6425 = vpop.f32.mrb[0].mxu0
    %v6426 = vadd.f32 %v6233, %v6425
    %v6427 = vpop.f32.mrb[0].mxu0
    %v6428 = vadd.f32 %v6235, %v6427
    %6429 = vmatprep.mubr.bf16.mxu0 %v2171
    %6430 = vmatmul.mubr.bf16.gmra.mrb[0].mxu0 %v2170
    %v6431 = vpop.f32.mrb[0].mxu0
    %v6432 = vadd.f32 %v6239, %v6431
    %v6433 = vpop.f32.mrb[0].mxu0
    %v6434 = vadd.f32 %v6241, %v6433
    %v6435 = vpop.f32.mrb[0].mxu0
    %v6436 = vadd.f32 %v6243, %v6435
    %v6437 = vpop.f32.mrb[0].mxu0
    %v6438 = vadd.f32 %v6245, %v6437
    %6439 = vmatprep.mubr.bf16.mxu0 %v2179
    %6440 = vmatmul.mubr.bf16.gmra.mrb[0].mxu0 %v2178
    %v6441 = vpop.f32.mrb[0].mxu0
    %v6442 = vadd.f32 %v6249, %v6441
    %v6443 = vpop.f32.mrb[0].mxu0
    %v6444 = vadd.f32 %v6251, %v6443
    %v6445 = vpop.f32.mrb[0].mxu0
    %v6446 = vadd.f32 %v6253, %v6445
    %v6447 = vpop.f32.mrb[0].mxu0
    %v6448 = vadd.f32 %v6255, %v6447
    %6449 = vmatprep.mubr.bf16.mxu0 %v2187
    %6450 = vmatmul.mubr.bf16.gmra.mrb[0].mxu0 %v2186
    %v6451 = vpop.f32.mrb[0].mxu0
    %v6452 = vadd.f32 %v6259, %v6451
    %v6453 = vpop.f32.mrb[0].mxu0
    %v6454 = vadd.f32 %v6261, %v6453
    %v6455 = vpop.f32.mrb[0].mxu0
    %v6456 = vadd.f32 %v6263, %v6455
    %v6457 = vpop.f32.mrb[0].mxu0
    %v6458 = vadd.f32 %v6265, %v6457
    %6459 = vmatprep.mubr.bf16.mxu0 %v2195
    %6460 = vmatmul.mubr.bf16.gmra.mrb[0].mxu0 %v2194
    %v6461 = vpop.f32.mrb[0].mxu0
    %v6462 = vadd.f32 %v6269, %v6461
    %v6463 = vpop.f32.mrb[0].mxu0
    %v6464 = vadd.f32 %v6271, %v6463
    %v6465 = vpop.f32.mrb[0].mxu0
    %v6466 = vadd.f32 %v6273, %v6465
    %v6467 = vpop.f32.mrb[0].mxu0
    %v6468 = vadd.f32 %v6275, %v6467
    %6469 = vmatprep.mubr.bf16.mxu0 %v2203
    %6470 = vmatmul.mubr.bf16.gmra.mrb[0].mxu0 %v2202
    %v6471 = vpop.f32.mrb[0].mxu0
    %v6472 = vadd.f32 %v6279, %v6471
    %v6473 = vpop.f32.mrb[0].mxu0
    %v6474 = vadd.f32 %v6281, %v6473
    %v6475 = vpop.f32.mrb[0].mxu0
    %v6476 = vadd.f32 %v6283, %v6475
    %v6477 = vpop.f32.mrb[0].mxu0
    %v6478 = vadd.f32 %v6285, %v6477
    %6479 = vdwg.mxu0
    %6480 = vmatprep.subr.bf16.mxu0 %v4557
    %6481 = vmatpush1.bf16.msra.mxu0 %v4556
    %6482 = vmatprep.subr.bf16.mxu0 %v4565
    %6483 = vmatpush1.bf16.msra.mxu0 %v4564
    %6484 = vmatprep.subr.bf16.mxu0 %v4573
    %6485 = vmatpush1.bf16.msra.mxu0 %v4572
    %6486 = vmatprep.subr.bf16.mxu0 %v4581
    %6487 = vmatpush1.bf16.msra.mxu0 %v4580
    %6488 = vmatprep.subr.bf16.mxu0 %v4589
    %6489 = vmatpush1.bf16.msra.mxu0 %v4588
    %6490 = vmatprep.subr.bf16.mxu0 %v4597
    %6491 = vmatpush1.bf16.msra.mxu0 %v4596
    %6492 = vmatprep.subr.bf16.mxu0 %v4605
    %6493 = vmatpush1.bf16.msra.mxu0 %v4604
    %6494 = vmatprep.subr.bf16.mxu0 %v4613
    %6495 = vmatpush1.bf16.msra.mxu0 %v4612
    %6496 = vmatprep.subr.bf16.mxu0 %v4621
    %6497 = vmatpush1.bf16.msra.mxu0 %v4620
    %6498 = vmatprep.subr.bf16.mxu0 %v4629
    %6499 = vmatpush1.bf16.msra.mxu0 %v4628
    %6500 = vmatprep.subr.bf16.mxu0 %v4637
    %6501 = vmatpush1.bf16.msra.mxu0 %v4636
    %6502 = vmatprep.subr.bf16.mxu0 %v4645
    %6503 = vmatpush1.bf16.msra.mxu0 %v4644
    %6504 = vmatprep.subr.bf16.mxu0 %v4653
    %6505 = vmatpush1.bf16.msra.mxu0 %v4652
    %6506 = vmatprep.subr.bf16.mxu0 %v4661
    %6507 = vmatpush1.bf16.msra.mxu0 %v4660
    %6508 = vmatprep.subr.bf16.mxu0 %v4669
    %6509 = vmatpush1.bf16.msra.mxu0 %v4668
    %6510 = vmatprep.subr.bf16.mxu0 %v4677
    %6511 = vmatpush1.bf16.msra.mxu0 %v4676
    %6512 = vmatprep.mubr.bf16.mxu0 %v2085
    %6513 = vmatmul.mubr.bf16.gmra.mrb[0].mxu0 %v2084
    %v6514 = vpop.f32.mrb[0].mxu0
    %v6515 = vadd.f32 %v6322, %v6514
    %v6516 = vpop.f32.mrb[0].mxu0
    %v6517 = vadd.f32 %v6324, %v6516
    %v6518 = vpop.f32.mrb[0].mxu0
    %v6519 = vadd.f32 %v6326, %v6518
    %v6520 = vpop.f32.mrb[0].mxu0
    %v6521 = vadd.f32 %v6328, %v6520
    %6522 = vmatprep.mubr.bf16.mxu0 %v2093
    %6523 = vmatmul.mubr.bf16.gmra.mrb[0].mxu0 %v2092
    %v6524 = vpop.f32.mrb[0].mxu0
    %v6525 = vadd.f32 %v6332, %v6524
    %v6526 = vpop.f32.mrb[0].mxu0
    %v6527 = vadd.f32 %v6334, %v6526
    %v6528 = vpop.f32.mrb[0].mxu0
    %v6529 = vadd.f32 %v6336, %v6528
    %v6530 = vpop.f32.mrb[0].mxu0
    %v6531 = vadd.f32 %v6338, %v6530
    %6532 = vmatprep.mubr.bf16.mxu0 %v2101
    %6533 = vmatmul.mubr.bf16.gmra.mrb[0].mxu0 %v2100
    %v6534 = vpop.f32.mrb[0].mxu0
    %v6535 = vadd.f32 %v6342, %v6534
    %v6536 = vpop.f32.mrb[0].mxu0
    %v6537 = vadd.f32 %v6344, %v6536
    %v6538 = vpop.f32.mrb[0].mxu0
    %v6539 = vadd.f32 %v6346, %v6538
    %v6540 = vpop.f32.mrb[0].mxu0
    %v6541 = vadd.f32 %v6348, %v6540
    %6542 = vmatprep.mubr.bf16.mxu0 %v2109
    %6543 = vmatmul.mubr.bf16.gmra.mrb[0].mxu0 %v2108
    %v6544 = vpop.f32.mrb[0].mxu0
    %v6545 = vadd.f32 %v6352, %v6544
    %v6546 = vpop.f32.mrb[0].mxu0
    %v6547 = vadd.f32 %v6354, %v6546
    %v6548 = vpop.f32.mrb[0].mxu0
    %v6549 = vadd.f32 %v6356, %v6548
    %v6550 = vpop.f32.mrb[0].mxu0
    %v6551 = vadd.f32 %v6358, %v6550
    %6552 = vmatprep.mubr.bf16.mxu0 %v2117
    %6553 = vmatmul.mubr.bf16.gmra.mrb[0].mxu0 %v2116
    %v6554 = vpop.f32.mrb[0].mxu0
    %v6555 = vadd.f32 %v6362, %v6554
    %v6556 = vpop.f32.mrb[0].mxu0
    %v6557 = vadd.f32 %v6364, %v6556
    %v6558 = vpop.f32.mrb[0].mxu0
    %v6559 = vadd.f32 %v6366, %v6558
    %v6560 = vpop.f32.mrb[0].mxu0
    %v6561 = vadd.f32 %v6368, %v6560
    %6562 = vmatprep.mubr.bf16.mxu0 %v2125
    %6563 = vmatmul.mubr.bf16.gmra.mrb[0].mxu0 %v2124
    %v6564 = vpop.f32.mrb[0].mxu0
    %v6565 = vadd.f32 %v6372, %v6564
    %v6566 = vpop.f32.mrb[0].mxu0
    %v6567 = vadd.f32 %v6374, %v6566
    %v6568 = vpop.f32.mrb[0].mxu0
    %v6569 = vadd.f32 %v6376, %v6568
    %v6570 = vpop.f32.mrb[0].mxu0
    %v6571 = vadd.f32 %v6378, %v6570
    %6572 = vmatprep.mubr.bf16.mxu0 %v2133
    %6573 = vmatmul.mubr.bf16.gmra.mrb[0].mxu0 %v2132
    %v6574 = vpop.f32.mrb[0].mxu0
    %v6575 = vadd.f32 %v6382, %v6574
    %v6576 = vpop.f32.mrb[0].mxu0
    %v6577 = vadd.f32 %v6384, %v6576
    %v6578 = vpop.f32.mrb[0].mxu0
    %v6579 = vadd.f32 %v6386, %v6578
    %v6580 = vpop.f32.mrb[0].mxu0
    %v6581 = vadd.f32 %v6388, %v6580
    %6582 = vmatprep.mubr.bf16.mxu0 %v2141
    %6583 = vmatmul.mubr.bf16.gmra.mrb[0].mxu0 %v2140
    %v6584 = vpop.f32.mrb[0].mxu0
    %v6585 = vadd.f32 %v6392, %v6584
    %v6586 = vpop.f32.mrb[0].mxu0
    %v6587 = vadd.f32 %v6394, %v6586
    %v6588 = vpop.f32.mrb[0].mxu0
    %v6589 = vadd.f32 %v6396, %v6588
    %v6590 = vpop.f32.mrb[0].mxu0
    %v6591 = vadd.f32 %v6398, %v6590
    %6592 = vmatprep.mubr.bf16.mxu0 %v2149
    %6593 = vmatmul.mubr.bf16.gmra.mrb[0].mxu0 %v2148
    %v6594 = vpop.f32.mrb[0].mxu0
    %v6595 = vadd.f32 %v6402, %v6594
    %v6596 = vpop.f32.mrb[0].mxu0
    %v6597 = vadd.f32 %v6404, %v6596
    %v6598 = vpop.f32.mrb[0].mxu0
    %v6599 = vadd.f32 %v6406, %v6598
    %v6600 = vpop.f32.mrb[0].mxu0
    %v6601 = vadd.f32 %v6408, %v6600
    %6602 = vmatprep.mubr.bf16.mxu0 %v2157
    %6603 = vmatmul.mubr.bf16.gmra.mrb[0].mxu0 %v2156
    %v6604 = vpop.f32.mrb[0].mxu0
    %v6605 = vadd.f32 %v6412, %v6604
    %v6606 = vpop.f32.mrb[0].mxu0
    %v6607 = vadd.f32 %v6414, %v6606
    %v6608 = vpop.f32.mrb[0].mxu0
    %v6609 = vadd.f32 %v6416, %v6608
    %v6610 = vpop.f32.mrb[0].mxu0
    %v6611 = vadd.f32 %v6418, %v6610
    %6612 = vmatprep.mubr.bf16.mxu0 %v2165
    %6613 = vmatmul.mubr.bf16.gmra.mrb[0].mxu0 %v2164
    %v6614 = vpop.f32.mrb[0].mxu0
    %v6615 = vadd.f32 %v6422, %v6614
    %v6616 = vpop.f32.mrb[0].mxu0
    %v6617 = vadd.f32 %v6424, %v6616
    %v6618 = vpop.f32.mrb[0].mxu0
    %v6619 = vadd.f32 %v6426, %v6618
    %v6620 = vpop.f32.mrb[0].mxu0
    %v6621 = vadd.f32 %v6428, %v6620
    %6622 = vmatprep.mubr.bf16.mxu0 %v2173
    %6623 = vmatmul.mubr.bf16.gmra.mrb[0].mxu0 %v2172
    %v6624 = vpop.f32.mrb[0].mxu0
    %v6625 = vadd.f32 %v6432, %v6624
    %v6626 = vpop.f32.mrb[0].mxu0
    %v6627 = vadd.f32 %v6434, %v6626
    %v6628 = vpop.f32.mrb[0].mxu0
    %v6629 = vadd.f32 %v6436, %v6628
    %v6630 = vpop.f32.mrb[0].mxu0
    %v6631 = vadd.f32 %v6438, %v6630
    %6632 = vmatprep.mubr.bf16.mxu0 %v2181
    %6633 = vmatmul.mubr.bf16.gmra.mrb[0].mxu0 %v2180
    %v6634 = vpop.f32.mrb[0].mxu0
    %v6635 = vadd.f32 %v6442, %v6634
    %v6636 = vpop.f32.mrb[0].mxu0
    %v6637 = vadd.f32 %v6444, %v6636
    %v6638 = vpop.f32.mrb[0].mxu0
    %v6639 = vadd.f32 %v6446, %v6638
    %v6640 = vpop.f32.mrb[0].mxu0
    %v6641 = vadd.f32 %v6448, %v6640
    %6642 = vmatprep.mubr.bf16.mxu0 %v2189
    %6643 = vmatmul.mubr.bf16.gmra.mrb[0].mxu0 %v2188
    %v6644 = vpop.f32.mrb[0].mxu0
    %v6645 = vadd.f32 %v6452, %v6644
    %v6646 = vpop.f32.mrb[0].mxu0
    %v6647 = vadd.f32 %v6454, %v6646
    %v6648 = vpop.f32.mrb[0].mxu0
    %v6649 = vadd.f32 %v6456, %v6648
    %v6650 = vpop.f32.mrb[0].mxu0
    %v6651 = vadd.f32 %v6458, %v6650
    %6652 = vmatprep.mubr.bf16.mxu0 %v2197
    %6653 = vmatmul.mubr.bf16.gmra.mrb[0].mxu0 %v2196
    %v6654 = vpop.f32.mrb[0].mxu0
    %v6655 = vadd.f32 %v6462, %v6654
    %v6656 = vpop.f32.mrb[0].mxu0
    %v6657 = vadd.f32 %v6464, %v6656
    %v6658 = vpop.f32.mrb[0].mxu0
    %v6659 = vadd.f32 %v6466, %v6658
    %v6660 = vpop.f32.mrb[0].mxu0
    %v6661 = vadd.f32 %v6468, %v6660
    %6662 = vmatprep.mubr.bf16.mxu0 %v2205
    %6663 = vmatmul.mubr.bf16.gmra.mrb[0].mxu0 %v2204
    %v6664 = vpop.f32.mrb[0].mxu0
    %v6665 = vadd.f32 %v6472, %v6664
    %v6666 = vpop.f32.mrb[0].mxu0
    %v6667 = vadd.f32 %v6474, %v6666
    %v6668 = vpop.f32.mrb[0].mxu0
    %v6669 = vadd.f32 %v6476, %v6668
    %v6670 = vpop.f32.mrb[0].mxu0
    %v6671 = vadd.f32 %v6478, %v6670
    %6672 = vdwg.mxu0
    %6673 = vmatprep.subr.bf16.mxu0 %v4685
    %6674 = vmatpush1.bf16.msra.mxu0 %v4684
    %6675 = vmatprep.subr.bf16.mxu0 %v4693
    %6676 = vmatpush1.bf16.msra.mxu0 %v4692
    %6677 = vmatprep.subr.bf16.mxu0 %v4701
    %6678 = vmatpush1.bf16.msra.mxu0 %v4700
    %6679 = vmatprep.subr.bf16.mxu0 %v4709
    %6680 = vmatpush1.bf16.msra.mxu0 %v4708
    %6681 = vmatprep.subr.bf16.mxu0 %v4717
    %6682 = vmatpush1.bf16.msra.mxu0 %v4716
    %6683 = vmatprep.subr.bf16.mxu0 %v4725
    %6684 = vmatpush1.bf16.msra.mxu0 %v4724
    %6685 = vmatprep.subr.bf16.mxu0 %v4733
    %6686 = vmatpush1.bf16.msra.mxu0 %v4732
    %6687 = vmatprep.subr.bf16.mxu0 %v4741
    %6688 = vmatpush1.bf16.msra.mxu0 %v4740
    %6689 = vmatprep.subr.bf16.mxu0 %v4749
    %6690 = vmatpush1.bf16.msra.mxu0 %v4748
    %6691 = vmatprep.subr.bf16.mxu0 %v4757
    %6692 = vmatpush1.bf16.msra.mxu0 %v4756
    %6693 = vmatprep.subr.bf16.mxu0 %v4765
    %6694 = vmatpush1.bf16.msra.mxu0 %v4764
    %6695 = vmatprep.subr.bf16.mxu0 %v4773
    %6696 = vmatpush1.bf16.msra.mxu0 %v4772
    %6697 = vmatprep.subr.bf16.mxu0 %v4781
    %6698 = vmatpush1.bf16.msra.mxu0 %v4780
    %6699 = vmatprep.subr.bf16.mxu0 %v4789
    %6700 = vmatpush1.bf16.msra.mxu0 %v4788
    %6701 = vmatprep.subr.bf16.mxu0 %v4797
    %6702 = vmatpush1.bf16.msra.mxu0 %v4796
    %6703 = vmatprep.subr.bf16.mxu0 %v4805
    %6704 = vmatpush1.bf16.msra.mxu0 %v4804
    %6705 = vmatprep.mubr.bf16.mxu0 %v2087
    %6706 = vmatmul.mubr.bf16.gmra.mrb[0].mxu0 %v2086
    %v6707 = vpop.f32.mrb[0].mxu0
    %v6708 = vadd.f32 %v6515, %v6707
    %v6709 = vpop.f32.mrb[0].mxu0
    %v6710 = vadd.f32 %v6517, %v6709
    %v6711 = vpop.f32.mrb[0].mxu0
    %v6712 = vadd.f32 %v6519, %v6711
    %v6713 = vpop.f32.mrb[0].mxu0
    %v6714 = vadd.f32 %v6521, %v6713
    %6715 = vmatprep.mubr.bf16.mxu0 %v2095
    %6716 = vmatmul.mubr.bf16.gmra.mrb[0].mxu0 %v2094
    %v6717 = vpop.f32.mrb[0].mxu0
    %v6718 = vadd.f32 %v6525, %v6717
    %v6719 = vpop.f32.mrb[0].mxu0
    %v6720 = vadd.f32 %v6527, %v6719
    %v6721 = vpop.f32.mrb[0].mxu0
    %v6722 = vadd.f32 %v6529, %v6721
    %v6723 = vpop.f32.mrb[0].mxu0
    %v6724 = vadd.f32 %v6531, %v6723
    %6725 = vmatprep.mubr.bf16.mxu0 %v2103
    %6726 = vmatmul.mubr.bf16.gmra.mrb[0].mxu0 %v2102
    %v6727 = vpop.f32.mrb[0].mxu0
    %v6728 = vadd.f32 %v6535, %v6727
    %v6729 = vpop.f32.mrb[0].mxu0
    %v6730 = vadd.f32 %v6537, %v6729
    %v6731 = vpop.f32.mrb[0].mxu0
    %v6732 = vadd.f32 %v6539, %v6731
    %v6733 = vpop.f32.mrb[0].mxu0
    %v6734 = vadd.f32 %v6541, %v6733
    %6735 = vmatprep.mubr.bf16.mxu0 %v2111
    %6736 = vmatmul.mubr.bf16.gmra.mrb[0].mxu0 %v2110
    %v6737 = vpop.f32.mrb[0].mxu0
    %v6738 = vadd.f32 %v6545, %v6737
    %v6739 = vpop.f32.mrb[0].mxu0
    %v6740 = vadd.f32 %v6547, %v6739
    %v6741 = vpop.f32.mrb[0].mxu0
    %v6742 = vadd.f32 %v6549, %v6741
    %v6743 = vpop.f32.mrb[0].mxu0
    %v6744 = vadd.f32 %v6551, %v6743
    %6745 = vmatprep.mubr.bf16.mxu0 %v2119
    %6746 = vmatmul.mubr.bf16.gmra.mrb[0].mxu0 %v2118
    %v6747 = vpop.f32.mrb[0].mxu0
    %v6748 = vadd.f32 %v6555, %v6747
    %v6749 = vpop.f32.mrb[0].mxu0
    %v6750 = vadd.f32 %v6557, %v6749
    %v6751 = vpop.f32.mrb[0].mxu0
    %v6752 = vadd.f32 %v6559, %v6751
    %v6753 = vpop.f32.mrb[0].mxu0
    %v6754 = vadd.f32 %v6561, %v6753
    %6755 = vmatprep.mubr.bf16.mxu0 %v2127
    %6756 = vmatmul.mubr.bf16.gmra.mrb[0].mxu0 %v2126
    %v6757 = vpop.f32.mrb[0].mxu0
    %v6758 = vadd.f32 %v6565, %v6757
    %v6759 = vpop.f32.mrb[0].mxu0
    %v6760 = vadd.f32 %v6567, %v6759
    %v6761 = vpop.f32.mrb[0].mxu0
    %v6762 = vadd.f32 %v6569, %v6761
    %v6763 = vpop.f32.mrb[0].mxu0
    %v6764 = vadd.f32 %v6571, %v6763
    %6765 = vmatprep.mubr.bf16.mxu0 %v2135
    %6766 = vmatmul.mubr.bf16.gmra.mrb[0].mxu0 %v2134
    %v6767 = vpop.f32.mrb[0].mxu0
    %v6768 = vadd.f32 %v6575, %v6767
    %v6769 = vpop.f32.mrb[0].mxu0
    %v6770 = vadd.f32 %v6577, %v6769
    %v6771 = vpop.f32.mrb[0].mxu0
    %v6772 = vadd.f32 %v6579, %v6771
    %v6773 = vpop.f32.mrb[0].mxu0
    %v6774 = vadd.f32 %v6581, %v6773
    %6775 = vmatprep.mubr.bf16.mxu0 %v2143
    %6776 = vmatmul.mubr.bf16.gmra.mrb[0].mxu0 %v2142
    %v6777 = vpop.f32.mrb[0].mxu0
    %v6778 = vadd.f32 %v6585, %v6777
    %v6779 = vpop.f32.mrb[0].mxu0
    %v6780 = vadd.f32 %v6587, %v6779
    %v6781 = vpop.f32.mrb[0].mxu0
    %v6782 = vadd.f32 %v6589, %v6781
    %v6783 = vpop.f32.mrb[0].mxu0
    %v6784 = vadd.f32 %v6591, %v6783
    %6785 = vmatprep.mubr.bf16.mxu0 %v2151
    %6786 = vmatmul.mubr.bf16.gmra.mrb[0].mxu0 %v2150
    %v6787 = vpop.f32.mrb[0].mxu0
    %v6788 = vadd.f32 %v6595, %v6787
    %v6789 = vpop.f32.mrb[0].mxu0
    %v6790 = vadd.f32 %v6597, %v6789
    %v6791 = vpop.f32.mrb[0].mxu0
    %v6792 = vadd.f32 %v6599, %v6791
    %v6793 = vpop.f32.mrb[0].mxu0
    %v6794 = vadd.f32 %v6601, %v6793
    %6795 = vmatprep.mubr.bf16.mxu0 %v2159
    %6796 = vmatmul.mubr.bf16.gmra.mrb[0].mxu0 %v2158
    %v6797 = vpop.f32.mrb[0].mxu0
    %v6798 = vadd.f32 %v6605, %v6797
    %v6799 = vpop.f32.mrb[0].mxu0
    %v6800 = vadd.f32 %v6607, %v6799
    %v6801 = vpop.f32.mrb[0].mxu0
    %v6802 = vadd.f32 %v6609, %v6801
    %v6803 = vpop.f32.mrb[0].mxu0
    %v6804 = vadd.f32 %v6611, %v6803
    %6805 = vmatprep.mubr.bf16.mxu0 %v2167
    %6806 = vmatmul.mubr.bf16.gmra.mrb[0].mxu0 %v2166
    %v6807 = vpop.f32.mrb[0].mxu0
    %v6808 = vadd.f32 %v6615, %v6807
    %v6809 = vpop.f32.mrb[0].mxu0
    %v6810 = vadd.f32 %v6617, %v6809
    %v6811 = vpop.f32.mrb[0].mxu0
    %v6812 = vadd.f32 %v6619, %v6811
    %v6813 = vpop.f32.mrb[0].mxu0
    %v6814 = vadd.f32 %v6621, %v6813
    %6815 = vmatprep.mubr.bf16.mxu0 %v2175
    %6816 = vmatmul.mubr.bf16.gmra.mrb[0].mxu0 %v2174
    %v6817 = vpop.f32.mrb[0].mxu0
    %v6818 = vadd.f32 %v6625, %v6817
    %v6819 = vpop.f32.mrb[0].mxu0
    %v6820 = vadd.f32 %v6627, %v6819
    %v6821 = vpop.f32.mrb[0].mxu0
    %v6822 = vadd.f32 %v6629, %v6821
    %v6823 = vpop.f32.mrb[0].mxu0
    %v6824 = vadd.f32 %v6631, %v6823
    %6825 = vmatprep.mubr.bf16.mxu0 %v2183
    %6826 = vmatmul.mubr.bf16.gmra.mrb[0].mxu0 %v2182
    %v6827 = vpop.f32.mrb[0].mxu0
    %v6828 = vadd.f32 %v6635, %v6827
    %v6829 = vpop.f32.mrb[0].mxu0
    %v6830 = vadd.f32 %v6637, %v6829
    %v6831 = vpop.f32.mrb[0].mxu0
    %v6832 = vadd.f32 %v6639, %v6831
    %v6833 = vpop.f32.mrb[0].mxu0
    %v6834 = vadd.f32 %v6641, %v6833
    %6835 = vmatprep.mubr.bf16.mxu0 %v2191
    %6836 = vmatmul.mubr.bf16.gmra.mrb[0].mxu0 %v2190
    %v6837 = vpop.f32.mrb[0].mxu0
    %v6838 = vadd.f32 %v6645, %v6837
    %v6839 = vpop.f32.mrb[0].mxu0
    %v6840 = vadd.f32 %v6647, %v6839
    %v6841 = vpop.f32.mrb[0].mxu0
    %v6842 = vadd.f32 %v6649, %v6841
    %v6843 = vpop.f32.mrb[0].mxu0
    %v6844 = vadd.f32 %v6651, %v6843
    %6845 = vmatprep.mubr.bf16.mxu0 %v2199
    %6846 = vmatmul.mubr.bf16.gmra.mrb[0].mxu0 %v2198
    %v6847 = vpop.f32.mrb[0].mxu0
    %v6848 = vadd.f32 %v6655, %v6847
    %v6849 = vpop.f32.mrb[0].mxu0
    %v6850 = vadd.f32 %v6657, %v6849
    %v6851 = vpop.f32.mrb[0].mxu0
    %v6852 = vadd.f32 %v6659, %v6851
    %v6853 = vpop.f32.mrb[0].mxu0
    %v6854 = vadd.f32 %v6661, %v6853
    %6855 = vmatprep.mubr.bf16.mxu0 %v2207
    %6856 = vmatmul.mubr.bf16.gmra.mrb[0].mxu0 %v2206
    %v6857 = vpop.f32.mrb[0].mxu0
    %v6858 = vadd.f32 %v6665, %v6857
    %v6859 = vpop.f32.mrb[0].mxu0
    %v6860 = vadd.f32 %v6667, %v6859
    %v6861 = vpop.f32.mrb[0].mxu0
    %v6862 = vadd.f32 %v6669, %v6861
    %v6863 = vpop.f32.mrb[0].mxu0
    %v6864 = vadd.f32 %v6671, %v6863
    %6865 = vdwg.mxu0
    %6866 = vmatprep.subr.bf16.mxu0 %v4303
    %6867 = vmatpush1.bf16.msra.mxu0 %v4302
    %6868 = vmatprep.subr.bf16.mxu0 %v4311
    %6869 = vmatpush1.bf16.msra.mxu0 %v4310
    %6870 = vmatprep.subr.bf16.mxu0 %v4319
    %6871 = vmatpush1.bf16.msra.mxu0 %v4318
    %6872 = vmatprep.subr.bf16.mxu0 %v4327
    %6873 = vmatpush1.bf16.msra.mxu0 %v4326
    %6874 = vmatprep.subr.bf16.mxu0 %v4335
    %6875 = vmatpush1.bf16.msra.mxu0 %v4334
    %6876 = vmatprep.subr.bf16.mxu0 %v4343
    %6877 = vmatpush1.bf16.msra.mxu0 %v4342
    %6878 = vmatprep.subr.bf16.mxu0 %v4351
    %6879 = vmatpush1.bf16.msra.mxu0 %v4350
    %6880 = vmatprep.subr.bf16.mxu0 %v4359
    %6881 = vmatpush1.bf16.msra.mxu0 %v4358
    %6882 = vmatprep.subr.bf16.mxu0 %v4367
    %6883 = vmatpush1.bf16.msra.mxu0 %v4366
    %6884 = vmatprep.subr.bf16.mxu0 %v4375
    %6885 = vmatpush1.bf16.msra.mxu0 %v4374
    %6886 = vmatprep.subr.bf16.mxu0 %v4383
    %6887 = vmatpush1.bf16.msra.mxu0 %v4382
    %6888 = vmatprep.subr.bf16.mxu0 %v4391
    %6889 = vmatpush1.bf16.msra.mxu0 %v4390
    %6890 = vmatprep.subr.bf16.mxu0 %v4399
    %6891 = vmatpush1.bf16.msra.mxu0 %v4398
    %6892 = vmatprep.subr.bf16.mxu0 %v4407
    %6893 = vmatpush1.bf16.msra.mxu0 %v4406
    %6894 = vmatprep.subr.bf16.mxu0 %v4415
    %6895 = vmatpush1.bf16.msra.mxu0 %v4414
    %6896 = vmatprep.subr.bf16.mxu0 %v4423
    %6897 = vmatpush1.bf16.msra.mxu0 %v4422
    %6898 = vmatprep.mubr.bf16.mxu0 %v2081
    %6899 = vmatmul.mubr.bf16.gmra.mrb[0].mxu0 %v2080
    %v6900 = vpop.f32.mrb[0].mxu0
    %v6901 = vadd.f32 %v2741, %v6900
    %v6902 = vpop.f32.mrb[0].mxu0
    %v6903 = vadd.f32 %v2745, %v6902
    %v6904 = vpop.f32.mrb[0].mxu0
    %v6905 = vadd.f32 %v2741, %v6904
    %v6906 = vpop.f32.mrb[0].mxu0
    %v6907 = vadd.f32 %v2745, %v6906
    %6908 = vmatprep.mubr.bf16.mxu0 %v2089
    %6909 = vmatmul.mubr.bf16.gmra.mrb[0].mxu0 %v2088
    %v6910 = vpop.f32.mrb[0].mxu0
    %v6911 = vadd.f32 %v2741, %v6910
    %v6912 = vpop.f32.mrb[0].mxu0
    %v6913 = vadd.f32 %v2745, %v6912
    %v6914 = vpop.f32.mrb[0].mxu0
    %v6915 = vadd.f32 %v2741, %v6914
    %v6916 = vpop.f32.mrb[0].mxu0
    %v6917 = vadd.f32 %v2745, %v6916
    %6918 = vmatprep.mubr.bf16.mxu0 %v2097
    %6919 = vmatmul.mubr.bf16.gmra.mrb[0].mxu0 %v2096
    %v6920 = vpop.f32.mrb[0].mxu0
    %v6921 = vadd.f32 %v2741, %v6920
    %v6922 = vpop.f32.mrb[0].mxu0
    %v6923 = vadd.f32 %v2745, %v6922
    %v6924 = vpop.f32.mrb[0].mxu0
    %v6925 = vadd.f32 %v2741, %v6924
    %v6926 = vpop.f32.mrb[0].mxu0
    %v6927 = vadd.f32 %v2745, %v6926
    %6928 = vmatprep.mubr.bf16.mxu0 %v2105
    %6929 = vmatmul.mubr.bf16.gmra.mrb[0].mxu0 %v2104
    %v6930 = vpop.f32.mrb[0].mxu0
    %v6931 = vadd.f32 %v2741, %v6930
    %v6932 = vpop.f32.mrb[0].mxu0
    %v6933 = vadd.f32 %v2745, %v6932
    %v6934 = vpop.f32.mrb[0].mxu0
    %v6935 = vadd.f32 %v2741, %v6934
    %v6936 = vpop.f32.mrb[0].mxu0
    %v6937 = vadd.f32 %v2745, %v6936
    %6938 = vmatprep.mubr.bf16.mxu0 %v2113
    %6939 = vmatmul.mubr.bf16.gmra.mrb[0].mxu0 %v2112
    %v6940 = vpop.f32.mrb[0].mxu0
    %v6941 = vadd.f32 %v2741, %v6940
    %v6942 = vpop.f32.mrb[0].mxu0
    %v6943 = vadd.f32 %v2745, %v6942
    %v6944 = vpop.f32.mrb[0].mxu0
    %v6945 = vadd.f32 %v2741, %v6944
    %v6946 = vpop.f32.mrb[0].mxu0
    %v6947 = vadd.f32 %v2745, %v6946
    %6948 = vmatprep.mubr.bf16.mxu0 %v2121
    %6949 = vmatmul.mubr.bf16.gmra.mrb[0].mxu0 %v2120
    %v6950 = vpop.f32.mrb[0].mxu0
    %v6951 = vadd.f32 %v2741, %v6950
    %v6952 = vpop.f32.mrb[0].mxu0
    %v6953 = vadd.f32 %v2745, %v6952
    %v6954 = vpop.f32.mrb[0].mxu0
    %v6955 = vadd.f32 %v2741, %v6954
    %v6956 = vpop.f32.mrb[0].mxu0
    %v6957 = vadd.f32 %v2745, %v6956
    %6958 = vmatprep.mubr.bf16.mxu0 %v2129
    %6959 = vmatmul.mubr.bf16.gmra.mrb[0].mxu0 %v2128
    %v6960 = vpop.f32.mrb[0].mxu0
    %v6961 = vadd.f32 %v2741, %v6960
    %v6962 = vpop.f32.mrb[0].mxu0
    %v6963 = vadd.f32 %v2745, %v6962
    %v6964 = vpop.f32.mrb[0].mxu0
    %v6965 = vadd.f32 %v2741, %v6964
    %v6966 = vpop.f32.mrb[0].mxu0
    %v6967 = vadd.f32 %v2745, %v6966
    %6968 = vmatprep.mubr.bf16.mxu0 %v2137
    %6969 = vmatmul.mubr.bf16.gmra.mrb[0].mxu0 %v2136
    %v6970 = vpop.f32.mrb[0].mxu0
    %v6971 = vadd.f32 %v2741, %v6970
    %v6972 = vpop.f32.mrb[0].mxu0
    %v6973 = vadd.f32 %v2745, %v6972
    %v6974 = vpop.f32.mrb[0].mxu0
    %v6975 = vadd.f32 %v2741, %v6974
    %v6976 = vpop.f32.mrb[0].mxu0
    %v6977 = vadd.f32 %v2745, %v6976
    %6978 = vmatprep.mubr.bf16.mxu0 %v2145
    %6979 = vmatmul.mubr.bf16.gmra.mrb[0].mxu0 %v2144
    %v6980 = vpop.f32.mrb[0].mxu0
    %v6981 = vadd.f32 %v2741, %v6980
    %v6982 = vpop.f32.mrb[0].mxu0
    %v6983 = vadd.f32 %v2745, %v6982
    %v6984 = vpop.f32.mrb[0].mxu0
    %v6985 = vadd.f32 %v2741, %v6984
    %v6986 = vpop.f32.mrb[0].mxu0
    %v6987 = vadd.f32 %v2745, %v6986
    %6988 = vmatprep.mubr.bf16.mxu0 %v2153
    %6989 = vmatmul.mubr.bf16.gmra.mrb[0].mxu0 %v2152
    %v6990 = vpop.f32.mrb[0].mxu0
    %v6991 = vadd.f32 %v2741, %v6990
    %v6992 = vpop.f32.mrb[0].mxu0
    %v6993 = vadd.f32 %v2745, %v6992
    %v6994 = vpop.f32.mrb[0].mxu0
    %v6995 = vadd.f32 %v2741, %v6994
    %v6996 = vpop.f32.mrb[0].mxu0
    %v6997 = vadd.f32 %v2745, %v6996
    %6998 = vmatprep.mubr.bf16.mxu0 %v2161
    %6999 = vmatmul.mubr.bf16.gmra.mrb[0].mxu0 %v2160
    %v7000 = vpop.f32.mrb[0].mxu0
    %v7001 = vadd.f32 %v2741, %v7000
    %v7002 = vpop.f32.mrb[0].mxu0
    %v7003 = vadd.f32 %v2745, %v7002
    %v7004 = vpop.f32.mrb[0].mxu0
    %v7005 = vadd.f32 %v2741, %v7004
    %v7006 = vpop.f32.mrb[0].mxu0
    %v7007 = vadd.f32 %v2745, %v7006
    %7008 = vmatprep.mubr.bf16.mxu0 %v2169
    %7009 = vmatmul.mubr.bf16.gmra.mrb[0].mxu0 %v2168
    %v7010 = vpop.f32.mrb[0].mxu0
    %v7011 = vadd.f32 %v2741, %v7010
    %v7012 = vpop.f32.mrb[0].mxu0
    %v7013 = vadd.f32 %v2745, %v7012
    %v7014 = vpop.f32.mrb[0].mxu0
    %v7015 = vadd.f32 %v2741, %v7014
    %v7016 = vpop.f32.mrb[0].mxu0
    %v7017 = vadd.f32 %v2745, %v7016
    %7018 = vmatprep.mubr.bf16.mxu0 %v2177
    %7019 = vmatmul.mubr.bf16.gmra.mrb[0].mxu0 %v2176
    %v7020 = vpop.f32.mrb[0].mxu0
    %v7021 = vadd.f32 %v2741, %v7020
    %v7022 = vpop.f32.mrb[0].mxu0
    %v7023 = vadd.f32 %v2745, %v7022
    %v7024 = vpop.f32.mrb[0].mxu0
    %v7025 = vadd.f32 %v2741, %v7024
    %v7026 = vpop.f32.mrb[0].mxu0
    %v7027 = vadd.f32 %v2745, %v7026
    %7028 = vmatprep.mubr.bf16.mxu0 %v2185
    %7029 = vmatmul.mubr.bf16.gmra.mrb[0].mxu0 %v2184
    %v7030 = vpop.f32.mrb[0].mxu0
    %v7031 = vadd.f32 %v2741, %v7030
    %v7032 = vpop.f32.mrb[0].mxu0
    %v7033 = vadd.f32 %v2745, %v7032
    %v7034 = vpop.f32.mrb[0].mxu0
    %v7035 = vadd.f32 %v2741, %v7034
    %v7036 = vpop.f32.mrb[0].mxu0
    %v7037 = vadd.f32 %v2745, %v7036
    %7038 = vmatprep.mubr.bf16.mxu0 %v2193
    %7039 = vmatmul.mubr.bf16.gmra.mrb[0].mxu0 %v2192
    %v7040 = vpop.f32.mrb[0].mxu0
    %v7041 = vadd.f32 %v2741, %v7040
    %v7042 = vpop.f32.mrb[0].mxu0
    %v7043 = vadd.f32 %v2745, %v7042
    %v7044 = vpop.f32.mrb[0].mxu0
    %v7045 = vadd.f32 %v2741, %v7044
    %v7046 = vpop.f32.mrb[0].mxu0
    %v7047 = vadd.f32 %v2745, %v7046
    %7048 = vmatprep.mubr.bf16.mxu0 %v2201
    %7049 = vmatmul.mubr.bf16.gmra.mrb[0].mxu0 %v2200
    %v7050 = vpop.f32.mrb[0].mxu0
    %v7051 = vadd.f32 %v2741, %v7050
    %v7052 = vpop.f32.mrb[0].mxu0
    %v7053 = vadd.f32 %v2745, %v7052
    %v7054 = vpop.f32.mrb[0].mxu0
    %v7055 = vadd.f32 %v2741, %v7054
    %v7056 = vpop.f32.mrb[0].mxu0
    %v7057 = vadd.f32 %v2745, %v7056
    %7058 = vdwg.mxu0
    %7059 = vmatprep.subr.bf16.mxu0 %v4431
    %7060 = vmatpush1.bf16.msra.mxu0 %v4430
    %7061 = vmatprep.subr.bf16.mxu0 %v4439
    %7062 = vmatpush1.bf16.msra.mxu0 %v4438
    %7063 = vmatprep.subr.bf16.mxu0 %v4447
    %7064 = vmatpush1.bf16.msra.mxu0 %v4446
    %7065 = vmatprep.subr.bf16.mxu0 %v4455
    %7066 = vmatpush1.bf16.msra.mxu0 %v4454
    %7067 = vmatprep.subr.bf16.mxu0 %v4463
    %7068 = vmatpush1.bf16.msra.mxu0 %v4462
    %7069 = vmatprep.subr.bf16.mxu0 %v4471
    %7070 = vmatpush1.bf16.msra.mxu0 %v4470
    %7071 = vmatprep.subr.bf16.mxu0 %v4479
    %7072 = vmatpush1.bf16.msra.mxu0 %v4478
    %7073 = vmatprep.subr.bf16.mxu0 %v4487
    %7074 = vmatpush1.bf16.msra.mxu0 %v4486
    %7075 = vmatprep.subr.bf16.mxu0 %v4495
    %7076 = vmatpush1.bf16.msra.mxu0 %v4494
    %7077 = vmatprep.subr.bf16.mxu0 %v4503
    %7078 = vmatpush1.bf16.msra.mxu0 %v4502
    %7079 = vmatprep.subr.bf16.mxu0 %v4511
    %7080 = vmatpush1.bf16.msra.mxu0 %v4510
    %7081 = vmatprep.subr.bf16.mxu0 %v4519
    %7082 = vmatpush1.bf16.msra.mxu0 %v4518
    %7083 = vmatprep.subr.bf16.mxu0 %v4527
    %7084 = vmatpush1.bf16.msra.mxu0 %v4526
    %7085 = vmatprep.subr.bf16.mxu0 %v4535
    %7086 = vmatpush1.bf16.msra.mxu0 %v4534
    %7087 = vmatprep.subr.bf16.mxu0 %v4543
    %7088 = vmatpush1.bf16.msra.mxu0 %v4542
    %7089 = vmatprep.subr.bf16.mxu0 %v4551
    %7090 = vmatpush1.bf16.msra.mxu0 %v4550
    %7091 = vmatprep.mubr.bf16.mxu0 %v2083
    %7092 = vmatmul.mubr.bf16.gmra.mrb[0].mxu0 %v2082
    %v7093 = vpop.f32.mrb[0].mxu0
    %v7094 = vadd.f32 %v6901, %v7093
    %v7095 = vpop.f32.mrb[0].mxu0
    %v7096 = vadd.f32 %v6903, %v7095
    %v7097 = vpop.f32.mrb[0].mxu0
    %v7098 = vadd.f32 %v6905, %v7097
    %v7099 = vpop.f32.mrb[0].mxu0
    %v7100 = vadd.f32 %v6907, %v7099
    %7101 = vmatprep.mubr.bf16.mxu0 %v2091
    %7102 = vmatmul.mubr.bf16.gmra.mrb[0].mxu0 %v2090
    %v7103 = vpop.f32.mrb[0].mxu0
    %v7104 = vadd.f32 %v6911, %v7103
    %v7105 = vpop.f32.mrb[0].mxu0
    %v7106 = vadd.f32 %v6913, %v7105
    %v7107 = vpop.f32.mrb[0].mxu0
    %v7108 = vadd.f32 %v6915, %v7107
    %v7109 = vpop.f32.mrb[0].mxu0
    %v7110 = vadd.f32 %v6917, %v7109
    %7111 = vmatprep.mubr.bf16.mxu0 %v2099
    %7112 = vmatmul.mubr.bf16.gmra.mrb[0].mxu0 %v2098
    %v7113 = vpop.f32.mrb[0].mxu0
    %v7114 = vadd.f32 %v6921, %v7113
    %v7115 = vpop.f32.mrb[0].mxu0
    %v7116 = vadd.f32 %v6923, %v7115
    %v7117 = vpop.f32.mrb[0].mxu0
    %v7118 = vadd.f32 %v6925, %v7117
    %v7119 = vpop.f32.mrb[0].mxu0
    %v7120 = vadd.f32 %v6927, %v7119
    %7121 = vmatprep.mubr.bf16.mxu0 %v2107
    %7122 = vmatmul.mubr.bf16.gmra.mrb[0].mxu0 %v2106
    %v7123 = vpop.f32.mrb[0].mxu0
    %v7124 = vadd.f32 %v6931, %v7123
    %v7125 = vpop.f32.mrb[0].mxu0
    %v7126 = vadd.f32 %v6933, %v7125
    %v7127 = vpop.f32.mrb[0].mxu0
    %v7128 = vadd.f32 %v6935, %v7127
    %v7129 = vpop.f32.mrb[0].mxu0
    %v7130 = vadd.f32 %v6937, %v7129
    %7131 = vmatprep.mubr.bf16.mxu0 %v2115
    %7132 = vmatmul.mubr.bf16.gmra.mrb[0].mxu0 %v2114
    %v7133 = vpop.f32.mrb[0].mxu0
    %v7134 = vadd.f32 %v6941, %v7133
    %v7135 = vpop.f32.mrb[0].mxu0
    %v7136 = vadd.f32 %v6943, %v7135
    %v7137 = vpop.f32.mrb[0].mxu0
    %v7138 = vadd.f32 %v6945, %v7137
    %v7139 = vpop.f32.mrb[0].mxu0
    %v7140 = vadd.f32 %v6947, %v7139
    %7141 = vmatprep.mubr.bf16.mxu0 %v2123
    %7142 = vmatmul.mubr.bf16.gmra.mrb[0].mxu0 %v2122
    %v7143 = vpop.f32.mrb[0].mxu0
    %v7144 = vadd.f32 %v6951, %v7143
    %v7145 = vpop.f32.mrb[0].mxu0
    %v7146 = vadd.f32 %v6953, %v7145
    %v7147 = vpop.f32.mrb[0].mxu0
    %v7148 = vadd.f32 %v6955, %v7147
    %v7149 = vpop.f32.mrb[0].mxu0
    %v7150 = vadd.f32 %v6957, %v7149
    %7151 = vmatprep.mubr.bf16.mxu0 %v2131
    %7152 = vmatmul.mubr.bf16.gmra.mrb[0].mxu0 %v2130
    %v7153 = vpop.f32.mrb[0].mxu0
    %v7154 = vadd.f32 %v6961, %v7153
    %v7155 = vpop.f32.mrb[0].mxu0
    %v7156 = vadd.f32 %v6963, %v7155
    %v7157 = vpop.f32.mrb[0].mxu0
    %v7158 = vadd.f32 %v6965, %v7157
    %v7159 = vpop.f32.mrb[0].mxu0
    %v7160 = vadd.f32 %v6967, %v7159
    %7161 = vmatprep.mubr.bf16.mxu0 %v2139
    %7162 = vmatmul.mubr.bf16.gmra.mrb[0].mxu0 %v2138
    %v7163 = vpop.f32.mrb[0].mxu0
    %v7164 = vadd.f32 %v6971, %v7163
    %v7165 = vpop.f32.mrb[0].mxu0
    %v7166 = vadd.f32 %v6973, %v7165
    %v7167 = vpop.f32.mrb[0].mxu0
    %v7168 = vadd.f32 %v6975, %v7167
    %v7169 = vpop.f32.mrb[0].mxu0
    %v7170 = vadd.f32 %v6977, %v7169
    %7171 = vmatprep.mubr.bf16.mxu0 %v2147
    %7172 = vmatmul.mubr.bf16.gmra.mrb[0].mxu0 %v2146
    %v7173 = vpop.f32.mrb[0].mxu0
    %v7174 = vadd.f32 %v6981, %v7173
    %v7175 = vpop.f32.mrb[0].mxu0
    %v7176 = vadd.f32 %v6983, %v7175
    %v7177 = vpop.f32.mrb[0].mxu0
    %v7178 = vadd.f32 %v6985, %v7177
    %v7179 = vpop.f32.mrb[0].mxu0
    %v7180 = vadd.f32 %v6987, %v7179
    %7181 = vmatprep.mubr.bf16.mxu0 %v2155
    %7182 = vmatmul.mubr.bf16.gmra.mrb[0].mxu0 %v2154
    %v7183 = vpop.f32.mrb[0].mxu0
    %v7184 = vadd.f32 %v6991, %v7183
    %v7185 = vpop.f32.mrb[0].mxu0
    %v7186 = vadd.f32 %v6993, %v7185
    %v7187 = vpop.f32.mrb[0].mxu0
    %v7188 = vadd.f32 %v6995, %v7187
    %v7189 = vpop.f32.mrb[0].mxu0
    %v7190 = vadd.f32 %v6997, %v7189
    %7191 = vmatprep.mubr.bf16.mxu0 %v2163
    %7192 = vmatmul.mubr.bf16.gmra.mrb[0].mxu0 %v2162
    %v7193 = vpop.f32.mrb[0].mxu0
    %v7194 = vadd.f32 %v7001, %v7193
    %v7195 = vpop.f32.mrb[0].mxu0
    %v7196 = vadd.f32 %v7003, %v7195
    %v7197 = vpop.f32.mrb[0].mxu0
    %v7198 = vadd.f32 %v7005, %v7197
    %v7199 = vpop.f32.mrb[0].mxu0
    %v7200 = vadd.f32 %v7007, %v7199
    %7201 = vmatprep.mubr.bf16.mxu0 %v2171
    %7202 = vmatmul.mubr.bf16.gmra.mrb[0].mxu0 %v2170
    %v7203 = vpop.f32.mrb[0].mxu0
    %v7204 = vadd.f32 %v7011, %v7203
    %v7205 = vpop.f32.mrb[0].mxu0
    %v7206 = vadd.f32 %v7013, %v7205
    %v7207 = vpop.f32.mrb[0].mxu0
    %v7208 = vadd.f32 %v7015, %v7207
    %v7209 = vpop.f32.mrb[0].mxu0
    %v7210 = vadd.f32 %v7017, %v7209
    %7211 = vmatprep.mubr.bf16.mxu0 %v2179
    %7212 = vmatmul.mubr.bf16.gmra.mrb[0].mxu0 %v2178
    %v7213 = vpop.f32.mrb[0].mxu0
    %v7214 = vadd.f32 %v7021, %v7213
    %v7215 = vpop.f32.mrb[0].mxu0
    %v7216 = vadd.f32 %v7023, %v7215
    %v7217 = vpop.f32.mrb[0].mxu0
    %v7218 = vadd.f32 %v7025, %v7217
    %v7219 = vpop.f32.mrb[0].mxu0
    %v7220 = vadd.f32 %v7027, %v7219
    %7221 = vmatprep.mubr.bf16.mxu0 %v2187
    %7222 = vmatmul.mubr.bf16.gmra.mrb[0].mxu0 %v2186
    %v7223 = vpop.f32.mrb[0].mxu0
    %v7224 = vadd.f32 %v7031, %v7223
    %v7225 = vpop.f32.mrb[0].mxu0
    %v7226 = vadd.f32 %v7033, %v7225
    %v7227 = vpop.f32.mrb[0].mxu0
    %v7228 = vadd.f32 %v7035, %v7227
    %v7229 = vpop.f32.mrb[0].mxu0
    %v7230 = vadd.f32 %v7037, %v7229
    %7231 = vmatprep.mubr.bf16.mxu0 %v2195
    %7232 = vmatmul.mubr.bf16.gmra.mrb[0].mxu0 %v2194
    %v7233 = vpop.f32.mrb[0].mxu0
    %v7234 = vadd.f32 %v7041, %v7233
    %v7235 = vpop.f32.mrb[0].mxu0
    %v7236 = vadd.f32 %v7043, %v7235
    %v7237 = vpop.f32.mrb[0].mxu0
    %v7238 = vadd.f32 %v7045, %v7237
    %v7239 = vpop.f32.mrb[0].mxu0
    %v7240 = vadd.f32 %v7047, %v7239
    %7241 = vmatprep.mubr.bf16.mxu0 %v2203
    %7242 = vmatmul.mubr.bf16.gmra.mrb[0].mxu0 %v2202
    %v7243 = vpop.f32.mrb[0].mxu0
    %v7244 = vadd.f32 %v7051, %v7243
    %v7245 = vpop.f32.mrb[0].mxu0
    %v7246 = vadd.f32 %v7053, %v7245
    %v7247 = vpop.f32.mrb[0].mxu0
    %v7248 = vadd.f32 %v7055, %v7247
    %v7249 = vpop.f32.mrb[0].mxu0
    %v7250 = vadd.f32 %v7057, %v7249
    %7251 = vdwg.mxu0
    %7252 = vmatprep.subr.bf16.mxu0 %v4559
    %7253 = vmatpush1.bf16.msra.mxu0 %v4558
    %7254 = vmatprep.subr.bf16.mxu0 %v4567
    %7255 = vmatpush1.bf16.msra.mxu0 %v4566
    %7256 = vmatprep.subr.bf16.mxu0 %v4575
    %7257 = vmatpush1.bf16.msra.mxu0 %v4574
    %7258 = vmatprep.subr.bf16.mxu0 %v4583
    %7259 = vmatpush1.bf16.msra.mxu0 %v4582
    %7260 = vmatprep.subr.bf16.mxu0 %v4591
    %7261 = vmatpush1.bf16.msra.mxu0 %v4590
    %7262 = vmatprep.subr.bf16.mxu0 %v4599
    %7263 = vmatpush1.bf16.msra.mxu0 %v4598
    %7264 = vmatprep.subr.bf16.mxu0 %v4607
    %7265 = vmatpush1.bf16.msra.mxu0 %v4606
    %7266 = vmatprep.subr.bf16.mxu0 %v4615
    %7267 = vmatpush1.bf16.msra.mxu0 %v4614
    %7268 = vmatprep.subr.bf16.mxu0 %v4623
    %7269 = vmatpush1.bf16.msra.mxu0 %v4622
    %7270 = vmatprep.subr.bf16.mxu0 %v4631
    %7271 = vmatpush1.bf16.msra.mxu0 %v4630
    %7272 = vmatprep.subr.bf16.mxu0 %v4639
    %7273 = vmatpush1.bf16.msra.mxu0 %v4638
    %7274 = vmatprep.subr.bf16.mxu0 %v4647
    %7275 = vmatpush1.bf16.msra.mxu0 %v4646
    %7276 = vmatprep.subr.bf16.mxu0 %v4655
    %7277 = vmatpush1.bf16.msra.mxu0 %v4654
    %7278 = vmatprep.subr.bf16.mxu0 %v4663
    %7279 = vmatpush1.bf16.msra.mxu0 %v4662
    %7280 = vmatprep.subr.bf16.mxu0 %v4671
    %7281 = vmatpush1.bf16.msra.mxu0 %v4670
    %7282 = vmatprep.subr.bf16.mxu0 %v4679
    %7283 = vmatpush1.bf16.msra.mxu0 %v4678
    %7284 = vmatprep.mubr.bf16.mxu0 %v2085
    %7285 = vmatmul.mubr.bf16.gmra.mrb[0].mxu0 %v2084
    %v7286 = vpop.f32.mrb[0].mxu0
    %v7287 = vadd.f32 %v7094, %v7286
    %v7288 = vpop.f32.mrb[0].mxu0
    %v7289 = vadd.f32 %v7096, %v7288
    %v7290 = vpop.f32.mrb[0].mxu0
    %v7291 = vadd.f32 %v7098, %v7290
    %v7292 = vpop.f32.mrb[0].mxu0
    %v7293 = vadd.f32 %v7100, %v7292
    %7294 = vmatprep.mubr.bf16.mxu0 %v2093
    %7295 = vmatmul.mubr.bf16.gmra.mrb[0].mxu0 %v2092
    %v7296 = vpop.f32.mrb[0].mxu0
    %v7297 = vadd.f32 %v7104, %v7296
    %v7298 = vpop.f32.mrb[0].mxu0
    %v7299 = vadd.f32 %v7106, %v7298
    %v7300 = vpop.f32.mrb[0].mxu0
    %v7301 = vadd.f32 %v7108, %v7300
    %v7302 = vpop.f32.mrb[0].mxu0
    %v7303 = vadd.f32 %v7110, %v7302
    %7304 = vmatprep.mubr.bf16.mxu0 %v2101
    %7305 = vmatmul.mubr.bf16.gmra.mrb[0].mxu0 %v2100
    %v7306 = vpop.f32.mrb[0].mxu0
    %v7307 = vadd.f32 %v7114, %v7306
    %v7308 = vpop.f32.mrb[0].mxu0
    %v7309 = vadd.f32 %v7116, %v7308
    %v7310 = vpop.f32.mrb[0].mxu0
    %v7311 = vadd.f32 %v7118, %v7310
    %v7312 = vpop.f32.mrb[0].mxu0
    %v7313 = vadd.f32 %v7120, %v7312
    %7314 = vmatprep.mubr.bf16.mxu0 %v2109
    %7315 = vmatmul.mubr.bf16.gmra.mrb[0].mxu0 %v2108
    %v7316 = vpop.f32.mrb[0].mxu0
    %v7317 = vadd.f32 %v7124, %v7316
    %v7318 = vpop.f32.mrb[0].mxu0
    %v7319 = vadd.f32 %v7126, %v7318
    %v7320 = vpop.f32.mrb[0].mxu0
    %v7321 = vadd.f32 %v7128, %v7320
    %v7322 = vpop.f32.mrb[0].mxu0
    %v7323 = vadd.f32 %v7130, %v7322
    %7324 = vmatprep.mubr.bf16.mxu0 %v2117
    %7325 = vmatmul.mubr.bf16.gmra.mrb[0].mxu0 %v2116
    %v7326 = vpop.f32.mrb[0].mxu0
    %v7327 = vadd.f32 %v7134, %v7326
    %v7328 = vpop.f32.mrb[0].mxu0
    %v7329 = vadd.f32 %v7136, %v7328
    %v7330 = vpop.f32.mrb[0].mxu0
    %v7331 = vadd.f32 %v7138, %v7330
    %v7332 = vpop.f32.mrb[0].mxu0
    %v7333 = vadd.f32 %v7140, %v7332
    %7334 = vmatprep.mubr.bf16.mxu0 %v2125
    %7335 = vmatmul.mubr.bf16.gmra.mrb[0].mxu0 %v2124
    %v7336 = vpop.f32.mrb[0].mxu0
    %v7337 = vadd.f32 %v7144, %v7336
    %v7338 = vpop.f32.mrb[0].mxu0
    %v7339 = vadd.f32 %v7146, %v7338
    %v7340 = vpop.f32.mrb[0].mxu0
    %v7341 = vadd.f32 %v7148, %v7340
    %v7342 = vpop.f32.mrb[0].mxu0
    %v7343 = vadd.f32 %v7150, %v7342
    %7344 = vmatprep.mubr.bf16.mxu0 %v2133
    %7345 = vmatmul.mubr.bf16.gmra.mrb[0].mxu0 %v2132
    %v7346 = vpop.f32.mrb[0].mxu0
    %v7347 = vadd.f32 %v7154, %v7346
    %v7348 = vpop.f32.mrb[0].mxu0
    %v7349 = vadd.f32 %v7156, %v7348
    %v7350 = vpop.f32.mrb[0].mxu0
    %v7351 = vadd.f32 %v7158, %v7350
    %v7352 = vpop.f32.mrb[0].mxu0
    %v7353 = vadd.f32 %v7160, %v7352
    %7354 = vmatprep.mubr.bf16.mxu0 %v2141
    %7355 = vmatmul.mubr.bf16.gmra.mrb[0].mxu0 %v2140
    %v7356 = vpop.f32.mrb[0].mxu0
    %v7357 = vadd.f32 %v7164, %v7356
    %v7358 = vpop.f32.mrb[0].mxu0
    %v7359 = vadd.f32 %v7166, %v7358
    %v7360 = vpop.f32.mrb[0].mxu0
    %v7361 = vadd.f32 %v7168, %v7360
    %v7362 = vpop.f32.mrb[0].mxu0
    %v7363 = vadd.f32 %v7170, %v7362
    %7364 = vmatprep.mubr.bf16.mxu0 %v2149
    %7365 = vmatmul.mubr.bf16.gmra.mrb[0].mxu0 %v2148
    %v7366 = vpop.f32.mrb[0].mxu0
    %v7367 = vadd.f32 %v7174, %v7366
    %v7368 = vpop.f32.mrb[0].mxu0
    %v7369 = vadd.f32 %v7176, %v7368
    %v7370 = vpop.f32.mrb[0].mxu0
    %v7371 = vadd.f32 %v7178, %v7370
    %v7372 = vpop.f32.mrb[0].mxu0
    %v7373 = vadd.f32 %v7180, %v7372
    %7374 = vmatprep.mubr.bf16.mxu0 %v2157
    %7375 = vmatmul.mubr.bf16.gmra.mrb[0].mxu0 %v2156
    %v7376 = vpop.f32.mrb[0].mxu0
    %v7377 = vadd.f32 %v7184, %v7376
    %v7378 = vpop.f32.mrb[0].mxu0
    %v7379 = vadd.f32 %v7186, %v7378
    %v7380 = vpop.f32.mrb[0].mxu0
    %v7381 = vadd.f32 %v7188, %v7380
    %v7382 = vpop.f32.mrb[0].mxu0
    %v7383 = vadd.f32 %v7190, %v7382
    %7384 = vmatprep.mubr.bf16.mxu0 %v2165
    %7385 = vmatmul.mubr.bf16.gmra.mrb[0].mxu0 %v2164
    %v7386 = vpop.f32.mrb[0].mxu0
    %v7387 = vadd.f32 %v7194, %v7386
    %v7388 = vpop.f32.mrb[0].mxu0
    %v7389 = vadd.f32 %v7196, %v7388
    %v7390 = vpop.f32.mrb[0].mxu0
    %v7391 = vadd.f32 %v7198, %v7390
    %v7392 = vpop.f32.mrb[0].mxu0
    %v7393 = vadd.f32 %v7200, %v7392
    %7394 = vmatprep.mubr.bf16.mxu0 %v2173
    %7395 = vmatmul.mubr.bf16.gmra.mrb[0].mxu0 %v2172
    %v7396 = vpop.f32.mrb[0].mxu0
    %v7397 = vadd.f32 %v7204, %v7396
    %v7398 = vpop.f32.mrb[0].mxu0
    %v7399 = vadd.f32 %v7206, %v7398
    %v7400 = vpop.f32.mrb[0].mxu0
    %v7401 = vadd.f32 %v7208, %v7400
    %v7402 = vpop.f32.mrb[0].mxu0
    %v7403 = vadd.f32 %v7210, %v7402
    %7404 = vmatprep.mubr.bf16.mxu0 %v2181
    %7405 = vmatmul.mubr.bf16.gmra.mrb[0].mxu0 %v2180
    %v7406 = vpop.f32.mrb[0].mxu0
    %v7407 = vadd.f32 %v7214, %v7406
    %v7408 = vpop.f32.mrb[0].mxu0
    %v7409 = vadd.f32 %v7216, %v7408
    %v7410 = vpop.f32.mrb[0].mxu0
    %v7411 = vadd.f32 %v7218, %v7410
    %v7412 = vpop.f32.mrb[0].mxu0
    %v7413 = vadd.f32 %v7220, %v7412
    %7414 = vmatprep.mubr.bf16.mxu0 %v2189
    %7415 = vmatmul.mubr.bf16.gmra.mrb[0].mxu0 %v2188
    %v7416 = vpop.f32.mrb[0].mxu0
    %v7417 = vadd.f32 %v7224, %v7416
    %v7418 = vpop.f32.mrb[0].mxu0
    %v7419 = vadd.f32 %v7226, %v7418
    %v7420 = vpop.f32.mrb[0].mxu0
    %v7421 = vadd.f32 %v7228, %v7420
    %v7422 = vpop.f32.mrb[0].mxu0
    %v7423 = vadd.f32 %v7230, %v7422
    %7424 = vmatprep.mubr.bf16.mxu0 %v2197
    %7425 = vmatmul.mubr.bf16.gmra.mrb[0].mxu0 %v2196
    %v7426 = vpop.f32.mrb[0].mxu0
    %v7427 = vadd.f32 %v7234, %v7426
    %v7428 = vpop.f32.mrb[0].mxu0
    %v7429 = vadd.f32 %v7236, %v7428
    %v7430 = vpop.f32.mrb[0].mxu0
    %v7431 = vadd.f32 %v7238, %v7430
    %v7432 = vpop.f32.mrb[0].mxu0
    %v7433 = vadd.f32 %v7240, %v7432
    %7434 = vmatprep.mubr.bf16.mxu0 %v2205
    %7435 = vmatmul.mubr.bf16.gmra.mrb[0].mxu0 %v2204
    %v7436 = vpop.f32.mrb[0].mxu0
    %v7437 = vadd.f32 %v7244, %v7436
    %v7438 = vpop.f32.mrb[0].mxu0
    %v7439 = vadd.f32 %v7246, %v7438
    %v7440 = vpop.f32.mrb[0].mxu0
    %v7441 = vadd.f32 %v7248, %v7440
    %v7442 = vpop.f32.mrb[0].mxu0
    %v7443 = vadd.f32 %v7250, %v7442
    %7444 = vdwg.mxu0
    %7445 = vmatprep.subr.bf16.mxu0 %v4687
    %7446 = vmatpush1.bf16.msra.mxu0 %v4686
    %7447 = vmatprep.subr.bf16.mxu0 %v4695
    %7448 = vmatpush1.bf16.msra.mxu0 %v4694
    %7449 = vmatprep.subr.bf16.mxu0 %v4703
    %7450 = vmatpush1.bf16.msra.mxu0 %v4702
    %7451 = vmatprep.subr.bf16.mxu0 %v4711
    %7452 = vmatpush1.bf16.msra.mxu0 %v4710
    %7453 = vmatprep.subr.bf16.mxu0 %v4719
    %7454 = vmatpush1.bf16.msra.mxu0 %v4718
    %7455 = vmatprep.subr.bf16.mxu0 %v4727
    %7456 = vmatpush1.bf16.msra.mxu0 %v4726
    %7457 = vmatprep.subr.bf16.mxu0 %v4735
    %7458 = vmatpush1.bf16.msra.mxu0 %v4734
    %7459 = vmatprep.subr.bf16.mxu0 %v4743
    %7460 = vmatpush1.bf16.msra.mxu0 %v4742
    %7461 = vmatprep.subr.bf16.mxu0 %v4751
    %7462 = vmatpush1.bf16.msra.mxu0 %v4750
    %7463 = vmatprep.subr.bf16.mxu0 %v4759
    %7464 = vmatpush1.bf16.msra.mxu0 %v4758
    %7465 = vmatprep.subr.bf16.mxu0 %v4767
    %7466 = vmatpush1.bf16.msra.mxu0 %v4766
    %7467 = vmatprep.subr.bf16.mxu0 %v4775
    %7468 = vmatpush1.bf16.msra.mxu0 %v4774
    %7469 = vmatprep.subr.bf16.mxu0 %v4783
    %7470 = vmatpush1.bf16.msra.mxu0 %v4782
    %7471 = vmatprep.subr.bf16.mxu0 %v4791
    %7472 = vmatpush1.bf16.msra.mxu0 %v4790
    %7473 = vmatprep.subr.bf16.mxu0 %v4799
    %7474 = vmatpush1.bf16.msra.mxu0 %v4798
    %7475 = vmatprep.subr.bf16.mxu0 %v4807
    %7476 = vmatpush1.bf16.msra.mxu0 %v4806
    %7477 = vmatprep.mubr.bf16.mxu0 %v2087
    %7478 = vmatmul.mubr.bf16.gmra.mrb[0].mxu0 %v2086
    %v7479 = vpop.f32.mrb[0].mxu0
    %v7480 = vadd.f32 %v7287, %v7479
    %v7481 = vpop.f32.mrb[0].mxu0
    %v7482 = vadd.f32 %v7289, %v7481
    %v7483 = vpop.f32.mrb[0].mxu0
    %v7484 = vadd.f32 %v7291, %v7483
    %v7485 = vpop.f32.mrb[0].mxu0
    %v7486 = vadd.f32 %v7293, %v7485
    %7487 = vmatprep.mubr.bf16.mxu0 %v2095
    %7488 = vmatmul.mubr.bf16.gmra.mrb[0].mxu0 %v2094
    %v7489 = vpop.f32.mrb[0].mxu0
    %v7490 = vadd.f32 %v7297, %v7489
    %v7491 = vpop.f32.mrb[0].mxu0
    %v7492 = vadd.f32 %v7299, %v7491
    %v7493 = vpop.f32.mrb[0].mxu0
    %v7494 = vadd.f32 %v7301, %v7493
    %v7495 = vpop.f32.mrb[0].mxu0
    %v7496 = vadd.f32 %v7303, %v7495
    %7497 = vmatprep.mubr.bf16.mxu0 %v2103
    %7498 = vmatmul.mubr.bf16.gmra.mrb[0].mxu0 %v2102
    %v7499 = vpop.f32.mrb[0].mxu0
    %v7500 = vadd.f32 %v7307, %v7499
    %v7501 = vpop.f32.mrb[0].mxu0
    %v7502 = vadd.f32 %v7309, %v7501
    %v7503 = vpop.f32.mrb[0].mxu0
    %v7504 = vadd.f32 %v7311, %v7503
    %v7505 = vpop.f32.mrb[0].mxu0
    %v7506 = vadd.f32 %v7313, %v7505
    %7507 = vmatprep.mubr.bf16.mxu0 %v2111
    %7508 = vmatmul.mubr.bf16.gmra.mrb[0].mxu0 %v2110
    %v7509 = vpop.f32.mrb[0].mxu0
    %v7510 = vadd.f32 %v7317, %v7509
    %v7511 = vpop.f32.mrb[0].mxu0
    %v7512 = vadd.f32 %v7319, %v7511
    %v7513 = vpop.f32.mrb[0].mxu0
    %v7514 = vadd.f32 %v7321, %v7513
    %v7515 = vpop.f32.mrb[0].mxu0
    %v7516 = vadd.f32 %v7323, %v7515
    %7517 = vmatprep.mubr.bf16.mxu0 %v2119
    %7518 = vmatmul.mubr.bf16.gmra.mrb[0].mxu0 %v2118
    %v7519 = vpop.f32.mrb[0].mxu0
    %v7520 = vadd.f32 %v7327, %v7519
    %v7521 = vpop.f32.mrb[0].mxu0
    %v7522 = vadd.f32 %v7329, %v7521
    %v7523 = vpop.f32.mrb[0].mxu0
    %v7524 = vadd.f32 %v7331, %v7523
    %v7525 = vpop.f32.mrb[0].mxu0
    %v7526 = vadd.f32 %v7333, %v7525
    %7527 = vmatprep.mubr.bf16.mxu0 %v2127
    %7528 = vmatmul.mubr.bf16.gmra.mrb[0].mxu0 %v2126
    %v7529 = vpop.f32.mrb[0].mxu0
    %v7530 = vadd.f32 %v7337, %v7529
    %v7531 = vpop.f32.mrb[0].mxu0
    %v7532 = vadd.f32 %v7339, %v7531
    %v7533 = vpop.f32.mrb[0].mxu0
    %v7534 = vadd.f32 %v7341, %v7533
    %v7535 = vpop.f32.mrb[0].mxu0
    %v7536 = vadd.f32 %v7343, %v7535
    %7537 = vmatprep.mubr.bf16.mxu0 %v2135
    %7538 = vmatmul.mubr.bf16.gmra.mrb[0].mxu0 %v2134
    %v7539 = vpop.f32.mrb[0].mxu0
    %v7540 = vadd.f32 %v7347, %v7539
    %v7541 = vpop.f32.mrb[0].mxu0
    %v7542 = vadd.f32 %v7349, %v7541
    %v7543 = vpop.f32.mrb[0].mxu0
    %v7544 = vadd.f32 %v7351, %v7543
    %v7545 = vpop.f32.mrb[0].mxu0
    %v7546 = vadd.f32 %v7353, %v7545
    %7547 = vmatprep.mubr.bf16.mxu0 %v2143
    %7548 = vmatmul.mubr.bf16.gmra.mrb[0].mxu0 %v2142
    %v7549 = vpop.f32.mrb[0].mxu0
    %v7550 = vadd.f32 %v7357, %v7549
    %v7551 = vpop.f32.mrb[0].mxu0
    %v7552 = vadd.f32 %v7359, %v7551
    %v7553 = vpop.f32.mrb[0].mxu0
    %v7554 = vadd.f32 %v7361, %v7553
    %v7555 = vpop.f32.mrb[0].mxu0
    %v7556 = vadd.f32 %v7363, %v7555
    %7557 = vmatprep.mubr.bf16.mxu0 %v2151
    %7558 = vmatmul.mubr.bf16.gmra.mrb[0].mxu0 %v2150
    %v7559 = vpop.f32.mrb[0].mxu0
    %v7560 = vadd.f32 %v7367, %v7559
    %v7561 = vpop.f32.mrb[0].mxu0
    %v7562 = vadd.f32 %v7369, %v7561
    %v7563 = vpop.f32.mrb[0].mxu0
    %v7564 = vadd.f32 %v7371, %v7563
    %v7565 = vpop.f32.mrb[0].mxu0
    %v7566 = vadd.f32 %v7373, %v7565
    %7567 = vmatprep.mubr.bf16.mxu0 %v2159
    %7568 = vmatmul.mubr.bf16.gmra.mrb[0].mxu0 %v2158
    %v7569 = vpop.f32.mrb[0].mxu0
    %v7570 = vadd.f32 %v7377, %v7569
    %v7571 = vpop.f32.mrb[0].mxu0
    %v7572 = vadd.f32 %v7379, %v7571
    %v7573 = vpop.f32.mrb[0].mxu0
    %v7574 = vadd.f32 %v7381, %v7573
    %v7575 = vpop.f32.mrb[0].mxu0
    %v7576 = vadd.f32 %v7383, %v7575
    %7577 = vmatprep.mubr.bf16.mxu0 %v2167
    %7578 = vmatmul.mubr.bf16.gmra.mrb[0].mxu0 %v2166
    %v7579 = vpop.f32.mrb[0].mxu0
    %v7580 = vadd.f32 %v7387, %v7579
    %v7581 = vpop.f32.mrb[0].mxu0
    %v7582 = vadd.f32 %v7389, %v7581
    %v7583 = vpop.f32.mrb[0].mxu0
    %v7584 = vadd.f32 %v7391, %v7583
    %v7585 = vpop.f32.mrb[0].mxu0
    %v7586 = vadd.f32 %v7393, %v7585
    %7587 = vmatprep.mubr.bf16.mxu0 %v2175
    %7588 = vmatmul.mubr.bf16.gmra.mrb[0].mxu0 %v2174
    %v7589 = vpop.f32.mrb[0].mxu0
    %v7590 = vadd.f32 %v7397, %v7589
    %v7591 = vpop.f32.mrb[0].mxu0
    %v7592 = vadd.f32 %v7399, %v7591
    %v7593 = vpop.f32.mrb[0].mxu0
    %v7594 = vadd.f32 %v7401, %v7593
    %v7595 = vpop.f32.mrb[0].mxu0
    %v7596 = vadd.f32 %v7403, %v7595
    %7597 = vmatprep.mubr.bf16.mxu0 %v2183
    %7598 = vmatmul.mubr.bf16.gmra.mrb[0].mxu0 %v2182
    %v7599 = vpop.f32.mrb[0].mxu0
    %v7600 = vadd.f32 %v7407, %v7599
    %v7601 = vpop.f32.mrb[0].mxu0
    %v7602 = vadd.f32 %v7409, %v7601
    %v7603 = vpop.f32.mrb[0].mxu0
    %v7604 = vadd.f32 %v7411, %v7603
    %v7605 = vpop.f32.mrb[0].mxu0
    %v7606 = vadd.f32 %v7413, %v7605
    %7607 = vmatprep.mubr.bf16.mxu0 %v2191
    %7608 = vmatmul.mubr.bf16.gmra.mrb[0].mxu0 %v2190
    %v7609 = vpop.f32.mrb[0].mxu0
    %v7610 = vadd.f32 %v7417, %v7609
    %v7611 = vpop.f32.mrb[0].mxu0
    %v7612 = vadd.f32 %v7419, %v7611
    %v7613 = vpop.f32.mrb[0].mxu0
    %v7614 = vadd.f32 %v7421, %v7613
    %v7615 = vpop.f32.mrb[0].mxu0
    %v7616 = vadd.f32 %v7423, %v7615
    %7617 = vmatprep.mubr.bf16.mxu0 %v2199
    %7618 = vmatmul.mubr.bf16.gmra.mrb[0].mxu0 %v2198
    %v7619 = vpop.f32.mrb[0].mxu0
    %v7620 = vadd.f32 %v7427, %v7619
    %v7621 = vpop.f32.mrb[0].mxu0
    %v7622 = vadd.f32 %v7429, %v7621
    %v7623 = vpop.f32.mrb[0].mxu0
    %v7624 = vadd.f32 %v7431, %v7623
    %v7625 = vpop.f32.mrb[0].mxu0
    %v7626 = vadd.f32 %v7433, %v7625
    %7627 = vmatprep.mubr.bf16.mxu0 %v2207
    %7628 = vmatmul.mubr.bf16.gmra.mrb[0].mxu0 %v2206
    %v7629 = vpop.f32.mrb[0].mxu0
    %v7630 = vadd.f32 %v7437, %v7629
    %v7631 = vpop.f32.mrb[0].mxu0
    %v7632 = vadd.f32 %v7439, %v7631
    %v7633 = vpop.f32.mrb[0].mxu0
    %v7634 = vadd.f32 %v7441, %v7633
    %v7635 = vpop.f32.mrb[0].mxu0
    %v7636 = vadd.f32 %v7443, %v7635
    %7637 = vdwg.mxu0
    %7638 = vmatprep.subr.bf16.mxu0 %v4305
    %7639 = vmatpush1.bf16.msra.mxu0 %v4304
    %7640 = vmatprep.subr.bf16.mxu0 %v4313
    %7641 = vmatpush1.bf16.msra.mxu0 %v4312
    %7642 = vmatprep.subr.bf16.mxu0 %v4321
    %7643 = vmatpush1.bf16.msra.mxu0 %v4320
    %7644 = vmatprep.subr.bf16.mxu0 %v4329
    %7645 = vmatpush1.bf16.msra.mxu0 %v4328
    %7646 = vmatprep.subr.bf16.mxu0 %v4337
    %7647 = vmatpush1.bf16.msra.mxu0 %v4336
    %7648 = vmatprep.subr.bf16.mxu0 %v4345
    %7649 = vmatpush1.bf16.msra.mxu0 %v4344
    %7650 = vmatprep.subr.bf16.mxu0 %v4353
    %7651 = vmatpush1.bf16.msra.mxu0 %v4352
    %7652 = vmatprep.subr.bf16.mxu0 %v4361
    %7653 = vmatpush1.bf16.msra.mxu0 %v4360
    %7654 = vmatprep.subr.bf16.mxu0 %v4369
    %7655 = vmatpush1.bf16.msra.mxu0 %v4368
    %7656 = vmatprep.subr.bf16.mxu0 %v4377
    %7657 = vmatpush1.bf16.msra.mxu0 %v4376
    %7658 = vmatprep.subr.bf16.mxu0 %v4385
    %7659 = vmatpush1.bf16.msra.mxu0 %v4384
    %7660 = vmatprep.subr.bf16.mxu0 %v4393
    %7661 = vmatpush1.bf16.msra.mxu0 %v4392
    %7662 = vmatprep.subr.bf16.mxu0 %v4401
    %7663 = vmatpush1.bf16.msra.mxu0 %v4400
    %7664 = vmatprep.subr.bf16.mxu0 %v4409
    %7665 = vmatpush1.bf16.msra.mxu0 %v4408
    %7666 = vmatprep.subr.bf16.mxu0 %v4417
    %7667 = vmatpush1.bf16.msra.mxu0 %v4416
    %7668 = vmatprep.subr.bf16.mxu0 %v4425
    %7669 = vmatpush1.bf16.msra.mxu0 %v4424
    %7670 = vmatprep.mubr.bf16.mxu0 %v2081
    %7671 = vmatmul.mubr.bf16.gmra.mrb[0].mxu0 %v2080
    %v7672 = vpop.f32.mrb[0].mxu0
    %v7673 = vadd.f32 %v2749, %v7672
    %v7674 = vpop.f32.mrb[0].mxu0
    %v7675 = vadd.f32 %v2753, %v7674
    %v7676 = vpop.f32.mrb[0].mxu0
    %v7677 = vadd.f32 %v2749, %v7676
    %v7678 = vpop.f32.mrb[0].mxu0
    %v7679 = vadd.f32 %v2753, %v7678
    %7680 = vmatprep.mubr.bf16.mxu0 %v2089
    %7681 = vmatmul.mubr.bf16.gmra.mrb[0].mxu0 %v2088
    %v7682 = vpop.f32.mrb[0].mxu0
    %v7683 = vadd.f32 %v2749, %v7682
    %v7684 = vpop.f32.mrb[0].mxu0
    %v7685 = vadd.f32 %v2753, %v7684
    %v7686 = vpop.f32.mrb[0].mxu0
    %v7687 = vadd.f32 %v2749, %v7686
    %v7688 = vpop.f32.mrb[0].mxu0
    %v7689 = vadd.f32 %v2753, %v7688
    %7690 = vmatprep.mubr.bf16.mxu0 %v2097
    %7691 = vmatmul.mubr.bf16.gmra.mrb[0].mxu0 %v2096
    %v7692 = vpop.f32.mrb[0].mxu0
    %v7693 = vadd.f32 %v2749, %v7692
    %v7694 = vpop.f32.mrb[0].mxu0
    %v7695 = vadd.f32 %v2753, %v7694
    %v7696 = vpop.f32.mrb[0].mxu0
    %v7697 = vadd.f32 %v2749, %v7696
    %v7698 = vpop.f32.mrb[0].mxu0
    %v7699 = vadd.f32 %v2753, %v7698
    %7700 = vmatprep.mubr.bf16.mxu0 %v2105
    %7701 = vmatmul.mubr.bf16.gmra.mrb[0].mxu0 %v2104
    %v7702 = vpop.f32.mrb[0].mxu0
    %v7703 = vadd.f32 %v2749, %v7702
    %v7704 = vpop.f32.mrb[0].mxu0
    %v7705 = vadd.f32 %v2753, %v7704
    %v7706 = vpop.f32.mrb[0].mxu0
    %v7707 = vadd.f32 %v2749, %v7706
    %v7708 = vpop.f32.mrb[0].mxu0
    %v7709 = vadd.f32 %v2753, %v7708
    %7710 = vmatprep.mubr.bf16.mxu0 %v2113
    %7711 = vmatmul.mubr.bf16.gmra.mrb[0].mxu0 %v2112
    %v7712 = vpop.f32.mrb[0].mxu0
    %v7713 = vadd.f32 %v2749, %v7712
    %v7714 = vpop.f32.mrb[0].mxu0
    %v7715 = vadd.f32 %v2753, %v7714
    %v7716 = vpop.f32.mrb[0].mxu0
    %v7717 = vadd.f32 %v2749, %v7716
    %v7718 = vpop.f32.mrb[0].mxu0
    %v7719 = vadd.f32 %v2753, %v7718
    %7720 = vmatprep.mubr.bf16.mxu0 %v2121
    %7721 = vmatmul.mubr.bf16.gmra.mrb[0].mxu0 %v2120
    %v7722 = vpop.f32.mrb[0].mxu0
    %v7723 = vadd.f32 %v2749, %v7722
    %v7724 = vpop.f32.mrb[0].mxu0
    %v7725 = vadd.f32 %v2753, %v7724
    %v7726 = vpop.f32.mrb[0].mxu0
    %v7727 = vadd.f32 %v2749, %v7726
    %v7728 = vpop.f32.mrb[0].mxu0
    %v7729 = vadd.f32 %v2753, %v7728
    %7730 = vmatprep.mubr.bf16.mxu0 %v2129
    %7731 = vmatmul.mubr.bf16.gmra.mrb[0].mxu0 %v2128
    %v7732 = vpop.f32.mrb[0].mxu0
    %v7733 = vadd.f32 %v2749, %v7732
    %v7734 = vpop.f32.mrb[0].mxu0
    %v7735 = vadd.f32 %v2753, %v7734
    %v7736 = vpop.f32.mrb[0].mxu0
    %v7737 = vadd.f32 %v2749, %v7736
    %v7738 = vpop.f32.mrb[0].mxu0
    %v7739 = vadd.f32 %v2753, %v7738
    %7740 = vmatprep.mubr.bf16.mxu0 %v2137
    %7741 = vmatmul.mubr.bf16.gmra.mrb[0].mxu0 %v2136
    %v7742 = vpop.f32.mrb[0].mxu0
    %v7743 = vadd.f32 %v2749, %v7742
    %v7744 = vpop.f32.mrb[0].mxu0
    %v7745 = vadd.f32 %v2753, %v7744
    %v7746 = vpop.f32.mrb[0].mxu0
    %v7747 = vadd.f32 %v2749, %v7746
    %v7748 = vpop.f32.mrb[0].mxu0
    %v7749 = vadd.f32 %v2753, %v7748
    %7750 = vmatprep.mubr.bf16.mxu0 %v2145
    %7751 = vmatmul.mubr.bf16.gmra.mrb[0].mxu0 %v2144
    %v7752 = vpop.f32.mrb[0].mxu0
    %v7753 = vadd.f32 %v2749, %v7752
    %v7754 = vpop.f32.mrb[0].mxu0
    %v7755 = vadd.f32 %v2753, %v7754
    %v7756 = vpop.f32.mrb[0].mxu0
    %v7757 = vadd.f32 %v2749, %v7756
    %v7758 = vpop.f32.mrb[0].mxu0
    %v7759 = vadd.f32 %v2753, %v7758
    %7760 = vmatprep.mubr.bf16.mxu0 %v2153
    %7761 = vmatmul.mubr.bf16.gmra.mrb[0].mxu0 %v2152
    %v7762 = vpop.f32.mrb[0].mxu0
    %v7763 = vadd.f32 %v2749, %v7762
    %v7764 = vpop.f32.mrb[0].mxu0
    %v7765 = vadd.f32 %v2753, %v7764
    %v7766 = vpop.f32.mrb[0].mxu0
    %v7767 = vadd.f32 %v2749, %v7766
    %v7768 = vpop.f32.mrb[0].mxu0
    %v7769 = vadd.f32 %v2753, %v7768
    %7770 = vmatprep.mubr.bf16.mxu0 %v2161
    %7771 = vmatmul.mubr.bf16.gmra.mrb[0].mxu0 %v2160
    %v7772 = vpop.f32.mrb[0].mxu0
    %v7773 = vadd.f32 %v2749, %v7772
    %v7774 = vpop.f32.mrb[0].mxu0
    %v7775 = vadd.f32 %v2753, %v7774
    %v7776 = vpop.f32.mrb[0].mxu0
    %v7777 = vadd.f32 %v2749, %v7776
    %v7778 = vpop.f32.mrb[0].mxu0
    %v7779 = vadd.f32 %v2753, %v7778
    %7780 = vmatprep.mubr.bf16.mxu0 %v2169
    %7781 = vmatmul.mubr.bf16.gmra.mrb[0].mxu0 %v2168
    %v7782 = vpop.f32.mrb[0].mxu0
    %v7783 = vadd.f32 %v2749, %v7782
    %v7784 = vpop.f32.mrb[0].mxu0
    %v7785 = vadd.f32 %v2753, %v7784
    %v7786 = vpop.f32.mrb[0].mxu0
    %v7787 = vadd.f32 %v2749, %v7786
    %v7788 = vpop.f32.mrb[0].mxu0
    %v7789 = vadd.f32 %v2753, %v7788
    %7790 = vmatprep.mubr.bf16.mxu0 %v2177
    %7791 = vmatmul.mubr.bf16.gmra.mrb[0].mxu0 %v2176
    %v7792 = vpop.f32.mrb[0].mxu0
    %v7793 = vadd.f32 %v2749, %v7792
    %v7794 = vpop.f32.mrb[0].mxu0
    %v7795 = vadd.f32 %v2753, %v7794
    %v7796 = vpop.f32.mrb[0].mxu0
    %v7797 = vadd.f32 %v2749, %v7796
    %v7798 = vpop.f32.mrb[0].mxu0
    %v7799 = vadd.f32 %v2753, %v7798
    %7800 = vmatprep.mubr.bf16.mxu0 %v2185
    %7801 = vmatmul.mubr.bf16.gmra.mrb[0].mxu0 %v2184
    %v7802 = vpop.f32.mrb[0].mxu0
    %v7803 = vadd.f32 %v2749, %v7802
    %v7804 = vpop.f32.mrb[0].mxu0
    %v7805 = vadd.f32 %v2753, %v7804
    %v7806 = vpop.f32.mrb[0].mxu0
    %v7807 = vadd.f32 %v2749, %v7806
    %v7808 = vpop.f32.mrb[0].mxu0
    %v7809 = vadd.f32 %v2753, %v7808
    %7810 = vmatprep.mubr.bf16.mxu0 %v2193
    %7811 = vmatmul.mubr.bf16.gmra.mrb[0].mxu0 %v2192
    %v7812 = vpop.f32.mrb[0].mxu0
    %v7813 = vadd.f32 %v2749, %v7812
    %v7814 = vpop.f32.mrb[0].mxu0
    %v7815 = vadd.f32 %v2753, %v7814
    %v7816 = vpop.f32.mrb[0].mxu0
    %v7817 = vadd.f32 %v2749, %v7816
    %v7818 = vpop.f32.mrb[0].mxu0
    %v7819 = vadd.f32 %v2753, %v7818
    %7820 = vmatprep.mubr.bf16.mxu0 %v2201
    %7821 = vmatmul.mubr.bf16.gmra.mrb[0].mxu0 %v2200
    %v7822 = vpop.f32.mrb[0].mxu0
    %v7823 = vadd.f32 %v2749, %v7822
    %v7824 = vpop.f32.mrb[0].mxu0
    %v7825 = vadd.f32 %v2753, %v7824
    %v7826 = vpop.f32.mrb[0].mxu0
    %v7827 = vadd.f32 %v2749, %v7826
    %v7828 = vpop.f32.mrb[0].mxu0
    %v7829 = vadd.f32 %v2753, %v7828
    %7830 = vdwg.mxu0
    %7831 = vmatprep.subr.bf16.mxu0 %v4433
    %7832 = vmatpush1.bf16.msra.mxu0 %v4432
    %7833 = vmatprep.subr.bf16.mxu0 %v4441
    %7834 = vmatpush1.bf16.msra.mxu0 %v4440
    %7835 = vmatprep.subr.bf16.mxu0 %v4449
    %7836 = vmatpush1.bf16.msra.mxu0 %v4448
    %7837 = vmatprep.subr.bf16.mxu0 %v4457
    %7838 = vmatpush1.bf16.msra.mxu0 %v4456
    %7839 = vmatprep.subr.bf16.mxu0 %v4465
    %7840 = vmatpush1.bf16.msra.mxu0 %v4464
    %7841 = vmatprep.subr.bf16.mxu0 %v4473
    %7842 = vmatpush1.bf16.msra.mxu0 %v4472
    %7843 = vmatprep.subr.bf16.mxu0 %v4481
    %7844 = vmatpush1.bf16.msra.mxu0 %v4480
    %7845 = vmatprep.subr.bf16.mxu0 %v4489
    %7846 = vmatpush1.bf16.msra.mxu0 %v4488
    %7847 = vmatprep.subr.bf16.mxu0 %v4497
    %7848 = vmatpush1.bf16.msra.mxu0 %v4496
    %7849 = vmatprep.subr.bf16.mxu0 %v4505
    %7850 = vmatpush1.bf16.msra.mxu0 %v4504
    %7851 = vmatprep.subr.bf16.mxu0 %v4513
    %7852 = vmatpush1.bf16.msra.mxu0 %v4512
    %7853 = vmatprep.subr.bf16.mxu0 %v4521
    %7854 = vmatpush1.bf16.msra.mxu0 %v4520
    %7855 = vmatprep.subr.bf16.mxu0 %v4529
    %7856 = vmatpush1.bf16.msra.mxu0 %v4528
    %7857 = vmatprep.subr.bf16.mxu0 %v4537
    %7858 = vmatpush1.bf16.msra.mxu0 %v4536
    %7859 = vmatprep.subr.bf16.mxu0 %v4545
    %7860 = vmatpush1.bf16.msra.mxu0 %v4544
    %7861 = vmatprep.subr.bf16.mxu0 %v4553
    %7862 = vmatpush1.bf16.msra.mxu0 %v4552
    %7863 = vmatprep.mubr.bf16.mxu0 %v2083
    %7864 = vmatmul.mubr.bf16.gmra.mrb[0].mxu0 %v2082
    %v7865 = vpop.f32.mrb[0].mxu0
    %v7866 = vadd.f32 %v7673, %v7865
    %v7867 = vpop.f32.mrb[0].mxu0
    %v7868 = vadd.f32 %v7675, %v7867
    %v7869 = vpop.f32.mrb[0].mxu0
    %v7870 = vadd.f32 %v7677, %v7869
    %v7871 = vpop.f32.mrb[0].mxu0
    %v7872 = vadd.f32 %v7679, %v7871
    %7873 = vmatprep.mubr.bf16.mxu0 %v2091
    %7874 = vmatmul.mubr.bf16.gmra.mrb[0].mxu0 %v2090
    %v7875 = vpop.f32.mrb[0].mxu0
    %v7876 = vadd.f32 %v7683, %v7875
    %v7877 = vpop.f32.mrb[0].mxu0
    %v7878 = vadd.f32 %v7685, %v7877
    %v7879 = vpop.f32.mrb[0].mxu0
    %v7880 = vadd.f32 %v7687, %v7879
    %v7881 = vpop.f32.mrb[0].mxu0
    %v7882 = vadd.f32 %v7689, %v7881
    %7883 = vmatprep.mubr.bf16.mxu0 %v2099
    %7884 = vmatmul.mubr.bf16.gmra.mrb[0].mxu0 %v2098
    %v7885 = vpop.f32.mrb[0].mxu0
    %v7886 = vadd.f32 %v7693, %v7885
    %v7887 = vpop.f32.mrb[0].mxu0
    %v7888 = vadd.f32 %v7695, %v7887
    %v7889 = vpop.f32.mrb[0].mxu0
    %v7890 = vadd.f32 %v7697, %v7889
    %v7891 = vpop.f32.mrb[0].mxu0
    %v7892 = vadd.f32 %v7699, %v7891
    %7893 = vmatprep.mubr.bf16.mxu0 %v2107
    %7894 = vmatmul.mubr.bf16.gmra.mrb[0].mxu0 %v2106
    %v7895 = vpop.f32.mrb[0].mxu0
    %v7896 = vadd.f32 %v7703, %v7895
    %v7897 = vpop.f32.mrb[0].mxu0
    %v7898 = vadd.f32 %v7705, %v7897
    %v7899 = vpop.f32.mrb[0].mxu0
    %v7900 = vadd.f32 %v7707, %v7899
    %v7901 = vpop.f32.mrb[0].mxu0
    %v7902 = vadd.f32 %v7709, %v7901
    %7903 = vmatprep.mubr.bf16.mxu0 %v2115
    %7904 = vmatmul.mubr.bf16.gmra.mrb[0].mxu0 %v2114
    %v7905 = vpop.f32.mrb[0].mxu0
    %v7906 = vadd.f32 %v7713, %v7905
    %v7907 = vpop.f32.mrb[0].mxu0
    %v7908 = vadd.f32 %v7715, %v7907
    %v7909 = vpop.f32.mrb[0].mxu0
    %v7910 = vadd.f32 %v7717, %v7909
    %v7911 = vpop.f32.mrb[0].mxu0
    %v7912 = vadd.f32 %v7719, %v7911
    %7913 = vmatprep.mubr.bf16.mxu0 %v2123
    %7914 = vmatmul.mubr.bf16.gmra.mrb[0].mxu0 %v2122
    %v7915 = vpop.f32.mrb[0].mxu0
    %v7916 = vadd.f32 %v7723, %v7915
    %v7917 = vpop.f32.mrb[0].mxu0
    %v7918 = vadd.f32 %v7725, %v7917
    %v7919 = vpop.f32.mrb[0].mxu0
    %v7920 = vadd.f32 %v7727, %v7919
    %v7921 = vpop.f32.mrb[0].mxu0
    %v7922 = vadd.f32 %v7729, %v7921
    %7923 = vmatprep.mubr.bf16.mxu0 %v2131
    %7924 = vmatmul.mubr.bf16.gmra.mrb[0].mxu0 %v2130
    %v7925 = vpop.f32.mrb[0].mxu0
    %v7926 = vadd.f32 %v7733, %v7925
    %v7927 = vpop.f32.mrb[0].mxu0
    %v7928 = vadd.f32 %v7735, %v7927
    %v7929 = vpop.f32.mrb[0].mxu0
    %v7930 = vadd.f32 %v7737, %v7929
    %v7931 = vpop.f32.mrb[0].mxu0
    %v7932 = vadd.f32 %v7739, %v7931
    %7933 = vmatprep.mubr.bf16.mxu0 %v2139
    %7934 = vmatmul.mubr.bf16.gmra.mrb[0].mxu0 %v2138
    %v7935 = vpop.f32.mrb[0].mxu0
    %v7936 = vadd.f32 %v7743, %v7935
    %v7937 = vpop.f32.mrb[0].mxu0
    %v7938 = vadd.f32 %v7745, %v7937
    %v7939 = vpop.f32.mrb[0].mxu0
    %v7940 = vadd.f32 %v7747, %v7939
    %v7941 = vpop.f32.mrb[0].mxu0
    %v7942 = vadd.f32 %v7749, %v7941
    %7943 = vmatprep.mubr.bf16.mxu0 %v2147
    %7944 = vmatmul.mubr.bf16.gmra.mrb[0].mxu0 %v2146
    %v7945 = vpop.f32.mrb[0].mxu0
    %v7946 = vadd.f32 %v7753, %v7945
    %v7947 = vpop.f32.mrb[0].mxu0
    %v7948 = vadd.f32 %v7755, %v7947
    %v7949 = vpop.f32.mrb[0].mxu0
    %v7950 = vadd.f32 %v7757, %v7949
    %v7951 = vpop.f32.mrb[0].mxu0
    %v7952 = vadd.f32 %v7759, %v7951
    %7953 = vmatprep.mubr.bf16.mxu0 %v2155
    %7954 = vmatmul.mubr.bf16.gmra.mrb[0].mxu0 %v2154
    %v7955 = vpop.f32.mrb[0].mxu0
    %v7956 = vadd.f32 %v7763, %v7955
    %v7957 = vpop.f32.mrb[0].mxu0
    %v7958 = vadd.f32 %v7765, %v7957
    %v7959 = vpop.f32.mrb[0].mxu0
    %v7960 = vadd.f32 %v7767, %v7959
    %v7961 = vpop.f32.mrb[0].mxu0
    %v7962 = vadd.f32 %v7769, %v7961
    %7963 = vmatprep.mubr.bf16.mxu0 %v2163
    %7964 = vmatmul.mubr.bf16.gmra.mrb[0].mxu0 %v2162
    %v7965 = vpop.f32.mrb[0].mxu0
    %v7966 = vadd.f32 %v7773, %v7965
    %v7967 = vpop.f32.mrb[0].mxu0
    %v7968 = vadd.f32 %v7775, %v7967
    %v7969 = vpop.f32.mrb[0].mxu0
    %v7970 = vadd.f32 %v7777, %v7969
    %v7971 = vpop.f32.mrb[0].mxu0
    %v7972 = vadd.f32 %v7779, %v7971
    %7973 = vmatprep.mubr.bf16.mxu0 %v2171
    %7974 = vmatmul.mubr.bf16.gmra.mrb[0].mxu0 %v2170
    %v7975 = vpop.f32.mrb[0].mxu0
    %v7976 = vadd.f32 %v7783, %v7975
    %v7977 = vpop.f32.mrb[0].mxu0
    %v7978 = vadd.f32 %v7785, %v7977
    %v7979 = vpop.f32.mrb[0].mxu0
    %v7980 = vadd.f32 %v7787, %v7979
    %v7981 = vpop.f32.mrb[0].mxu0
    %v7982 = vadd.f32 %v7789, %v7981
    %7983 = vmatprep.mubr.bf16.mxu0 %v2179
    %7984 = vmatmul.mubr.bf16.gmra.mrb[0].mxu0 %v2178
    %v7985 = vpop.f32.mrb[0].mxu0
    %v7986 = vadd.f32 %v7793, %v7985
    %v7987 = vpop.f32.mrb[0].mxu0
    %v7988 = vadd.f32 %v7795, %v7987
    %v7989 = vpop.f32.mrb[0].mxu0
    %v7990 = vadd.f32 %v7797, %v7989
    %v7991 = vpop.f32.mrb[0].mxu0
    %v7992 = vadd.f32 %v7799, %v7991
    %7993 = vmatprep.mubr.bf16.mxu0 %v2187
    %7994 = vmatmul.mubr.bf16.gmra.mrb[0].mxu0 %v2186
    %v7995 = vpop.f32.mrb[0].mxu0
    %v7996 = vadd.f32 %v7803, %v7995
    %v7997 = vpop.f32.mrb[0].mxu0
    %v7998 = vadd.f32 %v7805, %v7997
    %v7999 = vpop.f32.mrb[0].mxu0
    %v8000 = vadd.f32 %v7807, %v7999
    %v8001 = vpop.f32.mrb[0].mxu0
    %v8002 = vadd.f32 %v7809, %v8001
    %8003 = vmatprep.mubr.bf16.mxu0 %v2195
    %8004 = vmatmul.mubr.bf16.gmra.mrb[0].mxu0 %v2194
    %v8005 = vpop.f32.mrb[0].mxu0
    %v8006 = vadd.f32 %v7813, %v8005
    %v8007 = vpop.f32.mrb[0].mxu0
    %v8008 = vadd.f32 %v7815, %v8007
    %v8009 = vpop.f32.mrb[0].mxu0
    %v8010 = vadd.f32 %v7817, %v8009
    %v8011 = vpop.f32.mrb[0].mxu0
    %v8012 = vadd.f32 %v7819, %v8011
    %8013 = vmatprep.mubr.bf16.mxu0 %v2203
    %8014 = vmatmul.mubr.bf16.gmra.mrb[0].mxu0 %v2202
    %v8015 = vpop.f32.mrb[0].mxu0
    %v8016 = vadd.f32 %v7823, %v8015
    %v8017 = vpop.f32.mrb[0].mxu0
    %v8018 = vadd.f32 %v7825, %v8017
    %v8019 = vpop.f32.mrb[0].mxu0
    %v8020 = vadd.f32 %v7827, %v8019
    %v8021 = vpop.f32.mrb[0].mxu0
    %v8022 = vadd.f32 %v7829, %v8021
    %8023 = vdwg.mxu0
    %8024 = vmatprep.subr.bf16.mxu0 %v4561
    %8025 = vmatpush1.bf16.msra.mxu0 %v4560
    %8026 = vmatprep.subr.bf16.mxu0 %v4569
    %8027 = vmatpush1.bf16.msra.mxu0 %v4568
    %8028 = vmatprep.subr.bf16.mxu0 %v4577
    %8029 = vmatpush1.bf16.msra.mxu0 %v4576
    %8030 = vmatprep.subr.bf16.mxu0 %v4585
    %8031 = vmatpush1.bf16.msra.mxu0 %v4584
    %8032 = vmatprep.subr.bf16.mxu0 %v4593
    %8033 = vmatpush1.bf16.msra.mxu0 %v4592
    %8034 = vmatprep.subr.bf16.mxu0 %v4601
    %8035 = vmatpush1.bf16.msra.mxu0 %v4600
    %8036 = vmatprep.subr.bf16.mxu0 %v4609
    %8037 = vmatpush1.bf16.msra.mxu0 %v4608
    %8038 = vmatprep.subr.bf16.mxu0 %v4617
    %8039 = vmatpush1.bf16.msra.mxu0 %v4616
    %8040 = vmatprep.subr.bf16.mxu0 %v4625
    %8041 = vmatpush1.bf16.msra.mxu0 %v4624
    %8042 = vmatprep.subr.bf16.mxu0 %v4633
    %8043 = vmatpush1.bf16.msra.mxu0 %v4632
    %8044 = vmatprep.subr.bf16.mxu0 %v4641
    %8045 = vmatpush1.bf16.msra.mxu0 %v4640
    %8046 = vmatprep.subr.bf16.mxu0 %v4649
    %8047 = vmatpush1.bf16.msra.mxu0 %v4648
    %8048 = vmatprep.subr.bf16.mxu0 %v4657
    %8049 = vmatpush1.bf16.msra.mxu0 %v4656
    %8050 = vmatprep.subr.bf16.mxu0 %v4665
    %8051 = vmatpush1.bf16.msra.mxu0 %v4664
    %8052 = vmatprep.subr.bf16.mxu0 %v4673
    %8053 = vmatpush1.bf16.msra.mxu0 %v4672
    %8054 = vmatprep.subr.bf16.mxu0 %v4681
    %8055 = vmatpush1.bf16.msra.mxu0 %v4680
    %8056 = vmatprep.mubr.bf16.mxu0 %v2085
    %8057 = vmatmul.mubr.bf16.gmra.mrb[0].mxu0 %v2084
    %v8058 = vpop.f32.mrb[0].mxu0
    %v8059 = vadd.f32 %v7866, %v8058
    %v8060 = vpop.f32.mrb[0].mxu0
    %v8061 = vadd.f32 %v7868, %v8060
    %v8062 = vpop.f32.mrb[0].mxu0
    %v8063 = vadd.f32 %v7870, %v8062
    %v8064 = vpop.f32.mrb[0].mxu0
    %v8065 = vadd.f32 %v7872, %v8064
    %8066 = vmatprep.mubr.bf16.mxu0 %v2093
    %8067 = vmatmul.mubr.bf16.gmra.mrb[0].mxu0 %v2092
    %v8068 = vpop.f32.mrb[0].mxu0
    %v8069 = vadd.f32 %v7876, %v8068
    %v8070 = vpop.f32.mrb[0].mxu0
    %v8071 = vadd.f32 %v7878, %v8070
    %v8072 = vpop.f32.mrb[0].mxu0
    %v8073 = vadd.f32 %v7880, %v8072
    %v8074 = vpop.f32.mrb[0].mxu0
    %v8075 = vadd.f32 %v7882, %v8074
    %8076 = vmatprep.mubr.bf16.mxu0 %v2101
    %8077 = vmatmul.mubr.bf16.gmra.mrb[0].mxu0 %v2100
    %v8078 = vpop.f32.mrb[0].mxu0
    %v8079 = vadd.f32 %v7886, %v8078
    %v8080 = vpop.f32.mrb[0].mxu0
    %v8081 = vadd.f32 %v7888, %v8080
    %v8082 = vpop.f32.mrb[0].mxu0
    %v8083 = vadd.f32 %v7890, %v8082
    %v8084 = vpop.f32.mrb[0].mxu0
    %v8085 = vadd.f32 %v7892, %v8084
    %8086 = vmatprep.mubr.bf16.mxu0 %v2109
    %8087 = vmatmul.mubr.bf16.gmra.mrb[0].mxu0 %v2108
    %v8088 = vpop.f32.mrb[0].mxu0
    %v8089 = vadd.f32 %v7896, %v8088
    %v8090 = vpop.f32.mrb[0].mxu0
    %v8091 = vadd.f32 %v7898, %v8090
    %v8092 = vpop.f32.mrb[0].mxu0
    %v8093 = vadd.f32 %v7900, %v8092
    %v8094 = vpop.f32.mrb[0].mxu0
    %v8095 = vadd.f32 %v7902, %v8094
    %8096 = vmatprep.mubr.bf16.mxu0 %v2117
    %8097 = vmatmul.mubr.bf16.gmra.mrb[0].mxu0 %v2116
    %v8098 = vpop.f32.mrb[0].mxu0
    %v8099 = vadd.f32 %v7906, %v8098
    %v8100 = vpop.f32.mrb[0].mxu0
    %v8101 = vadd.f32 %v7908, %v8100
    %v8102 = vpop.f32.mrb[0].mxu0
    %v8103 = vadd.f32 %v7910, %v8102
    %v8104 = vpop.f32.mrb[0].mxu0
    %v8105 = vadd.f32 %v7912, %v8104
    %8106 = vmatprep.mubr.bf16.mxu0 %v2125
    %8107 = vmatmul.mubr.bf16.gmra.mrb[0].mxu0 %v2124
    %v8108 = vpop.f32.mrb[0].mxu0
    %v8109 = vadd.f32 %v7916, %v8108
    %v8110 = vpop.f32.mrb[0].mxu0
    %v8111 = vadd.f32 %v7918, %v8110
    %v8112 = vpop.f32.mrb[0].mxu0
    %v8113 = vadd.f32 %v7920, %v8112
    %v8114 = vpop.f32.mrb[0].mxu0
    %v8115 = vadd.f32 %v7922, %v8114
    %8116 = vmatprep.mubr.bf16.mxu0 %v2133
    %8117 = vmatmul.mubr.bf16.gmra.mrb[0].mxu0 %v2132
    %v8118 = vpop.f32.mrb[0].mxu0
    %v8119 = vadd.f32 %v7926, %v8118
    %v8120 = vpop.f32.mrb[0].mxu0
    %v8121 = vadd.f32 %v7928, %v8120
    %v8122 = vpop.f32.mrb[0].mxu0
    %v8123 = vadd.f32 %v7930, %v8122
    %v8124 = vpop.f32.mrb[0].mxu0
    %v8125 = vadd.f32 %v7932, %v8124
    %8126 = vmatprep.mubr.bf16.mxu0 %v2141
    %8127 = vmatmul.mubr.bf16.gmra.mrb[0].mxu0 %v2140
    %v8128 = vpop.f32.mrb[0].mxu0
    %v8129 = vadd.f32 %v7936, %v8128
    %v8130 = vpop.f32.mrb[0].mxu0
    %v8131 = vadd.f32 %v7938, %v8130
    %v8132 = vpop.f32.mrb[0].mxu0
    %v8133 = vadd.f32 %v7940, %v8132
    %v8134 = vpop.f32.mrb[0].mxu0
    %v8135 = vadd.f32 %v7942, %v8134
    %8136 = vmatprep.mubr.bf16.mxu0 %v2149
    %8137 = vmatmul.mubr.bf16.gmra.mrb[0].mxu0 %v2148
    %v8138 = vpop.f32.mrb[0].mxu0
    %v8139 = vadd.f32 %v7946, %v8138
    %v8140 = vpop.f32.mrb[0].mxu0
    %v8141 = vadd.f32 %v7948, %v8140
    %v8142 = vpop.f32.mrb[0].mxu0
    %v8143 = vadd.f32 %v7950, %v8142
    %v8144 = vpop.f32.mrb[0].mxu0
    %v8145 = vadd.f32 %v7952, %v8144
    %8146 = vmatprep.mubr.bf16.mxu0 %v2157
    %8147 = vmatmul.mubr.bf16.gmra.mrb[0].mxu0 %v2156
    %v8148 = vpop.f32.mrb[0].mxu0
    %v8149 = vadd.f32 %v7956, %v8148
    %v8150 = vpop.f32.mrb[0].mxu0
    %v8151 = vadd.f32 %v7958, %v8150
    %v8152 = vpop.f32.mrb[0].mxu0
    %v8153 = vadd.f32 %v7960, %v8152
    %v8154 = vpop.f32.mrb[0].mxu0
    %v8155 = vadd.f32 %v7962, %v8154
    %8156 = vmatprep.mubr.bf16.mxu0 %v2165
    %8157 = vmatmul.mubr.bf16.gmra.mrb[0].mxu0 %v2164
    %v8158 = vpop.f32.mrb[0].mxu0
    %v8159 = vadd.f32 %v7966, %v8158
    %v8160 = vpop.f32.mrb[0].mxu0
    %v8161 = vadd.f32 %v7968, %v8160
    %v8162 = vpop.f32.mrb[0].mxu0
    %v8163 = vadd.f32 %v7970, %v8162
    %v8164 = vpop.f32.mrb[0].mxu0
    %v8165 = vadd.f32 %v7972, %v8164
    %8166 = vmatprep.mubr.bf16.mxu0 %v2173
    %8167 = vmatmul.mubr.bf16.gmra.mrb[0].mxu0 %v2172
    %v8168 = vpop.f32.mrb[0].mxu0
    %v8169 = vadd.f32 %v7976, %v8168
    %v8170 = vpop.f32.mrb[0].mxu0
    %v8171 = vadd.f32 %v7978, %v8170
    %v8172 = vpop.f32.mrb[0].mxu0
    %v8173 = vadd.f32 %v7980, %v8172
    %v8174 = vpop.f32.mrb[0].mxu0
    %v8175 = vadd.f32 %v7982, %v8174
    %8176 = vmatprep.mubr.bf16.mxu0 %v2181
    %8177 = vmatmul.mubr.bf16.gmra.mrb[0].mxu0 %v2180
    %v8178 = vpop.f32.mrb[0].mxu0
    %v8179 = vadd.f32 %v7986, %v8178
    %v8180 = vpop.f32.mrb[0].mxu0
    %v8181 = vadd.f32 %v7988, %v8180
    %v8182 = vpop.f32.mrb[0].mxu0
    %v8183 = vadd.f32 %v7990, %v8182
    %v8184 = vpop.f32.mrb[0].mxu0
    %v8185 = vadd.f32 %v7992, %v8184
    %8186 = vmatprep.mubr.bf16.mxu0 %v2189
    %8187 = vmatmul.mubr.bf16.gmra.mrb[0].mxu0 %v2188
    %v8188 = vpop.f32.mrb[0].mxu0
    %v8189 = vadd.f32 %v7996, %v8188
    %v8190 = vpop.f32.mrb[0].mxu0
    %v8191 = vadd.f32 %v7998, %v8190
    %v8192 = vpop.f32.mrb[0].mxu0
    %v8193 = vadd.f32 %v8000, %v8192
    %v8194 = vpop.f32.mrb[0].mxu0
    %v8195 = vadd.f32 %v8002, %v8194
    %8196 = vmatprep.mubr.bf16.mxu0 %v2197
    %8197 = vmatmul.mubr.bf16.gmra.mrb[0].mxu0 %v2196
    %v8198 = vpop.f32.mrb[0].mxu0
    %v8199 = vadd.f32 %v8006, %v8198
    %v8200 = vpop.f32.mrb[0].mxu0
    %v8201 = vadd.f32 %v8008, %v8200
    %v8202 = vpop.f32.mrb[0].mxu0
    %v8203 = vadd.f32 %v8010, %v8202
    %v8204 = vpop.f32.mrb[0].mxu0
    %v8205 = vadd.f32 %v8012, %v8204
    %8206 = vmatprep.mubr.bf16.mxu0 %v2205
    %8207 = vmatmul.mubr.bf16.gmra.mrb[0].mxu0 %v2204
    %v8208 = vpop.f32.mrb[0].mxu0
    %v8209 = vadd.f32 %v8016, %v8208
    %v8210 = vpop.f32.mrb[0].mxu0
    %v8211 = vadd.f32 %v8018, %v8210
    %v8212 = vpop.f32.mrb[0].mxu0
    %v8213 = vadd.f32 %v8020, %v8212
    %v8214 = vpop.f32.mrb[0].mxu0
    %v8215 = vadd.f32 %v8022, %v8214
    %8216 = vdwg.mxu0
    %8217 = vmatprep.subr.bf16.mxu0 %v4689
    %8218 = vmatpush1.bf16.msra.mxu0 %v4688
    %8219 = vmatprep.subr.bf16.mxu0 %v4697
    %8220 = vmatpush1.bf16.msra.mxu0 %v4696
    %8221 = vmatprep.subr.bf16.mxu0 %v4705
    %8222 = vmatpush1.bf16.msra.mxu0 %v4704
    %8223 = vmatprep.subr.bf16.mxu0 %v4713
    %8224 = vmatpush1.bf16.msra.mxu0 %v4712
    %8225 = vmatprep.subr.bf16.mxu0 %v4721
    %8226 = vmatpush1.bf16.msra.mxu0 %v4720
    %8227 = vmatprep.subr.bf16.mxu0 %v4729
    %8228 = vmatpush1.bf16.msra.mxu0 %v4728
    %8229 = vmatprep.subr.bf16.mxu0 %v4737
    %8230 = vmatpush1.bf16.msra.mxu0 %v4736
    %8231 = vmatprep.subr.bf16.mxu0 %v4745
    %8232 = vmatpush1.bf16.msra.mxu0 %v4744
    %8233 = vmatprep.subr.bf16.mxu0 %v4753
    %8234 = vmatpush1.bf16.msra.mxu0 %v4752
    %8235 = vmatprep.subr.bf16.mxu0 %v4761
    %8236 = vmatpush1.bf16.msra.mxu0 %v4760
    %8237 = vmatprep.subr.bf16.mxu0 %v4769
    %8238 = vmatpush1.bf16.msra.mxu0 %v4768
    %8239 = vmatprep.subr.bf16.mxu0 %v4777
    %8240 = vmatpush1.bf16.msra.mxu0 %v4776
    %8241 = vmatprep.subr.bf16.mxu0 %v4785
    %8242 = vmatpush1.bf16.msra.mxu0 %v4784
    %8243 = vmatprep.subr.bf16.mxu0 %v4793
    %8244 = vmatpush1.bf16.msra.mxu0 %v4792
    %8245 = vmatprep.subr.bf16.mxu0 %v4801
    %8246 = vmatpush1.bf16.msra.mxu0 %v4800
    %8247 = vmatprep.subr.bf16.mxu0 %v4809
    %8248 = vmatpush1.bf16.msra.mxu0 %v4808
    %8249 = vmatprep.mubr.bf16.mxu0 %v2087
    %8250 = vmatmul.mubr.bf16.gmra.mrb[0].mxu0 %v2086
    %v8251 = vpop.f32.mrb[0].mxu0
    %v8252 = vadd.f32 %v8059, %v8251
    %v8253 = vpop.f32.mrb[0].mxu0
    %v8254 = vadd.f32 %v8061, %v8253
    %v8255 = vpop.f32.mrb[0].mxu0
    %v8256 = vadd.f32 %v8063, %v8255
    %v8257 = vpop.f32.mrb[0].mxu0
    %v8258 = vadd.f32 %v8065, %v8257
    %8259 = vmatprep.mubr.bf16.mxu0 %v2095
    %8260 = vmatmul.mubr.bf16.gmra.mrb[0].mxu0 %v2094
    %v8261 = vpop.f32.mrb[0].mxu0
    %v8262 = vadd.f32 %v8069, %v8261
    %v8263 = vpop.f32.mrb[0].mxu0
    %v8264 = vadd.f32 %v8071, %v8263
    %v8265 = vpop.f32.mrb[0].mxu0
    %v8266 = vadd.f32 %v8073, %v8265
    %v8267 = vpop.f32.mrb[0].mxu0
    %v8268 = vadd.f32 %v8075, %v8267
    %8269 = vmatprep.mubr.bf16.mxu0 %v2103
    %8270 = vmatmul.mubr.bf16.gmra.mrb[0].mxu0 %v2102
    %v8271 = vpop.f32.mrb[0].mxu0
    %v8272 = vadd.f32 %v8079, %v8271
    %v8273 = vpop.f32.mrb[0].mxu0
    %v8274 = vadd.f32 %v8081, %v8273
    %v8275 = vpop.f32.mrb[0].mxu0
    %v8276 = vadd.f32 %v8083, %v8275
    %v8277 = vpop.f32.mrb[0].mxu0
    %v8278 = vadd.f32 %v8085, %v8277
    %8279 = vmatprep.mubr.bf16.mxu0 %v2111
    %8280 = vmatmul.mubr.bf16.gmra.mrb[0].mxu0 %v2110
    %v8281 = vpop.f32.mrb[0].mxu0
    %v8282 = vadd.f32 %v8089, %v8281
    %v8283 = vpop.f32.mrb[0].mxu0
    %v8284 = vadd.f32 %v8091, %v8283
    %v8285 = vpop.f32.mrb[0].mxu0
    %v8286 = vadd.f32 %v8093, %v8285
    %v8287 = vpop.f32.mrb[0].mxu0
    %v8288 = vadd.f32 %v8095, %v8287
    %8289 = vmatprep.mubr.bf16.mxu0 %v2119
    %8290 = vmatmul.mubr.bf16.gmra.mrb[0].mxu0 %v2118
    %v8291 = vpop.f32.mrb[0].mxu0
    %v8292 = vadd.f32 %v8099, %v8291
    %v8293 = vpop.f32.mrb[0].mxu0
    %v8294 = vadd.f32 %v8101, %v8293
    %v8295 = vpop.f32.mrb[0].mxu0
    %v8296 = vadd.f32 %v8103, %v8295
    %v8297 = vpop.f32.mrb[0].mxu0
    %v8298 = vadd.f32 %v8105, %v8297
    %8299 = vmatprep.mubr.bf16.mxu0 %v2127
    %8300 = vmatmul.mubr.bf16.gmra.mrb[0].mxu0 %v2126
    %v8301 = vpop.f32.mrb[0].mxu0
    %v8302 = vadd.f32 %v8109, %v8301
    %v8303 = vpop.f32.mrb[0].mxu0
    %v8304 = vadd.f32 %v8111, %v8303
    %v8305 = vpop.f32.mrb[0].mxu0
    %v8306 = vadd.f32 %v8113, %v8305
    %v8307 = vpop.f32.mrb[0].mxu0
    %v8308 = vadd.f32 %v8115, %v8307
    %8309 = vmatprep.mubr.bf16.mxu0 %v2135
    %8310 = vmatmul.mubr.bf16.gmra.mrb[0].mxu0 %v2134
    %v8311 = vpop.f32.mrb[0].mxu0
    %v8312 = vadd.f32 %v8119, %v8311
    %v8313 = vpop.f32.mrb[0].mxu0
    %v8314 = vadd.f32 %v8121, %v8313
    %v8315 = vpop.f32.mrb[0].mxu0
    %v8316 = vadd.f32 %v8123, %v8315
    %v8317 = vpop.f32.mrb[0].mxu0
    %v8318 = vadd.f32 %v8125, %v8317
    %8319 = vmatprep.mubr.bf16.mxu0 %v2143
    %8320 = vmatmul.mubr.bf16.gmra.mrb[0].mxu0 %v2142
    %v8321 = vpop.f32.mrb[0].mxu0
    %v8322 = vadd.f32 %v8129, %v8321
    %v8323 = vpop.f32.mrb[0].mxu0
    %v8324 = vadd.f32 %v8131, %v8323
    %v8325 = vpop.f32.mrb[0].mxu0
    %v8326 = vadd.f32 %v8133, %v8325
    %v8327 = vpop.f32.mrb[0].mxu0
    %v8328 = vadd.f32 %v8135, %v8327
    %8329 = vmatprep.mubr.bf16.mxu0 %v2151
    %8330 = vmatmul.mubr.bf16.gmra.mrb[0].mxu0 %v2150
    %v8331 = vpop.f32.mrb[0].mxu0
    %v8332 = vadd.f32 %v8139, %v8331
    %v8333 = vpop.f32.mrb[0].mxu0
    %v8334 = vadd.f32 %v8141, %v8333
    %v8335 = vpop.f32.mrb[0].mxu0
    %v8336 = vadd.f32 %v8143, %v8335
    %v8337 = vpop.f32.mrb[0].mxu0
    %v8338 = vadd.f32 %v8145, %v8337
    %8339 = vmatprep.mubr.bf16.mxu0 %v2159
    %8340 = vmatmul.mubr.bf16.gmra.mrb[0].mxu0 %v2158
    %v8341 = vpop.f32.mrb[0].mxu0
    %v8342 = vadd.f32 %v8149, %v8341
    %v8343 = vpop.f32.mrb[0].mxu0
    %v8344 = vadd.f32 %v8151, %v8343
    %v8345 = vpop.f32.mrb[0].mxu0
    %v8346 = vadd.f32 %v8153, %v8345
    %v8347 = vpop.f32.mrb[0].mxu0
    %v8348 = vadd.f32 %v8155, %v8347
    %8349 = vmatprep.mubr.bf16.mxu0 %v2167
    %8350 = vmatmul.mubr.bf16.gmra.mrb[0].mxu0 %v2166
    %v8351 = vpop.f32.mrb[0].mxu0
    %v8352 = vadd.f32 %v8159, %v8351
    %v8353 = vpop.f32.mrb[0].mxu0
    %v8354 = vadd.f32 %v8161, %v8353
    %v8355 = vpop.f32.mrb[0].mxu0
    %v8356 = vadd.f32 %v8163, %v8355
    %v8357 = vpop.f32.mrb[0].mxu0
    %v8358 = vadd.f32 %v8165, %v8357
    %8359 = vmatprep.mubr.bf16.mxu0 %v2175
    %8360 = vmatmul.mubr.bf16.gmra.mrb[0].mxu0 %v2174
    %v8361 = vpop.f32.mrb[0].mxu0
    %v8362 = vadd.f32 %v8169, %v8361
    %v8363 = vpop.f32.mrb[0].mxu0
    %v8364 = vadd.f32 %v8171, %v8363
    %v8365 = vpop.f32.mrb[0].mxu0
    %v8366 = vadd.f32 %v8173, %v8365
    %v8367 = vpop.f32.mrb[0].mxu0
    %v8368 = vadd.f32 %v8175, %v8367
    %8369 = vmatprep.mubr.bf16.mxu0 %v2183
    %8370 = vmatmul.mubr.bf16.gmra.mrb[0].mxu0 %v2182
    %v8371 = vpop.f32.mrb[0].mxu0
    %v8372 = vadd.f32 %v8179, %v8371
    %v8373 = vpop.f32.mrb[0].mxu0
    %v8374 = vadd.f32 %v8181, %v8373
    %v8375 = vpop.f32.mrb[0].mxu0
    %v8376 = vadd.f32 %v8183, %v8375
    %v8377 = vpop.f32.mrb[0].mxu0
    %v8378 = vadd.f32 %v8185, %v8377
    %8379 = vmatprep.mubr.bf16.mxu0 %v2191
    %8380 = vmatmul.mubr.bf16.gmra.mrb[0].mxu0 %v2190
    %v8381 = vpop.f32.mrb[0].mxu0
    %v8382 = vadd.f32 %v8189, %v8381
    %v8383 = vpop.f32.mrb[0].mxu0
    %v8384 = vadd.f32 %v8191, %v8383
    %v8385 = vpop.f32.mrb[0].mxu0
    %v8386 = vadd.f32 %v8193, %v8385
    %v8387 = vpop.f32.mrb[0].mxu0
    %v8388 = vadd.f32 %v8195, %v8387
    %8389 = vmatprep.mubr.bf16.mxu0 %v2199
    %8390 = vmatmul.mubr.bf16.gmra.mrb[0].mxu0 %v2198
    %v8391 = vpop.f32.mrb[0].mxu0
    %v8392 = vadd.f32 %v8199, %v8391
    %v8393 = vpop.f32.mrb[0].mxu0
    %v8394 = vadd.f32 %v8201, %v8393
    %v8395 = vpop.f32.mrb[0].mxu0
    %v8396 = vadd.f32 %v8203, %v8395
    %v8397 = vpop.f32.mrb[0].mxu0
    %v8398 = vadd.f32 %v8205, %v8397
    %8399 = vmatprep.mubr.bf16.mxu0 %v2207
    %8400 = vmatmul.mubr.bf16.gmra.mrb[0].mxu0 %v2206
    %v8401 = vpop.f32.mrb[0].mxu0
    %v8402 = vadd.f32 %v8209, %v8401
    %v8403 = vpop.f32.mrb[0].mxu0
    %v8404 = vadd.f32 %v8211, %v8403
    %v8405 = vpop.f32.mrb[0].mxu0
    %v8406 = vadd.f32 %v8213, %v8405
    %v8407 = vpop.f32.mrb[0].mxu0
    %v8408 = vadd.f32 %v8215, %v8407
    %8409 = vdwg.mxu0
    %v8410 = vtanh.pop %v5936
    %v8411 = vtanh.pop %v5938
    %v8412 = vtanh.pop %v6708
    %v8413 = vtanh.pop %v6710
    %v8414 = vtanh.pop %v7480
    %v8415 = vtanh.pop %v7482
    %v8416 = vtanh.pop %v8252
    %v8417 = vtanh.pop %v8254
    %v8418 = vtanh.pop %v5940
    %v8419 = vtanh.pop %v5942
    %v8420 = vtanh.pop %v6712
    %v8421 = vtanh.pop %v6714
    %v8422 = vtanh.pop %v7484
    %v8423 = vtanh.pop %v7486
    %v8424 = vtanh.pop %v8256
    %v8425 = vtanh.pop %v8258
    %v8426 = vtanh.pop %v5946
    %v8427 = vtanh.pop %v5948
    %v8428 = vtanh.pop %v6718
    %v8429 = vtanh.pop %v6720
    %v8430 = vtanh.pop %v7490
    %v8431 = vtanh.pop %v7492
    %v8432 = vtanh.pop %v8262
    %v8433 = vtanh.pop %v8264
    %v8434 = vtanh.pop %v5950
    %v8435 = vtanh.pop %v5952
    %v8436 = vtanh.pop %v6722
    %v8437 = vtanh.pop %v6724
    %v8438 = vtanh.pop %v7494
    %v8439 = vtanh.pop %v7496
    %v8440 = vtanh.pop %v8266
    %v8441 = vtanh.pop %v8268
    %v8442 = vtanh.pop %v5956
    %v8443 = vtanh.pop %v5958
    %v8444 = vtanh.pop %v6728
    %v8445 = vtanh.pop %v6730
    %v8446 = vtanh.pop %v7500
    %v8447 = vtanh.pop %v7502
    %v8448 = vtanh.pop %v8272
    %v8449 = vtanh.pop %v8274
    %v8450 = vtanh.pop %v5960
    %v8451 = vtanh.pop %v5962
    %v8452 = vtanh.pop %v6732
    %v8453 = vtanh.pop %v6734
    %v8454 = vtanh.pop %v7504
    %v8455 = vtanh.pop %v7506
    %v8456 = vtanh.pop %v8276
    %v8457 = vtanh.pop %v8278
    %v8458 = vtanh.pop %v5966
    %v8459 = vtanh.pop %v5968
    %v8460 = vtanh.pop %v6738
    %v8461 = vtanh.pop %v6740
    %v8462 = vtanh.pop %v7510
    %v8463 = vtanh.pop %v7512
    %v8464 = vtanh.pop %v8282
    %v8465 = vtanh.pop %v8284
    %v8466 = vtanh.pop %v5970
    %v8467 = vtanh.pop %v5972
    %v8468 = vtanh.pop %v6742
    %v8469 = vtanh.pop %v6744
    %v8470 = vtanh.pop %v7514
    %v8471 = vtanh.pop %v7516
    %v8472 = vtanh.pop %v8286
    %v8473 = vtanh.pop %v8288
    %v8474 = vtanh.pop %v5976
    %v8475 = vtanh.pop %v5978
    %v8476 = vtanh.pop %v6748
    %v8477 = vtanh.pop %v6750
    %v8478 = vtanh.pop %v7520
    %v8479 = vtanh.pop %v7522
    %v8480 = vtanh.pop %v8292
    %v8481 = vtanh.pop %v8294
    %v8482 = vtanh.pop %v5980
    %v8483 = vtanh.pop %v5982
    %v8484 = vtanh.pop %v6752
    %v8485 = vtanh.pop %v6754
    %v8486 = vtanh.pop %v7524
    %v8487 = vtanh.pop %v7526
    %v8488 = vtanh.pop %v8296
    %v8489 = vtanh.pop %v8298
    %v8490 = vtanh.pop %v5986
    %v8491 = vtanh.pop %v5988
    %v8492 = vtanh.pop %v6758
    %v8493 = vtanh.pop %v6760
    %v8494 = vtanh.pop %v7530
    %v8495 = vtanh.pop %v7532
    %v8496 = vtanh.pop %v8302
    %v8497 = vtanh.pop %v8304
    %v8498 = vtanh.pop %v5990
    %v8499 = vtanh.pop %v5992
    %v8500 = vtanh.pop %v6762
    %v8501 = vtanh.pop %v6764
    %v8502 = vtanh.pop %v7534
    %v8503 = vtanh.pop %v7536
    %v8504 = vtanh.pop %v8306
    %v8505 = vtanh.pop %v8308
    %v8506 = vtanh.pop %v5996
    %v8507 = vtanh.pop %v5998
    %v8508 = vtanh.pop %v6768
    %v8509 = vtanh.pop %v6770
    %v8510 = vtanh.pop %v7540
    %v8511 = vtanh.pop %v7542
    %v8512 = vtanh.pop %v8312
    %v8513 = vtanh.pop %v8314
    %v8514 = vtanh.pop %v6000
    %v8515 = vtanh.pop %v6002
    %v8516 = vtanh.pop %v6772
    %v8517 = vtanh.pop %v6774
    %v8518 = vtanh.pop %v7544
    %v8519 = vtanh.pop %v7546
    %v8520 = vtanh.pop %v8316
    %v8521 = vtanh.pop %v8318
    %v8522 = vtanh.pop %v6006
    %v8523 = vtanh.pop %v6008
    %v8524 = vtanh.pop %v6778
    %v8525 = vtanh.pop %v6780
    %v8526 = vtanh.pop %v7550
    %v8527 = vtanh.pop %v7552
    %v8528 = vtanh.pop %v8322
    %v8529 = vtanh.pop %v8324
    %v8530 = vtanh.pop %v6010
    %v8531 = vtanh.pop %v6012
    %v8532 = vtanh.pop %v6782
    %v8533 = vtanh.pop %v6784
    %v8534 = vtanh.pop %v7554
    %v8535 = vtanh.pop %v7556
    %v8536 = vtanh.pop %v8326
    %v8537 = vtanh.pop %v8328
    %v8538 = vtanh.pop %v6016
    %v8539 = vtanh.pop %v6018
    %v8540 = vtanh.pop %v6788
    %v8541 = vtanh.pop %v6790
    %v8542 = vtanh.pop %v7560
    %v8543 = vtanh.pop %v7562
    %v8544 = vtanh.pop %v8332
    %v8545 = vtanh.pop %v8334
    %v8546 = vtanh.pop %v6020
    %v8547 = vtanh.pop %v6022
    %v8548 = vtanh.pop %v6792
    %v8549 = vtanh.pop %v6794
    %v8550 = vtanh.pop %v7564
    %v8551 = vtanh.pop %v7566
    %v8552 = vtanh.pop %v8336
    %v8553 = vtanh.pop %v8338
    %v8554 = vtanh.pop %v6026
    %v8555 = vtanh.pop %v6028
    %v8556 = vtanh.pop %v6798
    %v8557 = vtanh.pop %v6800
    %v8558 = vtanh.pop %v7570
    %v8559 = vtanh.pop %v7572
    %v8560 = vtanh.pop %v8342
    %v8561 = vtanh.pop %v8344
    %v8562 = vtanh.pop %v6030
    %v8563 = vtanh.pop %v6032
    %v8564 = vtanh.pop %v6802
    %v8565 = vtanh.pop %v6804
    %v8566 = vtanh.pop %v7574
    %v8567 = vtanh.pop %v7576
    %v8568 = vtanh.pop %v8346
    %v8569 = vtanh.pop %v8348
    %v8570 = vtanh.pop %v6036
    %v8571 = vtanh.pop %v6038
    %v8572 = vtanh.pop %v6808
    %v8573 = vtanh.pop %v6810
    %v8574 = vtanh.pop %v7580
    %v8575 = vtanh.pop %v7582
    %v8576 = vtanh.pop %v8352
    %v8577 = vtanh.pop %v8354
    %v8578 = vtanh.pop %v6040
    %v8579 = vtanh.pop %v6042
    %v8580 = vtanh.pop %v6812
    %v8581 = vtanh.pop %v6814
    %v8582 = vtanh.pop %v7584
    %v8583 = vtanh.pop %v7586
    %v8584 = vtanh.pop %v8356
    %v8585 = vtanh.pop %v8358
    %v8586 = vtanh.pop %v6046
    %v8587 = vtanh.pop %v6048
    %v8588 = vtanh.pop %v6818
    %v8589 = vtanh.pop %v6820
    %v8590 = vtanh.pop %v7590
    %v8591 = vtanh.pop %v7592
    %v8592 = vtanh.pop %v8362
    %v8593 = vtanh.pop %v8364
    %v8594 = vtanh.pop %v6050
    %v8595 = vtanh.pop %v6052
    %v8596 = vtanh.pop %v6822
    %v8597 = vtanh.pop %v6824
    %v8598 = vtanh.pop %v7594
    %v8599 = vtanh.pop %v7596
    %v8600 = vtanh.pop %v8366
    %v8601 = vtanh.pop %v8368
    %v8602 = vtanh.pop %v6056
    %v8603 = vtanh.pop %v6058
    %v8604 = vtanh.pop %v6828
    %v8605 = vtanh.pop %v6830
    %v8606 = vtanh.pop %v7600
    %v8607 = vtanh.pop %v7602
    %v8608 = vtanh.pop %v8372
    %v8609 = vtanh.pop %v8374
    %v8610 = vtanh.pop %v6060
    %v8611 = vtanh.pop %v6062
    %v8612 = vtanh.pop %v6832
    %v8613 = vtanh.pop %v6834
    %v8614 = vtanh.pop %v7604
    %v8615 = vtanh.pop %v7606
    %v8616 = vtanh.pop %v8376
    %v8617 = vtanh.pop %v8378
    %v8618 = vtanh.pop %v6066
    %v8619 = vtanh.pop %v6068
    %v8620 = vtanh.pop %v6838
    %v8621 = vtanh.pop %v6840
    %v8622 = vtanh.pop %v7610
    %v8623 = vtanh.pop %v7612
    %v8624 = vtanh.pop %v8382
    %v8625 = vtanh.pop %v8384
    %v8626 = vtanh.pop %v6070
    %v8627 = vtanh.pop %v6072
    %v8628 = vtanh.pop %v6842
    %v8629 = vtanh.pop %v6844
    %v8630 = vtanh.pop %v7614
    %v8631 = vtanh.pop %v7616
    %v8632 = vtanh.pop %v8386
    %v8633 = vtanh.pop %v8388
    %v8634 = vtanh.pop %v6076
    %v8635 = vtanh.pop %v6078
    %v8636 = vtanh.pop %v6848
    %v8637 = vtanh.pop %v6850
    %v8638 = vtanh.pop %v7620
    %v8639 = vtanh.pop %v7622
    %v8640 = vtanh.pop %v8392
    %v8641 = vtanh.pop %v8394
    %v8642 = vtanh.pop %v6080
    %v8643 = vtanh.pop %v6082
    %v8644 = vtanh.pop %v6852
    %v8645 = vtanh.pop %v6854
    %v8646 = vtanh.pop %v7624
    %v8647 = vtanh.pop %v7626
    %v8648 = vtanh.pop %v8396
    %v8649 = vtanh.pop %v8398
    %v8650 = vtanh.pop %v6086
    %v8651 = vtanh.pop %v6088
    %v8652 = vtanh.pop %v6858
    %v8653 = vtanh.pop %v6860
    %v8654 = vtanh.pop %v7630
    %v8655 = vtanh.pop %v7632
    %v8656 = vtanh.pop %v8402
    %v8657 = vtanh.pop %v8404
    %v8658 = vtanh.pop %v6090
    %v8659 = vtanh.pop %v6092
    %v8660 = vtanh.pop %v6862
    %v8661 = vtanh.pop %v6864
    %v8662 = vtanh.pop %v7634
    %v8663 = vtanh.pop %v7636
    %v8664 = vtanh.pop %v8406
    %v8665 = vtanh.pop %v8408
    %v8666 = vpack.c.bf16 %v8418, %v8410
    %v8667 = vpack.c.bf16 %v8419, %v8411
    %v8668 = vpack.c.bf16 %v8420, %v8412
    %v8669 = vpack.c.bf16 %v8421, %v8413
    %v8670 = vpack.c.bf16 %v8422, %v8414
    %v8671 = vpack.c.bf16 %v8423, %v8415
    %v8672 = vpack.c.bf16 %v8424, %v8416
    %v8673 = vpack.c.bf16 %v8425, %v8417
    %v8674 = vpack.c.bf16 %v8434, %v8426
    %v8675 = vpack.c.bf16 %v8435, %v8427
    %v8676 = vpack.c.bf16 %v8436, %v8428
    %v8677 = vpack.c.bf16 %v8437, %v8429
    %v8678 = vpack.c.bf16 %v8438, %v8430
    %v8679 = vpack.c.bf16 %v8439, %v8431
    %v8680 = vpack.c.bf16 %v8440, %v8432
    %v8681 = vpack.c.bf16 %v8441, %v8433
    %v8682 = vpack.c.bf16 %v8450, %v8442
    %v8683 = vpack.c.bf16 %v8451, %v8443
    %v8684 = vpack.c.bf16 %v8452, %v8444
    %v8685 = vpack.c.bf16 %v8453, %v8445
    %v8686 = vpack.c.bf16 %v8454, %v8446
    %v8687 = vpack.c.bf16 %v8455, %v8447
    %v8688 = vpack.c.bf16 %v8456, %v8448
    %v8689 = vpack.c.bf16 %v8457, %v8449
    %v8690 = vpack.c.bf16 %v8466, %v8458
    %v8691 = vpack.c.bf16 %v8467, %v8459
    %v8692 = vpack.c.bf16 %v8468, %v8460
    %v8693 = vpack.c.bf16 %v8469, %v8461
    %v8694 = vpack.c.bf16 %v8470, %v8462
    %v8695 = vpack.c.bf16 %v8471, %v8463
    %v8696 = vpack.c.bf16 %v8472, %v8464
    %v8697 = vpack.c.bf16 %v8473, %v8465
    %v8698 = vpack.c.bf16 %v8482, %v8474
    %v8699 = vpack.c.bf16 %v8483, %v8475
    %v8700 = vpack.c.bf16 %v8484, %v8476
    %v8701 = vpack.c.bf16 %v8485, %v8477
    %v8702 = vpack.c.bf16 %v8486, %v8478
    %v8703 = vpack.c.bf16 %v8487, %v8479
    %v8704 = vpack.c.bf16 %v8488, %v8480
    %v8705 = vpack.c.bf16 %v8489, %v8481
    %v8706 = vpack.c.bf16 %v8498, %v8490
    %v8707 = vpack.c.bf16 %v8499, %v8491
    %v8708 = vpack.c.bf16 %v8500, %v8492
    %v8709 = vpack.c.bf16 %v8501, %v8493
    %v8710 = vpack.c.bf16 %v8502, %v8494
    %v8711 = vpack.c.bf16 %v8503, %v8495
    %v8712 = vpack.c.bf16 %v8504, %v8496
    %v8713 = vpack.c.bf16 %v8505, %v8497
    %v8714 = vpack.c.bf16 %v8514, %v8506
    %v8715 = vpack.c.bf16 %v8515, %v8507
    %v8716 = vpack.c.bf16 %v8516, %v8508
    %v8717 = vpack.c.bf16 %v8517, %v8509
    %v8718 = vpack.c.bf16 %v8518, %v8510
    %v8719 = vpack.c.bf16 %v8519, %v8511
    %v8720 = vpack.c.bf16 %v8520, %v8512
    %v8721 = vpack.c.bf16 %v8521, %v8513
    %v8722 = vpack.c.bf16 %v8530, %v8522
    %v8723 = vpack.c.bf16 %v8531, %v8523
    %v8724 = vpack.c.bf16 %v8532, %v8524
    %v8725 = vpack.c.bf16 %v8533, %v8525
    %v8726 = vpack.c.bf16 %v8534, %v8526
    %v8727 = vpack.c.bf16 %v8535, %v8527
    %v8728 = vpack.c.bf16 %v8536, %v8528
    %v8729 = vpack.c.bf16 %v8537, %v8529
    %v8730 = vpack.c.bf16 %v8546, %v8538
    %v8731 = vpack.c.bf16 %v8547, %v8539
    %v8732 = vpack.c.bf16 %v8548, %v8540
    %v8733 = vpack.c.bf16 %v8549, %v8541
    %v8734 = vpack.c.bf16 %v8550, %v8542
    %v8735 = vpack.c.bf16 %v8551, %v8543
    %v8736 = vpack.c.bf16 %v8552, %v8544
    %v8737 = vpack.c.bf16 %v8553, %v8545
    %v8738 = vpack.c.bf16 %v8562, %v8554
    %v8739 = vpack.c.bf16 %v8563, %v8555
    %v8740 = vpack.c.bf16 %v8564, %v8556
    %v8741 = vpack.c.bf16 %v8565, %v8557
    %v8742 = vpack.c.bf16 %v8566, %v8558
    %v8743 = vpack.c.bf16 %v8567, %v8559
    %v8744 = vpack.c.bf16 %v8568, %v8560
    %v8745 = vpack.c.bf16 %v8569, %v8561
    %v8746 = vpack.c.bf16 %v8578, %v8570
    %v8747 = vpack.c.bf16 %v8579, %v8571
    %v8748 = vpack.c.bf16 %v8580, %v8572
    %v8749 = vpack.c.bf16 %v8581, %v8573
    %v8750 = vpack.c.bf16 %v8582, %v8574
    %v8751 = vpack.c.bf16 %v8583, %v8575
    %v8752 = vpack.c.bf16 %v8584, %v8576
    %v8753 = vpack.c.bf16 %v8585, %v8577
    %v8754 = vpack.c.bf16 %v8594, %v8586
    %v8755 = vpack.c.bf16 %v8595, %v8587
    %v8756 = vpack.c.bf16 %v8596, %v8588
    %v8757 = vpack.c.bf16 %v8597, %v8589
    %v8758 = vpack.c.bf16 %v8598, %v8590
    %v8759 = vpack.c.bf16 %v8599, %v8591
    %v8760 = vpack.c.bf16 %v8600, %v8592
    %v8761 = vpack.c.bf16 %v8601, %v8593
    %v8762 = vpack.c.bf16 %v8610, %v8602
    %v8763 = vpack.c.bf16 %v8611, %v8603
    %v8764 = vpack.c.bf16 %v8612, %v8604
    %v8765 = vpack.c.bf16 %v8613, %v8605
    %v8766 = vpack.c.bf16 %v8614, %v8606
    %v8767 = vpack.c.bf16 %v8615, %v8607
    %v8768 = vpack.c.bf16 %v8616, %v8608
    %v8769 = vpack.c.bf16 %v8617, %v8609
    %v8770 = vpack.c.bf16 %v8626, %v8618
    %v8771 = vpack.c.bf16 %v8627, %v8619
    %v8772 = vpack.c.bf16 %v8628, %v8620
    %v8773 = vpack.c.bf16 %v8629, %v8621
    %v8774 = vpack.c.bf16 %v8630, %v8622
    %v8775 = vpack.c.bf16 %v8631, %v8623
    %v8776 = vpack.c.bf16 %v8632, %v8624
    %v8777 = vpack.c.bf16 %v8633, %v8625
    %v8778 = vpack.c.bf16 %v8642, %v8634
    %v8779 = vpack.c.bf16 %v8643, %v8635
    %v8780 = vpack.c.bf16 %v8644, %v8636
    %v8781 = vpack.c.bf16 %v8645, %v8637
    %v8782 = vpack.c.bf16 %v8646, %v8638
    %v8783 = vpack.c.bf16 %v8647, %v8639
    %v8784 = vpack.c.bf16 %v8648, %v8640
    %v8785 = vpack.c.bf16 %v8649, %v8641
    %v8786 = vpack.c.bf16 %v8658, %v8650
    %v8787 = vpack.c.bf16 %v8659, %v8651
    %v8788 = vpack.c.bf16 %v8660, %v8652
    %v8789 = vpack.c.bf16 %v8661, %v8653
    %v8790 = vpack.c.bf16 %v8662, %v8654
    %v8791 = vpack.c.bf16 %v8663, %v8655
    %v8792 = vpack.c.bf16 %v8664, %v8656
    %v8793 = vpack.c.bf16 %v8665, %v8657
    %v8794 = vld [vmem:[#allocation10] sm:$0xf]
    %v8795 = vld [vmem:[#allocation10 + $0x4] sm:$0xf]
    %v8796 = vld [vmem:[#allocation10 + $0x8] sm:$0xf]
    %v8797 = vld [vmem:[#allocation10 + $0xc] sm:$0xf]
    %v8798 = vld [vmem:[#allocation10 + $0x10] sm:$0xf]
    %v8799 = vld [vmem:[#allocation10 + $0x14] sm:$0xf]
    %v8800 = vld [vmem:[#allocation10 + $0x18] sm:$0xf]
    %v8801 = vld [vmem:[#allocation10 + $0x1c] sm:$0xf]
    %v8802 = vld [vmem:[#allocation10 + $0x20] sm:$0xf]
    %v8803 = vld [vmem:[#allocation10 + $0x24] sm:$0xf]
    %v8804 = vld [vmem:[#allocation10 + $0x28] sm:$0xf]
    %v8805 = vld [vmem:[#allocation10 + $0x2c] sm:$0xf]
    %v8806 = vld [vmem:[#allocation10 + $0x30] sm:$0xf]
    %v8807 = vld [vmem:[#allocation10 + $0x34] sm:$0xf]
    %v8808 = vld [vmem:[#allocation10 + $0x38] sm:$0xf]
    %v8809 = vld [vmem:[#allocation10 + $0x3c] sm:$0xf]
    %v8810 = vld [vmem:[#allocation10 + $0x40] sm:$0xf]
    %v8811 = vld [vmem:[#allocation10 + $0x44] sm:$0xf]
    %v8812 = vld [vmem:[#allocation10 + $0x48] sm:$0xf]
    %v8813 = vld [vmem:[#allocation10 + $0x4c] sm:$0xf]
    %v8814 = vld [vmem:[#allocation10 + $0x50] sm:$0xf]
    %v8815 = vld [vmem:[#allocation10 + $0x54] sm:$0xf]
    %v8816 = vld [vmem:[#allocation10 + $0x58] sm:$0xf]
    %v8817 = vld [vmem:[#allocation10 + $0x5c] sm:$0xf]
    %v8818 = vld [vmem:[#allocation10 + $0x60] sm:$0xf]
    %v8819 = vld [vmem:[#allocation10 + $0x64] sm:$0xf]
    %v8820 = vld [vmem:[#allocation10 + $0x68] sm:$0xf]
    %v8821 = vld [vmem:[#allocation10 + $0x6c] sm:$0xf]
    %v8822 = vld [vmem:[#allocation10 + $0x70] sm:$0xf]
    %v8823 = vld [vmem:[#allocation10 + $0x74] sm:$0xf]
    %v8824 = vld [vmem:[#allocation10 + $0x78] sm:$0xf]
    %v8825 = vld [vmem:[#allocation10 + $0x7c] sm:$0xf]
    %v8826 = vld [vmem:[#allocation10 + $0x80] sm:$0xf]
    %v8827 = vld [vmem:[#allocation10 + $0x84] sm:$0xf]
    %v8828 = vld [vmem:[#allocation10 + $0x88] sm:$0xf]
    %v8829 = vld [vmem:[#allocation10 + $0x8c] sm:$0xf]
    %v8830 = vld [vmem:[#allocation10 + $0x90] sm:$0xf]
    %v8831 = vld [vmem:[#allocation10 + $0x94] sm:$0xf]
    %v8832 = vld [vmem:[#allocation10 + $0x98] sm:$0xf]
    %v8833 = vld [vmem:[#allocation10 + $0x9c] sm:$0xf]
    %v8834 = vld [vmem:[#allocation10 + $0xa0] sm:$0xf]
    %v8835 = vld [vmem:[#allocation10 + $0xa4] sm:$0xf]
    %v8836 = vld [vmem:[#allocation10 + $0xa8] sm:$0xf]
    %v8837 = vld [vmem:[#allocation10 + $0xac] sm:$0xf]
    %v8838 = vld [vmem:[#allocation10 + $0xb0] sm:$0xf]
    %v8839 = vld [vmem:[#allocation10 + $0xb4] sm:$0xf]
    %v8840 = vld [vmem:[#allocation10 + $0xb8] sm:$0xf]
    %v8841 = vld [vmem:[#allocation10 + $0xbc] sm:$0xf]
    %v8842 = vld [vmem:[#allocation10 + $0xc0] sm:$0xf]
    %v8843 = vld [vmem:[#allocation10 + $0xc4] sm:$0xf]
    %v8844 = vld [vmem:[#allocation10 + $0xc8] sm:$0xf]
    %v8845 = vld [vmem:[#allocation10 + $0xcc] sm:$0xf]
    %v8846 = vld [vmem:[#allocation10 + $0xd0] sm:$0xf]
    %v8847 = vld [vmem:[#allocation10 + $0xd4] sm:$0xf]
    %v8848 = vld [vmem:[#allocation10 + $0xd8] sm:$0xf]
    %v8849 = vld [vmem:[#allocation10 + $0xdc] sm:$0xf]
    %v8850 = vld [vmem:[#allocation10 + $0xe0] sm:$0xf]
    %v8851 = vld [vmem:[#allocation10 + $0xe4] sm:$0xf]
    %v8852 = vld [vmem:[#allocation10 + $0xe8] sm:$0xf]
    %v8853 = vld [vmem:[#allocation10 + $0xec] sm:$0xf]
    %v8854 = vld [vmem:[#allocation10 + $0xf0] sm:$0xf]
    %v8855 = vld [vmem:[#allocation10 + $0xf4] sm:$0xf]
    %v8856 = vld [vmem:[#allocation10 + $0xf8] sm:$0xf]
    %v8857 = vld [vmem:[#allocation10 + $0xfc] sm:$0xf]
    %v8858 = vld [vmem:[#allocation10 + $0x100] sm:$0xf]
    %v8859 = vld [vmem:[#allocation10 + $0x104] sm:$0xf]
    %v8860 = vld [vmem:[#allocation10 + $0x108] sm:$0xf]
    %v8861 = vld [vmem:[#allocation10 + $0x10c] sm:$0xf]
    %v8862 = vld [vmem:[#allocation10 + $0x110] sm:$0xf]
    %v8863 = vld [vmem:[#allocation10 + $0x114] sm:$0xf]
    %v8864 = vld [vmem:[#allocation10 + $0x118] sm:$0xf]
    %v8865 = vld [vmem:[#allocation10 + $0x11c] sm:$0xf]
    %v8866 = vld [vmem:[#allocation10 + $0x120] sm:$0xf]
    %v8867 = vld [vmem:[#allocation10 + $0x124] sm:$0xf]
    %v8868 = vld [vmem:[#allocation10 + $0x128] sm:$0xf]
    %v8869 = vld [vmem:[#allocation10 + $0x12c] sm:$0xf]
    %v8870 = vld [vmem:[#allocation10 + $0x130] sm:$0xf]
    %v8871 = vld [vmem:[#allocation10 + $0x134] sm:$0xf]
    %v8872 = vld [vmem:[#allocation10 + $0x138] sm:$0xf]
    %v8873 = vld [vmem:[#allocation10 + $0x13c] sm:$0xf]
    %v8874 = vld [vmem:[#allocation10 + $0x140] sm:$0xf]
    %v8875 = vld [vmem:[#allocation10 + $0x144] sm:$0xf]
    %v8876 = vld [vmem:[#allocation10 + $0x148] sm:$0xf]
    %v8877 = vld [vmem:[#allocation10 + $0x14c] sm:$0xf]
    %v8878 = vld [vmem:[#allocation10 + $0x150] sm:$0xf]
    %v8879 = vld [vmem:[#allocation10 + $0x154] sm:$0xf]
    %v8880 = vld [vmem:[#allocation10 + $0x158] sm:$0xf]
    %v8881 = vld [vmem:[#allocation10 + $0x15c] sm:$0xf]
    %v8882 = vld [vmem:[#allocation10 + $0x160] sm:$0xf]
    %v8883 = vld [vmem:[#allocation10 + $0x164] sm:$0xf]
    %v8884 = vld [vmem:[#allocation10 + $0x168] sm:$0xf]
    %v8885 = vld [vmem:[#allocation10 + $0x16c] sm:$0xf]
    %v8886 = vld [vmem:[#allocation10 + $0x170] sm:$0xf]
    %v8887 = vld [vmem:[#allocation10 + $0x174] sm:$0xf]
    %v8888 = vld [vmem:[#allocation10 + $0x178] sm:$0xf]
    %v8889 = vld [vmem:[#allocation10 + $0x17c] sm:$0xf]
    %v8890 = vld [vmem:[#allocation10 + $0x180] sm:$0xf]
    %v8891 = vld [vmem:[#allocation10 + $0x184] sm:$0xf]
    %v8892 = vld [vmem:[#allocation10 + $0x188] sm:$0xf]
    %v8893 = vld [vmem:[#allocation10 + $0x18c] sm:$0xf]
    %v8894 = vld [vmem:[#allocation10 + $0x190] sm:$0xf]
    %v8895 = vld [vmem:[#allocation10 + $0x194] sm:$0xf]
    %v8896 = vld [vmem:[#allocation10 + $0x198] sm:$0xf]
    %v8897 = vld [vmem:[#allocation10 + $0x19c] sm:$0xf]
    %v8898 = vld [vmem:[#allocation10 + $0x1a0] sm:$0xf]
    %v8899 = vld [vmem:[#allocation10 + $0x1a4] sm:$0xf]
    %v8900 = vld [vmem:[#allocation10 + $0x1a8] sm:$0xf]
    %v8901 = vld [vmem:[#allocation10 + $0x1ac] sm:$0xf]
    %v8902 = vld [vmem:[#allocation10 + $0x1b0] sm:$0xf]
    %v8903 = vld [vmem:[#allocation10 + $0x1b4] sm:$0xf]
    %v8904 = vld [vmem:[#allocation10 + $0x1b8] sm:$0xf]
    %v8905 = vld [vmem:[#allocation10 + $0x1bc] sm:$0xf]
    %v8906 = vld [vmem:[#allocation10 + $0x1c0] sm:$0xf]
    %v8907 = vld [vmem:[#allocation10 + $0x1c4] sm:$0xf]
    %v8908 = vld [vmem:[#allocation10 + $0x1c8] sm:$0xf]
    %v8909 = vld [vmem:[#allocation10 + $0x1cc] sm:$0xf]
    %v8910 = vld [vmem:[#allocation10 + $0x1d0] sm:$0xf]
    %v8911 = vld [vmem:[#allocation10 + $0x1d4] sm:$0xf]
    %v8912 = vld [vmem:[#allocation10 + $0x1d8] sm:$0xf]
    %v8913 = vld [vmem:[#allocation10 + $0x1dc] sm:$0xf]
    %v8914 = vld [vmem:[#allocation10 + $0x1e0] sm:$0xf]
    %v8915 = vld [vmem:[#allocation10 + $0x1e4] sm:$0xf]
    %v8916 = vld [vmem:[#allocation10 + $0x1e8] sm:$0xf]
    %v8917 = vld [vmem:[#allocation10 + $0x1ec] sm:$0xf]
    %v8918 = vld [vmem:[#allocation10 + $0x1f0] sm:$0xf]
    %v8919 = vld [vmem:[#allocation10 + $0x1f4] sm:$0xf]
    %v8920 = vld [vmem:[#allocation10 + $0x1f8] sm:$0xf]
    %v8921 = vld [vmem:[#allocation10 + $0x1fc] sm:$0xf]
    %v8922 = vld [vmem:[#allocation12] sm:$0x1]
    %v8924 = vlaneseq
    %v8925 = vshrl.u32 %v8924, 7
    %v8926 = vsub.s32 0, %v8925
    %v8927 = vrot.slane %v8922, %v8926
    %v9057 = vunpack.c.l.b16 %v8794
    %v9058 = vunpack.c.l.b16 %v8795
    %v9059 = vunpack.c.l.b16 %v8796
    %v9060 = vunpack.c.l.b16 %v8797
    %v9061 = vunpack.c.l.b16 %v8798
    %v9062 = vunpack.c.l.b16 %v8799
    %v9063 = vunpack.c.l.b16 %v8800
    %v9064 = vunpack.c.l.b16 %v8801
    %v9065 = vunpack.c.l.b16 %v8802
    %v9066 = vunpack.c.l.b16 %v8803
    %v9067 = vunpack.c.l.b16 %v8804
    %v9068 = vunpack.c.l.b16 %v8805
    %v9069 = vunpack.c.l.b16 %v8806
    %v9070 = vunpack.c.l.b16 %v8807
    %v9071 = vunpack.c.l.b16 %v8808
    %v9072 = vunpack.c.l.b16 %v8809
    %v9073 = vunpack.c.l.b16 %v8810
    %v9074 = vunpack.c.l.b16 %v8811
    %v9075 = vunpack.c.l.b16 %v8812
    %v9076 = vunpack.c.l.b16 %v8813
    %v9077 = vunpack.c.l.b16 %v8814
    %v9078 = vunpack.c.l.b16 %v8815
    %v9079 = vunpack.c.l.b16 %v8816
    %v9080 = vunpack.c.l.b16 %v8817
    %v9081 = vunpack.c.l.b16 %v8818
    %v9082 = vunpack.c.l.b16 %v8819
    %v9083 = vunpack.c.l.b16 %v8820
    %v9084 = vunpack.c.l.b16 %v8821
    %v9085 = vunpack.c.l.b16 %v8822
    %v9086 = vunpack.c.l.b16 %v8823
    %v9087 = vunpack.c.l.b16 %v8824
    %v9088 = vunpack.c.l.b16 %v8825
    %v9089 = vunpack.c.l.b16 %v8826
    %v9090 = vunpack.c.l.b16 %v8827
    %v9091 = vunpack.c.l.b16 %v8828
    %v9092 = vunpack.c.l.b16 %v8829
    %v9093 = vunpack.c.l.b16 %v8830
    %v9094 = vunpack.c.l.b16 %v8831
    %v9095 = vunpack.c.l.b16 %v8832
    %v9096 = vunpack.c.l.b16 %v8833
    %v9097 = vunpack.c.l.b16 %v8834
    %v9098 = vunpack.c.l.b16 %v8835
    %v9099 = vunpack.c.l.b16 %v8836
    %v9100 = vunpack.c.l.b16 %v8837
    %v9101 = vunpack.c.l.b16 %v8838
    %v9102 = vunpack.c.l.b16 %v8839
    %v9103 = vunpack.c.l.b16 %v8840
    %v9104 = vunpack.c.l.b16 %v8841
    %v9105 = vunpack.c.l.b16 %v8842
    %v9106 = vunpack.c.l.b16 %v8843
    %v9107 = vunpack.c.l.b16 %v8844
    %v9108 = vunpack.c.l.b16 %v8845
    %v9109 = vunpack.c.l.b16 %v8846
    %v9110 = vunpack.c.l.b16 %v8847
    %v9111 = vunpack.c.l.b16 %v8848
    %v9112 = vunpack.c.l.b16 %v8849
    %v9113 = vunpack.c.l.b16 %v8850
    %v9114 = vunpack.c.l.b16 %v8851
    %v9115 = vunpack.c.l.b16 %v8852
    %v9116 = vunpack.c.l.b16 %v8853
    %v9117 = vunpack.c.l.b16 %v8854
    %v9118 = vunpack.c.l.b16 %v8855
    %v9119 = vunpack.c.l.b16 %v8856
    %v9120 = vunpack.c.l.b16 %v8857
    %v9121 = vunpack.c.l.b16 %v8858
    %v9122 = vunpack.c.l.b16 %v8859
    %v9123 = vunpack.c.l.b16 %v8860
    %v9124 = vunpack.c.l.b16 %v8861
    %v9125 = vunpack.c.l.b16 %v8862
    %v9126 = vunpack.c.l.b16 %v8863
    %v9127 = vunpack.c.l.b16 %v8864
    %v9128 = vunpack.c.l.b16 %v8865
    %v9129 = vunpack.c.l.b16 %v8866
    %v9130 = vunpack.c.l.b16 %v8867
    %v9131 = vunpack.c.l.b16 %v8868
    %v9132 = vunpack.c.l.b16 %v8869
    %v9133 = vunpack.c.l.b16 %v8870
    %v9134 = vunpack.c.l.b16 %v8871
    %v9135 = vunpack.c.l.b16 %v8872
    %v9136 = vunpack.c.l.b16 %v8873
    %v9137 = vunpack.c.l.b16 %v8874
    %v9138 = vunpack.c.l.b16 %v8875
    %v9139 = vunpack.c.l.b16 %v8876
    %v9140 = vunpack.c.l.b16 %v8877
    %v9141 = vunpack.c.l.b16 %v8878
    %v9142 = vunpack.c.l.b16 %v8879
    %v9143 = vunpack.c.l.b16 %v8880
    %v9144 = vunpack.c.l.b16 %v8881
    %v9145 = vunpack.c.l.b16 %v8882
    %v9146 = vunpack.c.l.b16 %v8883
    %v9147 = vunpack.c.l.b16 %v8884
    %v9148 = vunpack.c.l.b16 %v8885
    %v9149 = vunpack.c.l.b16 %v8886
    %v9150 = vunpack.c.l.b16 %v8887
    %v9151 = vunpack.c.l.b16 %v8888
    %v9152 = vunpack.c.l.b16 %v8889
    %v9153 = vunpack.c.l.b16 %v8890
    %v9154 = vunpack.c.l.b16 %v8891
    %v9155 = vunpack.c.l.b16 %v8892
    %v9156 = vunpack.c.l.b16 %v8893
    %v9157 = vunpack.c.l.b16 %v8894
    %v9158 = vunpack.c.l.b16 %v8895
    %v9159 = vunpack.c.l.b16 %v8896
    %v9160 = vunpack.c.l.b16 %v8897
    %v9161 = vunpack.c.l.b16 %v8898
    %v9162 = vunpack.c.l.b16 %v8899
    %v9163 = vunpack.c.l.b16 %v8900
    %v9164 = vunpack.c.l.b16 %v8901
    %v9165 = vunpack.c.l.b16 %v8902
    %v9166 = vunpack.c.l.b16 %v8903
    %v9167 = vunpack.c.l.b16 %v8904
    %v9168 = vunpack.c.l.b16 %v8905
    %v9169 = vunpack.c.l.b16 %v8906
    %v9170 = vunpack.c.l.b16 %v8907
    %v9171 = vunpack.c.l.b16 %v8908
    %v9172 = vunpack.c.l.b16 %v8909
    %v9173 = vunpack.c.l.b16 %v8910
    %v9174 = vunpack.c.l.b16 %v8911
    %v9175 = vunpack.c.l.b16 %v8912
    %v9176 = vunpack.c.l.b16 %v8913
    %v9177 = vunpack.c.l.b16 %v8914
    %v9178 = vunpack.c.l.b16 %v8915
    %v9179 = vunpack.c.l.b16 %v8916
    %v9180 = vunpack.c.l.b16 %v8917
    %v9181 = vunpack.c.l.b16 %v8918
    %v9182 = vunpack.c.l.b16 %v8919
    %v9183 = vunpack.c.l.b16 %v8920
    %v9184 = vunpack.c.l.b16 %v8921
    %v9185 = vpack.c.b16 %v9058, %v9057
    %v9186 = vpack.c.b16 %v9060, %v9059
    %v9187 = vpack.c.b16 %v9062, %v9061
    %v9188 = vpack.c.b16 %v9064, %v9063
    %v9189 = vpack.c.b16 %v9066, %v9065
    %v9190 = vpack.c.b16 %v9068, %v9067
    %v9191 = vpack.c.b16 %v9070, %v9069
    %v9192 = vpack.c.b16 %v9072, %v9071
    %v9193 = vpack.c.b16 %v9074, %v9073
    %v9194 = vpack.c.b16 %v9076, %v9075
    %v9195 = vpack.c.b16 %v9078, %v9077
    %v9196 = vpack.c.b16 %v9080, %v9079
    %v9197 = vpack.c.b16 %v9082, %v9081
    %v9198 = vpack.c.b16 %v9084, %v9083
    %v9199 = vpack.c.b16 %v9086, %v9085
    %v9200 = vpack.c.b16 %v9088, %v9087
    %v9201 = vpack.c.b16 %v9090, %v9089
    %v9202 = vpack.c.b16 %v9092, %v9091
    %v9203 = vpack.c.b16 %v9094, %v9093
    %v9204 = vpack.c.b16 %v9096, %v9095
    %v9205 = vpack.c.b16 %v9098, %v9097
    %v9206 = vpack.c.b16 %v9100, %v9099
    %v9207 = vpack.c.b16 %v9102, %v9101
    %v9208 = vpack.c.b16 %v9104, %v9103
    %v9209 = vpack.c.b16 %v9106, %v9105
    %v9210 = vpack.c.b16 %v9108, %v9107
    %v9211 = vpack.c.b16 %v9110, %v9109
    %v9212 = vpack.c.b16 %v9112, %v9111
    %v9213 = vpack.c.b16 %v9114, %v9113
    %v9214 = vpack.c.b16 %v9116, %v9115
    %v9215 = vpack.c.b16 %v9118, %v9117
    %v9216 = vpack.c.b16 %v9120, %v9119
    %v9217 = vpack.c.b16 %v9122, %v9121
    %v9218 = vpack.c.b16 %v9124, %v9123
    %v9219 = vpack.c.b16 %v9126, %v9125
    %v9220 = vpack.c.b16 %v9128, %v9127
    %v9221 = vpack.c.b16 %v9130, %v9129
    %v9222 = vpack.c.b16 %v9132, %v9131
    %v9223 = vpack.c.b16 %v9134, %v9133
    %v9224 = vpack.c.b16 %v9136, %v9135
    %v9225 = vpack.c.b16 %v9138, %v9137
    %v9226 = vpack.c.b16 %v9140, %v9139
    %v9227 = vpack.c.b16 %v9142, %v9141
    %v9228 = vpack.c.b16 %v9144, %v9143
    %v9229 = vpack.c.b16 %v9146, %v9145
    %v9230 = vpack.c.b16 %v9148, %v9147
    %v9231 = vpack.c.b16 %v9150, %v9149
    %v9232 = vpack.c.b16 %v9152, %v9151
    %v9233 = vpack.c.b16 %v9154, %v9153
    %v9234 = vpack.c.b16 %v9156, %v9155
    %v9235 = vpack.c.b16 %v9158, %v9157
    %v9236 = vpack.c.b16 %v9160, %v9159
    %v9237 = vpack.c.b16 %v9162, %v9161
    %v9238 = vpack.c.b16 %v9164, %v9163
    %v9239 = vpack.c.b16 %v9166, %v9165
    %v9240 = vpack.c.b16 %v9168, %v9167
    %v9241 = vpack.c.b16 %v9170, %v9169
    %v9242 = vpack.c.b16 %v9172, %v9171
    %v9243 = vpack.c.b16 %v9174, %v9173
    %v9244 = vpack.c.b16 %v9176, %v9175
    %v9245 = vpack.c.b16 %v9178, %v9177
    %v9246 = vpack.c.b16 %v9180, %v9179
    %v9247 = vpack.c.b16 %v9182, %v9181
    %v9248 = vpack.c.b16 %v9184, %v9183
    %9313 = vmatprep.subr.bf16.mxu0 0
    %9314 = vmatpush1.bf16.msra.mxu0 %v9185
    %9315 = vmatprep.subr.bf16.mxu0 0
    %9316 = vmatpush1.bf16.msra.mxu0 %v9186
    %9317 = vmatprep.subr.bf16.mxu0 0
    %9318 = vmatpush1.bf16.msra.mxu0 %v9187
    %9319 = vmatprep.subr.bf16.mxu0 0
    %9320 = vmatpush1.bf16.msra.mxu0 %v9188
    %9321 = vmatprep.subr.bf16.mxu0 0
    %9322 = vmatpush1.bf16.msra.mxu0 %v9189
    %9323 = vmatprep.subr.bf16.mxu0 0
    %9324 = vmatpush1.bf16.msra.mxu0 %v9190
    %9325 = vmatprep.subr.bf16.mxu0 0
    %9326 = vmatpush1.bf16.msra.mxu0 %v9191
    %9327 = vmatprep.subr.bf16.mxu0 0
    %9328 = vmatpush1.bf16.msra.mxu0 %v9192
    %9329 = vmatprep.subr.bf16.mxu0 0
    %9330 = vmatpush1.bf16.msra.mxu0 %v9193
    %9331 = vmatprep.subr.bf16.mxu0 0
    %9332 = vmatpush1.bf16.msra.mxu0 %v9194
    %9333 = vmatprep.subr.bf16.mxu0 0
    %9334 = vmatpush1.bf16.msra.mxu0 %v9195
    %9335 = vmatprep.subr.bf16.mxu0 0
    %9336 = vmatpush1.bf16.msra.mxu0 %v9196
    %9337 = vmatprep.subr.bf16.mxu0 0
    %9338 = vmatpush1.bf16.msra.mxu0 %v9197
    %9339 = vmatprep.subr.bf16.mxu0 0
    %9340 = vmatpush1.bf16.msra.mxu0 %v9198
    %9341 = vmatprep.subr.bf16.mxu0 0
    %9342 = vmatpush1.bf16.msra.mxu0 %v9199
    %9343 = vmatprep.subr.bf16.mxu0 0
    %9344 = vmatpush1.bf16.msra.mxu0 %v9200
    %9345 = vmatprep.mubr.bf16.mxu0 %v8667
    %9346 = vmatmul.mubr.bf16.gmra.mrb[0].mxu0 %v8666
    %v9347 = vpop.f32.mrb[0].mxu0
    %v9348 = vadd.f32 %v8927, %v9347
    %v9349 = vpop.f32.mrb[0].mxu0
    %v9350 = vpop.f32.mrb[0].mxu0
    %v9351 = vadd.f32 %v8927, %v9350
    %v9352 = vpop.f32.mrb[0].mxu0
    %9353 = vmatprep.mubr.bf16.mxu0 %v8675
    %9354 = vmatmul.mubr.bf16.gmra.mrb[0].mxu0 %v8674
    %v9355 = vpop.f32.mrb[0].mxu0
    %v9356 = vadd.f32 %v8927, %v9355
    %v9357 = vpop.f32.mrb[0].mxu0
    %v9358 = vpop.f32.mrb[0].mxu0
    %v9359 = vadd.f32 %v8927, %v9358
    %v9360 = vpop.f32.mrb[0].mxu0
    %9361 = vmatprep.mubr.bf16.mxu0 %v8683
    %9362 = vmatmul.mubr.bf16.gmra.mrb[0].mxu0 %v8682
    %v9363 = vpop.f32.mrb[0].mxu0
    %v9364 = vadd.f32 %v8927, %v9363
    %v9365 = vpop.f32.mrb[0].mxu0
    %v9366 = vpop.f32.mrb[0].mxu0
    %v9367 = vadd.f32 %v8927, %v9366
    %v9368 = vpop.f32.mrb[0].mxu0
    %9369 = vmatprep.mubr.bf16.mxu0 %v8691
    %9370 = vmatmul.mubr.bf16.gmra.mrb[0].mxu0 %v8690
    %v9371 = vpop.f32.mrb[0].mxu0
    %v9372 = vadd.f32 %v8927, %v9371
    %v9373 = vpop.f32.mrb[0].mxu0
    %v9374 = vpop.f32.mrb[0].mxu0
    %v9375 = vadd.f32 %v8927, %v9374
    %v9376 = vpop.f32.mrb[0].mxu0
    %9377 = vmatprep.mubr.bf16.mxu0 %v8699
    %9378 = vmatmul.mubr.bf16.gmra.mrb[0].mxu0 %v8698
    %v9379 = vpop.f32.mrb[0].mxu0
    %v9380 = vadd.f32 %v8927, %v9379
    %v9381 = vpop.f32.mrb[0].mxu0
    %v9382 = vpop.f32.mrb[0].mxu0
    %v9383 = vadd.f32 %v8927, %v9382
    %v9384 = vpop.f32.mrb[0].mxu0
    %9385 = vmatprep.mubr.bf16.mxu0 %v8707
    %9386 = vmatmul.mubr.bf16.gmra.mrb[0].mxu0 %v8706
    %v9387 = vpop.f32.mrb[0].mxu0
    %v9388 = vadd.f32 %v8927, %v9387
    %v9389 = vpop.f32.mrb[0].mxu0
    %v9390 = vpop.f32.mrb[0].mxu0
    %v9391 = vadd.f32 %v8927, %v9390
    %v9392 = vpop.f32.mrb[0].mxu0
    %9393 = vmatprep.mubr.bf16.mxu0 %v8715
    %9394 = vmatmul.mubr.bf16.gmra.mrb[0].mxu0 %v8714
    %v9395 = vpop.f32.mrb[0].mxu0
    %v9396 = vadd.f32 %v8927, %v9395
    %v9397 = vpop.f32.mrb[0].mxu0
    %v9398 = vpop.f32.mrb[0].mxu0
    %v9399 = vadd.f32 %v8927, %v9398
    %v9400 = vpop.f32.mrb[0].mxu0
    %9401 = vmatprep.mubr.bf16.mxu0 %v8723
    %9402 = vmatmul.mubr.bf16.gmra.mrb[0].mxu0 %v8722
    %v9403 = vpop.f32.mrb[0].mxu0
    %v9404 = vadd.f32 %v8927, %v9403
    %v9405 = vpop.f32.mrb[0].mxu0
    %v9406 = vpop.f32.mrb[0].mxu0
    %v9407 = vadd.f32 %v8927, %v9406
    %v9408 = vpop.f32.mrb[0].mxu0
    %9409 = vmatprep.mubr.bf16.mxu0 %v8731
    %9410 = vmatmul.mubr.bf16.gmra.mrb[0].mxu0 %v8730
    %v9411 = vpop.f32.mrb[0].mxu0
    %v9412 = vadd.f32 %v8927, %v9411
    %v9413 = vpop.f32.mrb[0].mxu0
    %v9414 = vpop.f32.mrb[0].mxu0
    %v9415 = vadd.f32 %v8927, %v9414
    %v9416 = vpop.f32.mrb[0].mxu0
    %9417 = vmatprep.mubr.bf16.mxu0 %v8739
    %9418 = vmatmul.mubr.bf16.gmra.mrb[0].mxu0 %v8738
    %v9419 = vpop.f32.mrb[0].mxu0
    %v9420 = vadd.f32 %v8927, %v9419
    %v9421 = vpop.f32.mrb[0].mxu0
    %v9422 = vpop.f32.mrb[0].mxu0
    %v9423 = vadd.f32 %v8927, %v9422
    %v9424 = vpop.f32.mrb[0].mxu0
    %9425 = vmatprep.mubr.bf16.mxu0 %v8747
    %9426 = vmatmul.mubr.bf16.gmra.mrb[0].mxu0 %v8746
    %v9427 = vpop.f32.mrb[0].mxu0
    %v9428 = vadd.f32 %v8927, %v9427
    %v9429 = vpop.f32.mrb[0].mxu0
    %v9430 = vpop.f32.mrb[0].mxu0
    %v9431 = vadd.f32 %v8927, %v9430
    %v9432 = vpop.f32.mrb[0].mxu0
    %9433 = vmatprep.mubr.bf16.mxu0 %v8755
    %9434 = vmatmul.mubr.bf16.gmra.mrb[0].mxu0 %v8754
    %v9435 = vpop.f32.mrb[0].mxu0
    %v9436 = vadd.f32 %v8927, %v9435
    %v9437 = vpop.f32.mrb[0].mxu0
    %v9438 = vpop.f32.mrb[0].mxu0
    %v9439 = vadd.f32 %v8927, %v9438
    %v9440 = vpop.f32.mrb[0].mxu0
    %9441 = vmatprep.mubr.bf16.mxu0 %v8763
    %9442 = vmatmul.mubr.bf16.gmra.mrb[0].mxu0 %v8762
    %v9443 = vpop.f32.mrb[0].mxu0
    %v9444 = vadd.f32 %v8927, %v9443
    %v9445 = vpop.f32.mrb[0].mxu0
    %v9446 = vpop.f32.mrb[0].mxu0
    %v9447 = vadd.f32 %v8927, %v9446
    %v9448 = vpop.f32.mrb[0].mxu0
    %9449 = vmatprep.mubr.bf16.mxu0 %v8771
    %9450 = vmatmul.mubr.bf16.gmra.mrb[0].mxu0 %v8770
    %v9451 = vpop.f32.mrb[0].mxu0
    %v9452 = vadd.f32 %v8927, %v9451
    %v9453 = vpop.f32.mrb[0].mxu0
    %v9454 = vpop.f32.mrb[0].mxu0
    %v9455 = vadd.f32 %v8927, %v9454
    %v9456 = vpop.f32.mrb[0].mxu0
    %9457 = vmatprep.mubr.bf16.mxu0 %v8779
    %9458 = vmatmul.mubr.bf16.gmra.mrb[0].mxu0 %v8778
    %v9459 = vpop.f32.mrb[0].mxu0
    %v9460 = vadd.f32 %v8927, %v9459
    %v9461 = vpop.f32.mrb[0].mxu0
    %v9462 = vpop.f32.mrb[0].mxu0
    %v9463 = vadd.f32 %v8927, %v9462
    %v9464 = vpop.f32.mrb[0].mxu0
    %9465 = vmatprep.mubr.bf16.mxu0 %v8787
    %9466 = vmatmul.mubr.bf16.gmra.mrb[0].mxu0 %v8786
    %v9467 = vpop.f32.mrb[0].mxu0
    %v9468 = vadd.f32 %v8927, %v9467
    %v9469 = vpop.f32.mrb[0].mxu0
    %v9470 = vpop.f32.mrb[0].mxu0
    %v9471 = vadd.f32 %v8927, %v9470
    %v9472 = vpop.f32.mrb[0].mxu0
    %9473 = vdwg.mxu0
    %9474 = vmatprep.subr.bf16.mxu0 0
    %9475 = vmatpush1.bf16.msra.mxu0 %v9201
    %9476 = vmatprep.subr.bf16.mxu0 0
    %9477 = vmatpush1.bf16.msra.mxu0 %v9202
    %9478 = vmatprep.subr.bf16.mxu0 0
    %9479 = vmatpush1.bf16.msra.mxu0 %v9203
    %9480 = vmatprep.subr.bf16.mxu0 0
    %9481 = vmatpush1.bf16.msra.mxu0 %v9204
    %9482 = vmatprep.subr.bf16.mxu0 0
    %9483 = vmatpush1.bf16.msra.mxu0 %v9205
    %9484 = vmatprep.subr.bf16.mxu0 0
    %9485 = vmatpush1.bf16.msra.mxu0 %v9206
    %9486 = vmatprep.subr.bf16.mxu0 0
    %9487 = vmatpush1.bf16.msra.mxu0 %v9207
    %9488 = vmatprep.subr.bf16.mxu0 0
    %9489 = vmatpush1.bf16.msra.mxu0 %v9208
    %9490 = vmatprep.subr.bf16.mxu0 0
    %9491 = vmatpush1.bf16.msra.mxu0 %v9209
    %9492 = vmatprep.subr.bf16.mxu0 0
    %9493 = vmatpush1.bf16.msra.mxu0 %v9210
    %9494 = vmatprep.subr.bf16.mxu0 0
    %9495 = vmatpush1.bf16.msra.mxu0 %v9211
    %9496 = vmatprep.subr.bf16.mxu0 0
    %9497 = vmatpush1.bf16.msra.mxu0 %v9212
    %9498 = vmatprep.subr.bf16.mxu0 0
    %9499 = vmatpush1.bf16.msra.mxu0 %v9213
    %9500 = vmatprep.subr.bf16.mxu0 0
    %9501 = vmatpush1.bf16.msra.mxu0 %v9214
    %9502 = vmatprep.subr.bf16.mxu0 0
    %9503 = vmatpush1.bf16.msra.mxu0 %v9215
    %9504 = vmatprep.subr.bf16.mxu0 0
    %9505 = vmatpush1.bf16.msra.mxu0 %v9216
    %9506 = vmatprep.mubr.bf16.mxu0 %v8669
    %9507 = vmatmul.mubr.bf16.gmra.mrb[0].mxu0 %v8668
    %v9508 = vpop.f32.mrb[0].mxu0
    %v9509 = vadd.f32 %v9348, %v9508
    %v9510 = vpop.f32.mrb[0].mxu0
    %v9511 = vpop.f32.mrb[0].mxu0
    %v9512 = vadd.f32 %v9351, %v9511
    %v9513 = vpop.f32.mrb[0].mxu0
    %9514 = vmatprep.mubr.bf16.mxu0 %v8677
    %9515 = vmatmul.mubr.bf16.gmra.mrb[0].mxu0 %v8676
    %v9516 = vpop.f32.mrb[0].mxu0
    %v9517 = vadd.f32 %v9356, %v9516
    %v9518 = vpop.f32.mrb[0].mxu0
    %v9519 = vpop.f32.mrb[0].mxu0
    %v9520 = vadd.f32 %v9359, %v9519
    %v9521 = vpop.f32.mrb[0].mxu0
    %9522 = vmatprep.mubr.bf16.mxu0 %v8685
    %9523 = vmatmul.mubr.bf16.gmra.mrb[0].mxu0 %v8684
    %v9524 = vpop.f32.mrb[0].mxu0
    %v9525 = vadd.f32 %v9364, %v9524
    %v9526 = vpop.f32.mrb[0].mxu0
    %v9527 = vpop.f32.mrb[0].mxu0
    %v9528 = vadd.f32 %v9367, %v9527
    %v9529 = vpop.f32.mrb[0].mxu0
    %9530 = vmatprep.mubr.bf16.mxu0 %v8693
    %9531 = vmatmul.mubr.bf16.gmra.mrb[0].mxu0 %v8692
    %v9532 = vpop.f32.mrb[0].mxu0
    %v9533 = vadd.f32 %v9372, %v9532
    %v9534 = vpop.f32.mrb[0].mxu0
    %v9535 = vpop.f32.mrb[0].mxu0
    %v9536 = vadd.f32 %v9375, %v9535
    %v9537 = vpop.f32.mrb[0].mxu0
    %9538 = vmatprep.mubr.bf16.mxu0 %v8701
    %9539 = vmatmul.mubr.bf16.gmra.mrb[0].mxu0 %v8700
    %v9540 = vpop.f32.mrb[0].mxu0
    %v9541 = vadd.f32 %v9380, %v9540
    %v9542 = vpop.f32.mrb[0].mxu0
    %v9543 = vpop.f32.mrb[0].mxu0
    %v9544 = vadd.f32 %v9383, %v9543
    %v9545 = vpop.f32.mrb[0].mxu0
    %9546 = vmatprep.mubr.bf16.mxu0 %v8709
    %9547 = vmatmul.mubr.bf16.gmra.mrb[0].mxu0 %v8708
    %v9548 = vpop.f32.mrb[0].mxu0
    %v9549 = vadd.f32 %v9388, %v9548
    %v9550 = vpop.f32.mrb[0].mxu0
    %v9551 = vpop.f32.mrb[0].mxu0
    %v9552 = vadd.f32 %v9391, %v9551
    %v9553 = vpop.f32.mrb[0].mxu0
    %9554 = vmatprep.mubr.bf16.mxu0 %v8717
    %9555 = vmatmul.mubr.bf16.gmra.mrb[0].mxu0 %v8716
    %v9556 = vpop.f32.mrb[0].mxu0
    %v9557 = vadd.f32 %v9396, %v9556
    %v9558 = vpop.f32.mrb[0].mxu0
    %v9559 = vpop.f32.mrb[0].mxu0
    %v9560 = vadd.f32 %v9399, %v9559
    %v9561 = vpop.f32.mrb[0].mxu0
    %9562 = vmatprep.mubr.bf16.mxu0 %v8725
    %9563 = vmatmul.mubr.bf16.gmra.mrb[0].mxu0 %v8724
    %v9564 = vpop.f32.mrb[0].mxu0
    %v9565 = vadd.f32 %v9404, %v9564
    %v9566 = vpop.f32.mrb[0].mxu0
    %v9567 = vpop.f32.mrb[0].mxu0
    %v9568 = vadd.f32 %v9407, %v9567
    %v9569 = vpop.f32.mrb[0].mxu0
    %9570 = vmatprep.mubr.bf16.mxu0 %v8733
    %9571 = vmatmul.mubr.bf16.gmra.mrb[0].mxu0 %v8732
    %v9572 = vpop.f32.mrb[0].mxu0
    %v9573 = vadd.f32 %v9412, %v9572
    %v9574 = vpop.f32.mrb[0].mxu0
    %v9575 = vpop.f32.mrb[0].mxu0
    %v9576 = vadd.f32 %v9415, %v9575
    %v9577 = vpop.f32.mrb[0].mxu0
    %9578 = vmatprep.mubr.bf16.mxu0 %v8741
    %9579 = vmatmul.mubr.bf16.gmra.mrb[0].mxu0 %v8740
    %v9580 = vpop.f32.mrb[0].mxu0
    %v9581 = vadd.f32 %v9420, %v9580
    %v9582 = vpop.f32.mrb[0].mxu0
    %v9583 = vpop.f32.mrb[0].mxu0
    %v9584 = vadd.f32 %v9423, %v9583
    %v9585 = vpop.f32.mrb[0].mxu0
    %9586 = vmatprep.mubr.bf16.mxu0 %v8749
    %9587 = vmatmul.mubr.bf16.gmra.mrb[0].mxu0 %v8748
    %v9588 = vpop.f32.mrb[0].mxu0
    %v9589 = vadd.f32 %v9428, %v9588
    %v9590 = vpop.f32.mrb[0].mxu0
    %v9591 = vpop.f32.mrb[0].mxu0
    %v9592 = vadd.f32 %v9431, %v9591
    %v9593 = vpop.f32.mrb[0].mxu0
    %9594 = vmatprep.mubr.bf16.mxu0 %v8757
    %9595 = vmatmul.mubr.bf16.gmra.mrb[0].mxu0 %v8756
    %v9596 = vpop.f32.mrb[0].mxu0
    %v9597 = vadd.f32 %v9436, %v9596
    %v9598 = vpop.f32.mrb[0].mxu0
    %v9599 = vpop.f32.mrb[0].mxu0
    %v9600 = vadd.f32 %v9439, %v9599
    %v9601 = vpop.f32.mrb[0].mxu0
    %9602 = vmatprep.mubr.bf16.mxu0 %v8765
    %9603 = vmatmul.mubr.bf16.gmra.mrb[0].mxu0 %v8764
    %v9604 = vpop.f32.mrb[0].mxu0
    %v9605 = vadd.f32 %v9444, %v9604
    %v9606 = vpop.f32.mrb[0].mxu0
    %v9607 = vpop.f32.mrb[0].mxu0
    %v9608 = vadd.f32 %v9447, %v9607
    %v9609 = vpop.f32.mrb[0].mxu0
    %9610 = vmatprep.mubr.bf16.mxu0 %v8773
    %9611 = vmatmul.mubr.bf16.gmra.mrb[0].mxu0 %v8772
    %v9612 = vpop.f32.mrb[0].mxu0
    %v9613 = vadd.f32 %v9452, %v9612
    %v9614 = vpop.f32.mrb[0].mxu0
    %v9615 = vpop.f32.mrb[0].mxu0
    %v9616 = vadd.f32 %v9455, %v9615
    %v9617 = vpop.f32.mrb[0].mxu0
    %9618 = vmatprep.mubr.bf16.mxu0 %v8781
    %9619 = vmatmul.mubr.bf16.gmra.mrb[0].mxu0 %v8780
    %v9620 = vpop.f32.mrb[0].mxu0
    %v9621 = vadd.f32 %v9460, %v9620
    %v9622 = vpop.f32.mrb[0].mxu0
    %v9623 = vpop.f32.mrb[0].mxu0
    %v9624 = vadd.f32 %v9463, %v9623
    %v9625 = vpop.f32.mrb[0].mxu0
    %9626 = vmatprep.mubr.bf16.mxu0 %v8789
    %9627 = vmatmul.mubr.bf16.gmra.mrb[0].mxu0 %v8788
    %v9628 = vpop.f32.mrb[0].mxu0
    %v9629 = vadd.f32 %v9468, %v9628
    %v9630 = vpop.f32.mrb[0].mxu0
    %v9631 = vpop.f32.mrb[0].mxu0
    %v9632 = vadd.f32 %v9471, %v9631
    %v9633 = vpop.f32.mrb[0].mxu0
    %9634 = vdwg.mxu0
    %9635 = vmatprep.subr.bf16.mxu0 0
    %9636 = vmatpush1.bf16.msra.mxu0 %v9217
    %9637 = vmatprep.subr.bf16.mxu0 0
    %9638 = vmatpush1.bf16.msra.mxu0 %v9218
    %9639 = vmatprep.subr.bf16.mxu0 0
    %9640 = vmatpush1.bf16.msra.mxu0 %v9219
    %9641 = vmatprep.subr.bf16.mxu0 0
    %9642 = vmatpush1.bf16.msra.mxu0 %v9220
    %9643 = vmatprep.subr.bf16.mxu0 0
    %9644 = vmatpush1.bf16.msra.mxu0 %v9221
    %9645 = vmatprep.subr.bf16.mxu0 0
    %9646 = vmatpush1.bf16.msra.mxu0 %v9222
    %9647 = vmatprep.subr.bf16.mxu0 0
    %9648 = vmatpush1.bf16.msra.mxu0 %v9223
    %9649 = vmatprep.subr.bf16.mxu0 0
    %9650 = vmatpush1.bf16.msra.mxu0 %v9224
    %9651 = vmatprep.subr.bf16.mxu0 0
    %9652 = vmatpush1.bf16.msra.mxu0 %v9225
    %9653 = vmatprep.subr.bf16.mxu0 0
    %9654 = vmatpush1.bf16.msra.mxu0 %v9226
    %9655 = vmatprep.subr.bf16.mxu0 0
    %9656 = vmatpush1.bf16.msra.mxu0 %v9227
    %9657 = vmatprep.subr.bf16.mxu0 0
    %9658 = vmatpush1.bf16.msra.mxu0 %v9228
    %9659 = vmatprep.subr.bf16.mxu0 0
    %9660 = vmatpush1.bf16.msra.mxu0 %v9229
    %9661 = vmatprep.subr.bf16.mxu0 0
    %9662 = vmatpush1.bf16.msra.mxu0 %v9230
    %9663 = vmatprep.subr.bf16.mxu0 0
    %9664 = vmatpush1.bf16.msra.mxu0 %v9231
    %9665 = vmatprep.subr.bf16.mxu0 0
    %9666 = vmatpush1.bf16.msra.mxu0 %v9232
    %9667 = vmatprep.mubr.bf16.mxu0 %v8671
    %9668 = vmatmul.mubr.bf16.gmra.mrb[0].mxu0 %v8670
    %v9669 = vpop.f32.mrb[0].mxu0
    %v9670 = vadd.f32 %v9509, %v9669
    %v9671 = vpop.f32.mrb[0].mxu0
    %v9672 = vpop.f32.mrb[0].mxu0
    %v9673 = vadd.f32 %v9512, %v9672
    %v9674 = vpop.f32.mrb[0].mxu0
    %9675 = vmatprep.mubr.bf16.mxu0 %v8679
    %9676 = vmatmul.mubr.bf16.gmra.mrb[0].mxu0 %v8678
    %v9677 = vpop.f32.mrb[0].mxu0
    %v9678 = vadd.f32 %v9517, %v9677
    %v9679 = vpop.f32.mrb[0].mxu0
    %v9680 = vpop.f32.mrb[0].mxu0
    %v9681 = vadd.f32 %v9520, %v9680
    %v9682 = vpop.f32.mrb[0].mxu0
    %9683 = vmatprep.mubr.bf16.mxu0 %v8687
    %9684 = vmatmul.mubr.bf16.gmra.mrb[0].mxu0 %v8686
    %v9685 = vpop.f32.mrb[0].mxu0
    %v9686 = vadd.f32 %v9525, %v9685
    %v9687 = vpop.f32.mrb[0].mxu0
    %v9688 = vpop.f32.mrb[0].mxu0
    %v9689 = vadd.f32 %v9528, %v9688
    %v9690 = vpop.f32.mrb[0].mxu0
    %9691 = vmatprep.mubr.bf16.mxu0 %v8695
    %9692 = vmatmul.mubr.bf16.gmra.mrb[0].mxu0 %v8694
    %v9693 = vpop.f32.mrb[0].mxu0
    %v9694 = vadd.f32 %v9533, %v9693
    %v9695 = vpop.f32.mrb[0].mxu0
    %v9696 = vpop.f32.mrb[0].mxu0
    %v9697 = vadd.f32 %v9536, %v9696
    %v9698 = vpop.f32.mrb[0].mxu0
    %9699 = vmatprep.mubr.bf16.mxu0 %v8703
    %9700 = vmatmul.mubr.bf16.gmra.mrb[0].mxu0 %v8702
    %v9701 = vpop.f32.mrb[0].mxu0
    %v9702 = vadd.f32 %v9541, %v9701
    %v9703 = vpop.f32.mrb[0].mxu0
    %v9704 = vpop.f32.mrb[0].mxu0
    %v9705 = vadd.f32 %v9544, %v9704
    %v9706 = vpop.f32.mrb[0].mxu0
    %9707 = vmatprep.mubr.bf16.mxu0 %v8711
    %9708 = vmatmul.mubr.bf16.gmra.mrb[0].mxu0 %v8710
    %v9709 = vpop.f32.mrb[0].mxu0
    %v9710 = vadd.f32 %v9549, %v9709
    %v9711 = vpop.f32.mrb[0].mxu0
    %v9712 = vpop.f32.mrb[0].mxu0
    %v9713 = vadd.f32 %v9552, %v9712
    %v9714 = vpop.f32.mrb[0].mxu0
    %9715 = vmatprep.mubr.bf16.mxu0 %v8719
    %9716 = vmatmul.mubr.bf16.gmra.mrb[0].mxu0 %v8718
    %v9717 = vpop.f32.mrb[0].mxu0
    %v9718 = vadd.f32 %v9557, %v9717
    %v9719 = vpop.f32.mrb[0].mxu0
    %v9720 = vpop.f32.mrb[0].mxu0
    %v9721 = vadd.f32 %v9560, %v9720
    %v9722 = vpop.f32.mrb[0].mxu0
    %9723 = vmatprep.mubr.bf16.mxu0 %v8727
    %9724 = vmatmul.mubr.bf16.gmra.mrb[0].mxu0 %v8726
    %v9725 = vpop.f32.mrb[0].mxu0
    %v9726 = vadd.f32 %v9565, %v9725
    %v9727 = vpop.f32.mrb[0].mxu0
    %v9728 = vpop.f32.mrb[0].mxu0
    %v9729 = vadd.f32 %v9568, %v9728
    %v9730 = vpop.f32.mrb[0].mxu0
    %9731 = vmatprep.mubr.bf16.mxu0 %v8735
    %9732 = vmatmul.mubr.bf16.gmra.mrb[0].mxu0 %v8734
    %v9733 = vpop.f32.mrb[0].mxu0
    %v9734 = vadd.f32 %v9573, %v9733
    %v9735 = vpop.f32.mrb[0].mxu0
    %v9736 = vpop.f32.mrb[0].mxu0
    %v9737 = vadd.f32 %v9576, %v9736
    %v9738 = vpop.f32.mrb[0].mxu0
    %9739 = vmatprep.mubr.bf16.mxu0 %v8743
    %9740 = vmatmul.mubr.bf16.gmra.mrb[0].mxu0 %v8742
    %v9741 = vpop.f32.mrb[0].mxu0
    %v9742 = vadd.f32 %v9581, %v9741
    %v9743 = vpop.f32.mrb[0].mxu0
    %v9744 = vpop.f32.mrb[0].mxu0
    %v9745 = vadd.f32 %v9584, %v9744
    %v9746 = vpop.f32.mrb[0].mxu0
    %9747 = vmatprep.mubr.bf16.mxu0 %v8751
    %9748 = vmatmul.mubr.bf16.gmra.mrb[0].mxu0 %v8750
    %v9749 = vpop.f32.mrb[0].mxu0
    %v9750 = vadd.f32 %v9589, %v9749
    %v9751 = vpop.f32.mrb[0].mxu0
    %v9752 = vpop.f32.mrb[0].mxu0
    %v9753 = vadd.f32 %v9592, %v9752
    %v9754 = vpop.f32.mrb[0].mxu0
    %9755 = vmatprep.mubr.bf16.mxu0 %v8759
    %9756 = vmatmul.mubr.bf16.gmra.mrb[0].mxu0 %v8758
    %v9757 = vpop.f32.mrb[0].mxu0
    %v9758 = vadd.f32 %v9597, %v9757
    %v9759 = vpop.f32.mrb[0].mxu0
    %v9760 = vpop.f32.mrb[0].mxu0
    %v9761 = vadd.f32 %v9600, %v9760
    %v9762 = vpop.f32.mrb[0].mxu0
    %9763 = vmatprep.mubr.bf16.mxu0 %v8767
    %9764 = vmatmul.mubr.bf16.gmra.mrb[0].mxu0 %v8766
    %v9765 = vpop.f32.mrb[0].mxu0
    %v9766 = vadd.f32 %v9605, %v9765
    %v9767 = vpop.f32.mrb[0].mxu0
    %v9768 = vpop.f32.mrb[0].mxu0
    %v9769 = vadd.f32 %v9608, %v9768
    %v9770 = vpop.f32.mrb[0].mxu0
    %9771 = vmatprep.mubr.bf16.mxu0 %v8775
    %9772 = vmatmul.mubr.bf16.gmra.mrb[0].mxu0 %v8774
    %v9773 = vpop.f32.mrb[0].mxu0
    %v9774 = vadd.f32 %v9613, %v9773
    %v9775 = vpop.f32.mrb[0].mxu0
    %v9776 = vpop.f32.mrb[0].mxu0
    %v9777 = vadd.f32 %v9616, %v9776
    %v9778 = vpop.f32.mrb[0].mxu0
    %9779 = vmatprep.mubr.bf16.mxu0 %v8783
    %9780 = vmatmul.mubr.bf16.gmra.mrb[0].mxu0 %v8782
    %v9781 = vpop.f32.mrb[0].mxu0
    %v9782 = vadd.f32 %v9621, %v9781
    %v9783 = vpop.f32.mrb[0].mxu0
    %v9784 = vpop.f32.mrb[0].mxu0
    %v9785 = vadd.f32 %v9624, %v9784
    %v9786 = vpop.f32.mrb[0].mxu0
    %9787 = vmatprep.mubr.bf16.mxu0 %v8791
    %9788 = vmatmul.mubr.bf16.gmra.mrb[0].mxu0 %v8790
    %v9789 = vpop.f32.mrb[0].mxu0
    %v9790 = vadd.f32 %v9629, %v9789
    %v9791 = vpop.f32.mrb[0].mxu0
    %v9792 = vpop.f32.mrb[0].mxu0
    %v9793 = vadd.f32 %v9632, %v9792
    %v9794 = vpop.f32.mrb[0].mxu0
    %9795 = vdwg.mxu0
    %9796 = vmatprep.subr.bf16.mxu0 0
    %9797 = vmatpush1.bf16.msra.mxu0 %v9233
    %9798 = vmatprep.subr.bf16.mxu0 0
    %9799 = vmatpush1.bf16.msra.mxu0 %v9234
    %9800 = vmatprep.subr.bf16.mxu0 0
    %9801 = vmatpush1.bf16.msra.mxu0 %v9235
    %9802 = vmatprep.subr.bf16.mxu0 0
    %9803 = vmatpush1.bf16.msra.mxu0 %v9236
    %9804 = vmatprep.subr.bf16.mxu0 0
    %9805 = vmatpush1.bf16.msra.mxu0 %v9237
    %9806 = vmatprep.subr.bf16.mxu0 0
    %9807 = vmatpush1.bf16.msra.mxu0 %v9238
    %9808 = vmatprep.subr.bf16.mxu0 0
    %9809 = vmatpush1.bf16.msra.mxu0 %v9239
    %9810 = vmatprep.subr.bf16.mxu0 0
    %9811 = vmatpush1.bf16.msra.mxu0 %v9240
    %9812 = vmatprep.subr.bf16.mxu0 0
    %9813 = vmatpush1.bf16.msra.mxu0 %v9241
    %9814 = vmatprep.subr.bf16.mxu0 0
    %9815 = vmatpush1.bf16.msra.mxu0 %v9242
    %9816 = vmatprep.subr.bf16.mxu0 0
    %9817 = vmatpush1.bf16.msra.mxu0 %v9243
    %9818 = vmatprep.subr.bf16.mxu0 0
    %9819 = vmatpush1.bf16.msra.mxu0 %v9244
    %9820 = vmatprep.subr.bf16.mxu0 0
    %9821 = vmatpush1.bf16.msra.mxu0 %v9245
    %9822 = vmatprep.subr.bf16.mxu0 0
    %9823 = vmatpush1.bf16.msra.mxu0 %v9246
    %9824 = vmatprep.subr.bf16.mxu0 0
    %9825 = vmatpush1.bf16.msra.mxu0 %v9247
    %9826 = vmatprep.subr.bf16.mxu0 0
    %9827 = vmatpush1.bf16.msra.mxu0 %v9248
    %9828 = vmatprep.mubr.bf16.mxu0 %v8673
    %9829 = vmatmul.mubr.bf16.gmra.mrb[0].mxu0 %v8672
    %v9830 = vpop.f32.mrb[0].mxu0
    %v9831 = vadd.f32 %v9670, %v9830
    %v9832 = vpop.f32.mrb[0].mxu0
    %v9833 = vpop.f32.mrb[0].mxu0
    %v9834 = vadd.f32 %v9673, %v9833
    %v9835 = vpop.f32.mrb[0].mxu0
    %9836 = vmatprep.mubr.bf16.mxu0 %v8681
    %9837 = vmatmul.mubr.bf16.gmra.mrb[0].mxu0 %v8680
    %v9838 = vpop.f32.mrb[0].mxu0
    %v9839 = vadd.f32 %v9678, %v9838
    %v9840 = vpop.f32.mrb[0].mxu0
    %v9841 = vpop.f32.mrb[0].mxu0
    %v9842 = vadd.f32 %v9681, %v9841
    %v9843 = vpop.f32.mrb[0].mxu0
    %9844 = vmatprep.mubr.bf16.mxu0 %v8689
    %9845 = vmatmul.mubr.bf16.gmra.mrb[0].mxu0 %v8688
    %v9846 = vpop.f32.mrb[0].mxu0
    %v9847 = vadd.f32 %v9686, %v9846
    %v9848 = vpop.f32.mrb[0].mxu0
    %v9849 = vpop.f32.mrb[0].mxu0
    %v9850 = vadd.f32 %v9689, %v9849
    %v9851 = vpop.f32.mrb[0].mxu0
    %9852 = vmatprep.mubr.bf16.mxu0 %v8697
    %9853 = vmatmul.mubr.bf16.gmra.mrb[0].mxu0 %v8696
    %v9854 = vpop.f32.mrb[0].mxu0
    %v9855 = vadd.f32 %v9694, %v9854
    %v9856 = vpop.f32.mrb[0].mxu0
    %v9857 = vpop.f32.mrb[0].mxu0
    %v9858 = vadd.f32 %v9697, %v9857
    %v9859 = vpop.f32.mrb[0].mxu0
    %9860 = vmatprep.mubr.bf16.mxu0 %v8705
    %9861 = vmatmul.mubr.bf16.gmra.mrb[0].mxu0 %v8704
    %v9862 = vpop.f32.mrb[0].mxu0
    %v9863 = vadd.f32 %v9702, %v9862
    %v9864 = vpop.f32.mrb[0].mxu0
    %v9865 = vpop.f32.mrb[0].mxu0
    %v9866 = vadd.f32 %v9705, %v9865
    %v9867 = vpop.f32.mrb[0].mxu0
    %9868 = vmatprep.mubr.bf16.mxu0 %v8713
    %9869 = vmatmul.mubr.bf16.gmra.mrb[0].mxu0 %v8712
    %v9870 = vpop.f32.mrb[0].mxu0
    %v9871 = vadd.f32 %v9710, %v9870
    %v9872 = vpop.f32.mrb[0].mxu0
    %v9873 = vpop.f32.mrb[0].mxu0
    %v9874 = vadd.f32 %v9713, %v9873
    %v9875 = vpop.f32.mrb[0].mxu0
    %9876 = vmatprep.mubr.bf16.mxu0 %v8721
    %9877 = vmatmul.mubr.bf16.gmra.mrb[0].mxu0 %v8720
    %v9878 = vpop.f32.mrb[0].mxu0
    %v9879 = vadd.f32 %v9718, %v9878
    %v9880 = vpop.f32.mrb[0].mxu0
    %v9881 = vpop.f32.mrb[0].mxu0
    %v9882 = vadd.f32 %v9721, %v9881
    %v9883 = vpop.f32.mrb[0].mxu0
    %9884 = vmatprep.mubr.bf16.mxu0 %v8729
    %9885 = vmatmul.mubr.bf16.gmra.mrb[0].mxu0 %v8728
    %v9886 = vpop.f32.mrb[0].mxu0
    %v9887 = vadd.f32 %v9726, %v9886
    %v9888 = vpop.f32.mrb[0].mxu0
    %v9889 = vpop.f32.mrb[0].mxu0
    %v9890 = vadd.f32 %v9729, %v9889
    %v9891 = vpop.f32.mrb[0].mxu0
    %9892 = vmatprep.mubr.bf16.mxu0 %v8737
    %9893 = vmatmul.mubr.bf16.gmra.mrb[0].mxu0 %v8736
    %v9894 = vpop.f32.mrb[0].mxu0
    %v9895 = vadd.f32 %v9734, %v9894
    %v9896 = vpop.f32.mrb[0].mxu0
    %v9897 = vpop.f32.mrb[0].mxu0
    %v9898 = vadd.f32 %v9737, %v9897
    %v9899 = vpop.f32.mrb[0].mxu0
    %9900 = vmatprep.mubr.bf16.mxu0 %v8745
    %9901 = vmatmul.mubr.bf16.gmra.mrb[0].mxu0 %v8744
    %v9902 = vpop.f32.mrb[0].mxu0
    %v9903 = vadd.f32 %v9742, %v9902
    %v9904 = vpop.f32.mrb[0].mxu0
    %v9905 = vpop.f32.mrb[0].mxu0
    %v9906 = vadd.f32 %v9745, %v9905
    %v9907 = vpop.f32.mrb[0].mxu0
    %9908 = vmatprep.mubr.bf16.mxu0 %v8753
    %9909 = vmatmul.mubr.bf16.gmra.mrb[0].mxu0 %v8752
    %v9910 = vpop.f32.mrb[0].mxu0
    %v9911 = vadd.f32 %v9750, %v9910
    %v9912 = vpop.f32.mrb[0].mxu0
    %v9913 = vpop.f32.mrb[0].mxu0
    %v9914 = vadd.f32 %v9753, %v9913
    %v9915 = vpop.f32.mrb[0].mxu0
    %9916 = vmatprep.mubr.bf16.mxu0 %v8761
    %9917 = vmatmul.mubr.bf16.gmra.mrb[0].mxu0 %v8760
    %v9918 = vpop.f32.mrb[0].mxu0
    %v9919 = vadd.f32 %v9758, %v9918
    %v9920 = vpop.f32.mrb[0].mxu0
    %v9921 = vpop.f32.mrb[0].mxu0
    %v9922 = vadd.f32 %v9761, %v9921
    %v9923 = vpop.f32.mrb[0].mxu0
    %9924 = vmatprep.mubr.bf16.mxu0 %v8769
    %9925 = vmatmul.mubr.bf16.gmra.mrb[0].mxu0 %v8768
    %v9926 = vpop.f32.mrb[0].mxu0
    %v9927 = vadd.f32 %v9766, %v9926
    %v9928 = vpop.f32.mrb[0].mxu0
    %v9929 = vpop.f32.mrb[0].mxu0
    %v9930 = vadd.f32 %v9769, %v9929
    %v9931 = vpop.f32.mrb[0].mxu0
    %9932 = vmatprep.mubr.bf16.mxu0 %v8777
    %9933 = vmatmul.mubr.bf16.gmra.mrb[0].mxu0 %v8776
    %v9934 = vpop.f32.mrb[0].mxu0
    %v9935 = vadd.f32 %v9774, %v9934
    %v9936 = vpop.f32.mrb[0].mxu0
    %v9937 = vpop.f32.mrb[0].mxu0
    %v9938 = vadd.f32 %v9777, %v9937
    %v9939 = vpop.f32.mrb[0].mxu0
    %9940 = vmatprep.mubr.bf16.mxu0 %v8785
    %9941 = vmatmul.mubr.bf16.gmra.mrb[0].mxu0 %v8784
    %v9942 = vpop.f32.mrb[0].mxu0
    %v9943 = vadd.f32 %v9782, %v9942
    %v9944 = vpop.f32.mrb[0].mxu0
    %v9945 = vpop.f32.mrb[0].mxu0
    %v9946 = vadd.f32 %v9785, %v9945
    %v9947 = vpop.f32.mrb[0].mxu0
    %9948 = vmatprep.mubr.bf16.mxu0 %v8793
    %9949 = vmatmul.mubr.bf16.gmra.mrb[0].mxu0 %v8792
    %v9950 = vpop.f32.mrb[0].mxu0
    %v9951 = vadd.f32 %v9790, %v9950
    %v9952 = vpop.f32.mrb[0].mxu0
    %v9953 = vpop.f32.mrb[0].mxu0
    %v9954 = vadd.f32 %v9793, %v9953
    %v9955 = vpop.f32.mrb[0].mxu0
    %9956 = vdwg.mxu0
    %9957 = vst [vmem:[%s9] sm:$0xff] %v9831
    %9958 = vst [vmem:[%s9 + $0x8] sm:$0xff] %v9834
    %9959 = vst [vmem:[%s9 + $0x10] sm:$0xff] %v9839
    %9960 = vst [vmem:[%s9 + $0x18] sm:$0xff] %v9842
    %9961 = vst [vmem:[%s9 + $0x20] sm:$0xff] %v9847
    %9962 = vst [vmem:[%s9 + $0x28] sm:$0xff] %v9850
    %9963 = vst [vmem:[%s9 + $0x30] sm:$0xff] %v9855
    %9964 = vst [vmem:[%s9 + $0x38] sm:$0xff] %v9858
    %9965 = vst [vmem:[%s9 + $0x40] sm:$0xff] %v9863
    %9966 = vst [vmem:[%s9 + $0x48] sm:$0xff] %v9866
    %9967 = vst [vmem:[%s9 + $0x50] sm:$0xff] %v9871
    %9968 = vst [vmem:[%s9 + $0x58] sm:$0xff] %v9874
    %9969 = vst [vmem:[%s9 + $0x60] sm:$0xff] %v9879
    %9970 = vst [vmem:[%s9 + $0x68] sm:$0xff] %v9882
    %9971 = vst [vmem:[%s9 + $0x70] sm:$0xff] %v9887
    %9972 = vst [vmem:[%s9 + $0x78] sm:$0xff] %v9890
    %9973 = vst [vmem:[%s9 + $0x80] sm:$0xff] %v9895
    %9974 = vst [vmem:[%s9 + $0x88] sm:$0xff] %v9898
    %9975 = vst [vmem:[%s9 + $0x90] sm:$0xff] %v9903
    %9976 = vst [vmem:[%s9 + $0x98] sm:$0xff] %v9906
    %9977 = vst [vmem:[%s9 + $0xa0] sm:$0xff] %v9911
    %9978 = vst [vmem:[%s9 + $0xa8] sm:$0xff] %v9914
    %9979 = vst [vmem:[%s9 + $0xb0] sm:$0xff] %v9919
    %9980 = vst [vmem:[%s9 + $0xb8] sm:$0xff] %v9922
    %9981 = vst [vmem:[%s9 + $0xc0] sm:$0xff] %v9927
    %9982 = vst [vmem:[%s9 + $0xc8] sm:$0xff] %v9930
    %9983 = vst [vmem:[%s9 + $0xd0] sm:$0xff] %v9935
    %9984 = vst [vmem:[%s9 + $0xd8] sm:$0xff] %v9938
    %9985 = vst [vmem:[%s9 + $0xe0] sm:$0xff] %v9943
    %9986 = vst [vmem:[%s9 + $0xe8] sm:$0xff] %v9946
    %9987 = vst [vmem:[%s9 + $0xf0] sm:$0xff] %v9951
    %9988 = vst [vmem:[%s9 + $0xf8] sm:$0xff] %v9954
    // Predicated region
    $region66: #{forward.1} parent=1 // pred_check
      _
    $region67: #{forward.1} parent=1 // pred_check_branch
      %9990 = sbr.rel (0) target = $region69
    $region68: #{forward.1} parent=1 // pred_region
      _
    $region69: #{forward.1} parent=1 // pred_fallthru
      _
    // Predicated region
    $region70: #{forward.1} parent=1 // pred_check
      _
    $region71: #{forward.1} parent=1 // pred_check_branch
      %9992 = sbr.rel (0) target = $region73
    $region72: #{forward.1} parent=1 // pred_region
      _
    $region73: #{forward.1} parent=1 // pred_fallthru
      _
    %9993 = vsyncpa [#allocation3], 1
    %9994 = vsyncpa [#allocation5], 1
    %9995 = vsyncpa [#allocation8], 1
    %9996 = vsyncpa [#allocation11], 1

</llo_original>
